<compile_context>
chip_gen: v5e
topology: v5e:2x2
jax: 0.10.0
libtpu: 0.0.40
codegen_flags: <defaults>
</compile_context>

<pallas_src>
import functools

import jax
import jax.numpy as jnp
from jax import lax
from jax.experimental import pallas as pl
from jax.experimental.pallas import tpu as pltpu


# ---------------------------------------------------------------------------
# Helpers
# ---------------------------------------------------------------------------
def _pick_tile(n, preferred=(512, 1024, 256, 128, 64)):
    """Pick a spatial tile size that divides n (full extent as fallback)."""
    for t in preferred:
        if t <= n and n % t == 0:
            return t
    # largest divisor of n that is a multiple of 8 and <= 1024 (VMEM-safe)
    for t in range(min(n, 1024), 7, -1):
        if n % t == 0 and t % 8 == 0:
            return t
    # TODO(synk): add masked tail tiles for awkwardly-factored H*W instead of
    # falling back to the full extent (can blow VMEM for very large N).
    return n


# ---------------------------------------------------------------------------
# Fused kernel: gated QKV projection + flash attention + gamma * out + x.
# grid = (B, num_q_tiles, num_k_tiles); the k-tile axis is the reduction axis.
# ---------------------------------------------------------------------------
def ssfm_flash_kernel(xq_ref, gq_ref, xk_ref, gk_ref,
                      wq_ref, bq_ref, wk_ref, bk_ref, wv_ref, bv_ref,
                      gamma_ref,
                      o_ref,
                      q_sc, m_sc, acc_sc, *, c):
    ki = pl.program_id(2)

    @pl.when(ki == 0)
    def _():
        # Project the query tile once per (b, qi): (x @ Wq + bq) * (1 + sigmoid(g)).
        gate_q = 1.0 + jax.nn.sigmoid(gq_ref[0])                       # (TQ, 1) f32
        q = (jnp.dot(xq_ref[0], wq_ref[...],
                     preferred_element_type=jnp.float32) + bq_ref[...]) * gate_q
        q_sc[...] = q.astype(q_sc.dtype)                               # (TQ, Cq) bf16
        m_sc[...] = jnp.full(m_sc.shape, -jnp.inf, dtype=m_sc.dtype)
        acc_sc[...] = jnp.zeros(acc_sc.shape, dtype=acc_sc.dtype)

    # Gated k / v projections for the current key tile, recomputed per ki
    # directly from the raw bf16 x tile (the MXU is otherwise nearly idle, so
    # the extra TK x C x (Cq + C) MACs are free vs. a q/k/v HBM round trip).
    gate_k = 1.0 + jax.nn.sigmoid(gk_ref[0].astype(jnp.float32))       # (TK, 1) f32
    xk = xk_ref[0]                                                     # (TK, C) bf16
    k = (jnp.dot(xk, wk_ref[...],
                 preferred_element_type=jnp.float32) + bk_ref[...]) * gate_k
    v = (jnp.dot(xk, wv_ref[...],
                 preferred_element_type=jnp.float32) + bv_ref[...]) * gate_k
    # Augment v with a ones lane so the softmax denominator comes out of the
    # PV matmul (lane c of the accumulator) instead of an extra XLU reduction.
    v_aug = jnp.concatenate(
        [v, jnp.ones((v.shape[0], 1), dtype=v.dtype)], axis=-1)        # (TK, C+1)

    # Scores: bf16 MXU operands, f32 accumulation, contract the small channel
    # dim so no explicit transpose of k is materialized.
    s = lax.dot_general(q_sc[...], k.astype(q_sc.dtype),
                        dimension_numbers=(((1,), (1,)), ((), ())),
                        preferred_element_type=jnp.float32)            # (TQ, TK)

    m_prev = m_sc[...]                                                 # (TQ, 1)
    m_new = jnp.maximum(m_prev, jnp.max(s, axis=-1, keepdims=True))
    alpha = jnp.exp(m_prev - m_new)                                    # rescale factor
    p = jnp.exp(s - m_new)                                             # f32 (v5e-safe)
    acc_sc[...] = alpha * acc_sc[...] + jnp.dot(
        p.astype(jnp.bfloat16), v_aug.astype(jnp.bfloat16),
        preferred_element_type=jnp.float32)                            # (TQ, C+1)
    m_sc[...] = m_new

    @pl.when(ki == pl.num_programs(2) - 1)
    def _():
        gamma = gamma_ref[0, 0]
        acc = acc_sc[...]                                              # (TQ, C+1)
        # lane c holds the running softmax denominator (rescaled with alpha
        # like the rest of the accumulator).
        inv_l = pl.reciprocal(acc[:, c:c + 1], approx=True)            # (TQ, 1)
        o_ref[0] = (gamma * (acc[:, :c] * inv_l) + xq_ref[0]).astype(o_ref.dtype)


# ---------------------------------------------------------------------------
# Glue: bilinear resize with align_corners=True (matches F.interpolate).
# ---------------------------------------------------------------------------
def bilinear_resize_align_corners(img, out_h, out_w):
    # img: (B, 1, h0, w0) -> (B, 1, out_h, out_w)
    _, _, h0, w0 = img.shape
    ys = jnp.linspace(0.0, float(h0 - 1), out_h) if out_h > 1 else jnp.zeros((out_h,))
    xs = jnp.linspace(0.0, float(w0 - 1), out_w) if out_w > 1 else jnp.zeros((out_w,))
    y0 = jnp.floor(ys).astype(jnp.int32)
    x0 = jnp.floor(xs).astype(jnp.int32)
    y1 = jnp.minimum(y0 + 1, h0 - 1)
    x1 = jnp.minimum(x0 + 1, w0 - 1)
    wy = (ys - y0.astype(ys.dtype))[None, None, :, None]
    wx = (xs - x0.astype(xs.dtype))[None, None, None, :]

    g_y0 = img[:, :, y0, :]
    g_y1 = img[:, :, y1, :]

    def interp_x(a):
        return a[:, :, :, x0] * (1.0 - wx) + a[:, :, :, x1] * wx

    top = interp_x(g_y0)
    bot = interp_x(g_y1)
    return top * (1.0 - wy) + bot * wy


# ---------------------------------------------------------------------------
# Wrapper: NCHW in / NCHW out, one fused Pallas kernel on the hot path.
# ---------------------------------------------------------------------------
@jax.jit
def ssfm_forward(x, guiding_map0, wq, bq, wk, bk, wv, bv, gamma):
    B, C, H, W = x.shape
    Cq = wq.shape[1]
    N = H * W

    TQ = _pick_tile(N)
    # Keep at least 2 "parallel" grid points so the second v7x TensorCore works.
    if B * (N // TQ) < 2 and TQ % 2 == 0 and (TQ // 2) % 8 == 0:
        TQ = TQ // 2
    TK = _pick_tile(N)

    # ---- JAX glue: guiding-map resize + layout changes ----
    g_resized = bilinear_resize_align_corners(
        guiding_map0.astype(jnp.float32), H, W)                   # (B, 1, H, W)
    g_flat = g_resized.reshape(B, 1, N).transpose(0, 2, 1)        # (B, N, 1)

    x_flat = x.transpose(0, 2, 3, 1).reshape(B, N, C).astype(jnp.float32)
    x_bf = x_flat.astype(jnp.bfloat16)                            # k/v stream (re-read N/TQ times)

    gamma_smem = jnp.reshape(gamma.astype(jnp.float32), (1, 1))

    out = pl.pallas_call(
        functools.partial(ssfm_flash_kernel, c=C),
        out_shape=jax.ShapeDtypeStruct((B, N, C), jnp.float32),
        grid_spec=pltpu.PrefetchScalarGridSpec(
            num_scalar_prefetch=0,
            grid=(B, N // TQ, N // TK),
            in_specs=[
                pl.BlockSpec((1, TQ, C), lambda b, qi, ki: (b, qi, 0)),   # x q-tile (f32, residual)
                pl.BlockSpec((1, TQ, 1), lambda b, qi, ki: (b, qi, 0)),   # guide q-tile
                pl.BlockSpec((1, TK, C), lambda b, qi, ki: (b, ki, 0)),   # x k-tile (bf16)
                pl.BlockSpec((1, TK, 1), lambda b, qi, ki: (b, ki, 0)),   # guide k-tile
                pl.BlockSpec((C, Cq), lambda b, qi, ki: (0, 0)),          # Wq (f32)
                pl.BlockSpec((1, Cq), lambda b, qi, ki: (0, 0)),          # bq
                pl.BlockSpec((C, Cq), lambda b, qi, ki: (0, 0)),          # Wk (bf16)
                pl.BlockSpec((1, Cq), lambda b, qi, ki: (0, 0)),          # bk
                pl.BlockSpec((C, C), lambda b, qi, ki: (0, 0)),           # Wv (bf16)
                pl.BlockSpec((1, C), lambda b, qi, ki: (0, 0)),           # bv
                pl.BlockSpec(memory_space=pltpu.MemorySpace.SMEM),        # gamma
            ],
            out_specs=pl.BlockSpec((1, TQ, C), lambda b, qi, ki: (b, qi, 0)),
            scratch_shapes=[
                pltpu.VMEM((TQ, Cq), jnp.bfloat16),     # projected q tile
                pltpu.VMEM((TQ, 1), jnp.float32),       # running max
                pltpu.VMEM((TQ, C + 1), jnp.float32),   # acc (lane C = running sum)
            ]),
        compiler_params=pltpu.CompilerParams(
            dimension_semantics=("parallel", "parallel", "arbitrary"),
            vmem_limit_bytes=32 * 1024 * 1024),
    )(x_flat, g_flat, x_bf, g_flat,
      wq.astype(jnp.float32), bq.astype(jnp.float32),
      wk.astype(jnp.bfloat16), bk.astype(jnp.float32),
      wv.astype(jnp.bfloat16), bv.astype(jnp.float32),
      gamma_smem)

    # back to NCHW
    return out.reshape(B, H, W, C).transpose(0, 3, 1, 2)


# ---------------------------------------------------------------------------
# Pure-JAX f32 reference mirroring the PyTorch forward (correctness check).
# ---------------------------------------------------------------------------
def ssfm_reference(x, guiding_map0, wq, bq, wk, bk, wv, bv, gamma):
    B, C, H, W = x.shape
    N = H * W
    g = jax.nn.sigmoid(bilinear_resize_align_corners(guiding_map0, H, W))

    def conv1x1(inp, w_t, b):  # w_t: (Cin, Cout)
        return jnp.einsum('bchw,co->bohw', inp, w_t) + b.reshape(1, -1, 1, 1)

    q = conv1x1(x, wq, bq[0]) * (1.0 + g)
    k = conv1x1(x, wk, bk[0]) * (1.0 + g)
    v = conv1x1(x, wv, bv[0]) * (1.0 + g)

    proj_q = q.reshape(B, -1, N).transpose(0, 2, 1)      # (B, N, Cq)
    proj_k = k.reshape(B, -1, N)                         # (B, Cq, N)
    energy = jnp.einsum('bnc,bcm->bnm', proj_q, proj_k)  # (B, N, N)
    attn = jax.nn.softmax(energy, axis=-1)
    proj_v = v.reshape(B, C, N)                          # (B, C, N)
    out = jnp.einsum('bcn,bmn->bcm', proj_v, attn)       # (B, C, N)
    out = out.reshape(B, C, H, W)
    return gamma * out + x


if __name__ == "__main__":
    key = jax.random.PRNGKey(0)
    B, C, H, W = 2, 32, 16, 32          # in_dim = 32 -> C//8 = 4 ; N = 512
    Cq = C // 8
    gh, gw = 8, 16                       # guiding map at lower resolution

    ks = jax.random.split(key, 8)
    x = jax.random.normal(ks[0], (B, C, H, W), dtype=jnp.float32)
    guiding_map0 = jax.random.normal(ks[1], (B, 1, gh, gw), dtype=jnp.float32)

    # Conv2d 1x1 weights stored transposed as (Cin, Cout) for the kernel.
    wq = 0.1 * jax.random.normal(ks[2], (C, Cq), dtype=jnp.float32)
    bq = 0.1 * jax.random.normal(ks[3], (1, Cq), dtype=jnp.float32)
    wk = 0.1 * jax.random.normal(ks[4], (C, Cq), dtype=jnp.float32)
    bk = 0.1 * jax.random.normal(ks[5], (1, Cq), dtype=jnp.float32)
    wv = 0.1 * jax.random.normal(ks[6], (C, C), dtype=jnp.float32)
    bv = 0.1 * jax.random.normal(ks[7], (1, C), dtype=jnp.float32)
    # nn.Parameter(torch.zeros(1)); nonzero here so the attention path is tested.
    gamma = jnp.array([0.5], dtype=jnp.float32)

    out = ssfm_forward(x, guiding_map0, wq, bq, wk, bk, wv, bv, gamma)
    out = jax.block_until_ready(out)

    ref = ssfm_reference(x, guiding_map0, wq, bq, wk, bk, wv, bv, gamma)
    assert out.shape == (B, C, H, W)
    # bf16 MXU operands (f32 accumulation) + approx reciprocal => looser tolerance
    # than a pure-f32 comparison.
    assert jnp.allclose(out, ref, atol=5e-2, rtol=5e-2), float(jnp.max(jnp.abs(out - ref)))

    print("KERNEL_OK")
</pallas_src>

<mosaic_0001>
module attributes {stable_mosaic.version = 11 : i64} {
  func.func @ssfm_flash_kernel(%arg0: i32, %arg1: i32, %arg2: i32, %arg3: memref<1x512x32xf32, #tpu.memory_space<vmem>>, %arg4: memref<1x512x1xf32, #tpu.memory_space<vmem>>, %arg5: memref<1x512x32xbf16, #tpu.memory_space<vmem>>, %arg6: memref<1x512x1xf32, #tpu.memory_space<vmem>>, %arg7: memref<32x4xf32, #tpu.memory_space<vmem>>, %arg8: memref<1x4xf32, #tpu.memory_space<vmem>>, %arg9: memref<32x4xbf16, #tpu.memory_space<vmem>>, %arg10: memref<1x4xf32, #tpu.memory_space<vmem>>, %arg11: memref<32x32xbf16, #tpu.memory_space<vmem>>, %arg12: memref<1x32xf32, #tpu.memory_space<vmem>>, %arg13: memref<1x1xf32, #tpu.memory_space<smem>>, %arg14: memref<1x512x32xf32, #tpu.memory_space<vmem>>, %arg15: memref<512x4xbf16, #tpu.memory_space<vmem>>, %arg16: memref<512x1xf32, #tpu.memory_space<vmem>>, %arg17: memref<512x33xf32, #tpu.memory_space<vmem>>) attributes {dimension_semantics = [#tpu.dimension_semantics<parallel>, #tpu.dimension_semantics<parallel>, #tpu.dimension_semantics<arbitrary>], iteration_bounds = array<i64: 2, 1, 1>, scalar_prefetch = 0 : i64, scratch_operands = 3 : i64, tpu.core_type = #tpu.core_type<tc>, window_params = [{transform_indices = @transform_0, window_bounds = array<i64: 1, 512, 32>}, {transform_indices = @transform_1, window_bounds = array<i64: 1, 512, 1>}, {transform_indices = @transform_2, window_bounds = array<i64: 1, 512, 32>}, {transform_indices = @transform_3, window_bounds = array<i64: 1, 512, 1>}, {pipeline_mode = #tpu.pipeline_mode<synchronous>, transform_indices = @transform_4, window_bounds = array<i64: 32, 4>}, {pipeline_mode = #tpu.pipeline_mode<synchronous>, transform_indices = @transform_5, window_bounds = array<i64: 1, 4>}, {pipeline_mode = #tpu.pipeline_mode<synchronous>, transform_indices = @transform_6, window_bounds = array<i64: 32, 4>}, {pipeline_mode = #tpu.pipeline_mode<synchronous>, transform_indices = @transform_7, window_bounds = array<i64: 1, 4>}, {pipeline_mode = #tpu.pipeline_mode<synchronous>, transform_indices = @transform_8, window_bounds = array<i64: 32, 32>}, {pipeline_mode = #tpu.pipeline_mode<synchronous>, transform_indices = @transform_9, window_bounds = array<i64: 1, 32>}, {transform_indices = @transform_10, window_bounds = array<i64: 1, 1>}, {transform_indices = @transform_11, window_bounds = array<i64: 1, 512, 32>}]} {
    %c0_i32 = arith.constant 0 : i32
    %0 = arith.cmpi eq, %arg2, %c0_i32 : i32
    %1 = arith.extui %0 : i1 to i32
    %c0_i32_0 = arith.constant 0 : i32
    %2 = arith.cmpi ne, %1, %c0_i32_0 : i32
    scf.if %2 {
      %c0_33 = arith.constant 0 : index
      %c0_34 = arith.constant 0 : index
      %c0_35 = arith.constant 0 : index
      %54 = vector.load %arg4[%c0_33, %c0_34, %c0_35] : memref<1x512x1xf32, #tpu.memory_space<vmem>>, vector<1x512x1xf32>
      %55 = vector.shape_cast %54 : vector<1x512x1xf32> to vector<512x1xf32>
      %56 = arith.negf %55 : vector<512x1xf32>
      %57 = math.exp %56 : vector<512x1xf32>
      %cst_36 = arith.constant 1.000000e+00 : f32
      %58 = vector.broadcast %cst_36 : f32 to vector<512x1xf32>
      %59 = arith.addf %58, %57 : vector<512x1xf32>
      %60 = arith.divf %58, %59 : vector<512x1xf32>
      %cst_37 = arith.constant 1.000000e+00 : f32
      %61 = vector.broadcast %cst_37 : f32 to vector<512x1xf32>
      %62 = arith.addf %61, %60 : vector<512x1xf32>
      %c0_38 = arith.constant 0 : index
      %c0_39 = arith.constant 0 : index
      %c0_40 = arith.constant 0 : index
      %63 = vector.load %arg3[%c0_38, %c0_39, %c0_40] : memref<1x512x32xf32, #tpu.memory_space<vmem>>, vector<1x512x32xf32>
      %64 = vector.shape_cast %63 : vector<1x512x32xf32> to vector<512x32xf32>
      %c0_41 = arith.constant 0 : index
      %c0_42 = arith.constant 0 : index
      %65 = vector.load %arg7[%c0_41, %c0_42] : memref<32x4xf32, #tpu.memory_space<vmem>>, vector<32x4xf32>
      %cst_43 = arith.constant dense<0.000000e+00> : vector<512x4xf32>
      %66 = tpu.matmul %64, %65, %cst_43 {dimension_numbers = #tpu.dot_dimension_numbers<[1], [0], [0], [1], [0, 0, 1, 1], [], []>} : vector<512x32xf32>, vector<32x4xf32>, vector<512x4xf32> -> vector<512x4xf32>
      %c0_44 = arith.constant 0 : index
      %c0_45 = arith.constant 0 : index
      %67 = vector.load %arg8[%c0_44, %c0_45] : memref<1x4xf32, #tpu.memory_space<vmem>>, vector<1x4xf32>
      %68 = vector.broadcast %67 : vector<1x4xf32> to vector<512x4xf32>
      %69 = arith.addf %66, %68 : vector<512x4xf32>
      %70 = vector.broadcast %62 : vector<512x1xf32> to vector<512x4xf32>
      %71 = arith.mulf %69, %70 : vector<512x4xf32>
      %72 = arith.truncf %71 : vector<512x4xf32> to vector<512x4xbf16>
      %c0_46 = arith.constant 0 : index
      %c0_47 = arith.constant 0 : index
      %73 = vector.load %arg15[%c0_46, %c0_47] : memref<512x4xbf16, #tpu.memory_space<vmem>>, vector<512x4xbf16>
      tpu.vector_store %arg15[%c0_46, %c0_47], %72 {strides = array<i32>} : memref<512x4xbf16, #tpu.memory_space<vmem>>, vector<512x4xbf16>,
      %cst_48 = arith.constant 0xFF800000 : f32
      %74 = vector.broadcast %cst_48 : f32 to vector<512x1xf32>
      %c0_49 = arith.constant 0 : index
      %c0_50 = arith.constant 0 : index
      %75 = vector.load %arg16[%c0_49, %c0_50] : memref<512x1xf32, #tpu.memory_space<vmem>>, vector<512x1xf32>
      tpu.vector_store %arg16[%c0_49, %c0_50], %74 {strides = array<i32>} : memref<512x1xf32, #tpu.memory_space<vmem>>, vector<512x1xf32>,
      %cst_51 = arith.constant 0.000000e+00 : f32
      %76 = vector.broadcast %cst_51 : f32 to vector<512x33xf32>
      %c0_52 = arith.constant 0 : index
      %c0_53 = arith.constant 0 : index
      %77 = vector.load %arg17[%c0_52, %c0_53] : memref<512x33xf32, #tpu.memory_space<vmem>>, vector<512x33xf32>
      tpu.vector_store %arg17[%c0_52, %c0_53], %76 {strides = array<i32>} : memref<512x33xf32, #tpu.memory_space<vmem>>, vector<512x33xf32>,
    } else {
    }
    %c0 = arith.constant 0 : index
    %c0_1 = arith.constant 0 : index
    %c0_2 = arith.constant 0 : index
    %3 = vector.load %arg6[%c0, %c0_1, %c0_2] : memref<1x512x1xf32, #tpu.memory_space<vmem>>, vector<1x512x1xf32>
    %4 = vector.shape_cast %3 : vector<1x512x1xf32> to vector<512x1xf32>
    %5 = arith.negf %4 : vector<512x1xf32>
    %6 = math.exp %5 : vector<512x1xf32>
    %cst = arith.constant 1.000000e+00 : f32
    %7 = vector.broadcast %cst : f32 to vector<512x1xf32>
    %8 = arith.addf %7, %6 : vector<512x1xf32>
    %9 = arith.divf %7, %8 : vector<512x1xf32>
    %cst_3 = arith.constant 1.000000e+00 : f32
    %10 = vector.broadcast %cst_3 : f32 to vector<512x1xf32>
    %11 = arith.addf %10, %9 : vector<512x1xf32>
    %c0_4 = arith.constant 0 : index
    %c0_5 = arith.constant 0 : index
    %c0_6 = arith.constant 0 : index
    %12 = vector.load %arg5[%c0_4, %c0_5, %c0_6] : memref<1x512x32xbf16, #tpu.memory_space<vmem>>, vector<1x512x32xbf16>
    %13 = vector.shape_cast %12 : vector<1x512x32xbf16> to vector<512x32xbf16>
    %c0_7 = arith.constant 0 : index
    %c0_8 = arith.constant 0 : index
    %14 = vector.load %arg9[%c0_7, %c0_8] : memref<32x4xbf16, #tpu.memory_space<vmem>>, vector<32x4xbf16>
    %cst_9 = arith.constant dense<0.000000e+00> : vector<512x4xf32>
    %15 = tpu.matmul %13, %14, %cst_9 {dimension_numbers = #tpu.dot_dimension_numbers<[1], [0], [0], [1], [0, 0, 1, 1], [], []>} : vector<512x32xbf16>, vector<32x4xbf16>, vector<512x4xf32> -> vector<512x4xf32>
    %c0_10 = arith.constant 0 : index
    %c0_11 = arith.constant 0 : index
    %16 = vector.load %arg10[%c0_10, %c0_11] : memref<1x4xf32, #tpu.memory_space<vmem>>, vector<1x4xf32>
    %17 = vector.broadcast %16 : vector<1x4xf32> to vector<512x4xf32>
    %18 = arith.addf %15, %17 : vector<512x4xf32>
    %19 = vector.broadcast %11 : vector<512x1xf32> to vector<512x4xf32>
    %20 = arith.mulf %18, %19 : vector<512x4xf32>
    %c0_12 = arith.constant 0 : index
    %c0_13 = arith.constant 0 : index
    %21 = vector.load %arg11[%c0_12, %c0_13] : memref<32x32xbf16, #tpu.memory_space<vmem>>, vector<32x32xbf16>
    %cst_14 = arith.constant dense<0.000000e+00> : vector<512x32xf32>
    %22 = tpu.matmul %13, %21, %cst_14 {dimension_numbers = #tpu.dot_dimension_numbers<[1], [0], [0], [1], [0, 0, 1, 1], [], []>} : vector<512x32xbf16>, vector<32x32xbf16>, vector<512x32xf32> -> vector<512x32xf32>
    %c0_15 = arith.constant 0 : index
    %c0_16 = arith.constant 0 : index
    %23 = vector.load %arg12[%c0_15, %c0_16] : memref<1x32xf32, #tpu.memory_space<vmem>>, vector<1x32xf32>
    %24 = vector.broadcast %23 : vector<1x32xf32> to vector<512x32xf32>
    %25 = arith.addf %22, %24 : vector<512x32xf32>
    %26 = vector.broadcast %11 : vector<512x1xf32> to vector<512x32xf32>
    %27 = arith.mulf %25, %26 : vector<512x32xf32>
    %cst_17 = arith.constant 1.000000e+00 : f32
    %28 = vector.broadcast %cst_17 : f32 to vector<512x1xf32>
    %29 = tpu.concatenate %27, %28 in 1 : vector<512x32xf32>, vector<512x1xf32> -> vector<512x33xf32>
    %c0_18 = arith.constant 0 : index
    %c0_19 = arith.constant 0 : index
    %30 = vector.load %arg15[%c0_18, %c0_19] : memref<512x4xbf16, #tpu.memory_space<vmem>>, vector<512x4xbf16>
    %31 = arith.truncf %20 : vector<512x4xf32> to vector<512x4xbf16>
    %cst_20 = arith.constant dense<0.000000e+00> : vector<512x512xf32>
    %32 = tpu.matmul %30, %31, %cst_20 {dimension_numbers = #tpu.dot_dimension_numbers<[1], [1], [0], [0], [0, 0, 1, 0], [], []>} : vector<512x4xbf16>, vector<512x4xbf16>, vector<512x512xf32> -> vector<512x512xf32>
    %c0_21 = arith.constant 0 : index
    %c0_22 = arith.constant 0 : index
    %33 = vector.load %arg16[%c0_21, %c0_22] : memref<512x1xf32, #tpu.memory_space<vmem>>, vector<512x1xf32>
    %cst_23 = arith.constant dense<0xFF800000> : vector<512xf32>
    %34 = vector.multi_reduction <maximumf>, %32, %cst_23 [1] : vector<512x512xf32> to vector<512xf32>
    %35 = vector.shape_cast %34 : vector<512xf32> to vector<512x1xf32>
    %36 = arith.maximumf %33, %35 : vector<512x1xf32>
    %37 = arith.subf %33, %36 : vector<512x1xf32>
    %38 = math.exp %37 : vector<512x1xf32>
    %39 = vector.broadcast %36 : vector<512x1xf32> to vector<512x512xf32>
    %40 = arith.subf %32, %39 : vector<512x512xf32>
    %41 = math.exp %40 : vector<512x512xf32>
    %c0_24 = arith.constant 0 : index
    %c0_25 = arith.constant 0 : index
    %42 = vector.load %arg17[%c0_24, %c0_25] : memref<512x33xf32, #tpu.memory_space<vmem>>, vector<512x33xf32>
    %43 = vector.broadcast %38 : vector<512x1xf32> to vector<512x33xf32>
    %44 = arith.mulf %43, %42 : vector<512x33xf32>
    %45 = arith.truncf %41 : vector<512x512xf32> to vector<512x512xbf16>
    %46 = arith.truncf %29 : vector<512x33xf32> to vector<512x33xbf16>
    %cst_26 = arith.constant dense<0.000000e+00> : vector<512x33xf32>
    %47 = tpu.matmul %45, %46, %cst_26 {dimension_numbers = #tpu.dot_dimension_numbers<[1], [0], [0], [1], [0, 0, 1, 1], [], []>} : vector<512x512xbf16>, vector<512x33xbf16>, vector<512x33xf32> -> vector<512x33xf32>
    %48 = arith.addf %44, %47 : vector<512x33xf32>
    %c0_27 = arith.constant 0 : index
    %c0_28 = arith.constant 0 : index
    %49 = vector.load %arg17[%c0_27, %c0_28] : memref<512x33xf32, #tpu.memory_space<vmem>>, vector<512x33xf32>
    tpu.vector_store %arg17[%c0_27, %c0_28], %48 {strides = array<i32>} : memref<512x33xf32, #tpu.memory_space<vmem>>, vector<512x33xf32>,
    %c0_29 = arith.constant 0 : index
    %c0_30 = arith.constant 0 : index
    %50 = vector.load %arg16[%c0_29, %c0_30] : memref<512x1xf32, #tpu.memory_space<vmem>>, vector<512x1xf32>
    tpu.vector_store %arg16[%c0_29, %c0_30], %36 {strides = array<i32>} : memref<512x1xf32, #tpu.memory_space<vmem>>, vector<512x1xf32>,
    %c0_i32_31 = arith.constant 0 : i32
    %51 = arith.cmpi eq, %arg2, %c0_i32_31 : i32
    %52 = arith.extui %51 : i1 to i32
    %c0_i32_32 = arith.constant 0 : i32
    %53 = arith.cmpi ne, %52, %c0_i32_32 : i32
    scf.if %53 {
      %c0_33 = arith.constant 0 : index
      %c0_34 = arith.constant 0 : index
      %54 = memref.load %arg13[%c0_33, %c0_34] : memref<1x1xf32, #tpu.memory_space<smem>>
      %c0_35 = arith.constant 0 : index
      %c0_36 = arith.constant 0 : index
      %55 = vector.load %arg17[%c0_35, %c0_36] : memref<512x33xf32, #tpu.memory_space<vmem>>, vector<512x33xf32>
      %56 = vector.extract_strided_slice %55 {offsets = [0, 32], sizes = [512, 1], strides = [1, 1]} : vector<512x33xf32> to vector<512x1xf32>
      %57 = tpu.reciprocal %56 {approx = true} : vector<512x1xf32> -> vector<512x1xf32>
      %58 = vector.extract_strided_slice %55 {offsets = [0, 0], sizes = [512, 32], strides = [1, 1]} : vector<512x33xf32> to vector<512x32xf32>
      %59 = vector.broadcast %57 : vector<512x1xf32> to vector<512x32xf32>
      %60 = arith.mulf %58, %59 : vector<512x32xf32>
      %61 = vector.broadcast %54 : f32 to vector<512x32xf32>
      %62 = arith.mulf %61, %60 : vector<512x32xf32>
      %c0_37 = arith.constant 0 : index
      %c0_38 = arith.constant 0 : index
      %c0_39 = arith.constant 0 : index
      %63 = vector.load %arg3[%c0_37, %c0_38, %c0_39] : memref<1x512x32xf32, #tpu.memory_space<vmem>>, vector<1x512x32xf32>
      %64 = vector.shape_cast %63 : vector<1x512x32xf32> to vector<512x32xf32>
      %65 = arith.addf %62, %64 : vector<512x32xf32>
      %c0_40 = arith.constant 0 : index
      %c0_41 = arith.constant 0 : index
      %c0_42 = arith.constant 0 : index
      %66 = vector.load %arg14[%c0_40, %c0_41, %c0_42] : memref<1x512x32xf32, #tpu.memory_space<vmem>>, vector<1x512x32xf32>
      %67 = vector.shape_cast %66 : vector<1x512x32xf32> to vector<512x32xf32>
      %68 = vector.shape_cast %65 : vector<512x32xf32> to vector<1x512x32xf32>
      tpu.vector_store %arg14[%c0_40, %c0_41, %c0_42], %68 {strides = array<i32>} : memref<1x512x32xf32, #tpu.memory_space<vmem>>, vector<1x512x32xf32>,
    } else {
    }
    return
  }
  func.func @transform_0(%arg0: i32, %arg1: i32, %arg2: i32) -> (i32, i32, i32) {
    %c0_i32 = arith.constant 0 : i32
    %c0_i32_0 = arith.constant 0 : i32
    return %arg0, %arg1, %c0_i32 : i32, i32, i32
  }
  func.func @transform_1(%arg0: i32, %arg1: i32, %arg2: i32) -> (i32, i32, i32) {
    %c0_i32 = arith.constant 0 : i32
    %c0_i32_0 = arith.constant 0 : i32
    return %arg0, %arg1, %c0_i32 : i32, i32, i32
  }
  func.func @transform_2(%arg0: i32, %arg1: i32, %arg2: i32) -> (i32, i32, i32) {
    %c0_i32 = arith.constant 0 : i32
    %c0_i32_0 = arith.constant 0 : i32
    return %arg0, %arg2, %c0_i32 : i32, i32, i32
  }
  func.func @transform_3(%arg0: i32, %arg1: i32, %arg2: i32) -> (i32, i32, i32) {
    %c0_i32 = arith.constant 0 : i32
    %c0_i32_0 = arith.constant 0 : i32
    return %arg0, %arg2, %c0_i32 : i32, i32, i32
  }
  func.func @transform_4(%arg0: i32, %arg1: i32, %arg2: i32) -> (i32, i32) {
    %c0_i32 = arith.constant 0 : i32
    %c0_i32_0 = arith.constant 0 : i32
    %c0_i32_1 = arith.constant 0 : i32
    return %c0_i32, %c0_i32_0 : i32, i32
  }
  func.func @transform_5(%arg0: i32, %arg1: i32, %arg2: i32) -> (i32, i32) {
    %c0_i32 = arith.constant 0 : i32
    %c0_i32_0 = arith.constant 0 : i32
    %c0_i32_1 = arith.constant 0 : i32
    return %c0_i32, %c0_i32_0 : i32, i32
  }
  func.func @transform_6(%arg0: i32, %arg1: i32, %arg2: i32) -> (i32, i32) {
    %c0_i32 = arith.constant 0 : i32
    %c0_i32_0 = arith.constant 0 : i32
    %c0_i32_1 = arith.constant 0 : i32
    return %c0_i32, %c0_i32_0 : i32, i32
  }
  func.func @transform_7(%arg0: i32, %arg1: i32, %arg2: i32) -> (i32, i32) {
    %c0_i32 = arith.constant 0 : i32
    %c0_i32_0 = arith.constant 0 : i32
    %c0_i32_1 = arith.constant 0 : i32
    return %c0_i32, %c0_i32_0 : i32, i32
  }
  func.func @transform_8(%arg0: i32, %arg1: i32, %arg2: i32) -> (i32, i32) {
    %c0_i32 = arith.constant 0 : i32
    %c0_i32_0 = arith.constant 0 : i32
    %c0_i32_1 = arith.constant 0 : i32
    return %c0_i32, %c0_i32_0 : i32, i32
  }
  func.func @transform_9(%arg0: i32, %arg1: i32, %arg2: i32) -> (i32, i32) {
    %c0_i32 = arith.constant 0 : i32
    %c0_i32_0 = arith.constant 0 : i32
    %c0_i32_1 = arith.constant 0 : i32
    return %c0_i32, %c0_i32_0 : i32, i32
  }
  func.func @transform_10(%arg0: i32, %arg1: i32, %arg2: i32) -> (i32, i32) {
    %c0_i32 = arith.constant 0 : i32
    %c0_i32_0 = arith.constant 0 : i32
    %c0_i32_1 = arith.constant 0 : i32
    return %c0_i32, %c0_i32_0 : i32, i32
  }
  func.func @transform_11(%arg0: i32, %arg1: i32, %arg2: i32) -> (i32, i32, i32) {
    %c0_i32 = arith.constant 0 : i32
    %c0_i32_0 = arith.constant 0 : i32
    return %arg0, %arg1, %c0_i32 : i32, i32, i32
  }
}

</mosaic_0001>

<llo_original>
// kernel: ssfm_forward.1
$region0: #{ssfm_forward.1}
  #allocation0 [shape = 'u32[]', space=smem, size = 0x4, offset = 0x4, fixed_abs, tag = 'smem constant byte address 0x4 - core index']
  #allocation1 [shape = 'u32[72,128]{1,0:T(1,128)}', space=vmem, size = 0x9000, scoped, tag = 'internal scratch']
  #allocation2 [shape = 'bf16[512,4]{1,0:T(8,128)(2,1)}', space=vmem, size = 0x20000, scoped, tag = 'scratch operand']
  #allocation3 [shape = 'f32[512,1]{1,0:T(8,128)}', space=vmem, size = 0x40000, scoped, tag = 'scratch operand']
  #allocation4 [shape = 'f32[512,33]{1,0:T(8,128)}', space=vmem, size = 0x40000, scoped, tag = 'scratch operand']
  #allocation5 [shape = 'f32[1,1]{1,0:T(1,128)S(6)}', space=smem, size = 0x200, scoped, tag = 'scoped memory for ssfm_forward.1']
  %s0 = inlined_call_operand.vmem [shape: f32[2,512,32], index: 0, kind: input, shape index: {}]
  %s1 = inlined_call_operand.vmem [shape: f32[2,512,1], index: 1, kind: input, shape index: {}, may-alias: {1,3}]
  %s2 = inlined_call_operand.vmem [shape: bf16[2,512,32], index: 2, kind: input, shape index: {}]
  %s3 = inlined_call_operand.vmem [shape: f32[2,512,1], index: 3, kind: input, shape index: {}, may-alias: {1,3}]
  %s4 = inlined_call_operand.vmem [shape: f32[32,4], index: 4, kind: input, shape index: {}]
  %s5 = inlined_call_operand.vmem [shape: f32[1,4], index: 5, kind: input, shape index: {}]
  %s6 = inlined_call_operand.vmem [shape: bf16[32,4], index: 6, kind: input, shape index: {}]
  %s7 = inlined_call_operand.vmem [shape: f32[1,4], index: 7, kind: input, shape index: {}]
  %s8 = inlined_call_operand.vmem [shape: bf16[32,32], index: 8, kind: input, shape index: {}]
  %s9 = inlined_call_operand.vmem [shape: f32[1,32], index: 9, kind: input, shape index: {}]
  %s10 = inlined_call_operand.<no memory space> [shape: f32[1,1], index: 10, kind: input, shape index: {}]
  %s11 = inlined_call_operand.vmem [shape: f32[2,512,32], index: 11, kind: output, shape index: {}]
  %s12 = sld [smem:[#allocation0]]
  $region85: #{ssfm_forward.1} parent=0
    _
  %s14 = ssub.s32 1, %s12
  %s15 = scalar_select 0, %s14, %s12
  %16 = sst [smem:[#allocation5]] %s10
  loop: start=0, step=1, limit=4
  $region2: #{ssfm_forward.1} parent=0 // loop_pre_header
    _
  $region3: #{ssfm_forward.1} parent=0 // loop_header
    %s18 = sphi 0, %s22
    %p19 = scmp.ge.s32.totalorder %s18, 4
    %s25 = sphi 0, %s44
    %s26 = sphi 0, %s40
    %s27 = sphi 0, %s36
    %s28 = sphi 0, %s25
    %s29 = sphi 0, %s26
    %s30 = sphi 0, %s27
    %s31 = sphi 0, %s28
    %s32 = sphi 0, %s29
    %s33 = sphi 0, %s30
    %s49 = sphi 0, %s51
    %s52 = sphi 0, %s49
    %s53 = sphi 0, %s52
    %s69 = sphi 0, %s53
    %s77 = sphi 0, %s79
    %s80 = sphi 0, %s77
    %s81 = sphi 0, %s80
    %s97 = sphi 0, %s81
    %s105 = sphi 0, %s107
    %s108 = sphi 0, %s105
    %s109 = sphi 0, %s108
    %s125 = sphi 0, %s109
    %s133 = sphi 0, %s135
    %s136 = sphi 0, %s133
    %s137 = sphi 0, %s136
    %s153 = sphi 0, %s137
    %s157 = sphi 0, %s157
    %s159 = sphi 0, %s157
    %s160 = sphi 0, %s159
    %s174 = sphi 0, %s160
    %s178 = sphi 0, %s178
    %s180 = sphi 0, %s178
    %s181 = sphi 0, %s180
    %s195 = sphi 0, %s181
    %s199 = sphi 0, %s199
    %s201 = sphi 0, %s199
    %s202 = sphi 0, %s201
    %s216 = sphi 0, %s202
    %s220 = sphi 0, %s220
    %s222 = sphi 0, %s220
    %s223 = sphi 0, %s222
    %s237 = sphi 0, %s223
    %s241 = sphi 0, %s241
    %s243 = sphi 0, %s241
    %s244 = sphi 0, %s243
    %s258 = sphi 0, %s244
    %s262 = sphi 0, %s262
    %s264 = sphi 0, %s262
    %s265 = sphi 0, %s264
    %s279 = sphi 0, %s265
    %s283 = sphi 0, %s283
    %s285 = sphi 0, %s283
    %s286 = sphi 0, %s285
    %s300 = sphi 0, %s286
    %s308 = sphi 0, %s310
    %s311 = sphi 0, %s308
    %s312 = sphi 0, %s311
    %s328 = sphi 0, %s312
  $region4: #{ssfm_forward.1} parent=0 // loop_header_branch
    %21 = sbr.rel (%p19) target = $region8
  $region5: #{ssfm_forward.1} parent=0 // loop_body
    %s23 = ssub.s32 %s18, 1
    %s24 = ssub.s32 %s18, 2
    %s34 = sadd.s32 1, %s27
    %p35 = scmp.ge.s32.totalorder %s34, 1
    %s36 = scalar_select %p35, 0, %s34
    %s37 = sadd.s32 1, %s26
    %s38 = scalar_select %p35, %s37, %s26
    %p39 = scmp.ge.s32.totalorder %s38, 1
    %s40 = scalar_select %p39, 0, %s38
    %s41 = sadd.s32 1, %s25
    %s42 = scalar_select %p39, %s41, %s25
    %p43 = scmp.ge.s32.totalorder %s42, 2
    %s44 = scalar_select %p43, 0, %s42
    %s45 = ssub.s32 %s25, %s44
    %s46 = ssub.s32 %s26, %s40
    %s47 = sor.u32 %s45, %s46
    %p48 = scmp.eq.s32.totalorder %s47, 0
    %s50 = sadd.s32 %s49, 1
    %s51 = scalar_select %p48, %s49, %s50
    %p54 = pneg %p48
    %p55 = scmp.eq.s32.totalorder %s18, 1
    %p56 = por %p54, %p55
    %p57 = scmp.ne.s32.totalorder %s49, %s52
    %p58 = scmp.eq.s32.totalorder %s18, 0
    %p59 = por %p57, %p58
    %p60 = scmp.ne.s32.totalorder %s49, %s52
    %p61 = scmp.eq.s32.totalorder %s23, 1
    %p62 = por %p60, %p61
    %p63 = scmp.ne.s32.totalorder %s52, %s53
    %p64 = scmp.eq.s32.totalorder %s23, 0
    %p65 = por %p63, %p64
    %p66 = scmp.ne.s32.totalorder %s52, %s53
    %p67 = scmp.eq.s32.totalorder %s24, 1
    %p68 = por %p66, %p67
    %p70 = scmp.ne.s32.totalorder %s53, %s69
    %p71 = scmp.eq.s32.totalorder %s24, 0
    %p72 = por %p70, %p71
    %s73 = ssub.s32 %s25, %s44
    %s74 = ssub.s32 %s26, %s40
    %s75 = sor.u32 %s73, %s74
    %p76 = scmp.eq.s32.totalorder %s75, 0
    %s78 = sadd.s32 %s77, 1
    %s79 = scalar_select %p76, %s77, %s78
    %p82 = pneg %p76
    %p83 = scmp.eq.s32.totalorder %s18, 1
    %p84 = por %p82, %p83
    %p85 = scmp.ne.s32.totalorder %s77, %s80
    %p86 = scmp.eq.s32.totalorder %s18, 0
    %p87 = por %p85, %p86
    %p88 = scmp.ne.s32.totalorder %s77, %s80
    %p89 = scmp.eq.s32.totalorder %s23, 1
    %p90 = por %p88, %p89
    %p91 = scmp.ne.s32.totalorder %s80, %s81
    %p92 = scmp.eq.s32.totalorder %s23, 0
    %p93 = por %p91, %p92
    %p94 = scmp.ne.s32.totalorder %s80, %s81
    %p95 = scmp.eq.s32.totalorder %s24, 1
    %p96 = por %p94, %p95
    %p98 = scmp.ne.s32.totalorder %s81, %s97
    %p99 = scmp.eq.s32.totalorder %s24, 0
    %p100 = por %p98, %p99
    %s101 = ssub.s32 %s25, %s44
    %s102 = ssub.s32 %s27, %s36
    %s103 = sor.u32 %s101, %s102
    %p104 = scmp.eq.s32.totalorder %s103, 0
    %s106 = sadd.s32 %s105, 1
    %s107 = scalar_select %p104, %s105, %s106
    %p110 = pneg %p104
    %p111 = scmp.eq.s32.totalorder %s18, 1
    %p112 = por %p110, %p111
    %p113 = scmp.ne.s32.totalorder %s105, %s108
    %p114 = scmp.eq.s32.totalorder %s18, 0
    %p115 = por %p113, %p114
    %p116 = scmp.ne.s32.totalorder %s105, %s108
    %p117 = scmp.eq.s32.totalorder %s23, 1
    %p118 = por %p116, %p117
    %p119 = scmp.ne.s32.totalorder %s108, %s109
    %p120 = scmp.eq.s32.totalorder %s23, 0
    %p121 = por %p119, %p120
    %p122 = scmp.ne.s32.totalorder %s108, %s109
    %p123 = scmp.eq.s32.totalorder %s24, 1
    %p124 = por %p122, %p123
    %p126 = scmp.ne.s32.totalorder %s109, %s125
    %p127 = scmp.eq.s32.totalorder %s24, 0
    %p128 = por %p126, %p127
    %s129 = ssub.s32 %s25, %s44
    %s130 = ssub.s32 %s27, %s36
    %s131 = sor.u32 %s129, %s130
    %p132 = scmp.eq.s32.totalorder %s131, 0
    %s134 = sadd.s32 %s133, 1
    %s135 = scalar_select %p132, %s133, %s134
    %p138 = pneg %p132
    %p139 = scmp.eq.s32.totalorder %s18, 1
    %p140 = por %p138, %p139
    %p141 = scmp.ne.s32.totalorder %s133, %s136
    %p142 = scmp.eq.s32.totalorder %s18, 0
    %p143 = por %p141, %p142
    %p144 = scmp.ne.s32.totalorder %s133, %s136
    %p145 = scmp.eq.s32.totalorder %s23, 1
    %p146 = por %p144, %p145
    %p147 = scmp.ne.s32.totalorder %s136, %s137
    %p148 = scmp.eq.s32.totalorder %s23, 0
    %p149 = por %p147, %p148
    %p150 = scmp.ne.s32.totalorder %s136, %s137
    %p151 = scmp.eq.s32.totalorder %s24, 1
    %p152 = por %p150, %p151
    %p154 = scmp.ne.s32.totalorder %s137, %s153
    %p155 = scmp.eq.s32.totalorder %s24, 0
    %p156 = por %p154, %p155
    %s158 = sadd.s32 %s157, 1
    %p161 = scmp.eq.s32.totalorder %s18, 1
    %p162 = scmp.ne.s32.totalorder %s157, %s159
    %p163 = scmp.eq.s32.totalorder %s18, 0
    %p164 = por %p162, %p163
    %p165 = scmp.ne.s32.totalorder %s157, %s159
    %p166 = scmp.eq.s32.totalorder %s23, 1
    %p167 = por %p165, %p166
    %p168 = scmp.ne.s32.totalorder %s159, %s160
    %p169 = scmp.eq.s32.totalorder %s23, 0
    %p170 = por %p168, %p169
    %p171 = scmp.ne.s32.totalorder %s159, %s160
    %p172 = scmp.eq.s32.totalorder %s24, 1
    %p173 = por %p171, %p172
    %p175 = scmp.ne.s32.totalorder %s160, %s174
    %p176 = scmp.eq.s32.totalorder %s24, 0
    %p177 = por %p175, %p176
    %s179 = sadd.s32 %s178, 1
    %p182 = scmp.eq.s32.totalorder %s18, 1
    %p183 = scmp.ne.s32.totalorder %s178, %s180
    %p184 = scmp.eq.s32.totalorder %s18, 0
    %p185 = por %p183, %p184
    %p186 = scmp.ne.s32.totalorder %s178, %s180
    %p187 = scmp.eq.s32.totalorder %s23, 1
    %p188 = por %p186, %p187
    %p189 = scmp.ne.s32.totalorder %s180, %s181
    %p190 = scmp.eq.s32.totalorder %s23, 0
    %p191 = por %p189, %p190
    %p192 = scmp.ne.s32.totalorder %s180, %s181
    %p193 = scmp.eq.s32.totalorder %s24, 1
    %p194 = por %p192, %p193
    %p196 = scmp.ne.s32.totalorder %s181, %s195
    %p197 = scmp.eq.s32.totalorder %s24, 0
    %p198 = por %p196, %p197
    %s200 = sadd.s32 %s199, 1
    %p203 = scmp.eq.s32.totalorder %s18, 1
    %p204 = scmp.ne.s32.totalorder %s199, %s201
    %p205 = scmp.eq.s32.totalorder %s18, 0
    %p206 = por %p204, %p205
    %p207 = scmp.ne.s32.totalorder %s199, %s201
    %p208 = scmp.eq.s32.totalorder %s23, 1
    %p209 = por %p207, %p208
    %p210 = scmp.ne.s32.totalorder %s201, %s202
    %p211 = scmp.eq.s32.totalorder %s23, 0
    %p212 = por %p210, %p211
    %p213 = scmp.ne.s32.totalorder %s201, %s202
    %p214 = scmp.eq.s32.totalorder %s24, 1
    %p215 = por %p213, %p214
    %p217 = scmp.ne.s32.totalorder %s202, %s216
    %p218 = scmp.eq.s32.totalorder %s24, 0
    %p219 = por %p217, %p218
    %s221 = sadd.s32 %s220, 1
    %p224 = scmp.eq.s32.totalorder %s18, 1
    %p225 = scmp.ne.s32.totalorder %s220, %s222
    %p226 = scmp.eq.s32.totalorder %s18, 0
    %p227 = por %p225, %p226
    %p228 = scmp.ne.s32.totalorder %s220, %s222
    %p229 = scmp.eq.s32.totalorder %s23, 1
    %p230 = por %p228, %p229
    %p231 = scmp.ne.s32.totalorder %s222, %s223
    %p232 = scmp.eq.s32.totalorder %s23, 0
    %p233 = por %p231, %p232
    %p234 = scmp.ne.s32.totalorder %s222, %s223
    %p235 = scmp.eq.s32.totalorder %s24, 1
    %p236 = por %p234, %p235
    %p238 = scmp.ne.s32.totalorder %s223, %s237
    %p239 = scmp.eq.s32.totalorder %s24, 0
    %p240 = por %p238, %p239
    %s242 = sadd.s32 %s241, 1
    %p245 = scmp.eq.s32.totalorder %s18, 1
    %p246 = scmp.ne.s32.totalorder %s241, %s243
    %p247 = scmp.eq.s32.totalorder %s18, 0
    %p248 = por %p246, %p247
    %p249 = scmp.ne.s32.totalorder %s241, %s243
    %p250 = scmp.eq.s32.totalorder %s23, 1
    %p251 = por %p249, %p250
    %p252 = scmp.ne.s32.totalorder %s243, %s244
    %p253 = scmp.eq.s32.totalorder %s23, 0
    %p254 = por %p252, %p253
    %p255 = scmp.ne.s32.totalorder %s243, %s244
    %p256 = scmp.eq.s32.totalorder %s24, 1
    %p257 = por %p255, %p256
    %p259 = scmp.ne.s32.totalorder %s244, %s258
    %p260 = scmp.eq.s32.totalorder %s24, 0
    %p261 = por %p259, %p260
    %s263 = sadd.s32 %s262, 1
    %p266 = scmp.eq.s32.totalorder %s18, 1
    %p267 = scmp.ne.s32.totalorder %s262, %s264
    %p268 = scmp.eq.s32.totalorder %s18, 0
    %p269 = por %p267, %p268
    %p270 = scmp.ne.s32.totalorder %s262, %s264
    %p271 = scmp.eq.s32.totalorder %s23, 1
    %p272 = por %p270, %p271
    %p273 = scmp.ne.s32.totalorder %s264, %s265
    %p274 = scmp.eq.s32.totalorder %s23, 0
    %p275 = por %p273, %p274
    %p276 = scmp.ne.s32.totalorder %s264, %s265
    %p277 = scmp.eq.s32.totalorder %s24, 1
    %p278 = por %p276, %p277
    %p280 = scmp.ne.s32.totalorder %s265, %s279
    %p281 = scmp.eq.s32.totalorder %s24, 0
    %p282 = por %p280, %p281
    %s284 = sadd.s32 %s283, 1
    %p287 = scmp.eq.s32.totalorder %s18, 1
    %p288 = scmp.ne.s32.totalorder %s283, %s285
    %p289 = scmp.eq.s32.totalorder %s18, 0
    %p290 = por %p288, %p289
    %p291 = scmp.ne.s32.totalorder %s283, %s285
    %p292 = scmp.eq.s32.totalorder %s23, 1
    %p293 = por %p291, %p292
    %p294 = scmp.ne.s32.totalorder %s285, %s286
    %p295 = scmp.eq.s32.totalorder %s23, 0
    %p296 = por %p294, %p295
    %p297 = scmp.ne.s32.totalorder %s285, %s286
    %p298 = scmp.eq.s32.totalorder %s24, 1
    %p299 = por %p297, %p298
    %p301 = scmp.ne.s32.totalorder %s286, %s300
    %p302 = scmp.eq.s32.totalorder %s24, 0
    %p303 = por %p301, %p302
    %s304 = ssub.s32 %s25, %s44
    %s305 = ssub.s32 %s26, %s40
    %s306 = sor.u32 %s304, %s305
    %p307 = scmp.eq.s32.totalorder %s306, 0
    %s309 = sadd.s32 %s308, 1
    %s310 = scalar_select %p307, %s308, %s309
    %p313 = pneg %p307
    %p314 = scmp.eq.s32.totalorder %s18, 1
    %p315 = por %p313, %p314
    %p316 = scmp.ne.s32.totalorder %s308, %s311
    %p317 = scmp.eq.s32.totalorder %s18, 0
    %p318 = por %p316, %p317
    %p319 = scmp.ne.s32.totalorder %s308, %s311
    %p320 = scmp.eq.s32.totalorder %s23, 1
    %p321 = por %p319, %p320
    %p322 = scmp.ne.s32.totalorder %s311, %s312
    %p323 = scmp.eq.s32.totalorder %s23, 0
    %p324 = por %p322, %p323
    %p325 = scmp.ne.s32.totalorder %s311, %s312
    %p326 = scmp.eq.s32.totalorder %s24, 1
    %p327 = por %p325, %p326
    %p329 = scmp.ne.s32.totalorder %s312, %s328
    %p330 = scmp.eq.s32.totalorder %s24, 0
    %p331 = por %p329, %p330
    %p332 = scmp.le.s32.totalorder 1, %s18
    %p333 = scmp.lt.s32.totalorder %s18, 3
    %p334 = pnand %p332, %p333
    %p335 = pneg %p334
    // Predicated region
    $region9: #{ssfm_forward.1} parent=5 // pred_check
      _
    $region10: #{ssfm_forward.1} parent=5 // pred_check_branch
      %337 = sbr.rel (%p334) target = $region12
    $region11: #{ssfm_forward.1} parent=5 // pred_region
      %s338 = ssub.s32 %s18, 1
      // Predicated region
      $region13: #{ssfm_forward.1} parent=11 // pred_check
        %p339 = pneg %p170
      $region14: #{ssfm_forward.1} parent=11 // pred_check_branch
        %341 = sbr.rel (%p339) target = $region16
      $region15: #{ssfm_forward.1} parent=11 // pred_region
        _
      $region16: #{ssfm_forward.1} parent=11 // pred_fallthru
        _
      // Predicated region
      $region17: #{ssfm_forward.1} parent=11 // pred_check
        %p342 = pneg %p191
      $region18: #{ssfm_forward.1} parent=11 // pred_check_branch
        %344 = sbr.rel (%p342) target = $region20
      $region19: #{ssfm_forward.1} parent=11 // pred_region
        _
      $region20: #{ssfm_forward.1} parent=11 // pred_fallthru
        _
      // Predicated region
      $region21: #{ssfm_forward.1} parent=11 // pred_check
        %p345 = pneg %p212
      $region22: #{ssfm_forward.1} parent=11 // pred_check_branch
        %347 = sbr.rel (%p345) target = $region24
      $region23: #{ssfm_forward.1} parent=11 // pred_region
        _
      $region24: #{ssfm_forward.1} parent=11 // pred_fallthru
        _
      // Predicated region
      $region25: #{ssfm_forward.1} parent=11 // pred_check
        %p348 = pneg %p233
      $region26: #{ssfm_forward.1} parent=11 // pred_check_branch
        %350 = sbr.rel (%p348) target = $region28
      $region27: #{ssfm_forward.1} parent=11 // pred_region
        _
      $region28: #{ssfm_forward.1} parent=11 // pred_fallthru
        _
      // Predicated region
      $region29: #{ssfm_forward.1} parent=11 // pred_check
        %p351 = pneg %p254
      $region30: #{ssfm_forward.1} parent=11 // pred_check_branch
        %353 = sbr.rel (%p351) target = $region32
      $region31: #{ssfm_forward.1} parent=11 // pred_region
        _
      $region32: #{ssfm_forward.1} parent=11 // pred_fallthru
        _
      // Predicated region
      $region33: #{ssfm_forward.1} parent=11 // pred_check
        %p354 = pneg %p275
      $region34: #{ssfm_forward.1} parent=11 // pred_check_branch
        %356 = sbr.rel (%p354) target = $region36
      $region35: #{ssfm_forward.1} parent=11 // pred_region
        _
      $region36: #{ssfm_forward.1} parent=11 // pred_fallthru
        _
      // Predicated region
      $region37: #{ssfm_forward.1} parent=11 // pred_check
        %p357 = pneg %p296
      $region38: #{ssfm_forward.1} parent=11 // pred_check_branch
        %359 = sbr.rel (%p357) target = $region40
      $region39: #{ssfm_forward.1} parent=11 // pred_region
        _
      $region40: #{ssfm_forward.1} parent=11 // pred_fallthru
        _
    $region12: #{ssfm_forward.1} parent=5 // pred_fallthru
      _
    %p360 = scmp.lt.s32.totalorder %s18, 2
    // Predicated region
    $region41: #{ssfm_forward.1} parent=5 // pred_check
      %p361 = pneg %p360
    $region42: #{ssfm_forward.1} parent=5 // pred_check_branch
      %363 = sbr.rel (%p361) target = $region44
    $region43: #{ssfm_forward.1} parent=5 // pred_region
      // Predicated region
      $region45: #{ssfm_forward.1} parent=43 // pred_check
        %p364 = pneg %p59
      $region46: #{ssfm_forward.1} parent=43 // pred_check_branch
        %366 = sbr.rel (%p364) target = $region48
      $region47: #{ssfm_forward.1} parent=43 // pred_region
        %s367 = smul.u32 64, %s26
        %p368 = scmp.lt.s32.totalorder %s25, 1
        %s369 = scalar_select %p368, %s25, 1
        %p370 = scmp.lt.s32.totalorder %s367, 63
        %s371 = scalar_select %p370, %s367, 63
        %s372 = smul.addr %s369, 64
        %s373 = sadd.s32 %s371, %s372
        %s374 = smul.addr %s373, 8
        %s375 = scalar_lea.vmem %s0, %s374
        %s376 = smul.u32 64, %s26
      $region48: #{ssfm_forward.1} parent=43 // pred_fallthru
        _
      // Predicated region
      $region49: #{ssfm_forward.1} parent=43 // pred_check
        %p377 = pneg %p87
      $region50: #{ssfm_forward.1} parent=43 // pred_check_branch
        %379 = sbr.rel (%p377) target = $region52
      $region51: #{ssfm_forward.1} parent=43 // pred_region
        %s380 = smul.u32 64, %s26
        %p381 = scmp.lt.s32.totalorder %s25, 1
        %s382 = scalar_select %p381, %s25, 1
        %p383 = scmp.lt.s32.totalorder %s380, 63
        %s384 = scalar_select %p383, %s380, 63
        %s385 = smul.addr %s382, 64
        %s386 = sadd.s32 %s384, %s385
        %s387 = smul.addr %s386, 8
        %s388 = scalar_lea.vmem %s1, %s387
        %s389 = smul.u32 64, %s26
      $region52: #{ssfm_forward.1} parent=43 // pred_fallthru
        _
      // Predicated region
      $region53: #{ssfm_forward.1} parent=43 // pred_check
        %p390 = pneg %p115
      $region54: #{ssfm_forward.1} parent=43 // pred_check_branch
        %392 = sbr.rel (%p390) target = $region56
      $region55: #{ssfm_forward.1} parent=43 // pred_region
        %s393 = smul.u32 64, %s27
        %p394 = scmp.lt.s32.totalorder %s25, 1
        %s395 = scalar_select %p394, %s25, 1
        %p396 = scmp.lt.s32.totalorder %s393, 63
        %s397 = scalar_select %p396, %s393, 63
        %s398 = smul.addr %s395, 64
        %s399 = sadd.s32 %s397, %s398
        %s400 = smul.addr %s399, 4
        %s401 = scalar_lea.vmem %s2, %s400
        %s402 = smul.u32 64, %s27
      $region56: #{ssfm_forward.1} parent=43 // pred_fallthru
        _
      // Predicated region
      $region57: #{ssfm_forward.1} parent=43 // pred_check
        %p403 = pneg %p143
      $region58: #{ssfm_forward.1} parent=43 // pred_check_branch
        %405 = sbr.rel (%p403) target = $region60
      $region59: #{ssfm_forward.1} parent=43 // pred_region
        %s406 = smul.u32 64, %s27
        %p407 = scmp.lt.s32.totalorder %s25, 1
        %s408 = scalar_select %p407, %s25, 1
        %p409 = scmp.lt.s32.totalorder %s406, 63
        %s410 = scalar_select %p409, %s406, 63
        %s411 = smul.addr %s408, 64
        %s412 = sadd.s32 %s410, %s411
        %s413 = smul.addr %s412, 8
        %s414 = scalar_lea.vmem %s3, %s413
        %s415 = smul.u32 64, %s27
      $region60: #{ssfm_forward.1} parent=43 // pred_fallthru
        _
    $region44: #{ssfm_forward.1} parent=5 // pred_fallthru
      _
    %p416 = scmp.le.s32.totalorder 1, %s18
    %p417 = scmp.lt.s32.totalorder %s18, 3
    %p418 = pnand %p416, %p417
    %p419 = pneg %p418
    // Predicated region
    $region61: #{ssfm_forward.1} parent=5 // pred_check
      _
    $region62: #{ssfm_forward.1} parent=5 // pred_check_branch
      %421 = sbr.rel (%p418) target = $region64
    $region63: #{ssfm_forward.1} parent=5 // pred_region
      %s422 = ssub.s32 %s18, 1
      %s423 = smul.u32 64, %s29
      %p424 = scmp.lt.s32.totalorder %s28, 1
      %s425 = scalar_select %p424, %s28, 1
      %p426 = scmp.lt.s32.totalorder %s423, 63
      %s427 = scalar_select %p426, %s423, 63
      %s428 = smul.addr %s425, 64
      %s429 = sadd.s32 %s427, %s428
      %s430 = smul.addr %s429, 8
      %s431 = scalar_lea.vmem %s0, %s430
      %p432 = pneg %p65
      %p433 = pneg %p62
      %s434 = smul.u32 64, %s29
      %p435 = scmp.lt.s32.totalorder %s28, 1
      %s436 = scalar_select %p435, %s28, 1
      %p437 = scmp.lt.s32.totalorder %s434, 63
      %s438 = scalar_select %p437, %s434, 63
      %s439 = smul.addr %s436, 64
      %s440 = sadd.s32 %s438, %s439
      %s441 = smul.addr %s440, 8
      %s442 = scalar_lea.vmem %s1, %s441
      %p443 = pneg %p93
      %p444 = pneg %p90
      %s445 = smul.u32 64, %s30
      %p446 = scmp.lt.s32.totalorder %s28, 1
      %s447 = scalar_select %p446, %s28, 1
      %p448 = scmp.lt.s32.totalorder %s445, 63
      %s449 = scalar_select %p448, %s445, 63
      %s450 = smul.addr %s447, 64
      %s451 = sadd.s32 %s449, %s450
      %s452 = smul.addr %s451, 4
      %s453 = scalar_lea.vmem %s2, %s452
      %p454 = pneg %p121
      %p455 = pneg %p118
      %s456 = smul.u32 64, %s30
      %p457 = scmp.lt.s32.totalorder %s28, 1
      %s458 = scalar_select %p457, %s28, 1
      %p459 = scmp.lt.s32.totalorder %s456, 63
      %s460 = scalar_select %p459, %s456, 63
      %s461 = smul.addr %s458, 64
      %s462 = sadd.s32 %s460, %s461
      %s463 = smul.addr %s462, 8
      %s464 = scalar_lea.vmem %s3, %s463
      %p465 = pneg %p149
      %p466 = pneg %p146
      %p467 = pneg %p170
      %p468 = pneg %p167
      %p469 = pneg %p191
      %p470 = pneg %p188
      %p471 = pneg %p212
      %p472 = pneg %p209
      %p473 = pneg %p233
      %p474 = pneg %p230
      %p475 = pneg %p254
      %p476 = pneg %p251
      %p477 = pneg %p275
      %p478 = pneg %p272
      %p479 = pneg %p296
      %p480 = pneg %p293
      %p481 = pneg %p324
      %p482 = pneg %p321
      %s483 = smul.u32 64, %s29
      %p484 = scmp.lt.s32.totalorder %s28, 1
      %s485 = scalar_select %p484, %s28, 1
      %p486 = scmp.lt.s32.totalorder %s483, 63
      %s487 = scalar_select %p486, %s483, 63
      %s488 = smul.addr %s485, 64
      %s489 = sadd.s32 %s487, %s488
      %s490 = smul.addr %s489, 8
      %s491 = scalar_lea.vmem %s11, %s490
      %s492 = smul.u32 64, %s29
      %p493 = scmp.lt.s32.totalorder %s28, 1
      %s494 = scalar_select %p493, %s28, 1
      %p495 = scmp.lt.s32.totalorder %s492, 63
      %s496 = scalar_select %p495, %s492, 63
      %s497 = smul.addr %s494, 64
      %s498 = sadd.s32 %s496, %s497
      %s499 = smul.addr %s498, 8
      %s500 = scalar_lea.vmem %s0, %s499
      %s501 = smul.u32 64, %s29
      %s502 = smul.u32 64, %s29
      %p503 = scmp.lt.s32.totalorder %s28, 1
      %s504 = scalar_select %p503, %s28, 1
      %p505 = scmp.lt.s32.totalorder %s502, 63
      %s506 = scalar_select %p505, %s502, 63
      %s507 = smul.addr %s504, 64
      %s508 = sadd.s32 %s506, %s507
      %s509 = smul.addr %s508, 8
      %s510 = scalar_lea.vmem %s1, %s509
      %s511 = smul.u32 64, %s29
      %s512 = smul.u32 64, %s30
      %p513 = scmp.lt.s32.totalorder %s28, 1
      %s514 = scalar_select %p513, %s28, 1
      %p515 = scmp.lt.s32.totalorder %s512, 63
      %s516 = scalar_select %p515, %s512, 63
      %s517 = smul.addr %s514, 64
      %s518 = sadd.s32 %s516, %s517
      %s519 = smul.addr %s518, 4
      %s520 = scalar_lea.vmem %s2, %s519
      %s521 = smul.u32 64, %s30
      %s522 = smul.u32 64, %s30
      %p523 = scmp.lt.s32.totalorder %s28, 1
      %s524 = scalar_select %p523, %s28, 1
      %p525 = scmp.lt.s32.totalorder %s522, 63
      %s526 = scalar_select %p525, %s522, 63
      %s527 = smul.addr %s524, 64
      %s528 = sadd.s32 %s526, %s527
      %s529 = smul.addr %s528, 8
      %s530 = scalar_lea.vmem %s3, %s529
      %s531 = smul.u32 64, %s30
      %s532 = smul.u32 64, %s29
      %p533 = scmp.lt.s32.totalorder %s28, 1
      %s534 = scalar_select %p533, %s28, 1
      %p535 = scmp.lt.s32.totalorder %s532, 63
      %s536 = scalar_select %p535, %s532, 63
      %s537 = smul.addr %s534, 64
      %s538 = sadd.s32 %s536, %s537
      %s539 = smul.addr %s538, 8
      %s540 = scalar_lea.vmem %s11, %s539
      %s541 = smul.u32 64, %s29
      %p543 = scmp.eq.s32.totalorder %s30, 0
      // Predicated region
      $region65: #{ssfm_forward.1} parent=63 // pred_check
        %p544 = pneg %p543
      $region66: #{ssfm_forward.1} parent=63 // pred_check_branch
        %546 = sbr.rel (%p544) target = $region68
      $region67: #{ssfm_forward.1} parent=63 // pred_region
        %v547 = vld [vmem:[%s510] sm:$0xff]
        %v548 = vld [vmem:[%s510 + $0x8] sm:$0xff]
        %v549 = vld [vmem:[%s510 + $0x10] sm:$0xff]
        %v550 = vld [vmem:[%s510 + $0x18] sm:$0xff]
        %v551 = vld [vmem:[%s510 + $0x20] sm:$0xff]
        %v552 = vld [vmem:[%s510 + $0x28] sm:$0xff]
        %v553 = vld [vmem:[%s510 + $0x30] sm:$0xff]
        %v554 = vld [vmem:[%s510 + $0x38] sm:$0xff]
        %v555 = vld [vmem:[%s510 + $0x40] sm:$0xff]
        %v556 = vld [vmem:[%s510 + $0x48] sm:$0xff]
        %v557 = vld [vmem:[%s510 + $0x50] sm:$0xff]
        %v558 = vld [vmem:[%s510 + $0x58] sm:$0xff]
        %v559 = vld [vmem:[%s510 + $0x60] sm:$0xff]
        %v560 = vld [vmem:[%s510 + $0x68] sm:$0xff]
        %v561 = vld [vmem:[%s510 + $0x70] sm:$0xff]
        %v562 = vld [vmem:[%s510 + $0x78] sm:$0xff]
        %v563 = vld [vmem:[%s510 + $0x80] sm:$0xff]
        %v564 = vld [vmem:[%s510 + $0x88] sm:$0xff]
        %v565 = vld [vmem:[%s510 + $0x90] sm:$0xff]
        %v566 = vld [vmem:[%s510 + $0x98] sm:$0xff]
        %v567 = vld [vmem:[%s510 + $0xa0] sm:$0xff]
        %v568 = vld [vmem:[%s510 + $0xa8] sm:$0xff]
        %v569 = vld [vmem:[%s510 + $0xb0] sm:$0xff]
        %v570 = vld [vmem:[%s510 + $0xb8] sm:$0xff]
        %v571 = vld [vmem:[%s510 + $0xc0] sm:$0xff]
        %v572 = vld [vmem:[%s510 + $0xc8] sm:$0xff]
        %v573 = vld [vmem:[%s510 + $0xd0] sm:$0xff]
        %v574 = vld [vmem:[%s510 + $0xd8] sm:$0xff]
        %v575 = vld [vmem:[%s510 + $0xe0] sm:$0xff]
        %v576 = vld [vmem:[%s510 + $0xe8] sm:$0xff]
        %v577 = vld [vmem:[%s510 + $0xf0] sm:$0xff]
        %v578 = vld [vmem:[%s510 + $0xf8] sm:$0xff]
        %v579 = vld [vmem:[%s510 + $0x100] sm:$0xff]
        %v580 = vld [vmem:[%s510 + $0x108] sm:$0xff]
        %v581 = vld [vmem:[%s510 + $0x110] sm:$0xff]
        %v582 = vld [vmem:[%s510 + $0x118] sm:$0xff]
        %v583 = vld [vmem:[%s510 + $0x120] sm:$0xff]
        %v584 = vld [vmem:[%s510 + $0x128] sm:$0xff]
        %v585 = vld [vmem:[%s510 + $0x130] sm:$0xff]
        %v586 = vld [vmem:[%s510 + $0x138] sm:$0xff]
        %v587 = vld [vmem:[%s510 + $0x140] sm:$0xff]
        %v588 = vld [vmem:[%s510 + $0x148] sm:$0xff]
        %v589 = vld [vmem:[%s510 + $0x150] sm:$0xff]
        %v590 = vld [vmem:[%s510 + $0x158] sm:$0xff]
        %v591 = vld [vmem:[%s510 + $0x160] sm:$0xff]
        %v592 = vld [vmem:[%s510 + $0x168] sm:$0xff]
        %v593 = vld [vmem:[%s510 + $0x170] sm:$0xff]
        %v594 = vld [vmem:[%s510 + $0x178] sm:$0xff]
        %v595 = vld [vmem:[%s510 + $0x180] sm:$0xff]
        %v596 = vld [vmem:[%s510 + $0x188] sm:$0xff]
        %v597 = vld [vmem:[%s510 + $0x190] sm:$0xff]
        %v598 = vld [vmem:[%s510 + $0x198] sm:$0xff]
        %v599 = vld [vmem:[%s510 + $0x1a0] sm:$0xff]
        %v600 = vld [vmem:[%s510 + $0x1a8] sm:$0xff]
        %v601 = vld [vmem:[%s510 + $0x1b0] sm:$0xff]
        %v602 = vld [vmem:[%s510 + $0x1b8] sm:$0xff]
        %v603 = vld [vmem:[%s510 + $0x1c0] sm:$0xff]
        %v604 = vld [vmem:[%s510 + $0x1c8] sm:$0xff]
        %v605 = vld [vmem:[%s510 + $0x1d0] sm:$0xff]
        %v606 = vld [vmem:[%s510 + $0x1d8] sm:$0xff]
        %v607 = vld [vmem:[%s510 + $0x1e0] sm:$0xff]
        %v608 = vld [vmem:[%s510 + $0x1e8] sm:$0xff]
        %v609 = vld [vmem:[%s510 + $0x1f0] sm:$0xff]
        %v610 = vld [vmem:[%s510 + $0x1f8] sm:$0xff]
        %v611 = vxor.u32 %v547, 2147483648
        %v612 = vxor.u32 %v548, 2147483648
        %v613 = vxor.u32 %v549, 2147483648
        %v614 = vxor.u32 %v550, 2147483648
        %v615 = vxor.u32 %v551, 2147483648
        %v616 = vxor.u32 %v552, 2147483648
        %v617 = vxor.u32 %v553, 2147483648
        %v618 = vxor.u32 %v554, 2147483648
        %v619 = vxor.u32 %v555, 2147483648
        %v620 = vxor.u32 %v556, 2147483648
        %v621 = vxor.u32 %v557, 2147483648
        %v622 = vxor.u32 %v558, 2147483648
        %v623 = vxor.u32 %v559, 2147483648
        %v624 = vxor.u32 %v560, 2147483648
        %v625 = vxor.u32 %v561, 2147483648
        %v626 = vxor.u32 %v562, 2147483648
        %v627 = vxor.u32 %v563, 2147483648
        %v628 = vxor.u32 %v564, 2147483648
        %v629 = vxor.u32 %v565, 2147483648
        %v630 = vxor.u32 %v566, 2147483648
        %v631 = vxor.u32 %v567, 2147483648
        %v632 = vxor.u32 %v568, 2147483648
        %v633 = vxor.u32 %v569, 2147483648
        %v634 = vxor.u32 %v570, 2147483648
        %v635 = vxor.u32 %v571, 2147483648
        %v636 = vxor.u32 %v572, 2147483648
        %v637 = vxor.u32 %v573, 2147483648
        %v638 = vxor.u32 %v574, 2147483648
        %v639 = vxor.u32 %v575, 2147483648
        %v640 = vxor.u32 %v576, 2147483648
        %v641 = vxor.u32 %v577, 2147483648
        %v642 = vxor.u32 %v578, 2147483648
        %v643 = vxor.u32 %v579, 2147483648
        %v644 = vxor.u32 %v580, 2147483648
        %v645 = vxor.u32 %v581, 2147483648
        %v646 = vxor.u32 %v582, 2147483648
        %v647 = vxor.u32 %v583, 2147483648
        %v648 = vxor.u32 %v584, 2147483648
        %v649 = vxor.u32 %v585, 2147483648
        %v650 = vxor.u32 %v586, 2147483648
        %v651 = vxor.u32 %v587, 2147483648
        %v652 = vxor.u32 %v588, 2147483648
        %v653 = vxor.u32 %v589, 2147483648
        %v654 = vxor.u32 %v590, 2147483648
        %v655 = vxor.u32 %v591, 2147483648
        %v656 = vxor.u32 %v592, 2147483648
        %v657 = vxor.u32 %v593, 2147483648
        %v658 = vxor.u32 %v594, 2147483648
        %v659 = vxor.u32 %v595, 2147483648
        %v660 = vxor.u32 %v596, 2147483648
        %v661 = vxor.u32 %v597, 2147483648
        %v662 = vxor.u32 %v598, 2147483648
        %v663 = vxor.u32 %v599, 2147483648
        %v664 = vxor.u32 %v600, 2147483648
        %v665 = vxor.u32 %v601, 2147483648
        %v666 = vxor.u32 %v602, 2147483648
        %v667 = vxor.u32 %v603, 2147483648
        %v668 = vxor.u32 %v604, 2147483648
        %v669 = vxor.u32 %v605, 2147483648
        %v670 = vxor.u32 %v606, 2147483648
        %v671 = vxor.u32 %v607, 2147483648
        %v672 = vxor.u32 %v608, 2147483648
        %v673 = vxor.u32 %v609, 2147483648
        %v674 = vxor.u32 %v610, 2147483648
        %v675 = vmul.f32 %v611, 1.442695
        %v676 = vpow.pop %v675
        %v677 = vmul.f32 %v612, 1.442695
        %v678 = vpow.pop %v677
        %v679 = vmul.f32 %v613, 1.442695
        %v680 = vpow.pop %v679
        %v681 = vmul.f32 %v614, 1.442695
        %v682 = vpow.pop %v681
        %v683 = vmul.f32 %v615, 1.442695
        %v684 = vpow.pop %v683
        %v685 = vmul.f32 %v616, 1.442695
        %v686 = vpow.pop %v685
        %v687 = vmul.f32 %v617, 1.442695
        %v688 = vpow.pop %v687
        %v689 = vmul.f32 %v618, 1.442695
        %v690 = vpow.pop %v689
        %v691 = vmul.f32 %v619, 1.442695
        %v692 = vpow.pop %v691
        %v693 = vmul.f32 %v620, 1.442695
        %v694 = vpow.pop %v693
        %v695 = vmul.f32 %v621, 1.442695
        %v696 = vpow.pop %v695
        %v697 = vmul.f32 %v622, 1.442695
        %v698 = vpow.pop %v697
        %v699 = vmul.f32 %v623, 1.442695
        %v700 = vpow.pop %v699
        %v701 = vmul.f32 %v624, 1.442695
        %v702 = vpow.pop %v701
        %v703 = vmul.f32 %v625, 1.442695
        %v704 = vpow.pop %v703
        %v705 = vmul.f32 %v626, 1.442695
        %v706 = vpow.pop %v705
        %v707 = vmul.f32 %v627, 1.442695
        %v708 = vpow.pop %v707
        %v709 = vmul.f32 %v628, 1.442695
        %v710 = vpow.pop %v709
        %v711 = vmul.f32 %v629, 1.442695
        %v712 = vpow.pop %v711
        %v713 = vmul.f32 %v630, 1.442695
        %v714 = vpow.pop %v713
        %v715 = vmul.f32 %v631, 1.442695
        %v716 = vpow.pop %v715
        %v717 = vmul.f32 %v632, 1.442695
        %v718 = vpow.pop %v717
        %v719 = vmul.f32 %v633, 1.442695
        %v720 = vpow.pop %v719
        %v721 = vmul.f32 %v634, 1.442695
        %v722 = vpow.pop %v721
        %v723 = vmul.f32 %v635, 1.442695
        %v724 = vpow.pop %v723
        %v725 = vmul.f32 %v636, 1.442695
        %v726 = vpow.pop %v725
        %v727 = vmul.f32 %v637, 1.442695
        %v728 = vpow.pop %v727
        %v729 = vmul.f32 %v638, 1.442695
        %v730 = vpow.pop %v729
        %v731 = vmul.f32 %v639, 1.442695
        %v732 = vpow.pop %v731
        %v733 = vmul.f32 %v640, 1.442695
        %v734 = vpow.pop %v733
        %v735 = vmul.f32 %v641, 1.442695
        %v736 = vpow.pop %v735
        %v737 = vmul.f32 %v642, 1.442695
        %v738 = vpow.pop %v737
        %v739 = vmul.f32 %v643, 1.442695
        %v740 = vpow.pop %v739
        %v741 = vmul.f32 %v644, 1.442695
        %v742 = vpow.pop %v741
        %v743 = vmul.f32 %v645, 1.442695
        %v744 = vpow.pop %v743
        %v745 = vmul.f32 %v646, 1.442695
        %v746 = vpow.pop %v745
        %v747 = vmul.f32 %v647, 1.442695
        %v748 = vpow.pop %v747
        %v749 = vmul.f32 %v648, 1.442695
        %v750 = vpow.pop %v749
        %v751 = vmul.f32 %v649, 1.442695
        %v752 = vpow.pop %v751
        %v753 = vmul.f32 %v650, 1.442695
        %v754 = vpow.pop %v753
        %v755 = vmul.f32 %v651, 1.442695
        %v756 = vpow.pop %v755
        %v757 = vmul.f32 %v652, 1.442695
        %v758 = vpow.pop %v757
        %v759 = vmul.f32 %v653, 1.442695
        %v760 = vpow.pop %v759
        %v761 = vmul.f32 %v654, 1.442695
        %v762 = vpow.pop %v761
        %v763 = vmul.f32 %v655, 1.442695
        %v764 = vpow.pop %v763
        %v765 = vmul.f32 %v656, 1.442695
        %v766 = vpow.pop %v765
        %v767 = vmul.f32 %v657, 1.442695
        %v768 = vpow.pop %v767
        %v769 = vmul.f32 %v658, 1.442695
        %v770 = vpow.pop %v769
        %v771 = vmul.f32 %v659, 1.442695
        %v772 = vpow.pop %v771
        %v773 = vmul.f32 %v660, 1.442695
        %v774 = vpow.pop %v773
        %v775 = vmul.f32 %v661, 1.442695
        %v776 = vpow.pop %v775
        %v777 = vmul.f32 %v662, 1.442695
        %v778 = vpow.pop %v777
        %v779 = vmul.f32 %v663, 1.442695
        %v780 = vpow.pop %v779
        %v781 = vmul.f32 %v664, 1.442695
        %v782 = vpow.pop %v781
        %v783 = vmul.f32 %v665, 1.442695
        %v784 = vpow.pop %v783
        %v785 = vmul.f32 %v666, 1.442695
        %v786 = vpow.pop %v785
        %v787 = vmul.f32 %v667, 1.442695
        %v788 = vpow.pop %v787
        %v789 = vmul.f32 %v668, 1.442695
        %v790 = vpow.pop %v789
        %v791 = vmul.f32 %v669, 1.442695
        %v792 = vpow.pop %v791
        %v793 = vmul.f32 %v670, 1.442695
        %v794 = vpow.pop %v793
        %v795 = vmul.f32 %v671, 1.442695
        %v796 = vpow.pop %v795
        %v797 = vmul.f32 %v672, 1.442695
        %v798 = vpow.pop %v797
        %v799 = vmul.f32 %v673, 1.442695
        %v800 = vpow.pop %v799
        %v801 = vmul.f32 %v674, 1.442695
        %v802 = vpow.pop %v801
        %v803 = vadd.f32 %v676, 1.0
        %v804 = vadd.f32 %v678, 1.0
        %v805 = vadd.f32 %v680, 1.0
        %v806 = vadd.f32 %v682, 1.0
        %v807 = vadd.f32 %v684, 1.0
        %v808 = vadd.f32 %v686, 1.0
        %v809 = vadd.f32 %v688, 1.0
        %v810 = vadd.f32 %v690, 1.0
        %v811 = vadd.f32 %v692, 1.0
        %v812 = vadd.f32 %v694, 1.0
        %v813 = vadd.f32 %v696, 1.0
        %v814 = vadd.f32 %v698, 1.0
        %v815 = vadd.f32 %v700, 1.0
        %v816 = vadd.f32 %v702, 1.0
        %v817 = vadd.f32 %v704, 1.0
        %v818 = vadd.f32 %v706, 1.0
        %v819 = vadd.f32 %v708, 1.0
        %v820 = vadd.f32 %v710, 1.0
        %v821 = vadd.f32 %v712, 1.0
        %v822 = vadd.f32 %v714, 1.0
        %v823 = vadd.f32 %v716, 1.0
        %v824 = vadd.f32 %v718, 1.0
        %v825 = vadd.f32 %v720, 1.0
        %v826 = vadd.f32 %v722, 1.0
        %v827 = vadd.f32 %v724, 1.0
        %v828 = vadd.f32 %v726, 1.0
        %v829 = vadd.f32 %v728, 1.0
        %v830 = vadd.f32 %v730, 1.0
        %v831 = vadd.f32 %v732, 1.0
        %v832 = vadd.f32 %v734, 1.0
        %v833 = vadd.f32 %v736, 1.0
        %v834 = vadd.f32 %v738, 1.0
        %v835 = vadd.f32 %v740, 1.0
        %v836 = vadd.f32 %v742, 1.0
        %v837 = vadd.f32 %v744, 1.0
        %v838 = vadd.f32 %v746, 1.0
        %v839 = vadd.f32 %v748, 1.0
        %v840 = vadd.f32 %v750, 1.0
        %v841 = vadd.f32 %v752, 1.0
        %v842 = vadd.f32 %v754, 1.0
        %v843 = vadd.f32 %v756, 1.0
        %v844 = vadd.f32 %v758, 1.0
        %v845 = vadd.f32 %v760, 1.0
        %v846 = vadd.f32 %v762, 1.0
        %v847 = vadd.f32 %v764, 1.0
        %v848 = vadd.f32 %v766, 1.0
        %v849 = vadd.f32 %v768, 1.0
        %v850 = vadd.f32 %v770, 1.0
        %v851 = vadd.f32 %v772, 1.0
        %v852 = vadd.f32 %v774, 1.0
        %v853 = vadd.f32 %v776, 1.0
        %v854 = vadd.f32 %v778, 1.0
        %v855 = vadd.f32 %v780, 1.0
        %v856 = vadd.f32 %v782, 1.0
        %v857 = vadd.f32 %v784, 1.0
        %v858 = vadd.f32 %v786, 1.0
        %v859 = vadd.f32 %v788, 1.0
        %v860 = vadd.f32 %v790, 1.0
        %v861 = vadd.f32 %v792, 1.0
        %v862 = vadd.f32 %v794, 1.0
        %v863 = vadd.f32 %v796, 1.0
        %v864 = vadd.f32 %v798, 1.0
        %v865 = vadd.f32 %v800, 1.0
        %v866 = vadd.f32 %v802, 1.0
        %v867 = vrcp.pop %v803
        %v868 = vmul.f32 %v803, %v867
        %v869 = vsub.f32 1.0, %v868
        %v870 = vmul.f32 %v867, %v869
        %v871 = vadd.f32 %v867, %v870
        %vm872 = vweird.f32 %v803
        %vm873 = vweird.f32 %v867
        %vm874 = vmor %vm872, %vm873
        %v875 = vsel %vm874, %v867, %v871
        %v876 = vand.u32 2147483647, %v803
        %vm877 = vcmp.eq.f32.partialorder %v876, 8.507059e+37
        %v878 = vand.u32 %v803, 2147483648
        %v879 = vor.u32 1.1754944e-38, %v878
        %v880 = vsel %vm877, %v879, %v875
        %v881 = vmul.f32 1.0, %v880
        %v882 = vrcp.pop %v804
        %v883 = vmul.f32 %v804, %v882
        %v884 = vsub.f32 1.0, %v883
        %v885 = vmul.f32 %v882, %v884
        %v886 = vadd.f32 %v882, %v885
        %vm887 = vweird.f32 %v804
        %vm888 = vweird.f32 %v882
        %vm889 = vmor %vm887, %vm888
        %v890 = vsel %vm889, %v882, %v886
        %v891 = vand.u32 2147483647, %v804
        %vm892 = vcmp.eq.f32.partialorder %v891, 8.507059e+37
        %v893 = vand.u32 %v804, 2147483648
        %v894 = vor.u32 1.1754944e-38, %v893
        %v895 = vsel %vm892, %v894, %v890
        %v896 = vmul.f32 1.0, %v895
        %v897 = vrcp.pop %v805
        %v898 = vmul.f32 %v805, %v897
        %v899 = vsub.f32 1.0, %v898
        %v900 = vmul.f32 %v897, %v899
        %v901 = vadd.f32 %v897, %v900
        %vm902 = vweird.f32 %v805
        %vm903 = vweird.f32 %v897
        %vm904 = vmor %vm902, %vm903
        %v905 = vsel %vm904, %v897, %v901
        %v906 = vand.u32 2147483647, %v805
        %vm907 = vcmp.eq.f32.partialorder %v906, 8.507059e+37
        %v908 = vand.u32 %v805, 2147483648
        %v909 = vor.u32 1.1754944e-38, %v908
        %v910 = vsel %vm907, %v909, %v905
        %v911 = vmul.f32 1.0, %v910
        %v912 = vrcp.pop %v806
        %v913 = vmul.f32 %v806, %v912
        %v914 = vsub.f32 1.0, %v913
        %v915 = vmul.f32 %v912, %v914
        %v916 = vadd.f32 %v912, %v915
        %vm917 = vweird.f32 %v806
        %vm918 = vweird.f32 %v912
        %vm919 = vmor %vm917, %vm918
        %v920 = vsel %vm919, %v912, %v916
        %v921 = vand.u32 2147483647, %v806
        %vm922 = vcmp.eq.f32.partialorder %v921, 8.507059e+37
        %v923 = vand.u32 %v806, 2147483648
        %v924 = vor.u32 1.1754944e-38, %v923
        %v925 = vsel %vm922, %v924, %v920
        %v926 = vmul.f32 1.0, %v925
        %v927 = vrcp.pop %v807
        %v928 = vmul.f32 %v807, %v927
        %v929 = vsub.f32 1.0, %v928
        %v930 = vmul.f32 %v927, %v929
        %v931 = vadd.f32 %v927, %v930
        %vm932 = vweird.f32 %v807
        %vm933 = vweird.f32 %v927
        %vm934 = vmor %vm932, %vm933
        %v935 = vsel %vm934, %v927, %v931
        %v936 = vand.u32 2147483647, %v807
        %vm937 = vcmp.eq.f32.partialorder %v936, 8.507059e+37
        %v938 = vand.u32 %v807, 2147483648
        %v939 = vor.u32 1.1754944e-38, %v938
        %v940 = vsel %vm937, %v939, %v935
        %v941 = vmul.f32 1.0, %v940
        %v942 = vrcp.pop %v808
        %v943 = vmul.f32 %v808, %v942
        %v944 = vsub.f32 1.0, %v943
        %v945 = vmul.f32 %v942, %v944
        %v946 = vadd.f32 %v942, %v945
        %vm947 = vweird.f32 %v808
        %vm948 = vweird.f32 %v942
        %vm949 = vmor %vm947, %vm948
        %v950 = vsel %vm949, %v942, %v946
        %v951 = vand.u32 2147483647, %v808
        %vm952 = vcmp.eq.f32.partialorder %v951, 8.507059e+37
        %v953 = vand.u32 %v808, 2147483648
        %v954 = vor.u32 1.1754944e-38, %v953
        %v955 = vsel %vm952, %v954, %v950
        %v956 = vmul.f32 1.0, %v955
        %v957 = vrcp.pop %v809
        %v958 = vmul.f32 %v809, %v957
        %v959 = vsub.f32 1.0, %v958
        %v960 = vmul.f32 %v957, %v959
        %v961 = vadd.f32 %v957, %v960
        %vm962 = vweird.f32 %v809
        %vm963 = vweird.f32 %v957
        %vm964 = vmor %vm962, %vm963
        %v965 = vsel %vm964, %v957, %v961
        %v966 = vand.u32 2147483647, %v809
        %vm967 = vcmp.eq.f32.partialorder %v966, 8.507059e+37
        %v968 = vand.u32 %v809, 2147483648
        %v969 = vor.u32 1.1754944e-38, %v968
        %v970 = vsel %vm967, %v969, %v965
        %v971 = vmul.f32 1.0, %v970
        %v972 = vrcp.pop %v810
        %v973 = vmul.f32 %v810, %v972
        %v974 = vsub.f32 1.0, %v973
        %v975 = vmul.f32 %v972, %v974
        %v976 = vadd.f32 %v972, %v975
        %vm977 = vweird.f32 %v810
        %vm978 = vweird.f32 %v972
        %vm979 = vmor %vm977, %vm978
        %v980 = vsel %vm979, %v972, %v976
        %v981 = vand.u32 2147483647, %v810
        %vm982 = vcmp.eq.f32.partialorder %v981, 8.507059e+37
        %v983 = vand.u32 %v810, 2147483648
        %v984 = vor.u32 1.1754944e-38, %v983
        %v985 = vsel %vm982, %v984, %v980
        %v986 = vmul.f32 1.0, %v985
        %v987 = vrcp.pop %v811
        %v988 = vmul.f32 %v811, %v987
        %v989 = vsub.f32 1.0, %v988
        %v990 = vmul.f32 %v987, %v989
        %v991 = vadd.f32 %v987, %v990
        %vm992 = vweird.f32 %v811
        %vm993 = vweird.f32 %v987
        %vm994 = vmor %vm992, %vm993
        %v995 = vsel %vm994, %v987, %v991
        %v996 = vand.u32 2147483647, %v811
        %vm997 = vcmp.eq.f32.partialorder %v996, 8.507059e+37
        %v998 = vand.u32 %v811, 2147483648
        %v999 = vor.u32 1.1754944e-38, %v998
        %v1000 = vsel %vm997, %v999, %v995
        %v1001 = vmul.f32 1.0, %v1000
        %v1002 = vrcp.pop %v812
        %v1003 = vmul.f32 %v812, %v1002
        %v1004 = vsub.f32 1.0, %v1003
        %v1005 = vmul.f32 %v1002, %v1004
        %v1006 = vadd.f32 %v1002, %v1005
        %vm1007 = vweird.f32 %v812
        %vm1008 = vweird.f32 %v1002
        %vm1009 = vmor %vm1007, %vm1008
        %v1010 = vsel %vm1009, %v1002, %v1006
        %v1011 = vand.u32 2147483647, %v812
        %vm1012 = vcmp.eq.f32.partialorder %v1011, 8.507059e+37
        %v1013 = vand.u32 %v812, 2147483648
        %v1014 = vor.u32 1.1754944e-38, %v1013
        %v1015 = vsel %vm1012, %v1014, %v1010
        %v1016 = vmul.f32 1.0, %v1015
        %v1017 = vrcp.pop %v813
        %v1018 = vmul.f32 %v813, %v1017
        %v1019 = vsub.f32 1.0, %v1018
        %v1020 = vmul.f32 %v1017, %v1019
        %v1021 = vadd.f32 %v1017, %v1020
        %vm1022 = vweird.f32 %v813
        %vm1023 = vweird.f32 %v1017
        %vm1024 = vmor %vm1022, %vm1023
        %v1025 = vsel %vm1024, %v1017, %v1021
        %v1026 = vand.u32 2147483647, %v813
        %vm1027 = vcmp.eq.f32.partialorder %v1026, 8.507059e+37
        %v1028 = vand.u32 %v813, 2147483648
        %v1029 = vor.u32 1.1754944e-38, %v1028
        %v1030 = vsel %vm1027, %v1029, %v1025
        %v1031 = vmul.f32 1.0, %v1030
        %v1032 = vrcp.pop %v814
        %v1033 = vmul.f32 %v814, %v1032
        %v1034 = vsub.f32 1.0, %v1033
        %v1035 = vmul.f32 %v1032, %v1034
        %v1036 = vadd.f32 %v1032, %v1035
        %vm1037 = vweird.f32 %v814
        %vm1038 = vweird.f32 %v1032
        %vm1039 = vmor %vm1037, %vm1038
        %v1040 = vsel %vm1039, %v1032, %v1036
        %v1041 = vand.u32 2147483647, %v814
        %vm1042 = vcmp.eq.f32.partialorder %v1041, 8.507059e+37
        %v1043 = vand.u32 %v814, 2147483648
        %v1044 = vor.u32 1.1754944e-38, %v1043
        %v1045 = vsel %vm1042, %v1044, %v1040
        %v1046 = vmul.f32 1.0, %v1045
        %v1047 = vrcp.pop %v815
        %v1048 = vmul.f32 %v815, %v1047
        %v1049 = vsub.f32 1.0, %v1048
        %v1050 = vmul.f32 %v1047, %v1049
        %v1051 = vadd.f32 %v1047, %v1050
        %vm1052 = vweird.f32 %v815
        %vm1053 = vweird.f32 %v1047
        %vm1054 = vmor %vm1052, %vm1053
        %v1055 = vsel %vm1054, %v1047, %v1051
        %v1056 = vand.u32 2147483647, %v815
        %vm1057 = vcmp.eq.f32.partialorder %v1056, 8.507059e+37
        %v1058 = vand.u32 %v815, 2147483648
        %v1059 = vor.u32 1.1754944e-38, %v1058
        %v1060 = vsel %vm1057, %v1059, %v1055
        %v1061 = vmul.f32 1.0, %v1060
        %v1062 = vrcp.pop %v816
        %v1063 = vmul.f32 %v816, %v1062
        %v1064 = vsub.f32 1.0, %v1063
        %v1065 = vmul.f32 %v1062, %v1064
        %v1066 = vadd.f32 %v1062, %v1065
        %vm1067 = vweird.f32 %v816
        %vm1068 = vweird.f32 %v1062
        %vm1069 = vmor %vm1067, %vm1068
        %v1070 = vsel %vm1069, %v1062, %v1066
        %v1071 = vand.u32 2147483647, %v816
        %vm1072 = vcmp.eq.f32.partialorder %v1071, 8.507059e+37
        %v1073 = vand.u32 %v816, 2147483648
        %v1074 = vor.u32 1.1754944e-38, %v1073
        %v1075 = vsel %vm1072, %v1074, %v1070
        %v1076 = vmul.f32 1.0, %v1075
        %v1077 = vrcp.pop %v817
        %v1078 = vmul.f32 %v817, %v1077
        %v1079 = vsub.f32 1.0, %v1078
        %v1080 = vmul.f32 %v1077, %v1079
        %v1081 = vadd.f32 %v1077, %v1080
        %vm1082 = vweird.f32 %v817
        %vm1083 = vweird.f32 %v1077
        %vm1084 = vmor %vm1082, %vm1083
        %v1085 = vsel %vm1084, %v1077, %v1081
        %v1086 = vand.u32 2147483647, %v817
        %vm1087 = vcmp.eq.f32.partialorder %v1086, 8.507059e+37
        %v1088 = vand.u32 %v817, 2147483648
        %v1089 = vor.u32 1.1754944e-38, %v1088
        %v1090 = vsel %vm1087, %v1089, %v1085
        %v1091 = vmul.f32 1.0, %v1090
        %v1092 = vrcp.pop %v818
        %v1093 = vmul.f32 %v818, %v1092
        %v1094 = vsub.f32 1.0, %v1093
        %v1095 = vmul.f32 %v1092, %v1094
        %v1096 = vadd.f32 %v1092, %v1095
        %vm1097 = vweird.f32 %v818
        %vm1098 = vweird.f32 %v1092
        %vm1099 = vmor %vm1097, %vm1098
        %v1100 = vsel %vm1099, %v1092, %v1096
        %v1101 = vand.u32 2147483647, %v818
        %vm1102 = vcmp.eq.f32.partialorder %v1101, 8.507059e+37
        %v1103 = vand.u32 %v818, 2147483648
        %v1104 = vor.u32 1.1754944e-38, %v1103
        %v1105 = vsel %vm1102, %v1104, %v1100
        %v1106 = vmul.f32 1.0, %v1105
        %v1107 = vrcp.pop %v819
        %v1108 = vmul.f32 %v819, %v1107
        %v1109 = vsub.f32 1.0, %v1108
        %v1110 = vmul.f32 %v1107, %v1109
        %v1111 = vadd.f32 %v1107, %v1110
        %vm1112 = vweird.f32 %v819
        %vm1113 = vweird.f32 %v1107
        %vm1114 = vmor %vm1112, %vm1113
        %v1115 = vsel %vm1114, %v1107, %v1111
        %v1116 = vand.u32 2147483647, %v819
        %vm1117 = vcmp.eq.f32.partialorder %v1116, 8.507059e+37
        %v1118 = vand.u32 %v819, 2147483648
        %v1119 = vor.u32 1.1754944e-38, %v1118
        %v1120 = vsel %vm1117, %v1119, %v1115
        %v1121 = vmul.f32 1.0, %v1120
        %v1122 = vrcp.pop %v820
        %v1123 = vmul.f32 %v820, %v1122
        %v1124 = vsub.f32 1.0, %v1123
        %v1125 = vmul.f32 %v1122, %v1124
        %v1126 = vadd.f32 %v1122, %v1125
        %vm1127 = vweird.f32 %v820
        %vm1128 = vweird.f32 %v1122
        %vm1129 = vmor %vm1127, %vm1128
        %v1130 = vsel %vm1129, %v1122, %v1126
        %v1131 = vand.u32 2147483647, %v820
        %vm1132 = vcmp.eq.f32.partialorder %v1131, 8.507059e+37
        %v1133 = vand.u32 %v820, 2147483648
        %v1134 = vor.u32 1.1754944e-38, %v1133
        %v1135 = vsel %vm1132, %v1134, %v1130
        %v1136 = vmul.f32 1.0, %v1135
        %v1137 = vrcp.pop %v821
        %v1138 = vmul.f32 %v821, %v1137
        %v1139 = vsub.f32 1.0, %v1138
        %v1140 = vmul.f32 %v1137, %v1139
        %v1141 = vadd.f32 %v1137, %v1140
        %vm1142 = vweird.f32 %v821
        %vm1143 = vweird.f32 %v1137
        %vm1144 = vmor %vm1142, %vm1143
        %v1145 = vsel %vm1144, %v1137, %v1141
        %v1146 = vand.u32 2147483647, %v821
        %vm1147 = vcmp.eq.f32.partialorder %v1146, 8.507059e+37
        %v1148 = vand.u32 %v821, 2147483648
        %v1149 = vor.u32 1.1754944e-38, %v1148
        %v1150 = vsel %vm1147, %v1149, %v1145
        %v1151 = vmul.f32 1.0, %v1150
        %v1152 = vrcp.pop %v822
        %v1153 = vmul.f32 %v822, %v1152
        %v1154 = vsub.f32 1.0, %v1153
        %v1155 = vmul.f32 %v1152, %v1154
        %v1156 = vadd.f32 %v1152, %v1155
        %vm1157 = vweird.f32 %v822
        %vm1158 = vweird.f32 %v1152
        %vm1159 = vmor %vm1157, %vm1158
        %v1160 = vsel %vm1159, %v1152, %v1156
        %v1161 = vand.u32 2147483647, %v822
        %vm1162 = vcmp.eq.f32.partialorder %v1161, 8.507059e+37
        %v1163 = vand.u32 %v822, 2147483648
        %v1164 = vor.u32 1.1754944e-38, %v1163
        %v1165 = vsel %vm1162, %v1164, %v1160
        %v1166 = vmul.f32 1.0, %v1165
        %v1167 = vrcp.pop %v823
        %v1168 = vmul.f32 %v823, %v1167
        %v1169 = vsub.f32 1.0, %v1168
        %v1170 = vmul.f32 %v1167, %v1169
        %v1171 = vadd.f32 %v1167, %v1170
        %vm1172 = vweird.f32 %v823
        %vm1173 = vweird.f32 %v1167
        %vm1174 = vmor %vm1172, %vm1173
        %v1175 = vsel %vm1174, %v1167, %v1171
        %v1176 = vand.u32 2147483647, %v823
        %vm1177 = vcmp.eq.f32.partialorder %v1176, 8.507059e+37
        %v1178 = vand.u32 %v823, 2147483648
        %v1179 = vor.u32 1.1754944e-38, %v1178
        %v1180 = vsel %vm1177, %v1179, %v1175
        %v1181 = vmul.f32 1.0, %v1180
        %v1182 = vrcp.pop %v824
        %v1183 = vmul.f32 %v824, %v1182
        %v1184 = vsub.f32 1.0, %v1183
        %v1185 = vmul.f32 %v1182, %v1184
        %v1186 = vadd.f32 %v1182, %v1185
        %vm1187 = vweird.f32 %v824
        %vm1188 = vweird.f32 %v1182
        %vm1189 = vmor %vm1187, %vm1188
        %v1190 = vsel %vm1189, %v1182, %v1186
        %v1191 = vand.u32 2147483647, %v824
        %vm1192 = vcmp.eq.f32.partialorder %v1191, 8.507059e+37
        %v1193 = vand.u32 %v824, 2147483648
        %v1194 = vor.u32 1.1754944e-38, %v1193
        %v1195 = vsel %vm1192, %v1194, %v1190
        %v1196 = vmul.f32 1.0, %v1195
        %v1197 = vrcp.pop %v825
        %v1198 = vmul.f32 %v825, %v1197
        %v1199 = vsub.f32 1.0, %v1198
        %v1200 = vmul.f32 %v1197, %v1199
        %v1201 = vadd.f32 %v1197, %v1200
        %vm1202 = vweird.f32 %v825
        %vm1203 = vweird.f32 %v1197
        %vm1204 = vmor %vm1202, %vm1203
        %v1205 = vsel %vm1204, %v1197, %v1201
        %v1206 = vand.u32 2147483647, %v825
        %vm1207 = vcmp.eq.f32.partialorder %v1206, 8.507059e+37
        %v1208 = vand.u32 %v825, 2147483648
        %v1209 = vor.u32 1.1754944e-38, %v1208
        %v1210 = vsel %vm1207, %v1209, %v1205
        %v1211 = vmul.f32 1.0, %v1210
        %v1212 = vrcp.pop %v826
        %v1213 = vmul.f32 %v826, %v1212
        %v1214 = vsub.f32 1.0, %v1213
        %v1215 = vmul.f32 %v1212, %v1214
        %v1216 = vadd.f32 %v1212, %v1215
        %vm1217 = vweird.f32 %v826
        %vm1218 = vweird.f32 %v1212
        %vm1219 = vmor %vm1217, %vm1218
        %v1220 = vsel %vm1219, %v1212, %v1216
        %v1221 = vand.u32 2147483647, %v826
        %vm1222 = vcmp.eq.f32.partialorder %v1221, 8.507059e+37
        %v1223 = vand.u32 %v826, 2147483648
        %v1224 = vor.u32 1.1754944e-38, %v1223
        %v1225 = vsel %vm1222, %v1224, %v1220
        %v1226 = vmul.f32 1.0, %v1225
        %v1227 = vrcp.pop %v827
        %v1228 = vmul.f32 %v827, %v1227
        %v1229 = vsub.f32 1.0, %v1228
        %v1230 = vmul.f32 %v1227, %v1229
        %v1231 = vadd.f32 %v1227, %v1230
        %vm1232 = vweird.f32 %v827
        %vm1233 = vweird.f32 %v1227
        %vm1234 = vmor %vm1232, %vm1233
        %v1235 = vsel %vm1234, %v1227, %v1231
        %v1236 = vand.u32 2147483647, %v827
        %vm1237 = vcmp.eq.f32.partialorder %v1236, 8.507059e+37
        %v1238 = vand.u32 %v827, 2147483648
        %v1239 = vor.u32 1.1754944e-38, %v1238
        %v1240 = vsel %vm1237, %v1239, %v1235
        %v1241 = vmul.f32 1.0, %v1240
        %v1242 = vrcp.pop %v828
        %v1243 = vmul.f32 %v828, %v1242
        %v1244 = vsub.f32 1.0, %v1243
        %v1245 = vmul.f32 %v1242, %v1244
        %v1246 = vadd.f32 %v1242, %v1245
        %vm1247 = vweird.f32 %v828
        %vm1248 = vweird.f32 %v1242
        %vm1249 = vmor %vm1247, %vm1248
        %v1250 = vsel %vm1249, %v1242, %v1246
        %v1251 = vand.u32 2147483647, %v828
        %vm1252 = vcmp.eq.f32.partialorder %v1251, 8.507059e+37
        %v1253 = vand.u32 %v828, 2147483648
        %v1254 = vor.u32 1.1754944e-38, %v1253
        %v1255 = vsel %vm1252, %v1254, %v1250
        %v1256 = vmul.f32 1.0, %v1255
        %v1257 = vrcp.pop %v829
        %v1258 = vmul.f32 %v829, %v1257
        %v1259 = vsub.f32 1.0, %v1258
        %v1260 = vmul.f32 %v1257, %v1259
        %v1261 = vadd.f32 %v1257, %v1260
        %vm1262 = vweird.f32 %v829
        %vm1263 = vweird.f32 %v1257
        %vm1264 = vmor %vm1262, %vm1263
        %v1265 = vsel %vm1264, %v1257, %v1261
        %v1266 = vand.u32 2147483647, %v829
        %vm1267 = vcmp.eq.f32.partialorder %v1266, 8.507059e+37
        %v1268 = vand.u32 %v829, 2147483648
        %v1269 = vor.u32 1.1754944e-38, %v1268
        %v1270 = vsel %vm1267, %v1269, %v1265
        %v1271 = vmul.f32 1.0, %v1270
        %v1272 = vrcp.pop %v830
        %v1273 = vmul.f32 %v830, %v1272
        %v1274 = vsub.f32 1.0, %v1273
        %v1275 = vmul.f32 %v1272, %v1274
        %v1276 = vadd.f32 %v1272, %v1275
        %vm1277 = vweird.f32 %v830
        %vm1278 = vweird.f32 %v1272
        %vm1279 = vmor %vm1277, %vm1278
        %v1280 = vsel %vm1279, %v1272, %v1276
        %v1281 = vand.u32 2147483647, %v830
        %vm1282 = vcmp.eq.f32.partialorder %v1281, 8.507059e+37
        %v1283 = vand.u32 %v830, 2147483648
        %v1284 = vor.u32 1.1754944e-38, %v1283
        %v1285 = vsel %vm1282, %v1284, %v1280
        %v1286 = vmul.f32 1.0, %v1285
        %v1287 = vrcp.pop %v831
        %v1288 = vmul.f32 %v831, %v1287
        %v1289 = vsub.f32 1.0, %v1288
        %v1290 = vmul.f32 %v1287, %v1289
        %v1291 = vadd.f32 %v1287, %v1290
        %vm1292 = vweird.f32 %v831
        %vm1293 = vweird.f32 %v1287
        %vm1294 = vmor %vm1292, %vm1293
        %v1295 = vsel %vm1294, %v1287, %v1291
        %v1296 = vand.u32 2147483647, %v831
        %vm1297 = vcmp.eq.f32.partialorder %v1296, 8.507059e+37
        %v1298 = vand.u32 %v831, 2147483648
        %v1299 = vor.u32 1.1754944e-38, %v1298
        %v1300 = vsel %vm1297, %v1299, %v1295
        %v1301 = vmul.f32 1.0, %v1300
        %v1302 = vrcp.pop %v832
        %v1303 = vmul.f32 %v832, %v1302
        %v1304 = vsub.f32 1.0, %v1303
        %v1305 = vmul.f32 %v1302, %v1304
        %v1306 = vadd.f32 %v1302, %v1305
        %vm1307 = vweird.f32 %v832
        %vm1308 = vweird.f32 %v1302
        %vm1309 = vmor %vm1307, %vm1308
        %v1310 = vsel %vm1309, %v1302, %v1306
        %v1311 = vand.u32 2147483647, %v832
        %vm1312 = vcmp.eq.f32.partialorder %v1311, 8.507059e+37
        %v1313 = vand.u32 %v832, 2147483648
        %v1314 = vor.u32 1.1754944e-38, %v1313
        %v1315 = vsel %vm1312, %v1314, %v1310
        %v1316 = vmul.f32 1.0, %v1315
        %v1317 = vrcp.pop %v833
        %v1318 = vmul.f32 %v833, %v1317
        %v1319 = vsub.f32 1.0, %v1318
        %v1320 = vmul.f32 %v1317, %v1319
        %v1321 = vadd.f32 %v1317, %v1320
        %vm1322 = vweird.f32 %v833
        %vm1323 = vweird.f32 %v1317
        %vm1324 = vmor %vm1322, %vm1323
        %v1325 = vsel %vm1324, %v1317, %v1321
        %v1326 = vand.u32 2147483647, %v833
        %vm1327 = vcmp.eq.f32.partialorder %v1326, 8.507059e+37
        %v1328 = vand.u32 %v833, 2147483648
        %v1329 = vor.u32 1.1754944e-38, %v1328
        %v1330 = vsel %vm1327, %v1329, %v1325
        %v1331 = vmul.f32 1.0, %v1330
        %v1332 = vrcp.pop %v834
        %v1333 = vmul.f32 %v834, %v1332
        %v1334 = vsub.f32 1.0, %v1333
        %v1335 = vmul.f32 %v1332, %v1334
        %v1336 = vadd.f32 %v1332, %v1335
        %vm1337 = vweird.f32 %v834
        %vm1338 = vweird.f32 %v1332
        %vm1339 = vmor %vm1337, %vm1338
        %v1340 = vsel %vm1339, %v1332, %v1336
        %v1341 = vand.u32 2147483647, %v834
        %vm1342 = vcmp.eq.f32.partialorder %v1341, 8.507059e+37
        %v1343 = vand.u32 %v834, 2147483648
        %v1344 = vor.u32 1.1754944e-38, %v1343
        %v1345 = vsel %vm1342, %v1344, %v1340
        %v1346 = vmul.f32 1.0, %v1345
        %v1347 = vrcp.pop %v835
        %v1348 = vmul.f32 %v835, %v1347
        %v1349 = vsub.f32 1.0, %v1348
        %v1350 = vmul.f32 %v1347, %v1349
        %v1351 = vadd.f32 %v1347, %v1350
        %vm1352 = vweird.f32 %v835
        %vm1353 = vweird.f32 %v1347
        %vm1354 = vmor %vm1352, %vm1353
        %v1355 = vsel %vm1354, %v1347, %v1351
        %v1356 = vand.u32 2147483647, %v835
        %vm1357 = vcmp.eq.f32.partialorder %v1356, 8.507059e+37
        %v1358 = vand.u32 %v835, 2147483648
        %v1359 = vor.u32 1.1754944e-38, %v1358
        %v1360 = vsel %vm1357, %v1359, %v1355
        %v1361 = vmul.f32 1.0, %v1360
        %v1362 = vrcp.pop %v836
        %v1363 = vmul.f32 %v836, %v1362
        %v1364 = vsub.f32 1.0, %v1363
        %v1365 = vmul.f32 %v1362, %v1364
        %v1366 = vadd.f32 %v1362, %v1365
        %vm1367 = vweird.f32 %v836
        %vm1368 = vweird.f32 %v1362
        %vm1369 = vmor %vm1367, %vm1368
        %v1370 = vsel %vm1369, %v1362, %v1366
        %v1371 = vand.u32 2147483647, %v836
        %vm1372 = vcmp.eq.f32.partialorder %v1371, 8.507059e+37
        %v1373 = vand.u32 %v836, 2147483648
        %v1374 = vor.u32 1.1754944e-38, %v1373
        %v1375 = vsel %vm1372, %v1374, %v1370
        %v1376 = vmul.f32 1.0, %v1375
        %v1377 = vrcp.pop %v837
        %v1378 = vmul.f32 %v837, %v1377
        %v1379 = vsub.f32 1.0, %v1378
        %v1380 = vmul.f32 %v1377, %v1379
        %v1381 = vadd.f32 %v1377, %v1380
        %vm1382 = vweird.f32 %v837
        %vm1383 = vweird.f32 %v1377
        %vm1384 = vmor %vm1382, %vm1383
        %v1385 = vsel %vm1384, %v1377, %v1381
        %v1386 = vand.u32 2147483647, %v837
        %vm1387 = vcmp.eq.f32.partialorder %v1386, 8.507059e+37
        %v1388 = vand.u32 %v837, 2147483648
        %v1389 = vor.u32 1.1754944e-38, %v1388
        %v1390 = vsel %vm1387, %v1389, %v1385
        %v1391 = vmul.f32 1.0, %v1390
        %v1392 = vrcp.pop %v838
        %v1393 = vmul.f32 %v838, %v1392
        %v1394 = vsub.f32 1.0, %v1393
        %v1395 = vmul.f32 %v1392, %v1394
        %v1396 = vadd.f32 %v1392, %v1395
        %vm1397 = vweird.f32 %v838
        %vm1398 = vweird.f32 %v1392
        %vm1399 = vmor %vm1397, %vm1398
        %v1400 = vsel %vm1399, %v1392, %v1396
        %v1401 = vand.u32 2147483647, %v838
        %vm1402 = vcmp.eq.f32.partialorder %v1401, 8.507059e+37
        %v1403 = vand.u32 %v838, 2147483648
        %v1404 = vor.u32 1.1754944e-38, %v1403
        %v1405 = vsel %vm1402, %v1404, %v1400
        %v1406 = vmul.f32 1.0, %v1405
        %v1407 = vrcp.pop %v839
        %v1408 = vmul.f32 %v839, %v1407
        %v1409 = vsub.f32 1.0, %v1408
        %v1410 = vmul.f32 %v1407, %v1409
        %v1411 = vadd.f32 %v1407, %v1410
        %vm1412 = vweird.f32 %v839
        %vm1413 = vweird.f32 %v1407
        %vm1414 = vmor %vm1412, %vm1413
        %v1415 = vsel %vm1414, %v1407, %v1411
        %v1416 = vand.u32 2147483647, %v839
        %vm1417 = vcmp.eq.f32.partialorder %v1416, 8.507059e+37
        %v1418 = vand.u32 %v839, 2147483648
        %v1419 = vor.u32 1.1754944e-38, %v1418
        %v1420 = vsel %vm1417, %v1419, %v1415
        %v1421 = vmul.f32 1.0, %v1420
        %v1422 = vrcp.pop %v840
        %v1423 = vmul.f32 %v840, %v1422
        %v1424 = vsub.f32 1.0, %v1423
        %v1425 = vmul.f32 %v1422, %v1424
        %v1426 = vadd.f32 %v1422, %v1425
        %vm1427 = vweird.f32 %v840
        %vm1428 = vweird.f32 %v1422
        %vm1429 = vmor %vm1427, %vm1428
        %v1430 = vsel %vm1429, %v1422, %v1426
        %v1431 = vand.u32 2147483647, %v840
        %vm1432 = vcmp.eq.f32.partialorder %v1431, 8.507059e+37
        %v1433 = vand.u32 %v840, 2147483648
        %v1434 = vor.u32 1.1754944e-38, %v1433
        %v1435 = vsel %vm1432, %v1434, %v1430
        %v1436 = vmul.f32 1.0, %v1435
        %v1437 = vrcp.pop %v841
        %v1438 = vmul.f32 %v841, %v1437
        %v1439 = vsub.f32 1.0, %v1438
        %v1440 = vmul.f32 %v1437, %v1439
        %v1441 = vadd.f32 %v1437, %v1440
        %vm1442 = vweird.f32 %v841
        %vm1443 = vweird.f32 %v1437
        %vm1444 = vmor %vm1442, %vm1443
        %v1445 = vsel %vm1444, %v1437, %v1441
        %v1446 = vand.u32 2147483647, %v841
        %vm1447 = vcmp.eq.f32.partialorder %v1446, 8.507059e+37
        %v1448 = vand.u32 %v841, 2147483648
        %v1449 = vor.u32 1.1754944e-38, %v1448
        %v1450 = vsel %vm1447, %v1449, %v1445
        %v1451 = vmul.f32 1.0, %v1450
        %v1452 = vrcp.pop %v842
        %v1453 = vmul.f32 %v842, %v1452
        %v1454 = vsub.f32 1.0, %v1453
        %v1455 = vmul.f32 %v1452, %v1454
        %v1456 = vadd.f32 %v1452, %v1455
        %vm1457 = vweird.f32 %v842
        %vm1458 = vweird.f32 %v1452
        %vm1459 = vmor %vm1457, %vm1458
        %v1460 = vsel %vm1459, %v1452, %v1456
        %v1461 = vand.u32 2147483647, %v842
        %vm1462 = vcmp.eq.f32.partialorder %v1461, 8.507059e+37
        %v1463 = vand.u32 %v842, 2147483648
        %v1464 = vor.u32 1.1754944e-38, %v1463
        %v1465 = vsel %vm1462, %v1464, %v1460
        %v1466 = vmul.f32 1.0, %v1465
        %v1467 = vrcp.pop %v843
        %v1468 = vmul.f32 %v843, %v1467
        %v1469 = vsub.f32 1.0, %v1468
        %v1470 = vmul.f32 %v1467, %v1469
        %v1471 = vadd.f32 %v1467, %v1470
        %vm1472 = vweird.f32 %v843
        %vm1473 = vweird.f32 %v1467
        %vm1474 = vmor %vm1472, %vm1473
        %v1475 = vsel %vm1474, %v1467, %v1471
        %v1476 = vand.u32 2147483647, %v843
        %vm1477 = vcmp.eq.f32.partialorder %v1476, 8.507059e+37
        %v1478 = vand.u32 %v843, 2147483648
        %v1479 = vor.u32 1.1754944e-38, %v1478
        %v1480 = vsel %vm1477, %v1479, %v1475
        %v1481 = vmul.f32 1.0, %v1480
        %v1482 = vrcp.pop %v844
        %v1483 = vmul.f32 %v844, %v1482
        %v1484 = vsub.f32 1.0, %v1483
        %v1485 = vmul.f32 %v1482, %v1484
        %v1486 = vadd.f32 %v1482, %v1485
        %vm1487 = vweird.f32 %v844
        %vm1488 = vweird.f32 %v1482
        %vm1489 = vmor %vm1487, %vm1488
        %v1490 = vsel %vm1489, %v1482, %v1486
        %v1491 = vand.u32 2147483647, %v844
        %vm1492 = vcmp.eq.f32.partialorder %v1491, 8.507059e+37
        %v1493 = vand.u32 %v844, 2147483648
        %v1494 = vor.u32 1.1754944e-38, %v1493
        %v1495 = vsel %vm1492, %v1494, %v1490
        %v1496 = vmul.f32 1.0, %v1495
        %v1497 = vrcp.pop %v845
        %v1498 = vmul.f32 %v845, %v1497
        %v1499 = vsub.f32 1.0, %v1498
        %v1500 = vmul.f32 %v1497, %v1499
        %v1501 = vadd.f32 %v1497, %v1500
        %vm1502 = vweird.f32 %v845
        %vm1503 = vweird.f32 %v1497
        %vm1504 = vmor %vm1502, %vm1503
        %v1505 = vsel %vm1504, %v1497, %v1501
        %v1506 = vand.u32 2147483647, %v845
        %vm1507 = vcmp.eq.f32.partialorder %v1506, 8.507059e+37
        %v1508 = vand.u32 %v845, 2147483648
        %v1509 = vor.u32 1.1754944e-38, %v1508
        %v1510 = vsel %vm1507, %v1509, %v1505
        %v1511 = vmul.f32 1.0, %v1510
        %v1512 = vrcp.pop %v846
        %v1513 = vmul.f32 %v846, %v1512
        %v1514 = vsub.f32 1.0, %v1513
        %v1515 = vmul.f32 %v1512, %v1514
        %v1516 = vadd.f32 %v1512, %v1515
        %vm1517 = vweird.f32 %v846
        %vm1518 = vweird.f32 %v1512
        %vm1519 = vmor %vm1517, %vm1518
        %v1520 = vsel %vm1519, %v1512, %v1516
        %v1521 = vand.u32 2147483647, %v846
        %vm1522 = vcmp.eq.f32.partialorder %v1521, 8.507059e+37
        %v1523 = vand.u32 %v846, 2147483648
        %v1524 = vor.u32 1.1754944e-38, %v1523
        %v1525 = vsel %vm1522, %v1524, %v1520
        %v1526 = vmul.f32 1.0, %v1525
        %v1527 = vrcp.pop %v847
        %v1528 = vmul.f32 %v847, %v1527
        %v1529 = vsub.f32 1.0, %v1528
        %v1530 = vmul.f32 %v1527, %v1529
        %v1531 = vadd.f32 %v1527, %v1530
        %vm1532 = vweird.f32 %v847
        %vm1533 = vweird.f32 %v1527
        %vm1534 = vmor %vm1532, %vm1533
        %v1535 = vsel %vm1534, %v1527, %v1531
        %v1536 = vand.u32 2147483647, %v847
        %vm1537 = vcmp.eq.f32.partialorder %v1536, 8.507059e+37
        %v1538 = vand.u32 %v847, 2147483648
        %v1539 = vor.u32 1.1754944e-38, %v1538
        %v1540 = vsel %vm1537, %v1539, %v1535
        %v1541 = vmul.f32 1.0, %v1540
        %v1542 = vrcp.pop %v848
        %v1543 = vmul.f32 %v848, %v1542
        %v1544 = vsub.f32 1.0, %v1543
        %v1545 = vmul.f32 %v1542, %v1544
        %v1546 = vadd.f32 %v1542, %v1545
        %vm1547 = vweird.f32 %v848
        %vm1548 = vweird.f32 %v1542
        %vm1549 = vmor %vm1547, %vm1548
        %v1550 = vsel %vm1549, %v1542, %v1546
        %v1551 = vand.u32 2147483647, %v848
        %vm1552 = vcmp.eq.f32.partialorder %v1551, 8.507059e+37
        %v1553 = vand.u32 %v848, 2147483648
        %v1554 = vor.u32 1.1754944e-38, %v1553
        %v1555 = vsel %vm1552, %v1554, %v1550
        %v1556 = vmul.f32 1.0, %v1555
        %v1557 = vrcp.pop %v849
        %v1558 = vmul.f32 %v849, %v1557
        %v1559 = vsub.f32 1.0, %v1558
        %v1560 = vmul.f32 %v1557, %v1559
        %v1561 = vadd.f32 %v1557, %v1560
        %vm1562 = vweird.f32 %v849
        %vm1563 = vweird.f32 %v1557
        %vm1564 = vmor %vm1562, %vm1563
        %v1565 = vsel %vm1564, %v1557, %v1561
        %v1566 = vand.u32 2147483647, %v849
        %vm1567 = vcmp.eq.f32.partialorder %v1566, 8.507059e+37
        %v1568 = vand.u32 %v849, 2147483648
        %v1569 = vor.u32 1.1754944e-38, %v1568
        %v1570 = vsel %vm1567, %v1569, %v1565
        %v1571 = vmul.f32 1.0, %v1570
        %v1572 = vrcp.pop %v850
        %v1573 = vmul.f32 %v850, %v1572
        %v1574 = vsub.f32 1.0, %v1573
        %v1575 = vmul.f32 %v1572, %v1574
        %v1576 = vadd.f32 %v1572, %v1575
        %vm1577 = vweird.f32 %v850
        %vm1578 = vweird.f32 %v1572
        %vm1579 = vmor %vm1577, %vm1578
        %v1580 = vsel %vm1579, %v1572, %v1576
        %v1581 = vand.u32 2147483647, %v850
        %vm1582 = vcmp.eq.f32.partialorder %v1581, 8.507059e+37
        %v1583 = vand.u32 %v850, 2147483648
        %v1584 = vor.u32 1.1754944e-38, %v1583
        %v1585 = vsel %vm1582, %v1584, %v1580
        %v1586 = vmul.f32 1.0, %v1585
        %v1587 = vrcp.pop %v851
        %v1588 = vmul.f32 %v851, %v1587
        %v1589 = vsub.f32 1.0, %v1588
        %v1590 = vmul.f32 %v1587, %v1589
        %v1591 = vadd.f32 %v1587, %v1590
        %vm1592 = vweird.f32 %v851
        %vm1593 = vweird.f32 %v1587
        %vm1594 = vmor %vm1592, %vm1593
        %v1595 = vsel %vm1594, %v1587, %v1591
        %v1596 = vand.u32 2147483647, %v851
        %vm1597 = vcmp.eq.f32.partialorder %v1596, 8.507059e+37
        %v1598 = vand.u32 %v851, 2147483648
        %v1599 = vor.u32 1.1754944e-38, %v1598
        %v1600 = vsel %vm1597, %v1599, %v1595
        %v1601 = vmul.f32 1.0, %v1600
        %v1602 = vrcp.pop %v852
        %v1603 = vmul.f32 %v852, %v1602
        %v1604 = vsub.f32 1.0, %v1603
        %v1605 = vmul.f32 %v1602, %v1604
        %v1606 = vadd.f32 %v1602, %v1605
        %vm1607 = vweird.f32 %v852
        %vm1608 = vweird.f32 %v1602
        %vm1609 = vmor %vm1607, %vm1608
        %v1610 = vsel %vm1609, %v1602, %v1606
        %v1611 = vand.u32 2147483647, %v852
        %vm1612 = vcmp.eq.f32.partialorder %v1611, 8.507059e+37
        %v1613 = vand.u32 %v852, 2147483648
        %v1614 = vor.u32 1.1754944e-38, %v1613
        %v1615 = vsel %vm1612, %v1614, %v1610
        %v1616 = vmul.f32 1.0, %v1615
        %v1617 = vrcp.pop %v853
        %v1618 = vmul.f32 %v853, %v1617
        %v1619 = vsub.f32 1.0, %v1618
        %v1620 = vmul.f32 %v1617, %v1619
        %v1621 = vadd.f32 %v1617, %v1620
        %vm1622 = vweird.f32 %v853
        %vm1623 = vweird.f32 %v1617
        %vm1624 = vmor %vm1622, %vm1623
        %v1625 = vsel %vm1624, %v1617, %v1621
        %v1626 = vand.u32 2147483647, %v853
        %vm1627 = vcmp.eq.f32.partialorder %v1626, 8.507059e+37
        %v1628 = vand.u32 %v853, 2147483648
        %v1629 = vor.u32 1.1754944e-38, %v1628
        %v1630 = vsel %vm1627, %v1629, %v1625
        %v1631 = vmul.f32 1.0, %v1630
        %v1632 = vrcp.pop %v854
        %v1633 = vmul.f32 %v854, %v1632
        %v1634 = vsub.f32 1.0, %v1633
        %v1635 = vmul.f32 %v1632, %v1634
        %v1636 = vadd.f32 %v1632, %v1635
        %vm1637 = vweird.f32 %v854
        %vm1638 = vweird.f32 %v1632
        %vm1639 = vmor %vm1637, %vm1638
        %v1640 = vsel %vm1639, %v1632, %v1636
        %v1641 = vand.u32 2147483647, %v854
        %vm1642 = vcmp.eq.f32.partialorder %v1641, 8.507059e+37
        %v1643 = vand.u32 %v854, 2147483648
        %v1644 = vor.u32 1.1754944e-38, %v1643
        %v1645 = vsel %vm1642, %v1644, %v1640
        %v1646 = vmul.f32 1.0, %v1645
        %v1647 = vrcp.pop %v855
        %v1648 = vmul.f32 %v855, %v1647
        %v1649 = vsub.f32 1.0, %v1648
        %v1650 = vmul.f32 %v1647, %v1649
        %v1651 = vadd.f32 %v1647, %v1650
        %vm1652 = vweird.f32 %v855
        %vm1653 = vweird.f32 %v1647
        %vm1654 = vmor %vm1652, %vm1653
        %v1655 = vsel %vm1654, %v1647, %v1651
        %v1656 = vand.u32 2147483647, %v855
        %vm1657 = vcmp.eq.f32.partialorder %v1656, 8.507059e+37
        %v1658 = vand.u32 %v855, 2147483648
        %v1659 = vor.u32 1.1754944e-38, %v1658
        %v1660 = vsel %vm1657, %v1659, %v1655
        %v1661 = vmul.f32 1.0, %v1660
        %v1662 = vrcp.pop %v856
        %v1663 = vmul.f32 %v856, %v1662
        %v1664 = vsub.f32 1.0, %v1663
        %v1665 = vmul.f32 %v1662, %v1664
        %v1666 = vadd.f32 %v1662, %v1665
        %vm1667 = vweird.f32 %v856
        %vm1668 = vweird.f32 %v1662
        %vm1669 = vmor %vm1667, %vm1668
        %v1670 = vsel %vm1669, %v1662, %v1666
        %v1671 = vand.u32 2147483647, %v856
        %vm1672 = vcmp.eq.f32.partialorder %v1671, 8.507059e+37
        %v1673 = vand.u32 %v856, 2147483648
        %v1674 = vor.u32 1.1754944e-38, %v1673
        %v1675 = vsel %vm1672, %v1674, %v1670
        %v1676 = vmul.f32 1.0, %v1675
        %v1677 = vrcp.pop %v857
        %v1678 = vmul.f32 %v857, %v1677
        %v1679 = vsub.f32 1.0, %v1678
        %v1680 = vmul.f32 %v1677, %v1679
        %v1681 = vadd.f32 %v1677, %v1680
        %vm1682 = vweird.f32 %v857
        %vm1683 = vweird.f32 %v1677
        %vm1684 = vmor %vm1682, %vm1683
        %v1685 = vsel %vm1684, %v1677, %v1681
        %v1686 = vand.u32 2147483647, %v857
        %vm1687 = vcmp.eq.f32.partialorder %v1686, 8.507059e+37
        %v1688 = vand.u32 %v857, 2147483648
        %v1689 = vor.u32 1.1754944e-38, %v1688
        %v1690 = vsel %vm1687, %v1689, %v1685
        %v1691 = vmul.f32 1.0, %v1690
        %v1692 = vrcp.pop %v858
        %v1693 = vmul.f32 %v858, %v1692
        %v1694 = vsub.f32 1.0, %v1693
        %v1695 = vmul.f32 %v1692, %v1694
        %v1696 = vadd.f32 %v1692, %v1695
        %vm1697 = vweird.f32 %v858
        %vm1698 = vweird.f32 %v1692
        %vm1699 = vmor %vm1697, %vm1698
        %v1700 = vsel %vm1699, %v1692, %v1696
        %v1701 = vand.u32 2147483647, %v858
        %vm1702 = vcmp.eq.f32.partialorder %v1701, 8.507059e+37
        %v1703 = vand.u32 %v858, 2147483648
        %v1704 = vor.u32 1.1754944e-38, %v1703
        %v1705 = vsel %vm1702, %v1704, %v1700
        %v1706 = vmul.f32 1.0, %v1705
        %v1707 = vrcp.pop %v859
        %v1708 = vmul.f32 %v859, %v1707
        %v1709 = vsub.f32 1.0, %v1708
        %v1710 = vmul.f32 %v1707, %v1709
        %v1711 = vadd.f32 %v1707, %v1710
        %vm1712 = vweird.f32 %v859
        %vm1713 = vweird.f32 %v1707
        %vm1714 = vmor %vm1712, %vm1713
        %v1715 = vsel %vm1714, %v1707, %v1711
        %v1716 = vand.u32 2147483647, %v859
        %vm1717 = vcmp.eq.f32.partialorder %v1716, 8.507059e+37
        %v1718 = vand.u32 %v859, 2147483648
        %v1719 = vor.u32 1.1754944e-38, %v1718
        %v1720 = vsel %vm1717, %v1719, %v1715
        %v1721 = vmul.f32 1.0, %v1720
        %v1722 = vrcp.pop %v860
        %v1723 = vmul.f32 %v860, %v1722
        %v1724 = vsub.f32 1.0, %v1723
        %v1725 = vmul.f32 %v1722, %v1724
        %v1726 = vadd.f32 %v1722, %v1725
        %vm1727 = vweird.f32 %v860
        %vm1728 = vweird.f32 %v1722
        %vm1729 = vmor %vm1727, %vm1728
        %v1730 = vsel %vm1729, %v1722, %v1726
        %v1731 = vand.u32 2147483647, %v860
        %vm1732 = vcmp.eq.f32.partialorder %v1731, 8.507059e+37
        %v1733 = vand.u32 %v860, 2147483648
        %v1734 = vor.u32 1.1754944e-38, %v1733
        %v1735 = vsel %vm1732, %v1734, %v1730
        %v1736 = vmul.f32 1.0, %v1735
        %v1737 = vrcp.pop %v861
        %v1738 = vmul.f32 %v861, %v1737
        %v1739 = vsub.f32 1.0, %v1738
        %v1740 = vmul.f32 %v1737, %v1739
        %v1741 = vadd.f32 %v1737, %v1740
        %vm1742 = vweird.f32 %v861
        %vm1743 = vweird.f32 %v1737
        %vm1744 = vmor %vm1742, %vm1743
        %v1745 = vsel %vm1744, %v1737, %v1741
        %v1746 = vand.u32 2147483647, %v861
        %vm1747 = vcmp.eq.f32.partialorder %v1746, 8.507059e+37
        %v1748 = vand.u32 %v861, 2147483648
        %v1749 = vor.u32 1.1754944e-38, %v1748
        %v1750 = vsel %vm1747, %v1749, %v1745
        %v1751 = vmul.f32 1.0, %v1750
        %v1752 = vrcp.pop %v862
        %v1753 = vmul.f32 %v862, %v1752
        %v1754 = vsub.f32 1.0, %v1753
        %v1755 = vmul.f32 %v1752, %v1754
        %v1756 = vadd.f32 %v1752, %v1755
        %vm1757 = vweird.f32 %v862
        %vm1758 = vweird.f32 %v1752
        %vm1759 = vmor %vm1757, %vm1758
        %v1760 = vsel %vm1759, %v1752, %v1756
        %v1761 = vand.u32 2147483647, %v862
        %vm1762 = vcmp.eq.f32.partialorder %v1761, 8.507059e+37
        %v1763 = vand.u32 %v862, 2147483648
        %v1764 = vor.u32 1.1754944e-38, %v1763
        %v1765 = vsel %vm1762, %v1764, %v1760
        %v1766 = vmul.f32 1.0, %v1765
        %v1767 = vrcp.pop %v863
        %v1768 = vmul.f32 %v863, %v1767
        %v1769 = vsub.f32 1.0, %v1768
        %v1770 = vmul.f32 %v1767, %v1769
        %v1771 = vadd.f32 %v1767, %v1770
        %vm1772 = vweird.f32 %v863
        %vm1773 = vweird.f32 %v1767
        %vm1774 = vmor %vm1772, %vm1773
        %v1775 = vsel %vm1774, %v1767, %v1771
        %v1776 = vand.u32 2147483647, %v863
        %vm1777 = vcmp.eq.f32.partialorder %v1776, 8.507059e+37
        %v1778 = vand.u32 %v863, 2147483648
        %v1779 = vor.u32 1.1754944e-38, %v1778
        %v1780 = vsel %vm1777, %v1779, %v1775
        %v1781 = vmul.f32 1.0, %v1780
        %v1782 = vrcp.pop %v864
        %v1783 = vmul.f32 %v864, %v1782
        %v1784 = vsub.f32 1.0, %v1783
        %v1785 = vmul.f32 %v1782, %v1784
        %v1786 = vadd.f32 %v1782, %v1785
        %vm1787 = vweird.f32 %v864
        %vm1788 = vweird.f32 %v1782
        %vm1789 = vmor %vm1787, %vm1788
        %v1790 = vsel %vm1789, %v1782, %v1786
        %v1791 = vand.u32 2147483647, %v864
        %vm1792 = vcmp.eq.f32.partialorder %v1791, 8.507059e+37
        %v1793 = vand.u32 %v864, 2147483648
        %v1794 = vor.u32 1.1754944e-38, %v1793
        %v1795 = vsel %vm1792, %v1794, %v1790
        %v1796 = vmul.f32 1.0, %v1795
        %v1797 = vrcp.pop %v865
        %v1798 = vmul.f32 %v865, %v1797
        %v1799 = vsub.f32 1.0, %v1798
        %v1800 = vmul.f32 %v1797, %v1799
        %v1801 = vadd.f32 %v1797, %v1800
        %vm1802 = vweird.f32 %v865
        %vm1803 = vweird.f32 %v1797
        %vm1804 = vmor %vm1802, %vm1803
        %v1805 = vsel %vm1804, %v1797, %v1801
        %v1806 = vand.u32 2147483647, %v865
        %vm1807 = vcmp.eq.f32.partialorder %v1806, 8.507059e+37
        %v1808 = vand.u32 %v865, 2147483648
        %v1809 = vor.u32 1.1754944e-38, %v1808
        %v1810 = vsel %vm1807, %v1809, %v1805
        %v1811 = vmul.f32 1.0, %v1810
        %v1812 = vrcp.pop %v866
        %v1813 = vmul.f32 %v866, %v1812
        %v1814 = vsub.f32 1.0, %v1813
        %v1815 = vmul.f32 %v1812, %v1814
        %v1816 = vadd.f32 %v1812, %v1815
        %vm1817 = vweird.f32 %v866
        %vm1818 = vweird.f32 %v1812
        %vm1819 = vmor %vm1817, %vm1818
        %v1820 = vsel %vm1819, %v1812, %v1816
        %v1821 = vand.u32 2147483647, %v866
        %vm1822 = vcmp.eq.f32.partialorder %v1821, 8.507059e+37
        %v1823 = vand.u32 %v866, 2147483648
        %v1824 = vor.u32 1.1754944e-38, %v1823
        %v1825 = vsel %vm1822, %v1824, %v1820
        %v1826 = vmul.f32 1.0, %v1825
        %v1827 = vadd.f32 %v881, 1.0
        %v1828 = vadd.f32 %v896, 1.0
        %v1829 = vadd.f32 %v911, 1.0
        %v1830 = vadd.f32 %v926, 1.0
        %v1831 = vadd.f32 %v941, 1.0
        %v1832 = vadd.f32 %v956, 1.0
        %v1833 = vadd.f32 %v971, 1.0
        %v1834 = vadd.f32 %v986, 1.0
        %v1835 = vadd.f32 %v1001, 1.0
        %v1836 = vadd.f32 %v1016, 1.0
        %v1837 = vadd.f32 %v1031, 1.0
        %v1838 = vadd.f32 %v1046, 1.0
        %v1839 = vadd.f32 %v1061, 1.0
        %v1840 = vadd.f32 %v1076, 1.0
        %v1841 = vadd.f32 %v1091, 1.0
        %v1842 = vadd.f32 %v1106, 1.0
        %v1843 = vadd.f32 %v1121, 1.0
        %v1844 = vadd.f32 %v1136, 1.0
        %v1845 = vadd.f32 %v1151, 1.0
        %v1846 = vadd.f32 %v1166, 1.0
        %v1847 = vadd.f32 %v1181, 1.0
        %v1848 = vadd.f32 %v1196, 1.0
        %v1849 = vadd.f32 %v1211, 1.0
        %v1850 = vadd.f32 %v1226, 1.0
        %v1851 = vadd.f32 %v1241, 1.0
        %v1852 = vadd.f32 %v1256, 1.0
        %v1853 = vadd.f32 %v1271, 1.0
        %v1854 = vadd.f32 %v1286, 1.0
        %v1855 = vadd.f32 %v1301, 1.0
        %v1856 = vadd.f32 %v1316, 1.0
        %v1857 = vadd.f32 %v1331, 1.0
        %v1858 = vadd.f32 %v1346, 1.0
        %v1859 = vadd.f32 %v1361, 1.0
        %v1860 = vadd.f32 %v1376, 1.0
        %v1861 = vadd.f32 %v1391, 1.0
        %v1862 = vadd.f32 %v1406, 1.0
        %v1863 = vadd.f32 %v1421, 1.0
        %v1864 = vadd.f32 %v1436, 1.0
        %v1865 = vadd.f32 %v1451, 1.0
        %v1866 = vadd.f32 %v1466, 1.0
        %v1867 = vadd.f32 %v1481, 1.0
        %v1868 = vadd.f32 %v1496, 1.0
        %v1869 = vadd.f32 %v1511, 1.0
        %v1870 = vadd.f32 %v1526, 1.0
        %v1871 = vadd.f32 %v1541, 1.0
        %v1872 = vadd.f32 %v1556, 1.0
        %v1873 = vadd.f32 %v1571, 1.0
        %v1874 = vadd.f32 %v1586, 1.0
        %v1875 = vadd.f32 %v1601, 1.0
        %v1876 = vadd.f32 %v1616, 1.0
        %v1877 = vadd.f32 %v1631, 1.0
        %v1878 = vadd.f32 %v1646, 1.0
        %v1879 = vadd.f32 %v1661, 1.0
        %v1880 = vadd.f32 %v1676, 1.0
        %v1881 = vadd.f32 %v1691, 1.0
        %v1882 = vadd.f32 %v1706, 1.0
        %v1883 = vadd.f32 %v1721, 1.0
        %v1884 = vadd.f32 %v1736, 1.0
        %v1885 = vadd.f32 %v1751, 1.0
        %v1886 = vadd.f32 %v1766, 1.0
        %v1887 = vadd.f32 %v1781, 1.0
        %v1888 = vadd.f32 %v1796, 1.0
        %v1889 = vadd.f32 %v1811, 1.0
        %v1890 = vadd.f32 %v1826, 1.0
        %v1891 = vld [vmem:[%s500] sm:$0xff]
        %v1892 = vld [vmem:[%s500 + $0x8] sm:$0xff]
        %v1893 = vld [vmem:[%s500 + $0x10] sm:$0xff]
        %v1894 = vld [vmem:[%s500 + $0x18] sm:$0xff]
        %v1895 = vld [vmem:[%s500 + $0x20] sm:$0xff]
        %v1896 = vld [vmem:[%s500 + $0x28] sm:$0xff]
        %v1897 = vld [vmem:[%s500 + $0x30] sm:$0xff]
        %v1898 = vld [vmem:[%s500 + $0x38] sm:$0xff]
        %v1899 = vld [vmem:[%s500 + $0x40] sm:$0xff]
        %v1900 = vld [vmem:[%s500 + $0x48] sm:$0xff]
        %v1901 = vld [vmem:[%s500 + $0x50] sm:$0xff]
        %v1902 = vld [vmem:[%s500 + $0x58] sm:$0xff]
        %v1903 = vld [vmem:[%s500 + $0x60] sm:$0xff]
        %v1904 = vld [vmem:[%s500 + $0x68] sm:$0xff]
        %v1905 = vld [vmem:[%s500 + $0x70] sm:$0xff]
        %v1906 = vld [vmem:[%s500 + $0x78] sm:$0xff]
        %v1907 = vld [vmem:[%s500 + $0x80] sm:$0xff]
        %v1908 = vld [vmem:[%s500 + $0x88] sm:$0xff]
        %v1909 = vld [vmem:[%s500 + $0x90] sm:$0xff]
        %v1910 = vld [vmem:[%s500 + $0x98] sm:$0xff]
        %v1911 = vld [vmem:[%s500 + $0xa0] sm:$0xff]
        %v1912 = vld [vmem:[%s500 + $0xa8] sm:$0xff]
        %v1913 = vld [vmem:[%s500 + $0xb0] sm:$0xff]
        %v1914 = vld [vmem:[%s500 + $0xb8] sm:$0xff]
        %v1915 = vld [vmem:[%s500 + $0xc0] sm:$0xff]
        %v1916 = vld [vmem:[%s500 + $0xc8] sm:$0xff]
        %v1917 = vld [vmem:[%s500 + $0xd0] sm:$0xff]
        %v1918 = vld [vmem:[%s500 + $0xd8] sm:$0xff]
        %v1919 = vld [vmem:[%s500 + $0xe0] sm:$0xff]
        %v1920 = vld [vmem:[%s500 + $0xe8] sm:$0xff]
        %v1921 = vld [vmem:[%s500 + $0xf0] sm:$0xff]
        %v1922 = vld [vmem:[%s500 + $0xf8] sm:$0xff]
        %v1923 = vld [vmem:[%s500 + $0x100] sm:$0xff]
        %v1924 = vld [vmem:[%s500 + $0x108] sm:$0xff]
        %v1925 = vld [vmem:[%s500 + $0x110] sm:$0xff]
        %v1926 = vld [vmem:[%s500 + $0x118] sm:$0xff]
        %v1927 = vld [vmem:[%s500 + $0x120] sm:$0xff]
        %v1928 = vld [vmem:[%s500 + $0x128] sm:$0xff]
        %v1929 = vld [vmem:[%s500 + $0x130] sm:$0xff]
        %v1930 = vld [vmem:[%s500 + $0x138] sm:$0xff]
        %v1931 = vld [vmem:[%s500 + $0x140] sm:$0xff]
        %v1932 = vld [vmem:[%s500 + $0x148] sm:$0xff]
        %v1933 = vld [vmem:[%s500 + $0x150] sm:$0xff]
        %v1934 = vld [vmem:[%s500 + $0x158] sm:$0xff]
        %v1935 = vld [vmem:[%s500 + $0x160] sm:$0xff]
        %v1936 = vld [vmem:[%s500 + $0x168] sm:$0xff]
        %v1937 = vld [vmem:[%s500 + $0x170] sm:$0xff]
        %v1938 = vld [vmem:[%s500 + $0x178] sm:$0xff]
        %v1939 = vld [vmem:[%s500 + $0x180] sm:$0xff]
        %v1940 = vld [vmem:[%s500 + $0x188] sm:$0xff]
        %v1941 = vld [vmem:[%s500 + $0x190] sm:$0xff]
        %v1942 = vld [vmem:[%s500 + $0x198] sm:$0xff]
        %v1943 = vld [vmem:[%s500 + $0x1a0] sm:$0xff]
        %v1944 = vld [vmem:[%s500 + $0x1a8] sm:$0xff]
        %v1945 = vld [vmem:[%s500 + $0x1b0] sm:$0xff]
        %v1946 = vld [vmem:[%s500 + $0x1b8] sm:$0xff]
        %v1947 = vld [vmem:[%s500 + $0x1c0] sm:$0xff]
        %v1948 = vld [vmem:[%s500 + $0x1c8] sm:$0xff]
        %v1949 = vld [vmem:[%s500 + $0x1d0] sm:$0xff]
        %v1950 = vld [vmem:[%s500 + $0x1d8] sm:$0xff]
        %v1951 = vld [vmem:[%s500 + $0x1e0] sm:$0xff]
        %v1952 = vld [vmem:[%s500 + $0x1e8] sm:$0xff]
        %v1953 = vld [vmem:[%s500 + $0x1f0] sm:$0xff]
        %v1954 = vld [vmem:[%s500 + $0x1f8] sm:$0xff]
        %v1955 = vld [vmem:[%s4] sm:$0xff]
        %v1956 = vld [vmem:[%s4 + $0x8] sm:$0xff]
        %v1957 = vld [vmem:[%s4 + $0x10] sm:$0xff]
        %v1958 = vld [vmem:[%s4 + $0x18] sm:$0xff]
        %v1959 = vld [vmem:[%s5] sm:$0x1]
        %v1961 = vperm.slane %v1959, 0
        %vm1963 = vcmask 261120
        %v1965 = vsel %vm1963, %v1891, 0
        %v1968 = vsel %vm1963, %v1892, 0
        %v1971 = vsel %vm1963, %v1893, 0
        %v1974 = vsel %vm1963, %v1894, 0
        %v1977 = vsel %vm1963, %v1895, 0
        %v1980 = vsel %vm1963, %v1896, 0
        %v1983 = vsel %vm1963, %v1897, 0
        %v1986 = vsel %vm1963, %v1898, 0
        %v1989 = vsel %vm1963, %v1899, 0
        %v1992 = vsel %vm1963, %v1900, 0
        %v1995 = vsel %vm1963, %v1901, 0
        %v1998 = vsel %vm1963, %v1902, 0
        %v2001 = vsel %vm1963, %v1903, 0
        %v2004 = vsel %vm1963, %v1904, 0
        %v2007 = vsel %vm1963, %v1905, 0
        %v2010 = vsel %vm1963, %v1906, 0
        %v2013 = vsel %vm1963, %v1907, 0
        %v2016 = vsel %vm1963, %v1908, 0
        %v2019 = vsel %vm1963, %v1909, 0
        %v2022 = vsel %vm1963, %v1910, 0
        %v2025 = vsel %vm1963, %v1911, 0
        %v2028 = vsel %vm1963, %v1912, 0
        %v2031 = vsel %vm1963, %v1913, 0
        %v2034 = vsel %vm1963, %v1914, 0
        %v2037 = vsel %vm1963, %v1915, 0
        %v2040 = vsel %vm1963, %v1916, 0
        %v2043 = vsel %vm1963, %v1917, 0
        %v2046 = vsel %vm1963, %v1918, 0
        %v2049 = vsel %vm1963, %v1919, 0
        %v2052 = vsel %vm1963, %v1920, 0
        %v2055 = vsel %vm1963, %v1921, 0
        %v2058 = vsel %vm1963, %v1922, 0
        %v2061 = vsel %vm1963, %v1923, 0
        %v2064 = vsel %vm1963, %v1924, 0
        %v2067 = vsel %vm1963, %v1925, 0
        %v2070 = vsel %vm1963, %v1926, 0
        %v2073 = vsel %vm1963, %v1927, 0
        %v2076 = vsel %vm1963, %v1928, 0
        %v2079 = vsel %vm1963, %v1929, 0
        %v2082 = vsel %vm1963, %v1930, 0
        %v2085 = vsel %vm1963, %v1931, 0
        %v2088 = vsel %vm1963, %v1932, 0
        %v2091 = vsel %vm1963, %v1933, 0
        %v2094 = vsel %vm1963, %v1934, 0
        %v2097 = vsel %vm1963, %v1935, 0
        %v2100 = vsel %vm1963, %v1936, 0
        %v2103 = vsel %vm1963, %v1937, 0
        %v2106 = vsel %vm1963, %v1938, 0
        %v2109 = vsel %vm1963, %v1939, 0
        %v2112 = vsel %vm1963, %v1940, 0
        %v2115 = vsel %vm1963, %v1941, 0
        %v2118 = vsel %vm1963, %v1942, 0
        %v2121 = vsel %vm1963, %v1943, 0
        %v2124 = vsel %vm1963, %v1944, 0
        %v2127 = vsel %vm1963, %v1945, 0
        %v2130 = vsel %vm1963, %v1946, 0
        %v2133 = vsel %vm1963, %v1947, 0
        %v2136 = vsel %vm1963, %v1948, 0
        %v2139 = vsel %vm1963, %v1949, 0
        %v2142 = vsel %vm1963, %v1950, 0
        %v2145 = vsel %vm1963, %v1951, 0
        %v2148 = vsel %vm1963, %v1952, 0
        %v2151 = vsel %vm1963, %v1953, 0
        %v2154 = vsel %vm1963, %v1954, 0
        %2156 = vmatpush.msra.mxu0 0.0
        %2157 = vmatpush.msra.mxu0 0.0
        %2158 = vmatpush.msra.mxu0 0.0
        %2159 = vmatpush.msra.mxu0 0.0
        %2160 = vmatpush.msra.mxu0 0.0
        %2161 = vmatpush.msra.mxu0 0.0
        %2162 = vmatpush.msra.mxu0 0.0
        %2163 = vmatpush.msra.mxu0 0.0
        %2164 = vmatpush.msra.mxu0 0.0
        %2165 = vmatpush.msra.mxu0 0.0
        %2166 = vmatpush.msra.mxu0 0.0
        %2167 = vmatpush.msra.mxu0 0.0
        %2168 = vmatpush.msra.mxu0 %v1958
        %2169 = vmatpush.msra.mxu0 %v1957
        %2170 = vmatpush.msra.mxu0 %v1956
        %2171 = vmatpush.msra.mxu0 %v1955
        %2172 = vmatmul.f32.gmra.mxu0 %v1965
        %v2173 = vpop.f32.mrf.mxu0
        %v2174 = vadd.f32 %v1961, %v2173
        %2175 = vmatmul.f32.gmra.mxu0 %v1968
        %v2176 = vpop.f32.mrf.mxu0
        %v2177 = vadd.f32 %v1961, %v2176
        %2178 = vmatmul.f32.gmra.mxu0 %v1971
        %v2179 = vpop.f32.mrf.mxu0
        %v2180 = vadd.f32 %v1961, %v2179
        %2181 = vmatmul.f32.gmra.mxu0 %v1974
        %v2182 = vpop.f32.mrf.mxu0
        %v2183 = vadd.f32 %v1961, %v2182
        %2184 = vmatmul.f32.gmra.mxu0 %v1977
        %v2185 = vpop.f32.mrf.mxu0
        %v2186 = vadd.f32 %v1961, %v2185
        %2187 = vmatmul.f32.gmra.mxu0 %v1980
        %v2188 = vpop.f32.mrf.mxu0
        %v2189 = vadd.f32 %v1961, %v2188
        %2190 = vmatmul.f32.gmra.mxu0 %v1983
        %v2191 = vpop.f32.mrf.mxu0
        %v2192 = vadd.f32 %v1961, %v2191
        %2193 = vmatmul.f32.gmra.mxu0 %v1986
        %v2194 = vpop.f32.mrf.mxu0
        %v2195 = vadd.f32 %v1961, %v2194
        %2196 = vmatmul.f32.gmra.mxu0 %v1989
        %v2197 = vpop.f32.mrf.mxu0
        %v2198 = vadd.f32 %v1961, %v2197
        %2199 = vmatmul.f32.gmra.mxu0 %v1992
        %v2200 = vpop.f32.mrf.mxu0
        %v2201 = vadd.f32 %v1961, %v2200
        %2202 = vmatmul.f32.gmra.mxu0 %v1995
        %v2203 = vpop.f32.mrf.mxu0
        %v2204 = vadd.f32 %v1961, %v2203
        %2205 = vmatmul.f32.gmra.mxu0 %v1998
        %v2206 = vpop.f32.mrf.mxu0
        %v2207 = vadd.f32 %v1961, %v2206
        %2208 = vmatmul.f32.gmra.mxu0 %v2001
        %v2209 = vpop.f32.mrf.mxu0
        %v2210 = vadd.f32 %v1961, %v2209
        %2211 = vmatmul.f32.gmra.mxu0 %v2004
        %v2212 = vpop.f32.mrf.mxu0
        %v2213 = vadd.f32 %v1961, %v2212
        %2214 = vmatmul.f32.gmra.mxu0 %v2007
        %v2215 = vpop.f32.mrf.mxu0
        %v2216 = vadd.f32 %v1961, %v2215
        %2217 = vmatmul.f32.gmra.mxu0 %v2010
        %v2218 = vpop.f32.mrf.mxu0
        %v2219 = vadd.f32 %v1961, %v2218
        %2220 = vmatmul.f32.gmra.mxu0 %v2013
        %v2221 = vpop.f32.mrf.mxu0
        %v2222 = vadd.f32 %v1961, %v2221
        %2223 = vmatmul.f32.gmra.mxu0 %v2016
        %v2224 = vpop.f32.mrf.mxu0
        %v2225 = vadd.f32 %v1961, %v2224
        %2226 = vmatmul.f32.gmra.mxu0 %v2019
        %v2227 = vpop.f32.mrf.mxu0
        %v2228 = vadd.f32 %v1961, %v2227
        %2229 = vmatmul.f32.gmra.mxu0 %v2022
        %v2230 = vpop.f32.mrf.mxu0
        %v2231 = vadd.f32 %v1961, %v2230
        %2232 = vmatmul.f32.gmra.mxu0 %v2025
        %v2233 = vpop.f32.mrf.mxu0
        %v2234 = vadd.f32 %v1961, %v2233
        %2235 = vmatmul.f32.gmra.mxu0 %v2028
        %v2236 = vpop.f32.mrf.mxu0
        %v2237 = vadd.f32 %v1961, %v2236
        %2238 = vmatmul.f32.gmra.mxu0 %v2031
        %v2239 = vpop.f32.mrf.mxu0
        %v2240 = vadd.f32 %v1961, %v2239
        %2241 = vmatmul.f32.gmra.mxu0 %v2034
        %v2242 = vpop.f32.mrf.mxu0
        %v2243 = vadd.f32 %v1961, %v2242
        %2244 = vmatmul.f32.gmra.mxu0 %v2037
        %v2245 = vpop.f32.mrf.mxu0
        %v2246 = vadd.f32 %v1961, %v2245
        %2247 = vmatmul.f32.gmra.mxu0 %v2040
        %v2248 = vpop.f32.mrf.mxu0
        %v2249 = vadd.f32 %v1961, %v2248
        %2250 = vmatmul.f32.gmra.mxu0 %v2043
        %v2251 = vpop.f32.mrf.mxu0
        %v2252 = vadd.f32 %v1961, %v2251
        %2253 = vmatmul.f32.gmra.mxu0 %v2046
        %v2254 = vpop.f32.mrf.mxu0
        %v2255 = vadd.f32 %v1961, %v2254
        %2256 = vmatmul.f32.gmra.mxu0 %v2049
        %v2257 = vpop.f32.mrf.mxu0
        %v2258 = vadd.f32 %v1961, %v2257
        %2259 = vmatmul.f32.gmra.mxu0 %v2052
        %v2260 = vpop.f32.mrf.mxu0
        %v2261 = vadd.f32 %v1961, %v2260
        %2262 = vmatmul.f32.gmra.mxu0 %v2055
        %v2263 = vpop.f32.mrf.mxu0
        %v2264 = vadd.f32 %v1961, %v2263
        %2265 = vmatmul.f32.gmra.mxu0 %v2058
        %v2266 = vpop.f32.mrf.mxu0
        %v2267 = vadd.f32 %v1961, %v2266
        %2268 = vmatmul.f32.gmra.mxu0 %v2061
        %v2269 = vpop.f32.mrf.mxu0
        %v2270 = vadd.f32 %v1961, %v2269
        %2271 = vmatmul.f32.gmra.mxu0 %v2064
        %v2272 = vpop.f32.mrf.mxu0
        %v2273 = vadd.f32 %v1961, %v2272
        %2274 = vmatmul.f32.gmra.mxu0 %v2067
        %v2275 = vpop.f32.mrf.mxu0
        %v2276 = vadd.f32 %v1961, %v2275
        %2277 = vmatmul.f32.gmra.mxu0 %v2070
        %v2278 = vpop.f32.mrf.mxu0
        %v2279 = vadd.f32 %v1961, %v2278
        %2280 = vmatmul.f32.gmra.mxu0 %v2073
        %v2281 = vpop.f32.mrf.mxu0
        %v2282 = vadd.f32 %v1961, %v2281
        %2283 = vmatmul.f32.gmra.mxu0 %v2076
        %v2284 = vpop.f32.mrf.mxu0
        %v2285 = vadd.f32 %v1961, %v2284
        %2286 = vmatmul.f32.gmra.mxu0 %v2079
        %v2287 = vpop.f32.mrf.mxu0
        %v2288 = vadd.f32 %v1961, %v2287
        %2289 = vmatmul.f32.gmra.mxu0 %v2082
        %v2290 = vpop.f32.mrf.mxu0
        %v2291 = vadd.f32 %v1961, %v2290
        %2292 = vmatmul.f32.gmra.mxu0 %v2085
        %v2293 = vpop.f32.mrf.mxu0
        %v2294 = vadd.f32 %v1961, %v2293
        %2295 = vmatmul.f32.gmra.mxu0 %v2088
        %v2296 = vpop.f32.mrf.mxu0
        %v2297 = vadd.f32 %v1961, %v2296
        %2298 = vmatmul.f32.gmra.mxu0 %v2091
        %v2299 = vpop.f32.mrf.mxu0
        %v2300 = vadd.f32 %v1961, %v2299
        %2301 = vmatmul.f32.gmra.mxu0 %v2094
        %v2302 = vpop.f32.mrf.mxu0
        %v2303 = vadd.f32 %v1961, %v2302
        %2304 = vmatmul.f32.gmra.mxu0 %v2097
        %v2305 = vpop.f32.mrf.mxu0
        %v2306 = vadd.f32 %v1961, %v2305
        %2307 = vmatmul.f32.gmra.mxu0 %v2100
        %v2308 = vpop.f32.mrf.mxu0
        %v2309 = vadd.f32 %v1961, %v2308
        %2310 = vmatmul.f32.gmra.mxu0 %v2103
        %v2311 = vpop.f32.mrf.mxu0
        %v2312 = vadd.f32 %v1961, %v2311
        %2313 = vmatmul.f32.gmra.mxu0 %v2106
        %v2314 = vpop.f32.mrf.mxu0
        %v2315 = vadd.f32 %v1961, %v2314
        %2316 = vmatmul.f32.gmra.mxu0 %v2109
        %v2317 = vpop.f32.mrf.mxu0
        %v2318 = vadd.f32 %v1961, %v2317
        %2319 = vmatmul.f32.gmra.mxu0 %v2112
        %v2320 = vpop.f32.mrf.mxu0
        %v2321 = vadd.f32 %v1961, %v2320
        %2322 = vmatmul.f32.gmra.mxu0 %v2115
        %v2323 = vpop.f32.mrf.mxu0
        %v2324 = vadd.f32 %v1961, %v2323
        %2325 = vmatmul.f32.gmra.mxu0 %v2118
        %v2326 = vpop.f32.mrf.mxu0
        %v2327 = vadd.f32 %v1961, %v2326
        %2328 = vmatmul.f32.gmra.mxu0 %v2121
        %v2329 = vpop.f32.mrf.mxu0
        %v2330 = vadd.f32 %v1961, %v2329
        %2331 = vmatmul.f32.gmra.mxu0 %v2124
        %v2332 = vpop.f32.mrf.mxu0
        %v2333 = vadd.f32 %v1961, %v2332
        %2334 = vmatmul.f32.gmra.mxu0 %v2127
        %v2335 = vpop.f32.mrf.mxu0
        %v2336 = vadd.f32 %v1961, %v2335
        %2337 = vmatmul.f32.gmra.mxu0 %v2130
        %v2338 = vpop.f32.mrf.mxu0
        %v2339 = vadd.f32 %v1961, %v2338
        %2340 = vmatmul.f32.gmra.mxu0 %v2133
        %v2341 = vpop.f32.mrf.mxu0
        %v2342 = vadd.f32 %v1961, %v2341
        %2343 = vmatmul.f32.gmra.mxu0 %v2136
        %v2344 = vpop.f32.mrf.mxu0
        %v2345 = vadd.f32 %v1961, %v2344
        %2346 = vmatmul.f32.gmra.mxu0 %v2139
        %v2347 = vpop.f32.mrf.mxu0
        %v2348 = vadd.f32 %v1961, %v2347
        %2349 = vmatmul.f32.gmra.mxu0 %v2142
        %v2350 = vpop.f32.mrf.mxu0
        %v2351 = vadd.f32 %v1961, %v2350
        %2352 = vmatmul.f32.gmra.mxu0 %v2145
        %v2353 = vpop.f32.mrf.mxu0
        %v2354 = vadd.f32 %v1961, %v2353
        %2355 = vmatmul.f32.gmra.mxu0 %v2148
        %v2356 = vpop.f32.mrf.mxu0
        %v2357 = vadd.f32 %v1961, %v2356
        %2358 = vmatmul.f32.gmra.mxu0 %v2151
        %v2359 = vpop.f32.mrf.mxu0
        %v2360 = vadd.f32 %v1961, %v2359
        %2361 = vmatmul.f32.gmra.mxu0 %v2154
        %v2362 = vpop.f32.mrf.mxu0
        %v2363 = vadd.f32 %v1961, %v2362
        %2364 = vdwg.mxu0
        %2366 = vset.pattern.permute.xlu0 0
        %2367 = vperm.xlu0 %2366, %v1827
        %v2368 = vpop.permute.xlu0 %2367
        %2371 = vset.pattern.permute.xlu0 0
        %2372 = vperm.xlu0 %2371, %v1828
        %v2373 = vpop.permute.xlu0 %2372
        %2376 = vset.pattern.permute.xlu0 0
        %2377 = vperm.xlu0 %2376, %v1829
        %v2378 = vpop.permute.xlu0 %2377
        %2381 = vset.pattern.permute.xlu0 0
        %2382 = vperm.xlu0 %2381, %v1830
        %v2383 = vpop.permute.xlu0 %2382
        %2386 = vset.pattern.permute.xlu0 0
        %2387 = vperm.xlu0 %2386, %v1831
        %v2388 = vpop.permute.xlu0 %2387
        %2391 = vset.pattern.permute.xlu0 0
        %2392 = vperm.xlu0 %2391, %v1832
        %v2393 = vpop.permute.xlu0 %2392
        %2396 = vset.pattern.permute.xlu0 0
        %2397 = vperm.xlu0 %2396, %v1833
        %v2398 = vpop.permute.xlu0 %2397
        %2401 = vset.pattern.permute.xlu0 0
        %2402 = vperm.xlu0 %2401, %v1834
        %v2403 = vpop.permute.xlu0 %2402
        %2406 = vset.pattern.permute.xlu0 0
        %2407 = vperm.xlu0 %2406, %v1835
        %v2408 = vpop.permute.xlu0 %2407
        %2411 = vset.pattern.permute.xlu0 0
        %2412 = vperm.xlu0 %2411, %v1836
        %v2413 = vpop.permute.xlu0 %2412
        %2416 = vset.pattern.permute.xlu0 0
        %2417 = vperm.xlu0 %2416, %v1837
        %v2418 = vpop.permute.xlu0 %2417
        %2421 = vset.pattern.permute.xlu0 0
        %2422 = vperm.xlu0 %2421, %v1838
        %v2423 = vpop.permute.xlu0 %2422
        %2426 = vset.pattern.permute.xlu0 0
        %2427 = vperm.xlu0 %2426, %v1839
        %v2428 = vpop.permute.xlu0 %2427
        %2431 = vset.pattern.permute.xlu0 0
        %2432 = vperm.xlu0 %2431, %v1840
        %v2433 = vpop.permute.xlu0 %2432
        %2436 = vset.pattern.permute.xlu0 0
        %2437 = vperm.xlu0 %2436, %v1841
        %v2438 = vpop.permute.xlu0 %2437
        %2441 = vset.pattern.permute.xlu0 0
        %2442 = vperm.xlu0 %2441, %v1842
        %v2443 = vpop.permute.xlu0 %2442
        %2446 = vset.pattern.permute.xlu0 0
        %2447 = vperm.xlu0 %2446, %v1843
        %v2448 = vpop.permute.xlu0 %2447
        %2451 = vset.pattern.permute.xlu0 0
        %2452 = vperm.xlu0 %2451, %v1844
        %v2453 = vpop.permute.xlu0 %2452
        %2456 = vset.pattern.permute.xlu0 0
        %2457 = vperm.xlu0 %2456, %v1845
        %v2458 = vpop.permute.xlu0 %2457
        %2461 = vset.pattern.permute.xlu0 0
        %2462 = vperm.xlu0 %2461, %v1846
        %v2463 = vpop.permute.xlu0 %2462
        %2466 = vset.pattern.permute.xlu0 0
        %2467 = vperm.xlu0 %2466, %v1847
        %v2468 = vpop.permute.xlu0 %2467
        %2471 = vset.pattern.permute.xlu0 0
        %2472 = vperm.xlu0 %2471, %v1848
        %v2473 = vpop.permute.xlu0 %2472
        %2476 = vset.pattern.permute.xlu0 0
        %2477 = vperm.xlu0 %2476, %v1849
        %v2478 = vpop.permute.xlu0 %2477
        %2481 = vset.pattern.permute.xlu0 0
        %2482 = vperm.xlu0 %2481, %v1850
        %v2483 = vpop.permute.xlu0 %2482
        %2486 = vset.pattern.permute.xlu0 0
        %2487 = vperm.xlu0 %2486, %v1851
        %v2488 = vpop.permute.xlu0 %2487
        %2491 = vset.pattern.permute.xlu0 0
        %2492 = vperm.xlu0 %2491, %v1852
        %v2493 = vpop.permute.xlu0 %2492
        %2496 = vset.pattern.permute.xlu0 0
        %2497 = vperm.xlu0 %2496, %v1853
        %v2498 = vpop.permute.xlu0 %2497
        %2501 = vset.pattern.permute.xlu0 0
        %2502 = vperm.xlu0 %2501, %v1854
        %v2503 = vpop.permute.xlu0 %2502
        %2506 = vset.pattern.permute.xlu0 0
        %2507 = vperm.xlu0 %2506, %v1855
        %v2508 = vpop.permute.xlu0 %2507
        %2511 = vset.pattern.permute.xlu0 0
        %2512 = vperm.xlu0 %2511, %v1856
        %v2513 = vpop.permute.xlu0 %2512
        %2516 = vset.pattern.permute.xlu0 0
        %2517 = vperm.xlu0 %2516, %v1857
        %v2518 = vpop.permute.xlu0 %2517
        %2521 = vset.pattern.permute.xlu0 0
        %2522 = vperm.xlu0 %2521, %v1858
        %v2523 = vpop.permute.xlu0 %2522
        %2526 = vset.pattern.permute.xlu0 0
        %2527 = vperm.xlu0 %2526, %v1859
        %v2528 = vpop.permute.xlu0 %2527
        %2531 = vset.pattern.permute.xlu0 0
        %2532 = vperm.xlu0 %2531, %v1860
        %v2533 = vpop.permute.xlu0 %2532
        %2536 = vset.pattern.permute.xlu0 0
        %2537 = vperm.xlu0 %2536, %v1861
        %v2538 = vpop.permute.xlu0 %2537
        %2541 = vset.pattern.permute.xlu0 0
        %2542 = vperm.xlu0 %2541, %v1862
        %v2543 = vpop.permute.xlu0 %2542
        %2546 = vset.pattern.permute.xlu0 0
        %2547 = vperm.xlu0 %2546, %v1863
        %v2548 = vpop.permute.xlu0 %2547
        %2551 = vset.pattern.permute.xlu0 0
        %2552 = vperm.xlu0 %2551, %v1864
        %v2553 = vpop.permute.xlu0 %2552
        %2556 = vset.pattern.permute.xlu0 0
        %2557 = vperm.xlu0 %2556, %v1865
        %v2558 = vpop.permute.xlu0 %2557
        %2561 = vset.pattern.permute.xlu0 0
        %2562 = vperm.xlu0 %2561, %v1866
        %v2563 = vpop.permute.xlu0 %2562
        %2566 = vset.pattern.permute.xlu0 0
        %2567 = vperm.xlu0 %2566, %v1867
        %v2568 = vpop.permute.xlu0 %2567
        %2571 = vset.pattern.permute.xlu0 0
        %2572 = vperm.xlu0 %2571, %v1868
        %v2573 = vpop.permute.xlu0 %2572
        %2576 = vset.pattern.permute.xlu0 0
        %2577 = vperm.xlu0 %2576, %v1869
        %v2578 = vpop.permute.xlu0 %2577
        %2581 = vset.pattern.permute.xlu0 0
        %2582 = vperm.xlu0 %2581, %v1870
        %v2583 = vpop.permute.xlu0 %2582
        %2586 = vset.pattern.permute.xlu0 0
        %2587 = vperm.xlu0 %2586, %v1871
        %v2588 = vpop.permute.xlu0 %2587
        %2591 = vset.pattern.permute.xlu0 0
        %2592 = vperm.xlu0 %2591, %v1872
        %v2593 = vpop.permute.xlu0 %2592
        %2596 = vset.pattern.permute.xlu0 0
        %2597 = vperm.xlu0 %2596, %v1873
        %v2598 = vpop.permute.xlu0 %2597
        %2601 = vset.pattern.permute.xlu0 0
        %2602 = vperm.xlu0 %2601, %v1874
        %v2603 = vpop.permute.xlu0 %2602
        %2606 = vset.pattern.permute.xlu0 0
        %2607 = vperm.xlu0 %2606, %v1875
        %v2608 = vpop.permute.xlu0 %2607
        %2611 = vset.pattern.permute.xlu0 0
        %2612 = vperm.xlu0 %2611, %v1876
        %v2613 = vpop.permute.xlu0 %2612
        %2616 = vset.pattern.permute.xlu0 0
        %2617 = vperm.xlu0 %2616, %v1877
        %v2618 = vpop.permute.xlu0 %2617
        %2621 = vset.pattern.permute.xlu0 0
        %2622 = vperm.xlu0 %2621, %v1878
        %v2623 = vpop.permute.xlu0 %2622
        %2626 = vset.pattern.permute.xlu0 0
        %2627 = vperm.xlu0 %2626, %v1879
        %v2628 = vpop.permute.xlu0 %2627
        %2631 = vset.pattern.permute.xlu0 0
        %2632 = vperm.xlu0 %2631, %v1880
        %v2633 = vpop.permute.xlu0 %2632
        %2636 = vset.pattern.permute.xlu0 0
        %2637 = vperm.xlu0 %2636, %v1881
        %v2638 = vpop.permute.xlu0 %2637
        %2641 = vset.pattern.permute.xlu0 0
        %2642 = vperm.xlu0 %2641, %v1882
        %v2643 = vpop.permute.xlu0 %2642
        %2646 = vset.pattern.permute.xlu0 0
        %2647 = vperm.xlu0 %2646, %v1883
        %v2648 = vpop.permute.xlu0 %2647
        %2651 = vset.pattern.permute.xlu0 0
        %2652 = vperm.xlu0 %2651, %v1884
        %v2653 = vpop.permute.xlu0 %2652
        %2656 = vset.pattern.permute.xlu0 0
        %2657 = vperm.xlu0 %2656, %v1885
        %v2658 = vpop.permute.xlu0 %2657
        %2661 = vset.pattern.permute.xlu0 0
        %2662 = vperm.xlu0 %2661, %v1886
        %v2663 = vpop.permute.xlu0 %2662
        %2666 = vset.pattern.permute.xlu0 0
        %2667 = vperm.xlu0 %2666, %v1887
        %v2668 = vpop.permute.xlu0 %2667
        %2671 = vset.pattern.permute.xlu0 0
        %2672 = vperm.xlu0 %2671, %v1888
        %v2673 = vpop.permute.xlu0 %2672
        %2676 = vset.pattern.permute.xlu0 0
        %2677 = vperm.xlu0 %2676, %v1889
        %v2678 = vpop.permute.xlu0 %2677
        %2681 = vset.pattern.permute.xlu0 0
        %2682 = vperm.xlu0 %2681, %v1890
        %v2683 = vpop.permute.xlu0 %2682
        %v2685 = vmul.f32 %v2174, %v2368
        %v2686 = vmul.f32 %v2177, %v2373
        %v2687 = vmul.f32 %v2180, %v2378
        %v2688 = vmul.f32 %v2183, %v2383
        %v2689 = vmul.f32 %v2186, %v2388
        %v2690 = vmul.f32 %v2189, %v2393
        %v2691 = vmul.f32 %v2192, %v2398
        %v2692 = vmul.f32 %v2195, %v2403
        %v2693 = vmul.f32 %v2198, %v2408
        %v2694 = vmul.f32 %v2201, %v2413
        %v2695 = vmul.f32 %v2204, %v2418
        %v2696 = vmul.f32 %v2207, %v2423
        %v2697 = vmul.f32 %v2210, %v2428
        %v2698 = vmul.f32 %v2213, %v2433
        %v2699 = vmul.f32 %v2216, %v2438
        %v2700 = vmul.f32 %v2219, %v2443
        %v2701 = vmul.f32 %v2222, %v2448
        %v2702 = vmul.f32 %v2225, %v2453
        %v2703 = vmul.f32 %v2228, %v2458
        %v2704 = vmul.f32 %v2231, %v2463
        %v2705 = vmul.f32 %v2234, %v2468
        %v2706 = vmul.f32 %v2237, %v2473
        %v2707 = vmul.f32 %v2240, %v2478
        %v2708 = vmul.f32 %v2243, %v2483
        %v2709 = vmul.f32 %v2246, %v2488
        %v2710 = vmul.f32 %v2249, %v2493
        %v2711 = vmul.f32 %v2252, %v2498
        %v2712 = vmul.f32 %v2255, %v2503
        %v2713 = vmul.f32 %v2258, %v2508
        %v2714 = vmul.f32 %v2261, %v2513
        %v2715 = vmul.f32 %v2264, %v2518
        %v2716 = vmul.f32 %v2267, %v2523
        %v2717 = vmul.f32 %v2270, %v2528
        %v2718 = vmul.f32 %v2273, %v2533
        %v2719 = vmul.f32 %v2276, %v2538
        %v2720 = vmul.f32 %v2279, %v2543
        %v2721 = vmul.f32 %v2282, %v2548
        %v2722 = vmul.f32 %v2285, %v2553
        %v2723 = vmul.f32 %v2288, %v2558
        %v2724 = vmul.f32 %v2291, %v2563
        %v2725 = vmul.f32 %v2294, %v2568
        %v2726 = vmul.f32 %v2297, %v2573
        %v2727 = vmul.f32 %v2300, %v2578
        %v2728 = vmul.f32 %v2303, %v2583
        %v2729 = vmul.f32 %v2306, %v2588
        %v2730 = vmul.f32 %v2309, %v2593
        %v2731 = vmul.f32 %v2312, %v2598
        %v2732 = vmul.f32 %v2315, %v2603
        %v2733 = vmul.f32 %v2318, %v2608
        %v2734 = vmul.f32 %v2321, %v2613
        %v2735 = vmul.f32 %v2324, %v2618
        %v2736 = vmul.f32 %v2327, %v2623
        %v2737 = vmul.f32 %v2330, %v2628
        %v2738 = vmul.f32 %v2333, %v2633
        %v2739 = vmul.f32 %v2336, %v2638
        %v2740 = vmul.f32 %v2339, %v2643
        %v2741 = vmul.f32 %v2342, %v2648
        %v2742 = vmul.f32 %v2345, %v2653
        %v2743 = vmul.f32 %v2348, %v2658
        %v2744 = vmul.f32 %v2351, %v2663
        %v2745 = vmul.f32 %v2354, %v2668
        %v2746 = vmul.f32 %v2357, %v2673
        %v2747 = vmul.f32 %v2360, %v2678
        %v2748 = vmul.f32 %v2363, %v2683
        %v2749 = vpack.c.bf16 %v2685, %v2685
        %v2750 = vpack.c.bf16 %v2686, %v2686
        %v2751 = vpack.c.bf16 %v2687, %v2687
        %v2752 = vpack.c.bf16 %v2688, %v2688
        %v2753 = vpack.c.bf16 %v2689, %v2689
        %v2754 = vpack.c.bf16 %v2690, %v2690
        %v2755 = vpack.c.bf16 %v2691, %v2691
        %v2756 = vpack.c.bf16 %v2692, %v2692
        %v2757 = vpack.c.bf16 %v2693, %v2693
        %v2758 = vpack.c.bf16 %v2694, %v2694
        %v2759 = vpack.c.bf16 %v2695, %v2695
        %v2760 = vpack.c.bf16 %v2696, %v2696
        %v2761 = vpack.c.bf16 %v2697, %v2697
        %v2762 = vpack.c.bf16 %v2698, %v2698
        %v2763 = vpack.c.bf16 %v2699, %v2699
        %v2764 = vpack.c.bf16 %v2700, %v2700
        %v2765 = vpack.c.bf16 %v2701, %v2701
        %v2766 = vpack.c.bf16 %v2702, %v2702
        %v2767 = vpack.c.bf16 %v2703, %v2703
        %v2768 = vpack.c.bf16 %v2704, %v2704
        %v2769 = vpack.c.bf16 %v2705, %v2705
        %v2770 = vpack.c.bf16 %v2706, %v2706
        %v2771 = vpack.c.bf16 %v2707, %v2707
        %v2772 = vpack.c.bf16 %v2708, %v2708
        %v2773 = vpack.c.bf16 %v2709, %v2709
        %v2774 = vpack.c.bf16 %v2710, %v2710
        %v2775 = vpack.c.bf16 %v2711, %v2711
        %v2776 = vpack.c.bf16 %v2712, %v2712
        %v2777 = vpack.c.bf16 %v2713, %v2713
        %v2778 = vpack.c.bf16 %v2714, %v2714
        %v2779 = vpack.c.bf16 %v2715, %v2715
        %v2780 = vpack.c.bf16 %v2716, %v2716
        %v2781 = vpack.c.bf16 %v2717, %v2717
        %v2782 = vpack.c.bf16 %v2718, %v2718
        %v2783 = vpack.c.bf16 %v2719, %v2719
        %v2784 = vpack.c.bf16 %v2720, %v2720
        %v2785 = vpack.c.bf16 %v2721, %v2721
        %v2786 = vpack.c.bf16 %v2722, %v2722
        %v2787 = vpack.c.bf16 %v2723, %v2723
        %v2788 = vpack.c.bf16 %v2724, %v2724
        %v2789 = vpack.c.bf16 %v2725, %v2725
        %v2790 = vpack.c.bf16 %v2726, %v2726
        %v2791 = vpack.c.bf16 %v2727, %v2727
        %v2792 = vpack.c.bf16 %v2728, %v2728
        %v2793 = vpack.c.bf16 %v2729, %v2729
        %v2794 = vpack.c.bf16 %v2730, %v2730
        %v2795 = vpack.c.bf16 %v2731, %v2731
        %v2796 = vpack.c.bf16 %v2732, %v2732
        %v2797 = vpack.c.bf16 %v2733, %v2733
        %v2798 = vpack.c.bf16 %v2734, %v2734
        %v2799 = vpack.c.bf16 %v2735, %v2735
        %v2800 = vpack.c.bf16 %v2736, %v2736
        %v2801 = vpack.c.bf16 %v2737, %v2737
        %v2802 = vpack.c.bf16 %v2738, %v2738
        %v2803 = vpack.c.bf16 %v2739, %v2739
        %v2804 = vpack.c.bf16 %v2740, %v2740
        %v2805 = vpack.c.bf16 %v2741, %v2741
        %v2806 = vpack.c.bf16 %v2742, %v2742
        %v2807 = vpack.c.bf16 %v2743, %v2743
        %v2808 = vpack.c.bf16 %v2744, %v2744
        %v2809 = vpack.c.bf16 %v2745, %v2745
        %v2810 = vpack.c.bf16 %v2746, %v2746
        %v2811 = vpack.c.bf16 %v2747, %v2747
        %v2812 = vpack.c.bf16 %v2748, %v2748
        %vm2813 = vcmask 27648
        %2814 = vst.msk [vmem:[#allocation2] sm:$0xf] %vm2813, %v2749
        %2815 = vst.msk [vmem:[#allocation2 + $0x4] sm:$0xf] %vm2813, %v2750
        %2816 = vst.msk [vmem:[#allocation2 + $0x8] sm:$0xf] %vm2813, %v2751
        %2817 = vst.msk [vmem:[#allocation2 + $0xc] sm:$0xf] %vm2813, %v2752
        %2818 = vst.msk [vmem:[#allocation2 + $0x10] sm:$0xf] %vm2813, %v2753
        %2819 = vst.msk [vmem:[#allocation2 + $0x14] sm:$0xf] %vm2813, %v2754
        %2820 = vst.msk [vmem:[#allocation2 + $0x18] sm:$0xf] %vm2813, %v2755
        %2821 = vst.msk [vmem:[#allocation2 + $0x1c] sm:$0xf] %vm2813, %v2756
        %2822 = vst.msk [vmem:[#allocation2 + $0x20] sm:$0xf] %vm2813, %v2757
        %2823 = vst.msk [vmem:[#allocation2 + $0x24] sm:$0xf] %vm2813, %v2758
        %2824 = vst.msk [vmem:[#allocation2 + $0x28] sm:$0xf] %vm2813, %v2759
        %2825 = vst.msk [vmem:[#allocation2 + $0x2c] sm:$0xf] %vm2813, %v2760
        %2826 = vst.msk [vmem:[#allocation2 + $0x30] sm:$0xf] %vm2813, %v2761
        %2827 = vst.msk [vmem:[#allocation2 + $0x34] sm:$0xf] %vm2813, %v2762
        %2828 = vst.msk [vmem:[#allocation2 + $0x38] sm:$0xf] %vm2813, %v2763
        %2829 = vst.msk [vmem:[#allocation2 + $0x3c] sm:$0xf] %vm2813, %v2764
        %2830 = vst.msk [vmem:[#allocation2 + $0x40] sm:$0xf] %vm2813, %v2765
        %2831 = vst.msk [vmem:[#allocation2 + $0x44] sm:$0xf] %vm2813, %v2766
        %2832 = vst.msk [vmem:[#allocation2 + $0x48] sm:$0xf] %vm2813, %v2767
        %2833 = vst.msk [vmem:[#allocation2 + $0x4c] sm:$0xf] %vm2813, %v2768
        %2834 = vst.msk [vmem:[#allocation2 + $0x50] sm:$0xf] %vm2813, %v2769
        %2835 = vst.msk [vmem:[#allocation2 + $0x54] sm:$0xf] %vm2813, %v2770
        %2836 = vst.msk [vmem:[#allocation2 + $0x58] sm:$0xf] %vm2813, %v2771
        %2837 = vst.msk [vmem:[#allocation2 + $0x5c] sm:$0xf] %vm2813, %v2772
        %2838 = vst.msk [vmem:[#allocation2 + $0x60] sm:$0xf] %vm2813, %v2773
        %2839 = vst.msk [vmem:[#allocation2 + $0x64] sm:$0xf] %vm2813, %v2774
        %2840 = vst.msk [vmem:[#allocation2 + $0x68] sm:$0xf] %vm2813, %v2775
        %2841 = vst.msk [vmem:[#allocation2 + $0x6c] sm:$0xf] %vm2813, %v2776
        %2842 = vst.msk [vmem:[#allocation2 + $0x70] sm:$0xf] %vm2813, %v2777
        %2843 = vst.msk [vmem:[#allocation2 + $0x74] sm:$0xf] %vm2813, %v2778
        %2844 = vst.msk [vmem:[#allocation2 + $0x78] sm:$0xf] %vm2813, %v2779
        %2845 = vst.msk [vmem:[#allocation2 + $0x7c] sm:$0xf] %vm2813, %v2780
        %2846 = vst.msk [vmem:[#allocation2 + $0x80] sm:$0xf] %vm2813, %v2781
        %2847 = vst.msk [vmem:[#allocation2 + $0x84] sm:$0xf] %vm2813, %v2782
        %2848 = vst.msk [vmem:[#allocation2 + $0x88] sm:$0xf] %vm2813, %v2783
        %2849 = vst.msk [vmem:[#allocation2 + $0x8c] sm:$0xf] %vm2813, %v2784
        %2850 = vst.msk [vmem:[#allocation2 + $0x90] sm:$0xf] %vm2813, %v2785
        %2851 = vst.msk [vmem:[#allocation2 + $0x94] sm:$0xf] %vm2813, %v2786
        %2852 = vst.msk [vmem:[#allocation2 + $0x98] sm:$0xf] %vm2813, %v2787
        %2853 = vst.msk [vmem:[#allocation2 + $0x9c] sm:$0xf] %vm2813, %v2788
        %2854 = vst.msk [vmem:[#allocation2 + $0xa0] sm:$0xf] %vm2813, %v2789
        %2855 = vst.msk [vmem:[#allocation2 + $0xa4] sm:$0xf] %vm2813, %v2790
        %2856 = vst.msk [vmem:[#allocation2 + $0xa8] sm:$0xf] %vm2813, %v2791
        %2857 = vst.msk [vmem:[#allocation2 + $0xac] sm:$0xf] %vm2813, %v2792
        %2858 = vst.msk [vmem:[#allocation2 + $0xb0] sm:$0xf] %vm2813, %v2793
        %2859 = vst.msk [vmem:[#allocation2 + $0xb4] sm:$0xf] %vm2813, %v2794
        %2860 = vst.msk [vmem:[#allocation2 + $0xb8] sm:$0xf] %vm2813, %v2795
        %2861 = vst.msk [vmem:[#allocation2 + $0xbc] sm:$0xf] %vm2813, %v2796
        %2862 = vst.msk [vmem:[#allocation2 + $0xc0] sm:$0xf] %vm2813, %v2797
        %2863 = vst.msk [vmem:[#allocation2 + $0xc4] sm:$0xf] %vm2813, %v2798
        %2864 = vst.msk [vmem:[#allocation2 + $0xc8] sm:$0xf] %vm2813, %v2799
        %2865 = vst.msk [vmem:[#allocation2 + $0xcc] sm:$0xf] %vm2813, %v2800
        %2866 = vst.msk [vmem:[#allocation2 + $0xd0] sm:$0xf] %vm2813, %v2801
        %2867 = vst.msk [vmem:[#allocation2 + $0xd4] sm:$0xf] %vm2813, %v2802
        %2868 = vst.msk [vmem:[#allocation2 + $0xd8] sm:$0xf] %vm2813, %v2803
        %2869 = vst.msk [vmem:[#allocation2 + $0xdc] sm:$0xf] %vm2813, %v2804
        %2870 = vst.msk [vmem:[#allocation2 + $0xe0] sm:$0xf] %vm2813, %v2805
        %2871 = vst.msk [vmem:[#allocation2 + $0xe4] sm:$0xf] %vm2813, %v2806
        %2872 = vst.msk [vmem:[#allocation2 + $0xe8] sm:$0xf] %vm2813, %v2807
        %2873 = vst.msk [vmem:[#allocation2 + $0xec] sm:$0xf] %vm2813, %v2808
        %2874 = vst.msk [vmem:[#allocation2 + $0xf0] sm:$0xf] %vm2813, %v2809
        %2875 = vst.msk [vmem:[#allocation2 + $0xf4] sm:$0xf] %vm2813, %v2810
        %2876 = vst.msk [vmem:[#allocation2 + $0xf8] sm:$0xf] %vm2813, %v2811
        %2877 = vst.msk [vmem:[#allocation2 + $0xfc] sm:$0xf] %vm2813, %v2812
        %vm2878 = vcmask 7168
        %2879 = vst.msk [vmem:[#allocation3] sm:$0xff] %vm2878, -inf
        %2880 = vst.msk [vmem:[#allocation3 + $0x8] sm:$0xff] %vm2878, -inf
        %2881 = vst.msk [vmem:[#allocation3 + $0x10] sm:$0xff] %vm2878, -inf
        %2882 = vst.msk [vmem:[#allocation3 + $0x18] sm:$0xff] %vm2878, -inf
        %2883 = vst.msk [vmem:[#allocation3 + $0x20] sm:$0xff] %vm2878, -inf
        %2884 = vst.msk [vmem:[#allocation3 + $0x28] sm:$0xff] %vm2878, -inf
        %2885 = vst.msk [vmem:[#allocation3 + $0x30] sm:$0xff] %vm2878, -inf
        %2886 = vst.msk [vmem:[#allocation3 + $0x38] sm:$0xff] %vm2878, -inf
        %2887 = vst.msk [vmem:[#allocation3 + $0x40] sm:$0xff] %vm2878, -inf
        %2888 = vst.msk [vmem:[#allocation3 + $0x48] sm:$0xff] %vm2878, -inf
        %2889 = vst.msk [vmem:[#allocation3 + $0x50] sm:$0xff] %vm2878, -inf
        %2890 = vst.msk [vmem:[#allocation3 + $0x58] sm:$0xff] %vm2878, -inf
        %2891 = vst.msk [vmem:[#allocation3 + $0x60] sm:$0xff] %vm2878, -inf
        %2892 = vst.msk [vmem:[#allocation3 + $0x68] sm:$0xff] %vm2878, -inf
        %2893 = vst.msk [vmem:[#allocation3 + $0x70] sm:$0xff] %vm2878, -inf
        %2894 = vst.msk [vmem:[#allocation3 + $0x78] sm:$0xff] %vm2878, -inf
        %2895 = vst.msk [vmem:[#allocation3 + $0x80] sm:$0xff] %vm2878, -inf
        %2896 = vst.msk [vmem:[#allocation3 + $0x88] sm:$0xff] %vm2878, -inf
        %2897 = vst.msk [vmem:[#allocation3 + $0x90] sm:$0xff] %vm2878, -inf
        %2898 = vst.msk [vmem:[#allocation3 + $0x98] sm:$0xff] %vm2878, -inf
        %2899 = vst.msk [vmem:[#allocation3 + $0xa0] sm:$0xff] %vm2878, -inf
        %2900 = vst.msk [vmem:[#allocation3 + $0xa8] sm:$0xff] %vm2878, -inf
        %2901 = vst.msk [vmem:[#allocation3 + $0xb0] sm:$0xff] %vm2878, -inf
        %2902 = vst.msk [vmem:[#allocation3 + $0xb8] sm:$0xff] %vm2878, -inf
        %2903 = vst.msk [vmem:[#allocation3 + $0xc0] sm:$0xff] %vm2878, -inf
        %2904 = vst.msk [vmem:[#allocation3 + $0xc8] sm:$0xff] %vm2878, -inf
        %2905 = vst.msk [vmem:[#allocation3 + $0xd0] sm:$0xff] %vm2878, -inf
        %2906 = vst.msk [vmem:[#allocation3 + $0xd8] sm:$0xff] %vm2878, -inf
        %2907 = vst.msk [vmem:[#allocation3 + $0xe0] sm:$0xff] %vm2878, -inf
        %2908 = vst.msk [vmem:[#allocation3 + $0xe8] sm:$0xff] %vm2878, -inf
        %2909 = vst.msk [vmem:[#allocation3 + $0xf0] sm:$0xff] %vm2878, -inf
        %2910 = vst.msk [vmem:[#allocation3 + $0xf8] sm:$0xff] %vm2878, -inf
        %2911 = vst.msk [vmem:[#allocation3 + $0x100] sm:$0xff] %vm2878, -inf
        %2912 = vst.msk [vmem:[#allocation3 + $0x108] sm:$0xff] %vm2878, -inf
        %2913 = vst.msk [vmem:[#allocation3 + $0x110] sm:$0xff] %vm2878, -inf
        %2914 = vst.msk [vmem:[#allocation3 + $0x118] sm:$0xff] %vm2878, -inf
        %2915 = vst.msk [vmem:[#allocation3 + $0x120] sm:$0xff] %vm2878, -inf
        %2916 = vst.msk [vmem:[#allocation3 + $0x128] sm:$0xff] %vm2878, -inf
        %2917 = vst.msk [vmem:[#allocation3 + $0x130] sm:$0xff] %vm2878, -inf
        %2918 = vst.msk [vmem:[#allocation3 + $0x138] sm:$0xff] %vm2878, -inf
        %2919 = vst.msk [vmem:[#allocation3 + $0x140] sm:$0xff] %vm2878, -inf
        %2920 = vst.msk [vmem:[#allocation3 + $0x148] sm:$0xff] %vm2878, -inf
        %2921 = vst.msk [vmem:[#allocation3 + $0x150] sm:$0xff] %vm2878, -inf
        %2922 = vst.msk [vmem:[#allocation3 + $0x158] sm:$0xff] %vm2878, -inf
        %2923 = vst.msk [vmem:[#allocation3 + $0x160] sm:$0xff] %vm2878, -inf
        %2924 = vst.msk [vmem:[#allocation3 + $0x168] sm:$0xff] %vm2878, -inf
        %2925 = vst.msk [vmem:[#allocation3 + $0x170] sm:$0xff] %vm2878, -inf
        %2926 = vst.msk [vmem:[#allocation3 + $0x178] sm:$0xff] %vm2878, -inf
        %2927 = vst.msk [vmem:[#allocation3 + $0x180] sm:$0xff] %vm2878, -inf
        %2928 = vst.msk [vmem:[#allocation3 + $0x188] sm:$0xff] %vm2878, -inf
        %2929 = vst.msk [vmem:[#allocation3 + $0x190] sm:$0xff] %vm2878, -inf
        %2930 = vst.msk [vmem:[#allocation3 + $0x198] sm:$0xff] %vm2878, -inf
        %2931 = vst.msk [vmem:[#allocation3 + $0x1a0] sm:$0xff] %vm2878, -inf
        %2932 = vst.msk [vmem:[#allocation3 + $0x1a8] sm:$0xff] %vm2878, -inf
        %2933 = vst.msk [vmem:[#allocation3 + $0x1b0] sm:$0xff] %vm2878, -inf
        %2934 = vst.msk [vmem:[#allocation3 + $0x1b8] sm:$0xff] %vm2878, -inf
        %2935 = vst.msk [vmem:[#allocation3 + $0x1c0] sm:$0xff] %vm2878, -inf
        %2936 = vst.msk [vmem:[#allocation3 + $0x1c8] sm:$0xff] %vm2878, -inf
        %2937 = vst.msk [vmem:[#allocation3 + $0x1d0] sm:$0xff] %vm2878, -inf
        %2938 = vst.msk [vmem:[#allocation3 + $0x1d8] sm:$0xff] %vm2878, -inf
        %2939 = vst.msk [vmem:[#allocation3 + $0x1e0] sm:$0xff] %vm2878, -inf
        %2940 = vst.msk [vmem:[#allocation3 + $0x1e8] sm:$0xff] %vm2878, -inf
        %2941 = vst.msk [vmem:[#allocation3 + $0x1f0] sm:$0xff] %vm2878, -inf
        %2942 = vst.msk [vmem:[#allocation3 + $0x1f8] sm:$0xff] %vm2878, -inf
        %vm2943 = vcmask 269312
        %2944 = vst.msk [vmem:[#allocation4] sm:$0xff] %vm2943, 0.0
        %2945 = vst.msk [vmem:[#allocation4 + $0x8] sm:$0xff] %vm2943, 0.0
        %2946 = vst.msk [vmem:[#allocation4 + $0x10] sm:$0xff] %vm2943, 0.0
        %2947 = vst.msk [vmem:[#allocation4 + $0x18] sm:$0xff] %vm2943, 0.0
        %2948 = vst.msk [vmem:[#allocation4 + $0x20] sm:$0xff] %vm2943, 0.0
        %2949 = vst.msk [vmem:[#allocation4 + $0x28] sm:$0xff] %vm2943, 0.0
        %2950 = vst.msk [vmem:[#allocation4 + $0x30] sm:$0xff] %vm2943, 0.0
        %2951 = vst.msk [vmem:[#allocation4 + $0x38] sm:$0xff] %vm2943, 0.0
        %2952 = vst.msk [vmem:[#allocation4 + $0x40] sm:$0xff] %vm2943, 0.0
        %2953 = vst.msk [vmem:[#allocation4 + $0x48] sm:$0xff] %vm2943, 0.0
        %2954 = vst.msk [vmem:[#allocation4 + $0x50] sm:$0xff] %vm2943, 0.0
        %2955 = vst.msk [vmem:[#allocation4 + $0x58] sm:$0xff] %vm2943, 0.0
        %2956 = vst.msk [vmem:[#allocation4 + $0x60] sm:$0xff] %vm2943, 0.0
        %2957 = vst.msk [vmem:[#allocation4 + $0x68] sm:$0xff] %vm2943, 0.0
        %2958 = vst.msk [vmem:[#allocation4 + $0x70] sm:$0xff] %vm2943, 0.0
        %2959 = vst.msk [vmem:[#allocation4 + $0x78] sm:$0xff] %vm2943, 0.0
        %2960 = vst.msk [vmem:[#allocation4 + $0x80] sm:$0xff] %vm2943, 0.0
        %2961 = vst.msk [vmem:[#allocation4 + $0x88] sm:$0xff] %vm2943, 0.0
        %2962 = vst.msk [vmem:[#allocation4 + $0x90] sm:$0xff] %vm2943, 0.0
        %2963 = vst.msk [vmem:[#allocation4 + $0x98] sm:$0xff] %vm2943, 0.0
        %2964 = vst.msk [vmem:[#allocation4 + $0xa0] sm:$0xff] %vm2943, 0.0
        %2965 = vst.msk [vmem:[#allocation4 + $0xa8] sm:$0xff] %vm2943, 0.0
        %2966 = vst.msk [vmem:[#allocation4 + $0xb0] sm:$0xff] %vm2943, 0.0
        %2967 = vst.msk [vmem:[#allocation4 + $0xb8] sm:$0xff] %vm2943, 0.0
        %2968 = vst.msk [vmem:[#allocation4 + $0xc0] sm:$0xff] %vm2943, 0.0
        %2969 = vst.msk [vmem:[#allocation4 + $0xc8] sm:$0xff] %vm2943, 0.0
        %2970 = vst.msk [vmem:[#allocation4 + $0xd0] sm:$0xff] %vm2943, 0.0
        %2971 = vst.msk [vmem:[#allocation4 + $0xd8] sm:$0xff] %vm2943, 0.0
        %2972 = vst.msk [vmem:[#allocation4 + $0xe0] sm:$0xff] %vm2943, 0.0
        %2973 = vst.msk [vmem:[#allocation4 + $0xe8] sm:$0xff] %vm2943, 0.0
        %2974 = vst.msk [vmem:[#allocation4 + $0xf0] sm:$0xff] %vm2943, 0.0
        %2975 = vst.msk [vmem:[#allocation4 + $0xf8] sm:$0xff] %vm2943, 0.0
        %2976 = vst.msk [vmem:[#allocation4 + $0x100] sm:$0xff] %vm2943, 0.0
        %2977 = vst.msk [vmem:[#allocation4 + $0x108] sm:$0xff] %vm2943, 0.0
        %2978 = vst.msk [vmem:[#allocation4 + $0x110] sm:$0xff] %vm2943, 0.0
        %2979 = vst.msk [vmem:[#allocation4 + $0x118] sm:$0xff] %vm2943, 0.0
        %2980 = vst.msk [vmem:[#allocation4 + $0x120] sm:$0xff] %vm2943, 0.0
        %2981 = vst.msk [vmem:[#allocation4 + $0x128] sm:$0xff] %vm2943, 0.0
        %2982 = vst.msk [vmem:[#allocation4 + $0x130] sm:$0xff] %vm2943, 0.0
        %2983 = vst.msk [vmem:[#allocation4 + $0x138] sm:$0xff] %vm2943, 0.0
        %2984 = vst.msk [vmem:[#allocation4 + $0x140] sm:$0xff] %vm2943, 0.0
        %2985 = vst.msk [vmem:[#allocation4 + $0x148] sm:$0xff] %vm2943, 0.0
        %2986 = vst.msk [vmem:[#allocation4 + $0x150] sm:$0xff] %vm2943, 0.0
        %2987 = vst.msk [vmem:[#allocation4 + $0x158] sm:$0xff] %vm2943, 0.0
        %2988 = vst.msk [vmem:[#allocation4 + $0x160] sm:$0xff] %vm2943, 0.0
        %2989 = vst.msk [vmem:[#allocation4 + $0x168] sm:$0xff] %vm2943, 0.0
        %2990 = vst.msk [vmem:[#allocation4 + $0x170] sm:$0xff] %vm2943, 0.0
        %2991 = vst.msk [vmem:[#allocation4 + $0x178] sm:$0xff] %vm2943, 0.0
        %2992 = vst.msk [vmem:[#allocation4 + $0x180] sm:$0xff] %vm2943, 0.0
        %2993 = vst.msk [vmem:[#allocation4 + $0x188] sm:$0xff] %vm2943, 0.0
        %2994 = vst.msk [vmem:[#allocation4 + $0x190] sm:$0xff] %vm2943, 0.0
        %2995 = vst.msk [vmem:[#allocation4 + $0x198] sm:$0xff] %vm2943, 0.0
        %2996 = vst.msk [vmem:[#allocation4 + $0x1a0] sm:$0xff] %vm2943, 0.0
        %2997 = vst.msk [vmem:[#allocation4 + $0x1a8] sm:$0xff] %vm2943, 0.0
        %2998 = vst.msk [vmem:[#allocation4 + $0x1b0] sm:$0xff] %vm2943, 0.0
        %2999 = vst.msk [vmem:[#allocation4 + $0x1b8] sm:$0xff] %vm2943, 0.0
        %3000 = vst.msk [vmem:[#allocation4 + $0x1c0] sm:$0xff] %vm2943, 0.0
        %3001 = vst.msk [vmem:[#allocation4 + $0x1c8] sm:$0xff] %vm2943, 0.0
        %3002 = vst.msk [vmem:[#allocation4 + $0x1d0] sm:$0xff] %vm2943, 0.0
        %3003 = vst.msk [vmem:[#allocation4 + $0x1d8] sm:$0xff] %vm2943, 0.0
        %3004 = vst.msk [vmem:[#allocation4 + $0x1e0] sm:$0xff] %vm2943, 0.0
        %3005 = vst.msk [vmem:[#allocation4 + $0x1e8] sm:$0xff] %vm2943, 0.0
        %3006 = vst.msk [vmem:[#allocation4 + $0x1f0] sm:$0xff] %vm2943, 0.0
        %3007 = vst.msk [vmem:[#allocation4 + $0x1f8] sm:$0xff] %vm2943, 0.0
      $region68: #{ssfm_forward.1} parent=63 // pred_fallthru
        _
      %v3008 = vld [vmem:[%s530] sm:$0xff]
      %v3009 = vld [vmem:[%s530 + $0x8] sm:$0xff]
      %v3010 = vld [vmem:[%s530 + $0x10] sm:$0xff]
      %v3011 = vld [vmem:[%s530 + $0x18] sm:$0xff]
      %v3012 = vld [vmem:[%s530 + $0x20] sm:$0xff]
      %v3013 = vld [vmem:[%s530 + $0x28] sm:$0xff]
      %v3014 = vld [vmem:[%s530 + $0x30] sm:$0xff]
      %v3015 = vld [vmem:[%s530 + $0x38] sm:$0xff]
      %v3016 = vld [vmem:[%s530 + $0x40] sm:$0xff]
      %v3017 = vld [vmem:[%s530 + $0x48] sm:$0xff]
      %v3018 = vld [vmem:[%s530 + $0x50] sm:$0xff]
      %v3019 = vld [vmem:[%s530 + $0x58] sm:$0xff]
      %v3020 = vld [vmem:[%s530 + $0x60] sm:$0xff]
      %v3021 = vld [vmem:[%s530 + $0x68] sm:$0xff]
      %v3022 = vld [vmem:[%s530 + $0x70] sm:$0xff]
      %v3023 = vld [vmem:[%s530 + $0x78] sm:$0xff]
      %v3024 = vld [vmem:[%s530 + $0x80] sm:$0xff]
      %v3025 = vld [vmem:[%s530 + $0x88] sm:$0xff]
      %v3026 = vld [vmem:[%s530 + $0x90] sm:$0xff]
      %v3027 = vld [vmem:[%s530 + $0x98] sm:$0xff]
      %v3028 = vld [vmem:[%s530 + $0xa0] sm:$0xff]
      %v3029 = vld [vmem:[%s530 + $0xa8] sm:$0xff]
      %v3030 = vld [vmem:[%s530 + $0xb0] sm:$0xff]
      %v3031 = vld [vmem:[%s530 + $0xb8] sm:$0xff]
      %v3032 = vld [vmem:[%s530 + $0xc0] sm:$0xff]
      %v3033 = vld [vmem:[%s530 + $0xc8] sm:$0xff]
      %v3034 = vld [vmem:[%s530 + $0xd0] sm:$0xff]
      %v3035 = vld [vmem:[%s530 + $0xd8] sm:$0xff]
      %v3036 = vld [vmem:[%s530 + $0xe0] sm:$0xff]
      %v3037 = vld [vmem:[%s530 + $0xe8] sm:$0xff]
      %v3038 = vld [vmem:[%s530 + $0xf0] sm:$0xff]
      %v3039 = vld [vmem:[%s530 + $0xf8] sm:$0xff]
      %v3040 = vld [vmem:[%s530 + $0x100] sm:$0xff]
      %v3041 = vld [vmem:[%s530 + $0x108] sm:$0xff]
      %v3042 = vld [vmem:[%s530 + $0x110] sm:$0xff]
      %v3043 = vld [vmem:[%s530 + $0x118] sm:$0xff]
      %v3044 = vld [vmem:[%s530 + $0x120] sm:$0xff]
      %v3045 = vld [vmem:[%s530 + $0x128] sm:$0xff]
      %v3046 = vld [vmem:[%s530 + $0x130] sm:$0xff]
      %v3047 = vld [vmem:[%s530 + $0x138] sm:$0xff]
      %v3048 = vld [vmem:[%s530 + $0x140] sm:$0xff]
      %v3049 = vld [vmem:[%s530 + $0x148] sm:$0xff]
      %v3050 = vld [vmem:[%s530 + $0x150] sm:$0xff]
      %v3051 = vld [vmem:[%s530 + $0x158] sm:$0xff]
      %v3052 = vld [vmem:[%s530 + $0x160] sm:$0xff]
      %v3053 = vld [vmem:[%s530 + $0x168] sm:$0xff]
      %v3054 = vld [vmem:[%s530 + $0x170] sm:$0xff]
      %v3055 = vld [vmem:[%s530 + $0x178] sm:$0xff]
      %v3056 = vld [vmem:[%s530 + $0x180] sm:$0xff]
      %v3057 = vld [vmem:[%s530 + $0x188] sm:$0xff]
      %v3058 = vld [vmem:[%s530 + $0x190] sm:$0xff]
      %v3059 = vld [vmem:[%s530 + $0x198] sm:$0xff]
      %v3060 = vld [vmem:[%s530 + $0x1a0] sm:$0xff]
      %v3061 = vld [vmem:[%s530 + $0x1a8] sm:$0xff]
      %v3062 = vld [vmem:[%s530 + $0x1b0] sm:$0xff]
      %v3063 = vld [vmem:[%s530 + $0x1b8] sm:$0xff]
      %v3064 = vld [vmem:[%s530 + $0x1c0] sm:$0xff]
      %v3065 = vld [vmem:[%s530 + $0x1c8] sm:$0xff]
      %v3066 = vld [vmem:[%s530 + $0x1d0] sm:$0xff]
      %v3067 = vld [vmem:[%s530 + $0x1d8] sm:$0xff]
      %v3068 = vld [vmem:[%s530 + $0x1e0] sm:$0xff]
      %v3069 = vld [vmem:[%s530 + $0x1e8] sm:$0xff]
      %v3070 = vld [vmem:[%s530 + $0x1f0] sm:$0xff]
      %v3071 = vld [vmem:[%s530 + $0x1f8] sm:$0xff]
      %v3072 = vxor.u32 %v3008, 2147483648
      %v3073 = vxor.u32 %v3009, 2147483648
      %v3074 = vxor.u32 %v3010, 2147483648
      %v3075 = vxor.u32 %v3011, 2147483648
      %v3076 = vxor.u32 %v3012, 2147483648
      %v3077 = vxor.u32 %v3013, 2147483648
      %v3078 = vxor.u32 %v3014, 2147483648
      %v3079 = vxor.u32 %v3015, 2147483648
      %v3080 = vxor.u32 %v3016, 2147483648
      %v3081 = vxor.u32 %v3017, 2147483648
      %v3082 = vxor.u32 %v3018, 2147483648
      %v3083 = vxor.u32 %v3019, 2147483648
      %v3084 = vxor.u32 %v3020, 2147483648
      %v3085 = vxor.u32 %v3021, 2147483648
      %v3086 = vxor.u32 %v3022, 2147483648
      %v3087 = vxor.u32 %v3023, 2147483648
      %v3088 = vxor.u32 %v3024, 2147483648
      %v3089 = vxor.u32 %v3025, 2147483648
      %v3090 = vxor.u32 %v3026, 2147483648
      %v3091 = vxor.u32 %v3027, 2147483648
      %v3092 = vxor.u32 %v3028, 2147483648
      %v3093 = vxor.u32 %v3029, 2147483648
      %v3094 = vxor.u32 %v3030, 2147483648
      %v3095 = vxor.u32 %v3031, 2147483648
      %v3096 = vxor.u32 %v3032, 2147483648
      %v3097 = vxor.u32 %v3033, 2147483648
      %v3098 = vxor.u32 %v3034, 2147483648
      %v3099 = vxor.u32 %v3035, 2147483648
      %v3100 = vxor.u32 %v3036, 2147483648
      %v3101 = vxor.u32 %v3037, 2147483648
      %v3102 = vxor.u32 %v3038, 2147483648
      %v3103 = vxor.u32 %v3039, 2147483648
      %v3104 = vxor.u32 %v3040, 2147483648
      %v3105 = vxor.u32 %v3041, 2147483648
      %v3106 = vxor.u32 %v3042, 2147483648
      %v3107 = vxor.u32 %v3043, 2147483648
      %v3108 = vxor.u32 %v3044, 2147483648
      %v3109 = vxor.u32 %v3045, 2147483648
      %v3110 = vxor.u32 %v3046, 2147483648
      %v3111 = vxor.u32 %v3047, 2147483648
      %v3112 = vxor.u32 %v3048, 2147483648
      %v3113 = vxor.u32 %v3049, 2147483648
      %v3114 = vxor.u32 %v3050, 2147483648
      %v3115 = vxor.u32 %v3051, 2147483648
      %v3116 = vxor.u32 %v3052, 2147483648
      %v3117 = vxor.u32 %v3053, 2147483648
      %v3118 = vxor.u32 %v3054, 2147483648
      %v3119 = vxor.u32 %v3055, 2147483648
      %v3120 = vxor.u32 %v3056, 2147483648
      %v3121 = vxor.u32 %v3057, 2147483648
      %v3122 = vxor.u32 %v3058, 2147483648
      %v3123 = vxor.u32 %v3059, 2147483648
      %v3124 = vxor.u32 %v3060, 2147483648
      %v3125 = vxor.u32 %v3061, 2147483648
      %v3126 = vxor.u32 %v3062, 2147483648
      %v3127 = vxor.u32 %v3063, 2147483648
      %v3128 = vxor.u32 %v3064, 2147483648
      %v3129 = vxor.u32 %v3065, 2147483648
      %v3130 = vxor.u32 %v3066, 2147483648
      %v3131 = vxor.u32 %v3067, 2147483648
      %v3132 = vxor.u32 %v3068, 2147483648
      %v3133 = vxor.u32 %v3069, 2147483648
      %v3134 = vxor.u32 %v3070, 2147483648
      %v3135 = vxor.u32 %v3071, 2147483648
      %v3136 = vmul.f32 %v3072, 1.442695
      %v3137 = vpow.pop %v3136
      %v3138 = vmul.f32 %v3073, 1.442695
      %v3139 = vpow.pop %v3138
      %v3140 = vmul.f32 %v3074, 1.442695
      %v3141 = vpow.pop %v3140
      %v3142 = vmul.f32 %v3075, 1.442695
      %v3143 = vpow.pop %v3142
      %v3144 = vmul.f32 %v3076, 1.442695
      %v3145 = vpow.pop %v3144
      %v3146 = vmul.f32 %v3077, 1.442695
      %v3147 = vpow.pop %v3146
      %v3148 = vmul.f32 %v3078, 1.442695
      %v3149 = vpow.pop %v3148
      %v3150 = vmul.f32 %v3079, 1.442695
      %v3151 = vpow.pop %v3150
      %v3152 = vmul.f32 %v3080, 1.442695
      %v3153 = vpow.pop %v3152
      %v3154 = vmul.f32 %v3081, 1.442695
      %v3155 = vpow.pop %v3154
      %v3156 = vmul.f32 %v3082, 1.442695
      %v3157 = vpow.pop %v3156
      %v3158 = vmul.f32 %v3083, 1.442695
      %v3159 = vpow.pop %v3158
      %v3160 = vmul.f32 %v3084, 1.442695
      %v3161 = vpow.pop %v3160
      %v3162 = vmul.f32 %v3085, 1.442695
      %v3163 = vpow.pop %v3162
      %v3164 = vmul.f32 %v3086, 1.442695
      %v3165 = vpow.pop %v3164
      %v3166 = vmul.f32 %v3087, 1.442695
      %v3167 = vpow.pop %v3166
      %v3168 = vmul.f32 %v3088, 1.442695
      %v3169 = vpow.pop %v3168
      %v3170 = vmul.f32 %v3089, 1.442695
      %v3171 = vpow.pop %v3170
      %v3172 = vmul.f32 %v3090, 1.442695
      %v3173 = vpow.pop %v3172
      %v3174 = vmul.f32 %v3091, 1.442695
      %v3175 = vpow.pop %v3174
      %v3176 = vmul.f32 %v3092, 1.442695
      %v3177 = vpow.pop %v3176
      %v3178 = vmul.f32 %v3093, 1.442695
      %v3179 = vpow.pop %v3178
      %v3180 = vmul.f32 %v3094, 1.442695
      %v3181 = vpow.pop %v3180
      %v3182 = vmul.f32 %v3095, 1.442695
      %v3183 = vpow.pop %v3182
      %v3184 = vmul.f32 %v3096, 1.442695
      %v3185 = vpow.pop %v3184
      %v3186 = vmul.f32 %v3097, 1.442695
      %v3187 = vpow.pop %v3186
      %v3188 = vmul.f32 %v3098, 1.442695
      %v3189 = vpow.pop %v3188
      %v3190 = vmul.f32 %v3099, 1.442695
      %v3191 = vpow.pop %v3190
      %v3192 = vmul.f32 %v3100, 1.442695
      %v3193 = vpow.pop %v3192
      %v3194 = vmul.f32 %v3101, 1.442695
      %v3195 = vpow.pop %v3194
      %v3196 = vmul.f32 %v3102, 1.442695
      %v3197 = vpow.pop %v3196
      %v3198 = vmul.f32 %v3103, 1.442695
      %v3199 = vpow.pop %v3198
      %v3200 = vmul.f32 %v3104, 1.442695
      %v3201 = vpow.pop %v3200
      %v3202 = vmul.f32 %v3105, 1.442695
      %v3203 = vpow.pop %v3202
      %v3204 = vmul.f32 %v3106, 1.442695
      %v3205 = vpow.pop %v3204
      %v3206 = vmul.f32 %v3107, 1.442695
      %v3207 = vpow.pop %v3206
      %v3208 = vmul.f32 %v3108, 1.442695
      %v3209 = vpow.pop %v3208
      %v3210 = vmul.f32 %v3109, 1.442695
      %v3211 = vpow.pop %v3210
      %v3212 = vmul.f32 %v3110, 1.442695
      %v3213 = vpow.pop %v3212
      %v3214 = vmul.f32 %v3111, 1.442695
      %v3215 = vpow.pop %v3214
      %v3216 = vmul.f32 %v3112, 1.442695
      %v3217 = vpow.pop %v3216
      %v3218 = vmul.f32 %v3113, 1.442695
      %v3219 = vpow.pop %v3218
      %v3220 = vmul.f32 %v3114, 1.442695
      %v3221 = vpow.pop %v3220
      %v3222 = vmul.f32 %v3115, 1.442695
      %v3223 = vpow.pop %v3222
      %v3224 = vmul.f32 %v3116, 1.442695
      %v3225 = vpow.pop %v3224
      %v3226 = vmul.f32 %v3117, 1.442695
      %v3227 = vpow.pop %v3226
      %v3228 = vmul.f32 %v3118, 1.442695
      %v3229 = vpow.pop %v3228
      %v3230 = vmul.f32 %v3119, 1.442695
      %v3231 = vpow.pop %v3230
      %v3232 = vmul.f32 %v3120, 1.442695
      %v3233 = vpow.pop %v3232
      %v3234 = vmul.f32 %v3121, 1.442695
      %v3235 = vpow.pop %v3234
      %v3236 = vmul.f32 %v3122, 1.442695
      %v3237 = vpow.pop %v3236
      %v3238 = vmul.f32 %v3123, 1.442695
      %v3239 = vpow.pop %v3238
      %v3240 = vmul.f32 %v3124, 1.442695
      %v3241 = vpow.pop %v3240
      %v3242 = vmul.f32 %v3125, 1.442695
      %v3243 = vpow.pop %v3242
      %v3244 = vmul.f32 %v3126, 1.442695
      %v3245 = vpow.pop %v3244
      %v3246 = vmul.f32 %v3127, 1.442695
      %v3247 = vpow.pop %v3246
      %v3248 = vmul.f32 %v3128, 1.442695
      %v3249 = vpow.pop %v3248
      %v3250 = vmul.f32 %v3129, 1.442695
      %v3251 = vpow.pop %v3250
      %v3252 = vmul.f32 %v3130, 1.442695
      %v3253 = vpow.pop %v3252
      %v3254 = vmul.f32 %v3131, 1.442695
      %v3255 = vpow.pop %v3254
      %v3256 = vmul.f32 %v3132, 1.442695
      %v3257 = vpow.pop %v3256
      %v3258 = vmul.f32 %v3133, 1.442695
      %v3259 = vpow.pop %v3258
      %v3260 = vmul.f32 %v3134, 1.442695
      %v3261 = vpow.pop %v3260
      %v3262 = vmul.f32 %v3135, 1.442695
      %v3263 = vpow.pop %v3262
      %v3264 = vadd.f32 %v3137, 1.0
      %v3265 = vadd.f32 %v3139, 1.0
      %v3266 = vadd.f32 %v3141, 1.0
      %v3267 = vadd.f32 %v3143, 1.0
      %v3268 = vadd.f32 %v3145, 1.0
      %v3269 = vadd.f32 %v3147, 1.0
      %v3270 = vadd.f32 %v3149, 1.0
      %v3271 = vadd.f32 %v3151, 1.0
      %v3272 = vadd.f32 %v3153, 1.0
      %v3273 = vadd.f32 %v3155, 1.0
      %v3274 = vadd.f32 %v3157, 1.0
      %v3275 = vadd.f32 %v3159, 1.0
      %v3276 = vadd.f32 %v3161, 1.0
      %v3277 = vadd.f32 %v3163, 1.0
      %v3278 = vadd.f32 %v3165, 1.0
      %v3279 = vadd.f32 %v3167, 1.0
      %v3280 = vadd.f32 %v3169, 1.0
      %v3281 = vadd.f32 %v3171, 1.0
      %v3282 = vadd.f32 %v3173, 1.0
      %v3283 = vadd.f32 %v3175, 1.0
      %v3284 = vadd.f32 %v3177, 1.0
      %v3285 = vadd.f32 %v3179, 1.0
      %v3286 = vadd.f32 %v3181, 1.0
      %v3287 = vadd.f32 %v3183, 1.0
      %v3288 = vadd.f32 %v3185, 1.0
      %v3289 = vadd.f32 %v3187, 1.0
      %v3290 = vadd.f32 %v3189, 1.0
      %v3291 = vadd.f32 %v3191, 1.0
      %v3292 = vadd.f32 %v3193, 1.0
      %v3293 = vadd.f32 %v3195, 1.0
      %v3294 = vadd.f32 %v3197, 1.0
      %v3295 = vadd.f32 %v3199, 1.0
      %v3296 = vadd.f32 %v3201, 1.0
      %v3297 = vadd.f32 %v3203, 1.0
      %v3298 = vadd.f32 %v3205, 1.0
      %v3299 = vadd.f32 %v3207, 1.0
      %v3300 = vadd.f32 %v3209, 1.0
      %v3301 = vadd.f32 %v3211, 1.0
      %v3302 = vadd.f32 %v3213, 1.0
      %v3303 = vadd.f32 %v3215, 1.0
      %v3304 = vadd.f32 %v3217, 1.0
      %v3305 = vadd.f32 %v3219, 1.0
      %v3306 = vadd.f32 %v3221, 1.0
      %v3307 = vadd.f32 %v3223, 1.0
      %v3308 = vadd.f32 %v3225, 1.0
      %v3309 = vadd.f32 %v3227, 1.0
      %v3310 = vadd.f32 %v3229, 1.0
      %v3311 = vadd.f32 %v3231, 1.0
      %v3312 = vadd.f32 %v3233, 1.0
      %v3313 = vadd.f32 %v3235, 1.0
      %v3314 = vadd.f32 %v3237, 1.0
      %v3315 = vadd.f32 %v3239, 1.0
      %v3316 = vadd.f32 %v3241, 1.0
      %v3317 = vadd.f32 %v3243, 1.0
      %v3318 = vadd.f32 %v3245, 1.0
      %v3319 = vadd.f32 %v3247, 1.0
      %v3320 = vadd.f32 %v3249, 1.0
      %v3321 = vadd.f32 %v3251, 1.0
      %v3322 = vadd.f32 %v3253, 1.0
      %v3323 = vadd.f32 %v3255, 1.0
      %v3324 = vadd.f32 %v3257, 1.0
      %v3325 = vadd.f32 %v3259, 1.0
      %v3326 = vadd.f32 %v3261, 1.0
      %v3327 = vadd.f32 %v3263, 1.0
      %v3328 = vrcp.pop %v3264
      %v3329 = vmul.f32 %v3264, %v3328
      %v3330 = vsub.f32 1.0, %v3329
      %v3331 = vmul.f32 %v3328, %v3330
      %v3332 = vadd.f32 %v3328, %v3331
      %vm3333 = vweird.f32 %v3264
      %vm3334 = vweird.f32 %v3328
      %vm3335 = vmor %vm3333, %vm3334
      %v3336 = vsel %vm3335, %v3328, %v3332
      %v3337 = vand.u32 2147483647, %v3264
      %vm3338 = vcmp.eq.f32.partialorder %v3337, 8.507059e+37
      %v3339 = vand.u32 %v3264, 2147483648
      %v3340 = vor.u32 1.1754944e-38, %v3339
      %v3341 = vsel %vm3338, %v3340, %v3336
      %v3342 = vmul.f32 1.0, %v3341
      %v3343 = vrcp.pop %v3265
      %v3344 = vmul.f32 %v3265, %v3343
      %v3345 = vsub.f32 1.0, %v3344
      %v3346 = vmul.f32 %v3343, %v3345
      %v3347 = vadd.f32 %v3343, %v3346
      %vm3348 = vweird.f32 %v3265
      %vm3349 = vweird.f32 %v3343
      %vm3350 = vmor %vm3348, %vm3349
      %v3351 = vsel %vm3350, %v3343, %v3347
      %v3352 = vand.u32 2147483647, %v3265
      %vm3353 = vcmp.eq.f32.partialorder %v3352, 8.507059e+37
      %v3354 = vand.u32 %v3265, 2147483648
      %v3355 = vor.u32 1.1754944e-38, %v3354
      %v3356 = vsel %vm3353, %v3355, %v3351
      %v3357 = vmul.f32 1.0, %v3356
      %v3358 = vrcp.pop %v3266
      %v3359 = vmul.f32 %v3266, %v3358
      %v3360 = vsub.f32 1.0, %v3359
      %v3361 = vmul.f32 %v3358, %v3360
      %v3362 = vadd.f32 %v3358, %v3361
      %vm3363 = vweird.f32 %v3266
      %vm3364 = vweird.f32 %v3358
      %vm3365 = vmor %vm3363, %vm3364
      %v3366 = vsel %vm3365, %v3358, %v3362
      %v3367 = vand.u32 2147483647, %v3266
      %vm3368 = vcmp.eq.f32.partialorder %v3367, 8.507059e+37
      %v3369 = vand.u32 %v3266, 2147483648
      %v3370 = vor.u32 1.1754944e-38, %v3369
      %v3371 = vsel %vm3368, %v3370, %v3366
      %v3372 = vmul.f32 1.0, %v3371
      %v3373 = vrcp.pop %v3267
      %v3374 = vmul.f32 %v3267, %v3373
      %v3375 = vsub.f32 1.0, %v3374
      %v3376 = vmul.f32 %v3373, %v3375
      %v3377 = vadd.f32 %v3373, %v3376
      %vm3378 = vweird.f32 %v3267
      %vm3379 = vweird.f32 %v3373
      %vm3380 = vmor %vm3378, %vm3379
      %v3381 = vsel %vm3380, %v3373, %v3377
      %v3382 = vand.u32 2147483647, %v3267
      %vm3383 = vcmp.eq.f32.partialorder %v3382, 8.507059e+37
      %v3384 = vand.u32 %v3267, 2147483648
      %v3385 = vor.u32 1.1754944e-38, %v3384
      %v3386 = vsel %vm3383, %v3385, %v3381
      %v3387 = vmul.f32 1.0, %v3386
      %v3388 = vrcp.pop %v3268
      %v3389 = vmul.f32 %v3268, %v3388
      %v3390 = vsub.f32 1.0, %v3389
      %v3391 = vmul.f32 %v3388, %v3390
      %v3392 = vadd.f32 %v3388, %v3391
      %vm3393 = vweird.f32 %v3268
      %vm3394 = vweird.f32 %v3388
      %vm3395 = vmor %vm3393, %vm3394
      %v3396 = vsel %vm3395, %v3388, %v3392
      %v3397 = vand.u32 2147483647, %v3268
      %vm3398 = vcmp.eq.f32.partialorder %v3397, 8.507059e+37
      %v3399 = vand.u32 %v3268, 2147483648
      %v3400 = vor.u32 1.1754944e-38, %v3399
      %v3401 = vsel %vm3398, %v3400, %v3396
      %v3402 = vmul.f32 1.0, %v3401
      %v3403 = vrcp.pop %v3269
      %v3404 = vmul.f32 %v3269, %v3403
      %v3405 = vsub.f32 1.0, %v3404
      %v3406 = vmul.f32 %v3403, %v3405
      %v3407 = vadd.f32 %v3403, %v3406
      %vm3408 = vweird.f32 %v3269
      %vm3409 = vweird.f32 %v3403
      %vm3410 = vmor %vm3408, %vm3409
      %v3411 = vsel %vm3410, %v3403, %v3407
      %v3412 = vand.u32 2147483647, %v3269
      %vm3413 = vcmp.eq.f32.partialorder %v3412, 8.507059e+37
      %v3414 = vand.u32 %v3269, 2147483648
      %v3415 = vor.u32 1.1754944e-38, %v3414
      %v3416 = vsel %vm3413, %v3415, %v3411
      %v3417 = vmul.f32 1.0, %v3416
      %v3418 = vrcp.pop %v3270
      %v3419 = vmul.f32 %v3270, %v3418
      %v3420 = vsub.f32 1.0, %v3419
      %v3421 = vmul.f32 %v3418, %v3420
      %v3422 = vadd.f32 %v3418, %v3421
      %vm3423 = vweird.f32 %v3270
      %vm3424 = vweird.f32 %v3418
      %vm3425 = vmor %vm3423, %vm3424
      %v3426 = vsel %vm3425, %v3418, %v3422
      %v3427 = vand.u32 2147483647, %v3270
      %vm3428 = vcmp.eq.f32.partialorder %v3427, 8.507059e+37
      %v3429 = vand.u32 %v3270, 2147483648
      %v3430 = vor.u32 1.1754944e-38, %v3429
      %v3431 = vsel %vm3428, %v3430, %v3426
      %v3432 = vmul.f32 1.0, %v3431
      %v3433 = vrcp.pop %v3271
      %v3434 = vmul.f32 %v3271, %v3433
      %v3435 = vsub.f32 1.0, %v3434
      %v3436 = vmul.f32 %v3433, %v3435
      %v3437 = vadd.f32 %v3433, %v3436
      %vm3438 = vweird.f32 %v3271
      %vm3439 = vweird.f32 %v3433
      %vm3440 = vmor %vm3438, %vm3439
      %v3441 = vsel %vm3440, %v3433, %v3437
      %v3442 = vand.u32 2147483647, %v3271
      %vm3443 = vcmp.eq.f32.partialorder %v3442, 8.507059e+37
      %v3444 = vand.u32 %v3271, 2147483648
      %v3445 = vor.u32 1.1754944e-38, %v3444
      %v3446 = vsel %vm3443, %v3445, %v3441
      %v3447 = vmul.f32 1.0, %v3446
      %v3448 = vrcp.pop %v3272
      %v3449 = vmul.f32 %v3272, %v3448
      %v3450 = vsub.f32 1.0, %v3449
      %v3451 = vmul.f32 %v3448, %v3450
      %v3452 = vadd.f32 %v3448, %v3451
      %vm3453 = vweird.f32 %v3272
      %vm3454 = vweird.f32 %v3448
      %vm3455 = vmor %vm3453, %vm3454
      %v3456 = vsel %vm3455, %v3448, %v3452
      %v3457 = vand.u32 2147483647, %v3272
      %vm3458 = vcmp.eq.f32.partialorder %v3457, 8.507059e+37
      %v3459 = vand.u32 %v3272, 2147483648
      %v3460 = vor.u32 1.1754944e-38, %v3459
      %v3461 = vsel %vm3458, %v3460, %v3456
      %v3462 = vmul.f32 1.0, %v3461
      %v3463 = vrcp.pop %v3273
      %v3464 = vmul.f32 %v3273, %v3463
      %v3465 = vsub.f32 1.0, %v3464
      %v3466 = vmul.f32 %v3463, %v3465
      %v3467 = vadd.f32 %v3463, %v3466
      %vm3468 = vweird.f32 %v3273
      %vm3469 = vweird.f32 %v3463
      %vm3470 = vmor %vm3468, %vm3469
      %v3471 = vsel %vm3470, %v3463, %v3467
      %v3472 = vand.u32 2147483647, %v3273
      %vm3473 = vcmp.eq.f32.partialorder %v3472, 8.507059e+37
      %v3474 = vand.u32 %v3273, 2147483648
      %v3475 = vor.u32 1.1754944e-38, %v3474
      %v3476 = vsel %vm3473, %v3475, %v3471
      %v3477 = vmul.f32 1.0, %v3476
      %v3478 = vrcp.pop %v3274
      %v3479 = vmul.f32 %v3274, %v3478
      %v3480 = vsub.f32 1.0, %v3479
      %v3481 = vmul.f32 %v3478, %v3480
      %v3482 = vadd.f32 %v3478, %v3481
      %vm3483 = vweird.f32 %v3274
      %vm3484 = vweird.f32 %v3478
      %vm3485 = vmor %vm3483, %vm3484
      %v3486 = vsel %vm3485, %v3478, %v3482
      %v3487 = vand.u32 2147483647, %v3274
      %vm3488 = vcmp.eq.f32.partialorder %v3487, 8.507059e+37
      %v3489 = vand.u32 %v3274, 2147483648
      %v3490 = vor.u32 1.1754944e-38, %v3489
      %v3491 = vsel %vm3488, %v3490, %v3486
      %v3492 = vmul.f32 1.0, %v3491
      %v3493 = vrcp.pop %v3275
      %v3494 = vmul.f32 %v3275, %v3493
      %v3495 = vsub.f32 1.0, %v3494
      %v3496 = vmul.f32 %v3493, %v3495
      %v3497 = vadd.f32 %v3493, %v3496
      %vm3498 = vweird.f32 %v3275
      %vm3499 = vweird.f32 %v3493
      %vm3500 = vmor %vm3498, %vm3499
      %v3501 = vsel %vm3500, %v3493, %v3497
      %v3502 = vand.u32 2147483647, %v3275
      %vm3503 = vcmp.eq.f32.partialorder %v3502, 8.507059e+37
      %v3504 = vand.u32 %v3275, 2147483648
      %v3505 = vor.u32 1.1754944e-38, %v3504
      %v3506 = vsel %vm3503, %v3505, %v3501
      %v3507 = vmul.f32 1.0, %v3506
      %v3508 = vrcp.pop %v3276
      %v3509 = vmul.f32 %v3276, %v3508
      %v3510 = vsub.f32 1.0, %v3509
      %v3511 = vmul.f32 %v3508, %v3510
      %v3512 = vadd.f32 %v3508, %v3511
      %vm3513 = vweird.f32 %v3276
      %vm3514 = vweird.f32 %v3508
      %vm3515 = vmor %vm3513, %vm3514
      %v3516 = vsel %vm3515, %v3508, %v3512
      %v3517 = vand.u32 2147483647, %v3276
      %vm3518 = vcmp.eq.f32.partialorder %v3517, 8.507059e+37
      %v3519 = vand.u32 %v3276, 2147483648
      %v3520 = vor.u32 1.1754944e-38, %v3519
      %v3521 = vsel %vm3518, %v3520, %v3516
      %v3522 = vmul.f32 1.0, %v3521
      %v3523 = vrcp.pop %v3277
      %v3524 = vmul.f32 %v3277, %v3523
      %v3525 = vsub.f32 1.0, %v3524
      %v3526 = vmul.f32 %v3523, %v3525
      %v3527 = vadd.f32 %v3523, %v3526
      %vm3528 = vweird.f32 %v3277
      %vm3529 = vweird.f32 %v3523
      %vm3530 = vmor %vm3528, %vm3529
      %v3531 = vsel %vm3530, %v3523, %v3527
      %v3532 = vand.u32 2147483647, %v3277
      %vm3533 = vcmp.eq.f32.partialorder %v3532, 8.507059e+37
      %v3534 = vand.u32 %v3277, 2147483648
      %v3535 = vor.u32 1.1754944e-38, %v3534
      %v3536 = vsel %vm3533, %v3535, %v3531
      %v3537 = vmul.f32 1.0, %v3536
      %v3538 = vrcp.pop %v3278
      %v3539 = vmul.f32 %v3278, %v3538
      %v3540 = vsub.f32 1.0, %v3539
      %v3541 = vmul.f32 %v3538, %v3540
      %v3542 = vadd.f32 %v3538, %v3541
      %vm3543 = vweird.f32 %v3278
      %vm3544 = vweird.f32 %v3538
      %vm3545 = vmor %vm3543, %vm3544
      %v3546 = vsel %vm3545, %v3538, %v3542
      %v3547 = vand.u32 2147483647, %v3278
      %vm3548 = vcmp.eq.f32.partialorder %v3547, 8.507059e+37
      %v3549 = vand.u32 %v3278, 2147483648
      %v3550 = vor.u32 1.1754944e-38, %v3549
      %v3551 = vsel %vm3548, %v3550, %v3546
      %v3552 = vmul.f32 1.0, %v3551
      %v3553 = vrcp.pop %v3279
      %v3554 = vmul.f32 %v3279, %v3553
      %v3555 = vsub.f32 1.0, %v3554
      %v3556 = vmul.f32 %v3553, %v3555
      %v3557 = vadd.f32 %v3553, %v3556
      %vm3558 = vweird.f32 %v3279
      %vm3559 = vweird.f32 %v3553
      %vm3560 = vmor %vm3558, %vm3559
      %v3561 = vsel %vm3560, %v3553, %v3557
      %v3562 = vand.u32 2147483647, %v3279
      %vm3563 = vcmp.eq.f32.partialorder %v3562, 8.507059e+37
      %v3564 = vand.u32 %v3279, 2147483648
      %v3565 = vor.u32 1.1754944e-38, %v3564
      %v3566 = vsel %vm3563, %v3565, %v3561
      %v3567 = vmul.f32 1.0, %v3566
      %v3568 = vrcp.pop %v3280
      %v3569 = vmul.f32 %v3280, %v3568
      %v3570 = vsub.f32 1.0, %v3569
      %v3571 = vmul.f32 %v3568, %v3570
      %v3572 = vadd.f32 %v3568, %v3571
      %vm3573 = vweird.f32 %v3280
      %vm3574 = vweird.f32 %v3568
      %vm3575 = vmor %vm3573, %vm3574
      %v3576 = vsel %vm3575, %v3568, %v3572
      %v3577 = vand.u32 2147483647, %v3280
      %vm3578 = vcmp.eq.f32.partialorder %v3577, 8.507059e+37
      %v3579 = vand.u32 %v3280, 2147483648
      %v3580 = vor.u32 1.1754944e-38, %v3579
      %v3581 = vsel %vm3578, %v3580, %v3576
      %v3582 = vmul.f32 1.0, %v3581
      %v3583 = vrcp.pop %v3281
      %v3584 = vmul.f32 %v3281, %v3583
      %v3585 = vsub.f32 1.0, %v3584
      %v3586 = vmul.f32 %v3583, %v3585
      %v3587 = vadd.f32 %v3583, %v3586
      %vm3588 = vweird.f32 %v3281
      %vm3589 = vweird.f32 %v3583
      %vm3590 = vmor %vm3588, %vm3589
      %v3591 = vsel %vm3590, %v3583, %v3587
      %v3592 = vand.u32 2147483647, %v3281
      %vm3593 = vcmp.eq.f32.partialorder %v3592, 8.507059e+37
      %v3594 = vand.u32 %v3281, 2147483648
      %v3595 = vor.u32 1.1754944e-38, %v3594
      %v3596 = vsel %vm3593, %v3595, %v3591
      %v3597 = vmul.f32 1.0, %v3596
      %v3598 = vrcp.pop %v3282
      %v3599 = vmul.f32 %v3282, %v3598
      %v3600 = vsub.f32 1.0, %v3599
      %v3601 = vmul.f32 %v3598, %v3600
      %v3602 = vadd.f32 %v3598, %v3601
      %vm3603 = vweird.f32 %v3282
      %vm3604 = vweird.f32 %v3598
      %vm3605 = vmor %vm3603, %vm3604
      %v3606 = vsel %vm3605, %v3598, %v3602
      %v3607 = vand.u32 2147483647, %v3282
      %vm3608 = vcmp.eq.f32.partialorder %v3607, 8.507059e+37
      %v3609 = vand.u32 %v3282, 2147483648
      %v3610 = vor.u32 1.1754944e-38, %v3609
      %v3611 = vsel %vm3608, %v3610, %v3606
      %v3612 = vmul.f32 1.0, %v3611
      %v3613 = vrcp.pop %v3283
      %v3614 = vmul.f32 %v3283, %v3613
      %v3615 = vsub.f32 1.0, %v3614
      %v3616 = vmul.f32 %v3613, %v3615
      %v3617 = vadd.f32 %v3613, %v3616
      %vm3618 = vweird.f32 %v3283
      %vm3619 = vweird.f32 %v3613
      %vm3620 = vmor %vm3618, %vm3619
      %v3621 = vsel %vm3620, %v3613, %v3617
      %v3622 = vand.u32 2147483647, %v3283
      %vm3623 = vcmp.eq.f32.partialorder %v3622, 8.507059e+37
      %v3624 = vand.u32 %v3283, 2147483648
      %v3625 = vor.u32 1.1754944e-38, %v3624
      %v3626 = vsel %vm3623, %v3625, %v3621
      %v3627 = vmul.f32 1.0, %v3626
      %v3628 = vrcp.pop %v3284
      %v3629 = vmul.f32 %v3284, %v3628
      %v3630 = vsub.f32 1.0, %v3629
      %v3631 = vmul.f32 %v3628, %v3630
      %v3632 = vadd.f32 %v3628, %v3631
      %vm3633 = vweird.f32 %v3284
      %vm3634 = vweird.f32 %v3628
      %vm3635 = vmor %vm3633, %vm3634
      %v3636 = vsel %vm3635, %v3628, %v3632
      %v3637 = vand.u32 2147483647, %v3284
      %vm3638 = vcmp.eq.f32.partialorder %v3637, 8.507059e+37
      %v3639 = vand.u32 %v3284, 2147483648
      %v3640 = vor.u32 1.1754944e-38, %v3639
      %v3641 = vsel %vm3638, %v3640, %v3636
      %v3642 = vmul.f32 1.0, %v3641
      %v3643 = vrcp.pop %v3285
      %v3644 = vmul.f32 %v3285, %v3643
      %v3645 = vsub.f32 1.0, %v3644
      %v3646 = vmul.f32 %v3643, %v3645
      %v3647 = vadd.f32 %v3643, %v3646
      %vm3648 = vweird.f32 %v3285
      %vm3649 = vweird.f32 %v3643
      %vm3650 = vmor %vm3648, %vm3649
      %v3651 = vsel %vm3650, %v3643, %v3647
      %v3652 = vand.u32 2147483647, %v3285
      %vm3653 = vcmp.eq.f32.partialorder %v3652, 8.507059e+37
      %v3654 = vand.u32 %v3285, 2147483648
      %v3655 = vor.u32 1.1754944e-38, %v3654
      %v3656 = vsel %vm3653, %v3655, %v3651
      %v3657 = vmul.f32 1.0, %v3656
      %v3658 = vrcp.pop %v3286
      %v3659 = vmul.f32 %v3286, %v3658
      %v3660 = vsub.f32 1.0, %v3659
      %v3661 = vmul.f32 %v3658, %v3660
      %v3662 = vadd.f32 %v3658, %v3661
      %vm3663 = vweird.f32 %v3286
      %vm3664 = vweird.f32 %v3658
      %vm3665 = vmor %vm3663, %vm3664
      %v3666 = vsel %vm3665, %v3658, %v3662
      %v3667 = vand.u32 2147483647, %v3286
      %vm3668 = vcmp.eq.f32.partialorder %v3667, 8.507059e+37
      %v3669 = vand.u32 %v3286, 2147483648
      %v3670 = vor.u32 1.1754944e-38, %v3669
      %v3671 = vsel %vm3668, %v3670, %v3666
      %v3672 = vmul.f32 1.0, %v3671
      %v3673 = vrcp.pop %v3287
      %v3674 = vmul.f32 %v3287, %v3673
      %v3675 = vsub.f32 1.0, %v3674
      %v3676 = vmul.f32 %v3673, %v3675
      %v3677 = vadd.f32 %v3673, %v3676
      %vm3678 = vweird.f32 %v3287
      %vm3679 = vweird.f32 %v3673
      %vm3680 = vmor %vm3678, %vm3679
      %v3681 = vsel %vm3680, %v3673, %v3677
      %v3682 = vand.u32 2147483647, %v3287
      %vm3683 = vcmp.eq.f32.partialorder %v3682, 8.507059e+37
      %v3684 = vand.u32 %v3287, 2147483648
      %v3685 = vor.u32 1.1754944e-38, %v3684
      %v3686 = vsel %vm3683, %v3685, %v3681
      %v3687 = vmul.f32 1.0, %v3686
      %v3688 = vrcp.pop %v3288
      %v3689 = vmul.f32 %v3288, %v3688
      %v3690 = vsub.f32 1.0, %v3689
      %v3691 = vmul.f32 %v3688, %v3690
      %v3692 = vadd.f32 %v3688, %v3691
      %vm3693 = vweird.f32 %v3288
      %vm3694 = vweird.f32 %v3688
      %vm3695 = vmor %vm3693, %vm3694
      %v3696 = vsel %vm3695, %v3688, %v3692
      %v3697 = vand.u32 2147483647, %v3288
      %vm3698 = vcmp.eq.f32.partialorder %v3697, 8.507059e+37
      %v3699 = vand.u32 %v3288, 2147483648
      %v3700 = vor.u32 1.1754944e-38, %v3699
      %v3701 = vsel %vm3698, %v3700, %v3696
      %v3702 = vmul.f32 1.0, %v3701
      %v3703 = vrcp.pop %v3289
      %v3704 = vmul.f32 %v3289, %v3703
      %v3705 = vsub.f32 1.0, %v3704
      %v3706 = vmul.f32 %v3703, %v3705
      %v3707 = vadd.f32 %v3703, %v3706
      %vm3708 = vweird.f32 %v3289
      %vm3709 = vweird.f32 %v3703
      %vm3710 = vmor %vm3708, %vm3709
      %v3711 = vsel %vm3710, %v3703, %v3707
      %v3712 = vand.u32 2147483647, %v3289
      %vm3713 = vcmp.eq.f32.partialorder %v3712, 8.507059e+37
      %v3714 = vand.u32 %v3289, 2147483648
      %v3715 = vor.u32 1.1754944e-38, %v3714
      %v3716 = vsel %vm3713, %v3715, %v3711
      %v3717 = vmul.f32 1.0, %v3716
      %v3718 = vrcp.pop %v3290
      %v3719 = vmul.f32 %v3290, %v3718
      %v3720 = vsub.f32 1.0, %v3719
      %v3721 = vmul.f32 %v3718, %v3720
      %v3722 = vadd.f32 %v3718, %v3721
      %vm3723 = vweird.f32 %v3290
      %vm3724 = vweird.f32 %v3718
      %vm3725 = vmor %vm3723, %vm3724
      %v3726 = vsel %vm3725, %v3718, %v3722
      %v3727 = vand.u32 2147483647, %v3290
      %vm3728 = vcmp.eq.f32.partialorder %v3727, 8.507059e+37
      %v3729 = vand.u32 %v3290, 2147483648
      %v3730 = vor.u32 1.1754944e-38, %v3729
      %v3731 = vsel %vm3728, %v3730, %v3726
      %v3732 = vmul.f32 1.0, %v3731
      %v3733 = vrcp.pop %v3291
      %v3734 = vmul.f32 %v3291, %v3733
      %v3735 = vsub.f32 1.0, %v3734
      %v3736 = vmul.f32 %v3733, %v3735
      %v3737 = vadd.f32 %v3733, %v3736
      %vm3738 = vweird.f32 %v3291
      %vm3739 = vweird.f32 %v3733
      %vm3740 = vmor %vm3738, %vm3739
      %v3741 = vsel %vm3740, %v3733, %v3737
      %v3742 = vand.u32 2147483647, %v3291
      %vm3743 = vcmp.eq.f32.partialorder %v3742, 8.507059e+37
      %v3744 = vand.u32 %v3291, 2147483648
      %v3745 = vor.u32 1.1754944e-38, %v3744
      %v3746 = vsel %vm3743, %v3745, %v3741
      %v3747 = vmul.f32 1.0, %v3746
      %v3748 = vrcp.pop %v3292
      %v3749 = vmul.f32 %v3292, %v3748
      %v3750 = vsub.f32 1.0, %v3749
      %v3751 = vmul.f32 %v3748, %v3750
      %v3752 = vadd.f32 %v3748, %v3751
      %vm3753 = vweird.f32 %v3292
      %vm3754 = vweird.f32 %v3748
      %vm3755 = vmor %vm3753, %vm3754
      %v3756 = vsel %vm3755, %v3748, %v3752
      %v3757 = vand.u32 2147483647, %v3292
      %vm3758 = vcmp.eq.f32.partialorder %v3757, 8.507059e+37
      %v3759 = vand.u32 %v3292, 2147483648
      %v3760 = vor.u32 1.1754944e-38, %v3759
      %v3761 = vsel %vm3758, %v3760, %v3756
      %v3762 = vmul.f32 1.0, %v3761
      %v3763 = vrcp.pop %v3293
      %v3764 = vmul.f32 %v3293, %v3763
      %v3765 = vsub.f32 1.0, %v3764
      %v3766 = vmul.f32 %v3763, %v3765
      %v3767 = vadd.f32 %v3763, %v3766
      %vm3768 = vweird.f32 %v3293
      %vm3769 = vweird.f32 %v3763
      %vm3770 = vmor %vm3768, %vm3769
      %v3771 = vsel %vm3770, %v3763, %v3767
      %v3772 = vand.u32 2147483647, %v3293
      %vm3773 = vcmp.eq.f32.partialorder %v3772, 8.507059e+37
      %v3774 = vand.u32 %v3293, 2147483648
      %v3775 = vor.u32 1.1754944e-38, %v3774
      %v3776 = vsel %vm3773, %v3775, %v3771
      %v3777 = vmul.f32 1.0, %v3776
      %v3778 = vrcp.pop %v3294
      %v3779 = vmul.f32 %v3294, %v3778
      %v3780 = vsub.f32 1.0, %v3779
      %v3781 = vmul.f32 %v3778, %v3780
      %v3782 = vadd.f32 %v3778, %v3781
      %vm3783 = vweird.f32 %v3294
      %vm3784 = vweird.f32 %v3778
      %vm3785 = vmor %vm3783, %vm3784
      %v3786 = vsel %vm3785, %v3778, %v3782
      %v3787 = vand.u32 2147483647, %v3294
      %vm3788 = vcmp.eq.f32.partialorder %v3787, 8.507059e+37
      %v3789 = vand.u32 %v3294, 2147483648
      %v3790 = vor.u32 1.1754944e-38, %v3789
      %v3791 = vsel %vm3788, %v3790, %v3786
      %v3792 = vmul.f32 1.0, %v3791
      %v3793 = vrcp.pop %v3295
      %v3794 = vmul.f32 %v3295, %v3793
      %v3795 = vsub.f32 1.0, %v3794
      %v3796 = vmul.f32 %v3793, %v3795
      %v3797 = vadd.f32 %v3793, %v3796
      %vm3798 = vweird.f32 %v3295
      %vm3799 = vweird.f32 %v3793
      %vm3800 = vmor %vm3798, %vm3799
      %v3801 = vsel %vm3800, %v3793, %v3797
      %v3802 = vand.u32 2147483647, %v3295
      %vm3803 = vcmp.eq.f32.partialorder %v3802, 8.507059e+37
      %v3804 = vand.u32 %v3295, 2147483648
      %v3805 = vor.u32 1.1754944e-38, %v3804
      %v3806 = vsel %vm3803, %v3805, %v3801
      %v3807 = vmul.f32 1.0, %v3806
      %v3808 = vrcp.pop %v3296
      %v3809 = vmul.f32 %v3296, %v3808
      %v3810 = vsub.f32 1.0, %v3809
      %v3811 = vmul.f32 %v3808, %v3810
      %v3812 = vadd.f32 %v3808, %v3811
      %vm3813 = vweird.f32 %v3296
      %vm3814 = vweird.f32 %v3808
      %vm3815 = vmor %vm3813, %vm3814
      %v3816 = vsel %vm3815, %v3808, %v3812
      %v3817 = vand.u32 2147483647, %v3296
      %vm3818 = vcmp.eq.f32.partialorder %v3817, 8.507059e+37
      %v3819 = vand.u32 %v3296, 2147483648
      %v3820 = vor.u32 1.1754944e-38, %v3819
      %v3821 = vsel %vm3818, %v3820, %v3816
      %v3822 = vmul.f32 1.0, %v3821
      %v3823 = vrcp.pop %v3297
      %v3824 = vmul.f32 %v3297, %v3823
      %v3825 = vsub.f32 1.0, %v3824
      %v3826 = vmul.f32 %v3823, %v3825
      %v3827 = vadd.f32 %v3823, %v3826
      %vm3828 = vweird.f32 %v3297
      %vm3829 = vweird.f32 %v3823
      %vm3830 = vmor %vm3828, %vm3829
      %v3831 = vsel %vm3830, %v3823, %v3827
      %v3832 = vand.u32 2147483647, %v3297
      %vm3833 = vcmp.eq.f32.partialorder %v3832, 8.507059e+37
      %v3834 = vand.u32 %v3297, 2147483648
      %v3835 = vor.u32 1.1754944e-38, %v3834
      %v3836 = vsel %vm3833, %v3835, %v3831
      %v3837 = vmul.f32 1.0, %v3836
      %v3838 = vrcp.pop %v3298
      %v3839 = vmul.f32 %v3298, %v3838
      %v3840 = vsub.f32 1.0, %v3839
      %v3841 = vmul.f32 %v3838, %v3840
      %v3842 = vadd.f32 %v3838, %v3841
      %vm3843 = vweird.f32 %v3298
      %vm3844 = vweird.f32 %v3838
      %vm3845 = vmor %vm3843, %vm3844
      %v3846 = vsel %vm3845, %v3838, %v3842
      %v3847 = vand.u32 2147483647, %v3298
      %vm3848 = vcmp.eq.f32.partialorder %v3847, 8.507059e+37
      %v3849 = vand.u32 %v3298, 2147483648
      %v3850 = vor.u32 1.1754944e-38, %v3849
      %v3851 = vsel %vm3848, %v3850, %v3846
      %v3852 = vmul.f32 1.0, %v3851
      %v3853 = vrcp.pop %v3299
      %v3854 = vmul.f32 %v3299, %v3853
      %v3855 = vsub.f32 1.0, %v3854
      %v3856 = vmul.f32 %v3853, %v3855
      %v3857 = vadd.f32 %v3853, %v3856
      %vm3858 = vweird.f32 %v3299
      %vm3859 = vweird.f32 %v3853
      %vm3860 = vmor %vm3858, %vm3859
      %v3861 = vsel %vm3860, %v3853, %v3857
      %v3862 = vand.u32 2147483647, %v3299
      %vm3863 = vcmp.eq.f32.partialorder %v3862, 8.507059e+37
      %v3864 = vand.u32 %v3299, 2147483648
      %v3865 = vor.u32 1.1754944e-38, %v3864
      %v3866 = vsel %vm3863, %v3865, %v3861
      %v3867 = vmul.f32 1.0, %v3866
      %v3868 = vrcp.pop %v3300
      %v3869 = vmul.f32 %v3300, %v3868
      %v3870 = vsub.f32 1.0, %v3869
      %v3871 = vmul.f32 %v3868, %v3870
      %v3872 = vadd.f32 %v3868, %v3871
      %vm3873 = vweird.f32 %v3300
      %vm3874 = vweird.f32 %v3868
      %vm3875 = vmor %vm3873, %vm3874
      %v3876 = vsel %vm3875, %v3868, %v3872
      %v3877 = vand.u32 2147483647, %v3300
      %vm3878 = vcmp.eq.f32.partialorder %v3877, 8.507059e+37
      %v3879 = vand.u32 %v3300, 2147483648
      %v3880 = vor.u32 1.1754944e-38, %v3879
      %v3881 = vsel %vm3878, %v3880, %v3876
      %v3882 = vmul.f32 1.0, %v3881
      %v3883 = vrcp.pop %v3301
      %v3884 = vmul.f32 %v3301, %v3883
      %v3885 = vsub.f32 1.0, %v3884
      %v3886 = vmul.f32 %v3883, %v3885
      %v3887 = vadd.f32 %v3883, %v3886
      %vm3888 = vweird.f32 %v3301
      %vm3889 = vweird.f32 %v3883
      %vm3890 = vmor %vm3888, %vm3889
      %v3891 = vsel %vm3890, %v3883, %v3887
      %v3892 = vand.u32 2147483647, %v3301
      %vm3893 = vcmp.eq.f32.partialorder %v3892, 8.507059e+37
      %v3894 = vand.u32 %v3301, 2147483648
      %v3895 = vor.u32 1.1754944e-38, %v3894
      %v3896 = vsel %vm3893, %v3895, %v3891
      %v3897 = vmul.f32 1.0, %v3896
      %v3898 = vrcp.pop %v3302
      %v3899 = vmul.f32 %v3302, %v3898
      %v3900 = vsub.f32 1.0, %v3899
      %v3901 = vmul.f32 %v3898, %v3900
      %v3902 = vadd.f32 %v3898, %v3901
      %vm3903 = vweird.f32 %v3302
      %vm3904 = vweird.f32 %v3898
      %vm3905 = vmor %vm3903, %vm3904
      %v3906 = vsel %vm3905, %v3898, %v3902
      %v3907 = vand.u32 2147483647, %v3302
      %vm3908 = vcmp.eq.f32.partialorder %v3907, 8.507059e+37
      %v3909 = vand.u32 %v3302, 2147483648
      %v3910 = vor.u32 1.1754944e-38, %v3909
      %v3911 = vsel %vm3908, %v3910, %v3906
      %v3912 = vmul.f32 1.0, %v3911
      %v3913 = vrcp.pop %v3303
      %v3914 = vmul.f32 %v3303, %v3913
      %v3915 = vsub.f32 1.0, %v3914
      %v3916 = vmul.f32 %v3913, %v3915
      %v3917 = vadd.f32 %v3913, %v3916
      %vm3918 = vweird.f32 %v3303
      %vm3919 = vweird.f32 %v3913
      %vm3920 = vmor %vm3918, %vm3919
      %v3921 = vsel %vm3920, %v3913, %v3917
      %v3922 = vand.u32 2147483647, %v3303
      %vm3923 = vcmp.eq.f32.partialorder %v3922, 8.507059e+37
      %v3924 = vand.u32 %v3303, 2147483648
      %v3925 = vor.u32 1.1754944e-38, %v3924
      %v3926 = vsel %vm3923, %v3925, %v3921
      %v3927 = vmul.f32 1.0, %v3926
      %v3928 = vrcp.pop %v3304
      %v3929 = vmul.f32 %v3304, %v3928
      %v3930 = vsub.f32 1.0, %v3929
      %v3931 = vmul.f32 %v3928, %v3930
      %v3932 = vadd.f32 %v3928, %v3931
      %vm3933 = vweird.f32 %v3304
      %vm3934 = vweird.f32 %v3928
      %vm3935 = vmor %vm3933, %vm3934
      %v3936 = vsel %vm3935, %v3928, %v3932
      %v3937 = vand.u32 2147483647, %v3304
      %vm3938 = vcmp.eq.f32.partialorder %v3937, 8.507059e+37
      %v3939 = vand.u32 %v3304, 2147483648
      %v3940 = vor.u32 1.1754944e-38, %v3939
      %v3941 = vsel %vm3938, %v3940, %v3936
      %v3942 = vmul.f32 1.0, %v3941
      %v3943 = vrcp.pop %v3305
      %v3944 = vmul.f32 %v3305, %v3943
      %v3945 = vsub.f32 1.0, %v3944
      %v3946 = vmul.f32 %v3943, %v3945
      %v3947 = vadd.f32 %v3943, %v3946
      %vm3948 = vweird.f32 %v3305
      %vm3949 = vweird.f32 %v3943
      %vm3950 = vmor %vm3948, %vm3949
      %v3951 = vsel %vm3950, %v3943, %v3947
      %v3952 = vand.u32 2147483647, %v3305
      %vm3953 = vcmp.eq.f32.partialorder %v3952, 8.507059e+37
      %v3954 = vand.u32 %v3305, 2147483648
      %v3955 = vor.u32 1.1754944e-38, %v3954
      %v3956 = vsel %vm3953, %v3955, %v3951
      %v3957 = vmul.f32 1.0, %v3956
      %v3958 = vrcp.pop %v3306
      %v3959 = vmul.f32 %v3306, %v3958
      %v3960 = vsub.f32 1.0, %v3959
      %v3961 = vmul.f32 %v3958, %v3960
      %v3962 = vadd.f32 %v3958, %v3961
      %vm3963 = vweird.f32 %v3306
      %vm3964 = vweird.f32 %v3958
      %vm3965 = vmor %vm3963, %vm3964
      %v3966 = vsel %vm3965, %v3958, %v3962
      %v3967 = vand.u32 2147483647, %v3306
      %vm3968 = vcmp.eq.f32.partialorder %v3967, 8.507059e+37
      %v3969 = vand.u32 %v3306, 2147483648
      %v3970 = vor.u32 1.1754944e-38, %v3969
      %v3971 = vsel %vm3968, %v3970, %v3966
      %v3972 = vmul.f32 1.0, %v3971
      %v3973 = vrcp.pop %v3307
      %v3974 = vmul.f32 %v3307, %v3973
      %v3975 = vsub.f32 1.0, %v3974
      %v3976 = vmul.f32 %v3973, %v3975
      %v3977 = vadd.f32 %v3973, %v3976
      %vm3978 = vweird.f32 %v3307
      %vm3979 = vweird.f32 %v3973
      %vm3980 = vmor %vm3978, %vm3979
      %v3981 = vsel %vm3980, %v3973, %v3977
      %v3982 = vand.u32 2147483647, %v3307
      %vm3983 = vcmp.eq.f32.partialorder %v3982, 8.507059e+37
      %v3984 = vand.u32 %v3307, 2147483648
      %v3985 = vor.u32 1.1754944e-38, %v3984
      %v3986 = vsel %vm3983, %v3985, %v3981
      %v3987 = vmul.f32 1.0, %v3986
      %v3988 = vrcp.pop %v3308
      %v3989 = vmul.f32 %v3308, %v3988
      %v3990 = vsub.f32 1.0, %v3989
      %v3991 = vmul.f32 %v3988, %v3990
      %v3992 = vadd.f32 %v3988, %v3991
      %vm3993 = vweird.f32 %v3308
      %vm3994 = vweird.f32 %v3988
      %vm3995 = vmor %vm3993, %vm3994
      %v3996 = vsel %vm3995, %v3988, %v3992
      %v3997 = vand.u32 2147483647, %v3308
      %vm3998 = vcmp.eq.f32.partialorder %v3997, 8.507059e+37
      %v3999 = vand.u32 %v3308, 2147483648
      %v4000 = vor.u32 1.1754944e-38, %v3999
      %v4001 = vsel %vm3998, %v4000, %v3996
      %v4002 = vmul.f32 1.0, %v4001
      %v4003 = vrcp.pop %v3309
      %v4004 = vmul.f32 %v3309, %v4003
      %v4005 = vsub.f32 1.0, %v4004
      %v4006 = vmul.f32 %v4003, %v4005
      %v4007 = vadd.f32 %v4003, %v4006
      %vm4008 = vweird.f32 %v3309
      %vm4009 = vweird.f32 %v4003
      %vm4010 = vmor %vm4008, %vm4009
      %v4011 = vsel %vm4010, %v4003, %v4007
      %v4012 = vand.u32 2147483647, %v3309
      %vm4013 = vcmp.eq.f32.partialorder %v4012, 8.507059e+37
      %v4014 = vand.u32 %v3309, 2147483648
      %v4015 = vor.u32 1.1754944e-38, %v4014
      %v4016 = vsel %vm4013, %v4015, %v4011
      %v4017 = vmul.f32 1.0, %v4016
      %v4018 = vrcp.pop %v3310
      %v4019 = vmul.f32 %v3310, %v4018
      %v4020 = vsub.f32 1.0, %v4019
      %v4021 = vmul.f32 %v4018, %v4020
      %v4022 = vadd.f32 %v4018, %v4021
      %vm4023 = vweird.f32 %v3310
      %vm4024 = vweird.f32 %v4018
      %vm4025 = vmor %vm4023, %vm4024
      %v4026 = vsel %vm4025, %v4018, %v4022
      %v4027 = vand.u32 2147483647, %v3310
      %vm4028 = vcmp.eq.f32.partialorder %v4027, 8.507059e+37
      %v4029 = vand.u32 %v3310, 2147483648
      %v4030 = vor.u32 1.1754944e-38, %v4029
      %v4031 = vsel %vm4028, %v4030, %v4026
      %v4032 = vmul.f32 1.0, %v4031
      %v4033 = vrcp.pop %v3311
      %v4034 = vmul.f32 %v3311, %v4033
      %v4035 = vsub.f32 1.0, %v4034
      %v4036 = vmul.f32 %v4033, %v4035
      %v4037 = vadd.f32 %v4033, %v4036
      %vm4038 = vweird.f32 %v3311
      %vm4039 = vweird.f32 %v4033
      %vm4040 = vmor %vm4038, %vm4039
      %v4041 = vsel %vm4040, %v4033, %v4037
      %v4042 = vand.u32 2147483647, %v3311
      %vm4043 = vcmp.eq.f32.partialorder %v4042, 8.507059e+37
      %v4044 = vand.u32 %v3311, 2147483648
      %v4045 = vor.u32 1.1754944e-38, %v4044
      %v4046 = vsel %vm4043, %v4045, %v4041
      %v4047 = vmul.f32 1.0, %v4046
      %v4048 = vrcp.pop %v3312
      %v4049 = vmul.f32 %v3312, %v4048
      %v4050 = vsub.f32 1.0, %v4049
      %v4051 = vmul.f32 %v4048, %v4050
      %v4052 = vadd.f32 %v4048, %v4051
      %vm4053 = vweird.f32 %v3312
      %vm4054 = vweird.f32 %v4048
      %vm4055 = vmor %vm4053, %vm4054
      %v4056 = vsel %vm4055, %v4048, %v4052
      %v4057 = vand.u32 2147483647, %v3312
      %vm4058 = vcmp.eq.f32.partialorder %v4057, 8.507059e+37
      %v4059 = vand.u32 %v3312, 2147483648
      %v4060 = vor.u32 1.1754944e-38, %v4059
      %v4061 = vsel %vm4058, %v4060, %v4056
      %v4062 = vmul.f32 1.0, %v4061
      %v4063 = vrcp.pop %v3313
      %v4064 = vmul.f32 %v3313, %v4063
      %v4065 = vsub.f32 1.0, %v4064
      %v4066 = vmul.f32 %v4063, %v4065
      %v4067 = vadd.f32 %v4063, %v4066
      %vm4068 = vweird.f32 %v3313
      %vm4069 = vweird.f32 %v4063
      %vm4070 = vmor %vm4068, %vm4069
      %v4071 = vsel %vm4070, %v4063, %v4067
      %v4072 = vand.u32 2147483647, %v3313
      %vm4073 = vcmp.eq.f32.partialorder %v4072, 8.507059e+37
      %v4074 = vand.u32 %v3313, 2147483648
      %v4075 = vor.u32 1.1754944e-38, %v4074
      %v4076 = vsel %vm4073, %v4075, %v4071
      %v4077 = vmul.f32 1.0, %v4076
      %v4078 = vrcp.pop %v3314
      %v4079 = vmul.f32 %v3314, %v4078
      %v4080 = vsub.f32 1.0, %v4079
      %v4081 = vmul.f32 %v4078, %v4080
      %v4082 = vadd.f32 %v4078, %v4081
      %vm4083 = vweird.f32 %v3314
      %vm4084 = vweird.f32 %v4078
      %vm4085 = vmor %vm4083, %vm4084
      %v4086 = vsel %vm4085, %v4078, %v4082
      %v4087 = vand.u32 2147483647, %v3314
      %vm4088 = vcmp.eq.f32.partialorder %v4087, 8.507059e+37
      %v4089 = vand.u32 %v3314, 2147483648
      %v4090 = vor.u32 1.1754944e-38, %v4089
      %v4091 = vsel %vm4088, %v4090, %v4086
      %v4092 = vmul.f32 1.0, %v4091
      %v4093 = vrcp.pop %v3315
      %v4094 = vmul.f32 %v3315, %v4093
      %v4095 = vsub.f32 1.0, %v4094
      %v4096 = vmul.f32 %v4093, %v4095
      %v4097 = vadd.f32 %v4093, %v4096
      %vm4098 = vweird.f32 %v3315
      %vm4099 = vweird.f32 %v4093
      %vm4100 = vmor %vm4098, %vm4099
      %v4101 = vsel %vm4100, %v4093, %v4097
      %v4102 = vand.u32 2147483647, %v3315
      %vm4103 = vcmp.eq.f32.partialorder %v4102, 8.507059e+37
      %v4104 = vand.u32 %v3315, 2147483648
      %v4105 = vor.u32 1.1754944e-38, %v4104
      %v4106 = vsel %vm4103, %v4105, %v4101
      %v4107 = vmul.f32 1.0, %v4106
      %v4108 = vrcp.pop %v3316
      %v4109 = vmul.f32 %v3316, %v4108
      %v4110 = vsub.f32 1.0, %v4109
      %v4111 = vmul.f32 %v4108, %v4110
      %v4112 = vadd.f32 %v4108, %v4111
      %vm4113 = vweird.f32 %v3316
      %vm4114 = vweird.f32 %v4108
      %vm4115 = vmor %vm4113, %vm4114
      %v4116 = vsel %vm4115, %v4108, %v4112
      %v4117 = vand.u32 2147483647, %v3316
      %vm4118 = vcmp.eq.f32.partialorder %v4117, 8.507059e+37
      %v4119 = vand.u32 %v3316, 2147483648
      %v4120 = vor.u32 1.1754944e-38, %v4119
      %v4121 = vsel %vm4118, %v4120, %v4116
      %v4122 = vmul.f32 1.0, %v4121
      %v4123 = vrcp.pop %v3317
      %v4124 = vmul.f32 %v3317, %v4123
      %v4125 = vsub.f32 1.0, %v4124
      %v4126 = vmul.f32 %v4123, %v4125
      %v4127 = vadd.f32 %v4123, %v4126
      %vm4128 = vweird.f32 %v3317
      %vm4129 = vweird.f32 %v4123
      %vm4130 = vmor %vm4128, %vm4129
      %v4131 = vsel %vm4130, %v4123, %v4127
      %v4132 = vand.u32 2147483647, %v3317
      %vm4133 = vcmp.eq.f32.partialorder %v4132, 8.507059e+37
      %v4134 = vand.u32 %v3317, 2147483648
      %v4135 = vor.u32 1.1754944e-38, %v4134
      %v4136 = vsel %vm4133, %v4135, %v4131
      %v4137 = vmul.f32 1.0, %v4136
      %v4138 = vrcp.pop %v3318
      %v4139 = vmul.f32 %v3318, %v4138
      %v4140 = vsub.f32 1.0, %v4139
      %v4141 = vmul.f32 %v4138, %v4140
      %v4142 = vadd.f32 %v4138, %v4141
      %vm4143 = vweird.f32 %v3318
      %vm4144 = vweird.f32 %v4138
      %vm4145 = vmor %vm4143, %vm4144
      %v4146 = vsel %vm4145, %v4138, %v4142
      %v4147 = vand.u32 2147483647, %v3318
      %vm4148 = vcmp.eq.f32.partialorder %v4147, 8.507059e+37
      %v4149 = vand.u32 %v3318, 2147483648
      %v4150 = vor.u32 1.1754944e-38, %v4149
      %v4151 = vsel %vm4148, %v4150, %v4146
      %v4152 = vmul.f32 1.0, %v4151
      %v4153 = vrcp.pop %v3319
      %v4154 = vmul.f32 %v3319, %v4153
      %v4155 = vsub.f32 1.0, %v4154
      %v4156 = vmul.f32 %v4153, %v4155
      %v4157 = vadd.f32 %v4153, %v4156
      %vm4158 = vweird.f32 %v3319
      %vm4159 = vweird.f32 %v4153
      %vm4160 = vmor %vm4158, %vm4159
      %v4161 = vsel %vm4160, %v4153, %v4157
      %v4162 = vand.u32 2147483647, %v3319
      %vm4163 = vcmp.eq.f32.partialorder %v4162, 8.507059e+37
      %v4164 = vand.u32 %v3319, 2147483648
      %v4165 = vor.u32 1.1754944e-38, %v4164
      %v4166 = vsel %vm4163, %v4165, %v4161
      %v4167 = vmul.f32 1.0, %v4166
      %v4168 = vrcp.pop %v3320
      %v4169 = vmul.f32 %v3320, %v4168
      %v4170 = vsub.f32 1.0, %v4169
      %v4171 = vmul.f32 %v4168, %v4170
      %v4172 = vadd.f32 %v4168, %v4171
      %vm4173 = vweird.f32 %v3320
      %vm4174 = vweird.f32 %v4168
      %vm4175 = vmor %vm4173, %vm4174
      %v4176 = vsel %vm4175, %v4168, %v4172
      %v4177 = vand.u32 2147483647, %v3320
      %vm4178 = vcmp.eq.f32.partialorder %v4177, 8.507059e+37
      %v4179 = vand.u32 %v3320, 2147483648
      %v4180 = vor.u32 1.1754944e-38, %v4179
      %v4181 = vsel %vm4178, %v4180, %v4176
      %v4182 = vmul.f32 1.0, %v4181
      %v4183 = vrcp.pop %v3321
      %v4184 = vmul.f32 %v3321, %v4183
      %v4185 = vsub.f32 1.0, %v4184
      %v4186 = vmul.f32 %v4183, %v4185
      %v4187 = vadd.f32 %v4183, %v4186
      %vm4188 = vweird.f32 %v3321
      %vm4189 = vweird.f32 %v4183
      %vm4190 = vmor %vm4188, %vm4189
      %v4191 = vsel %vm4190, %v4183, %v4187
      %v4192 = vand.u32 2147483647, %v3321
      %vm4193 = vcmp.eq.f32.partialorder %v4192, 8.507059e+37
      %v4194 = vand.u32 %v3321, 2147483648
      %v4195 = vor.u32 1.1754944e-38, %v4194
      %v4196 = vsel %vm4193, %v4195, %v4191
      %v4197 = vmul.f32 1.0, %v4196
      %v4198 = vrcp.pop %v3322
      %v4199 = vmul.f32 %v3322, %v4198
      %v4200 = vsub.f32 1.0, %v4199
      %v4201 = vmul.f32 %v4198, %v4200
      %v4202 = vadd.f32 %v4198, %v4201
      %vm4203 = vweird.f32 %v3322
      %vm4204 = vweird.f32 %v4198
      %vm4205 = vmor %vm4203, %vm4204
      %v4206 = vsel %vm4205, %v4198, %v4202
      %v4207 = vand.u32 2147483647, %v3322
      %vm4208 = vcmp.eq.f32.partialorder %v4207, 8.507059e+37
      %v4209 = vand.u32 %v3322, 2147483648
      %v4210 = vor.u32 1.1754944e-38, %v4209
      %v4211 = vsel %vm4208, %v4210, %v4206
      %v4212 = vmul.f32 1.0, %v4211
      %v4213 = vrcp.pop %v3323
      %v4214 = vmul.f32 %v3323, %v4213
      %v4215 = vsub.f32 1.0, %v4214
      %v4216 = vmul.f32 %v4213, %v4215
      %v4217 = vadd.f32 %v4213, %v4216
      %vm4218 = vweird.f32 %v3323
      %vm4219 = vweird.f32 %v4213
      %vm4220 = vmor %vm4218, %vm4219
      %v4221 = vsel %vm4220, %v4213, %v4217
      %v4222 = vand.u32 2147483647, %v3323
      %vm4223 = vcmp.eq.f32.partialorder %v4222, 8.507059e+37
      %v4224 = vand.u32 %v3323, 2147483648
      %v4225 = vor.u32 1.1754944e-38, %v4224
      %v4226 = vsel %vm4223, %v4225, %v4221
      %v4227 = vmul.f32 1.0, %v4226
      %v4228 = vrcp.pop %v3324
      %v4229 = vmul.f32 %v3324, %v4228
      %v4230 = vsub.f32 1.0, %v4229
      %v4231 = vmul.f32 %v4228, %v4230
      %v4232 = vadd.f32 %v4228, %v4231
      %vm4233 = vweird.f32 %v3324
      %vm4234 = vweird.f32 %v4228
      %vm4235 = vmor %vm4233, %vm4234
      %v4236 = vsel %vm4235, %v4228, %v4232
      %v4237 = vand.u32 2147483647, %v3324
      %vm4238 = vcmp.eq.f32.partialorder %v4237, 8.507059e+37
      %v4239 = vand.u32 %v3324, 2147483648
      %v4240 = vor.u32 1.1754944e-38, %v4239
      %v4241 = vsel %vm4238, %v4240, %v4236
      %v4242 = vmul.f32 1.0, %v4241
      %v4243 = vrcp.pop %v3325
      %v4244 = vmul.f32 %v3325, %v4243
      %v4245 = vsub.f32 1.0, %v4244
      %v4246 = vmul.f32 %v4243, %v4245
      %v4247 = vadd.f32 %v4243, %v4246
      %vm4248 = vweird.f32 %v3325
      %vm4249 = vweird.f32 %v4243
      %vm4250 = vmor %vm4248, %vm4249
      %v4251 = vsel %vm4250, %v4243, %v4247
      %v4252 = vand.u32 2147483647, %v3325
      %vm4253 = vcmp.eq.f32.partialorder %v4252, 8.507059e+37
      %v4254 = vand.u32 %v3325, 2147483648
      %v4255 = vor.u32 1.1754944e-38, %v4254
      %v4256 = vsel %vm4253, %v4255, %v4251
      %v4257 = vmul.f32 1.0, %v4256
      %v4258 = vrcp.pop %v3326
      %v4259 = vmul.f32 %v3326, %v4258
      %v4260 = vsub.f32 1.0, %v4259
      %v4261 = vmul.f32 %v4258, %v4260
      %v4262 = vadd.f32 %v4258, %v4261
      %vm4263 = vweird.f32 %v3326
      %vm4264 = vweird.f32 %v4258
      %vm4265 = vmor %vm4263, %vm4264
      %v4266 = vsel %vm4265, %v4258, %v4262
      %v4267 = vand.u32 2147483647, %v3326
      %vm4268 = vcmp.eq.f32.partialorder %v4267, 8.507059e+37
      %v4269 = vand.u32 %v3326, 2147483648
      %v4270 = vor.u32 1.1754944e-38, %v4269
      %v4271 = vsel %vm4268, %v4270, %v4266
      %v4272 = vmul.f32 1.0, %v4271
      %v4273 = vrcp.pop %v3327
      %v4274 = vmul.f32 %v3327, %v4273
      %v4275 = vsub.f32 1.0, %v4274
      %v4276 = vmul.f32 %v4273, %v4275
      %v4277 = vadd.f32 %v4273, %v4276
      %vm4278 = vweird.f32 %v3327
      %vm4279 = vweird.f32 %v4273
      %vm4280 = vmor %vm4278, %vm4279
      %v4281 = vsel %vm4280, %v4273, %v4277
      %v4282 = vand.u32 2147483647, %v3327
      %vm4283 = vcmp.eq.f32.partialorder %v4282, 8.507059e+37
      %v4284 = vand.u32 %v3327, 2147483648
      %v4285 = vor.u32 1.1754944e-38, %v4284
      %v4286 = vsel %vm4283, %v4285, %v4281
      %v4287 = vmul.f32 1.0, %v4286
      %v4288 = vadd.f32 %v3342, 1.0
      %v4289 = vadd.f32 %v3357, 1.0
      %v4290 = vadd.f32 %v3372, 1.0
      %v4291 = vadd.f32 %v3387, 1.0
      %v4292 = vadd.f32 %v3402, 1.0
      %v4293 = vadd.f32 %v3417, 1.0
      %v4294 = vadd.f32 %v3432, 1.0
      %v4295 = vadd.f32 %v3447, 1.0
      %v4296 = vadd.f32 %v3462, 1.0
      %v4297 = vadd.f32 %v3477, 1.0
      %v4298 = vadd.f32 %v3492, 1.0
      %v4299 = vadd.f32 %v3507, 1.0
      %v4300 = vadd.f32 %v3522, 1.0
      %v4301 = vadd.f32 %v3537, 1.0
      %v4302 = vadd.f32 %v3552, 1.0
      %v4303 = vadd.f32 %v3567, 1.0
      %v4304 = vadd.f32 %v3582, 1.0
      %v4305 = vadd.f32 %v3597, 1.0
      %v4306 = vadd.f32 %v3612, 1.0
      %v4307 = vadd.f32 %v3627, 1.0
      %v4308 = vadd.f32 %v3642, 1.0
      %v4309 = vadd.f32 %v3657, 1.0
      %v4310 = vadd.f32 %v3672, 1.0
      %v4311 = vadd.f32 %v3687, 1.0
      %v4312 = vadd.f32 %v3702, 1.0
      %v4313 = vadd.f32 %v3717, 1.0
      %v4314 = vadd.f32 %v3732, 1.0
      %v4315 = vadd.f32 %v3747, 1.0
      %v4316 = vadd.f32 %v3762, 1.0
      %v4317 = vadd.f32 %v3777, 1.0
      %v4318 = vadd.f32 %v3792, 1.0
      %v4319 = vadd.f32 %v3807, 1.0
      %v4320 = vadd.f32 %v3822, 1.0
      %v4321 = vadd.f32 %v3837, 1.0
      %v4322 = vadd.f32 %v3852, 1.0
      %v4323 = vadd.f32 %v3867, 1.0
      %v4324 = vadd.f32 %v3882, 1.0
      %v4325 = vadd.f32 %v3897, 1.0
      %v4326 = vadd.f32 %v3912, 1.0
      %v4327 = vadd.f32 %v3927, 1.0
      %v4328 = vadd.f32 %v3942, 1.0
      %v4329 = vadd.f32 %v3957, 1.0
      %v4330 = vadd.f32 %v3972, 1.0
      %v4331 = vadd.f32 %v3987, 1.0
      %v4332 = vadd.f32 %v4002, 1.0
      %v4333 = vadd.f32 %v4017, 1.0
      %v4334 = vadd.f32 %v4032, 1.0
      %v4335 = vadd.f32 %v4047, 1.0
      %v4336 = vadd.f32 %v4062, 1.0
      %v4337 = vadd.f32 %v4077, 1.0
      %v4338 = vadd.f32 %v4092, 1.0
      %v4339 = vadd.f32 %v4107, 1.0
      %v4340 = vadd.f32 %v4122, 1.0
      %v4341 = vadd.f32 %v4137, 1.0
      %v4342 = vadd.f32 %v4152, 1.0
      %v4343 = vadd.f32 %v4167, 1.0
      %v4344 = vadd.f32 %v4182, 1.0
      %v4345 = vadd.f32 %v4197, 1.0
      %v4346 = vadd.f32 %v4212, 1.0
      %v4347 = vadd.f32 %v4227, 1.0
      %v4348 = vadd.f32 %v4242, 1.0
      %v4349 = vadd.f32 %v4257, 1.0
      %v4350 = vadd.f32 %v4272, 1.0
      %v4351 = vadd.f32 %v4287, 1.0
      %v4352 = vld [vmem:[%s520] sm:$0xf]
      %v4353 = vld [vmem:[%s520 + $0x4] sm:$0xf]
      %v4354 = vld [vmem:[%s520 + $0x8] sm:$0xf]
      %v4355 = vld [vmem:[%s520 + $0xc] sm:$0xf]
      %v4356 = vld [vmem:[%s520 + $0x10] sm:$0xf]
      %v4357 = vld [vmem:[%s520 + $0x14] sm:$0xf]
      %v4358 = vld [vmem:[%s520 + $0x18] sm:$0xf]
      %v4359 = vld [vmem:[%s520 + $0x1c] sm:$0xf]
      %v4360 = vld [vmem:[%s520 + $0x20] sm:$0xf]
      %v4361 = vld [vmem:[%s520 + $0x24] sm:$0xf]
      %v4362 = vld [vmem:[%s520 + $0x28] sm:$0xf]
      %v4363 = vld [vmem:[%s520 + $0x2c] sm:$0xf]
      %v4364 = vld [vmem:[%s520 + $0x30] sm:$0xf]
      %v4365 = vld [vmem:[%s520 + $0x34] sm:$0xf]
      %v4366 = vld [vmem:[%s520 + $0x38] sm:$0xf]
      %v4367 = vld [vmem:[%s520 + $0x3c] sm:$0xf]
      %v4368 = vld [vmem:[%s520 + $0x40] sm:$0xf]
      %v4369 = vld [vmem:[%s520 + $0x44] sm:$0xf]
      %v4370 = vld [vmem:[%s520 + $0x48] sm:$0xf]
      %v4371 = vld [vmem:[%s520 + $0x4c] sm:$0xf]
      %v4372 = vld [vmem:[%s520 + $0x50] sm:$0xf]
      %v4373 = vld [vmem:[%s520 + $0x54] sm:$0xf]
      %v4374 = vld [vmem:[%s520 + $0x58] sm:$0xf]
      %v4375 = vld [vmem:[%s520 + $0x5c] sm:$0xf]
      %v4376 = vld [vmem:[%s520 + $0x60] sm:$0xf]
      %v4377 = vld [vmem:[%s520 + $0x64] sm:$0xf]
      %v4378 = vld [vmem:[%s520 + $0x68] sm:$0xf]
      %v4379 = vld [vmem:[%s520 + $0x6c] sm:$0xf]
      %v4380 = vld [vmem:[%s520 + $0x70] sm:$0xf]
      %v4381 = vld [vmem:[%s520 + $0x74] sm:$0xf]
      %v4382 = vld [vmem:[%s520 + $0x78] sm:$0xf]
      %v4383 = vld [vmem:[%s520 + $0x7c] sm:$0xf]
      %v4384 = vld [vmem:[%s520 + $0x80] sm:$0xf]
      %v4385 = vld [vmem:[%s520 + $0x84] sm:$0xf]
      %v4386 = vld [vmem:[%s520 + $0x88] sm:$0xf]
      %v4387 = vld [vmem:[%s520 + $0x8c] sm:$0xf]
      %v4388 = vld [vmem:[%s520 + $0x90] sm:$0xf]
      %v4389 = vld [vmem:[%s520 + $0x94] sm:$0xf]
      %v4390 = vld [vmem:[%s520 + $0x98] sm:$0xf]
      %v4391 = vld [vmem:[%s520 + $0x9c] sm:$0xf]
      %v4392 = vld [vmem:[%s520 + $0xa0] sm:$0xf]
      %v4393 = vld [vmem:[%s520 + $0xa4] sm:$0xf]
      %v4394 = vld [vmem:[%s520 + $0xa8] sm:$0xf]
      %v4395 = vld [vmem:[%s520 + $0xac] sm:$0xf]
      %v4396 = vld [vmem:[%s520 + $0xb0] sm:$0xf]
      %v4397 = vld [vmem:[%s520 + $0xb4] sm:$0xf]
      %v4398 = vld [vmem:[%s520 + $0xb8] sm:$0xf]
      %v4399 = vld [vmem:[%s520 + $0xbc] sm:$0xf]
      %v4400 = vld [vmem:[%s520 + $0xc0] sm:$0xf]
      %v4401 = vld [vmem:[%s520 + $0xc4] sm:$0xf]
      %v4402 = vld [vmem:[%s520 + $0xc8] sm:$0xf]
      %v4403 = vld [vmem:[%s520 + $0xcc] sm:$0xf]
      %v4404 = vld [vmem:[%s520 + $0xd0] sm:$0xf]
      %v4405 = vld [vmem:[%s520 + $0xd4] sm:$0xf]
      %v4406 = vld [vmem:[%s520 + $0xd8] sm:$0xf]
      %v4407 = vld [vmem:[%s520 + $0xdc] sm:$0xf]
      %v4408 = vld [vmem:[%s520 + $0xe0] sm:$0xf]
      %v4409 = vld [vmem:[%s520 + $0xe4] sm:$0xf]
      %v4410 = vld [vmem:[%s520 + $0xe8] sm:$0xf]
      %v4411 = vld [vmem:[%s520 + $0xec] sm:$0xf]
      %v4412 = vld [vmem:[%s520 + $0xf0] sm:$0xf]
      %v4413 = vld [vmem:[%s520 + $0xf4] sm:$0xf]
      %v4414 = vld [vmem:[%s520 + $0xf8] sm:$0xf]
      %v4415 = vld [vmem:[%s520 + $0xfc] sm:$0xf]
      %v4416 = vld [vmem:[%s6] sm:$0xf]
      %v4417 = vld [vmem:[%s6 + $0x4] sm:$0xf]
      %v4418 = vld [vmem:[%s6 + $0x8] sm:$0xf]
      %v4419 = vld [vmem:[%s6 + $0xc] sm:$0xf]
      %v4420 = vld [vmem:[%s7] sm:$0x1]
      %v4422 = vperm.slane %v4420, 0
      %v4488 = vunpack.c.l.b16 %v4352
      %v4489 = vunpack.c.l.b16 %v4353
      %v4490 = vunpack.c.l.b16 %v4354
      %v4491 = vunpack.c.l.b16 %v4355
      %v4492 = vunpack.c.l.b16 %v4356
      %v4493 = vunpack.c.l.b16 %v4357
      %v4494 = vunpack.c.l.b16 %v4358
      %v4495 = vunpack.c.l.b16 %v4359
      %v4496 = vunpack.c.l.b16 %v4360
      %v4497 = vunpack.c.l.b16 %v4361
      %v4498 = vunpack.c.l.b16 %v4362
      %v4499 = vunpack.c.l.b16 %v4363
      %v4500 = vunpack.c.l.b16 %v4364
      %v4501 = vunpack.c.l.b16 %v4365
      %v4502 = vunpack.c.l.b16 %v4366
      %v4503 = vunpack.c.l.b16 %v4367
      %v4504 = vunpack.c.l.b16 %v4368
      %v4505 = vunpack.c.l.b16 %v4369
      %v4506 = vunpack.c.l.b16 %v4370
      %v4507 = vunpack.c.l.b16 %v4371
      %v4508 = vunpack.c.l.b16 %v4372
      %v4509 = vunpack.c.l.b16 %v4373
      %v4510 = vunpack.c.l.b16 %v4374
      %v4511 = vunpack.c.l.b16 %v4375
      %v4512 = vunpack.c.l.b16 %v4376
      %v4513 = vunpack.c.l.b16 %v4377
      %v4514 = vunpack.c.l.b16 %v4378
      %v4515 = vunpack.c.l.b16 %v4379
      %v4516 = vunpack.c.l.b16 %v4380
      %v4517 = vunpack.c.l.b16 %v4381
      %v4518 = vunpack.c.l.b16 %v4382
      %v4519 = vunpack.c.l.b16 %v4383
      %v4520 = vunpack.c.l.b16 %v4384
      %v4521 = vunpack.c.l.b16 %v4385
      %v4522 = vunpack.c.l.b16 %v4386
      %v4523 = vunpack.c.l.b16 %v4387
      %v4524 = vunpack.c.l.b16 %v4388
      %v4525 = vunpack.c.l.b16 %v4389
      %v4526 = vunpack.c.l.b16 %v4390
      %v4527 = vunpack.c.l.b16 %v4391
      %v4528 = vunpack.c.l.b16 %v4392
      %v4529 = vunpack.c.l.b16 %v4393
      %v4530 = vunpack.c.l.b16 %v4394
      %v4531 = vunpack.c.l.b16 %v4395
      %v4532 = vunpack.c.l.b16 %v4396
      %v4533 = vunpack.c.l.b16 %v4397
      %v4534 = vunpack.c.l.b16 %v4398
      %v4535 = vunpack.c.l.b16 %v4399
      %v4536 = vunpack.c.l.b16 %v4400
      %v4537 = vunpack.c.l.b16 %v4401
      %v4538 = vunpack.c.l.b16 %v4402
      %v4539 = vunpack.c.l.b16 %v4403
      %v4540 = vunpack.c.l.b16 %v4404
      %v4541 = vunpack.c.l.b16 %v4405
      %v4542 = vunpack.c.l.b16 %v4406
      %v4543 = vunpack.c.l.b16 %v4407
      %v4544 = vunpack.c.l.b16 %v4408
      %v4545 = vunpack.c.l.b16 %v4409
      %v4546 = vunpack.c.l.b16 %v4410
      %v4547 = vunpack.c.l.b16 %v4411
      %v4548 = vunpack.c.l.b16 %v4412
      %v4549 = vunpack.c.l.b16 %v4413
      %v4550 = vunpack.c.l.b16 %v4414
      %v4551 = vunpack.c.l.b16 %v4415
      %v4552 = vpack.c.b16 %v4489, %v4488
      %v4553 = vpack.c.b16 %v4491, %v4490
      %v4554 = vpack.c.b16 %v4493, %v4492
      %v4555 = vpack.c.b16 %v4495, %v4494
      %v4556 = vpack.c.b16 %v4497, %v4496
      %v4557 = vpack.c.b16 %v4499, %v4498
      %v4558 = vpack.c.b16 %v4501, %v4500
      %v4559 = vpack.c.b16 %v4503, %v4502
      %v4560 = vpack.c.b16 %v4505, %v4504
      %v4561 = vpack.c.b16 %v4507, %v4506
      %v4562 = vpack.c.b16 %v4509, %v4508
      %v4563 = vpack.c.b16 %v4511, %v4510
      %v4564 = vpack.c.b16 %v4513, %v4512
      %v4565 = vpack.c.b16 %v4515, %v4514
      %v4566 = vpack.c.b16 %v4517, %v4516
      %v4567 = vpack.c.b16 %v4519, %v4518
      %v4568 = vpack.c.b16 %v4521, %v4520
      %v4569 = vpack.c.b16 %v4523, %v4522
      %v4570 = vpack.c.b16 %v4525, %v4524
      %v4571 = vpack.c.b16 %v4527, %v4526
      %v4572 = vpack.c.b16 %v4529, %v4528
      %v4573 = vpack.c.b16 %v4531, %v4530
      %v4574 = vpack.c.b16 %v4533, %v4532
      %v4575 = vpack.c.b16 %v4535, %v4534
      %v4576 = vpack.c.b16 %v4537, %v4536
      %v4577 = vpack.c.b16 %v4539, %v4538
      %v4578 = vpack.c.b16 %v4541, %v4540
      %v4579 = vpack.c.b16 %v4543, %v4542
      %v4580 = vpack.c.b16 %v4545, %v4544
      %v4581 = vpack.c.b16 %v4547, %v4546
      %v4582 = vpack.c.b16 %v4549, %v4548
      %v4583 = vpack.c.b16 %v4551, %v4550
      %v4588 = vunpack.c.l.b16 %v4416
      %v4589 = vunpack.c.l.b16 %v4417
      %v4590 = vunpack.c.l.b16 %v4418
      %v4591 = vunpack.c.l.b16 %v4419
      %v4592 = vpack.c.b16 %v4589, %v4588
      %v4593 = vpack.c.b16 %v4591, %v4590
      %vm4596 = vcmask 261120
      %v4598 = vsel %vm4596, %v4552, 0
      %v4601 = vsel %vm4596, %v4553, 0
      %v4604 = vsel %vm4596, %v4554, 0
      %v4607 = vsel %vm4596, %v4555, 0
      %v4610 = vsel %vm4596, %v4556, 0
      %v4613 = vsel %vm4596, %v4557, 0
      %v4616 = vsel %vm4596, %v4558, 0
      %v4619 = vsel %vm4596, %v4559, 0
      %v4622 = vsel %vm4596, %v4560, 0
      %v4625 = vsel %vm4596, %v4561, 0
      %v4628 = vsel %vm4596, %v4562, 0
      %v4631 = vsel %vm4596, %v4563, 0
      %v4634 = vsel %vm4596, %v4564, 0
      %v4637 = vsel %vm4596, %v4565, 0
      %v4640 = vsel %vm4596, %v4566, 0
      %v4643 = vsel %vm4596, %v4567, 0
      %v4646 = vsel %vm4596, %v4568, 0
      %v4649 = vsel %vm4596, %v4569, 0
      %v4652 = vsel %vm4596, %v4570, 0
      %v4655 = vsel %vm4596, %v4571, 0
      %v4658 = vsel %vm4596, %v4572, 0
      %v4661 = vsel %vm4596, %v4573, 0
      %v4664 = vsel %vm4596, %v4574, 0
      %v4667 = vsel %vm4596, %v4575, 0
      %v4670 = vsel %vm4596, %v4576, 0
      %v4673 = vsel %vm4596, %v4577, 0
      %v4676 = vsel %vm4596, %v4578, 0
      %v4679 = vsel %vm4596, %v4579, 0
      %v4682 = vsel %vm4596, %v4580, 0
      %v4685 = vsel %vm4596, %v4581, 0
      %v4688 = vsel %vm4596, %v4582, 0
      %v4691 = vsel %vm4596, %v4583, 0
      %4693 = vmatpush.bf16.msra.mxu0 0
      %4694 = vmatpush.bf16.msra.mxu0 0
      %4695 = vmatpush.bf16.msra.mxu0 0
      %4696 = vmatpush.bf16.msra.mxu0 0
      %4697 = vmatpush.bf16.msra.mxu0 0
      %4698 = vmatpush.bf16.msra.mxu0 0
      %4699 = vmatpush.bf16.msra.mxu0 %v4593
      %4700 = vmatpush.bf16.msra.mxu0 %v4592
      %4701 = vmatmul.bf16.gmra.mxu0 %v4598
      %v4702 = vpop.f32.mrf.mxu0
      %v4703 = vadd.f32 %v4422, %v4702
      %v4704 = vpop.f32.mrf.mxu0
      %v4705 = vadd.f32 %v4422, %v4704
      %4706 = vmatmul.bf16.gmra.mxu0 %v4601
      %v4707 = vpop.f32.mrf.mxu0
      %v4708 = vadd.f32 %v4422, %v4707
      %v4709 = vpop.f32.mrf.mxu0
      %v4710 = vadd.f32 %v4422, %v4709
      %4711 = vmatmul.bf16.gmra.mxu0 %v4604
      %v4712 = vpop.f32.mrf.mxu0
      %v4713 = vadd.f32 %v4422, %v4712
      %v4714 = vpop.f32.mrf.mxu0
      %v4715 = vadd.f32 %v4422, %v4714
      %4716 = vmatmul.bf16.gmra.mxu0 %v4607
      %v4717 = vpop.f32.mrf.mxu0
      %v4718 = vadd.f32 %v4422, %v4717
      %v4719 = vpop.f32.mrf.mxu0
      %v4720 = vadd.f32 %v4422, %v4719
      %4721 = vmatmul.bf16.gmra.mxu0 %v4610
      %v4722 = vpop.f32.mrf.mxu0
      %v4723 = vadd.f32 %v4422, %v4722
      %v4724 = vpop.f32.mrf.mxu0
      %v4725 = vadd.f32 %v4422, %v4724
      %4726 = vmatmul.bf16.gmra.mxu0 %v4613
      %v4727 = vpop.f32.mrf.mxu0
      %v4728 = vadd.f32 %v4422, %v4727
      %v4729 = vpop.f32.mrf.mxu0
      %v4730 = vadd.f32 %v4422, %v4729
      %4731 = vmatmul.bf16.gmra.mxu0 %v4616
      %v4732 = vpop.f32.mrf.mxu0
      %v4733 = vadd.f32 %v4422, %v4732
      %v4734 = vpop.f32.mrf.mxu0
      %v4735 = vadd.f32 %v4422, %v4734
      %4736 = vmatmul.bf16.gmra.mxu0 %v4619
      %v4737 = vpop.f32.mrf.mxu0
      %v4738 = vadd.f32 %v4422, %v4737
      %v4739 = vpop.f32.mrf.mxu0
      %v4740 = vadd.f32 %v4422, %v4739
      %4741 = vmatmul.bf16.gmra.mxu0 %v4622
      %v4742 = vpop.f32.mrf.mxu0
      %v4743 = vadd.f32 %v4422, %v4742
      %v4744 = vpop.f32.mrf.mxu0
      %v4745 = vadd.f32 %v4422, %v4744
      %4746 = vmatmul.bf16.gmra.mxu0 %v4625
      %v4747 = vpop.f32.mrf.mxu0
      %v4748 = vadd.f32 %v4422, %v4747
      %v4749 = vpop.f32.mrf.mxu0
      %v4750 = vadd.f32 %v4422, %v4749
      %4751 = vmatmul.bf16.gmra.mxu0 %v4628
      %v4752 = vpop.f32.mrf.mxu0
      %v4753 = vadd.f32 %v4422, %v4752
      %v4754 = vpop.f32.mrf.mxu0
      %v4755 = vadd.f32 %v4422, %v4754
      %4756 = vmatmul.bf16.gmra.mxu0 %v4631
      %v4757 = vpop.f32.mrf.mxu0
      %v4758 = vadd.f32 %v4422, %v4757
      %v4759 = vpop.f32.mrf.mxu0
      %v4760 = vadd.f32 %v4422, %v4759
      %4761 = vmatmul.bf16.gmra.mxu0 %v4634
      %v4762 = vpop.f32.mrf.mxu0
      %v4763 = vadd.f32 %v4422, %v4762
      %v4764 = vpop.f32.mrf.mxu0
      %v4765 = vadd.f32 %v4422, %v4764
      %4766 = vmatmul.bf16.gmra.mxu0 %v4637
      %v4767 = vpop.f32.mrf.mxu0
      %v4768 = vadd.f32 %v4422, %v4767
      %v4769 = vpop.f32.mrf.mxu0
      %v4770 = vadd.f32 %v4422, %v4769
      %4771 = vmatmul.bf16.gmra.mxu0 %v4640
      %v4772 = vpop.f32.mrf.mxu0
      %v4773 = vadd.f32 %v4422, %v4772
      %v4774 = vpop.f32.mrf.mxu0
      %v4775 = vadd.f32 %v4422, %v4774
      %4776 = vmatmul.bf16.gmra.mxu0 %v4643
      %v4777 = vpop.f32.mrf.mxu0
      %v4778 = vadd.f32 %v4422, %v4777
      %v4779 = vpop.f32.mrf.mxu0
      %v4780 = vadd.f32 %v4422, %v4779
      %4781 = vmatmul.bf16.gmra.mxu0 %v4646
      %v4782 = vpop.f32.mrf.mxu0
      %v4783 = vadd.f32 %v4422, %v4782
      %v4784 = vpop.f32.mrf.mxu0
      %v4785 = vadd.f32 %v4422, %v4784
      %4786 = vmatmul.bf16.gmra.mxu0 %v4649
      %v4787 = vpop.f32.mrf.mxu0
      %v4788 = vadd.f32 %v4422, %v4787
      %v4789 = vpop.f32.mrf.mxu0
      %v4790 = vadd.f32 %v4422, %v4789
      %4791 = vmatmul.bf16.gmra.mxu0 %v4652
      %v4792 = vpop.f32.mrf.mxu0
      %v4793 = vadd.f32 %v4422, %v4792
      %v4794 = vpop.f32.mrf.mxu0
      %v4795 = vadd.f32 %v4422, %v4794
      %4796 = vmatmul.bf16.gmra.mxu0 %v4655
      %v4797 = vpop.f32.mrf.mxu0
      %v4798 = vadd.f32 %v4422, %v4797
      %v4799 = vpop.f32.mrf.mxu0
      %v4800 = vadd.f32 %v4422, %v4799
      %4801 = vmatmul.bf16.gmra.mxu0 %v4658
      %v4802 = vpop.f32.mrf.mxu0
      %v4803 = vadd.f32 %v4422, %v4802
      %v4804 = vpop.f32.mrf.mxu0
      %v4805 = vadd.f32 %v4422, %v4804
      %4806 = vmatmul.bf16.gmra.mxu0 %v4661
      %v4807 = vpop.f32.mrf.mxu0
      %v4808 = vadd.f32 %v4422, %v4807
      %v4809 = vpop.f32.mrf.mxu0
      %v4810 = vadd.f32 %v4422, %v4809
      %4811 = vmatmul.bf16.gmra.mxu0 %v4664
      %v4812 = vpop.f32.mrf.mxu0
      %v4813 = vadd.f32 %v4422, %v4812
      %v4814 = vpop.f32.mrf.mxu0
      %v4815 = vadd.f32 %v4422, %v4814
      %4816 = vmatmul.bf16.gmra.mxu0 %v4667
      %v4817 = vpop.f32.mrf.mxu0
      %v4818 = vadd.f32 %v4422, %v4817
      %v4819 = vpop.f32.mrf.mxu0
      %v4820 = vadd.f32 %v4422, %v4819
      %4821 = vmatmul.bf16.gmra.mxu0 %v4670
      %v4822 = vpop.f32.mrf.mxu0
      %v4823 = vadd.f32 %v4422, %v4822
      %v4824 = vpop.f32.mrf.mxu0
      %v4825 = vadd.f32 %v4422, %v4824
      %4826 = vmatmul.bf16.gmra.mxu0 %v4673
      %v4827 = vpop.f32.mrf.mxu0
      %v4828 = vadd.f32 %v4422, %v4827
      %v4829 = vpop.f32.mrf.mxu0
      %v4830 = vadd.f32 %v4422, %v4829
      %4831 = vmatmul.bf16.gmra.mxu0 %v4676
      %v4832 = vpop.f32.mrf.mxu0
      %v4833 = vadd.f32 %v4422, %v4832
      %v4834 = vpop.f32.mrf.mxu0
      %v4835 = vadd.f32 %v4422, %v4834
      %4836 = vmatmul.bf16.gmra.mxu0 %v4679
      %v4837 = vpop.f32.mrf.mxu0
      %v4838 = vadd.f32 %v4422, %v4837
      %v4839 = vpop.f32.mrf.mxu0
      %v4840 = vadd.f32 %v4422, %v4839
      %4841 = vmatmul.bf16.gmra.mxu0 %v4682
      %v4842 = vpop.f32.mrf.mxu0
      %v4843 = vadd.f32 %v4422, %v4842
      %v4844 = vpop.f32.mrf.mxu0
      %v4845 = vadd.f32 %v4422, %v4844
      %4846 = vmatmul.bf16.gmra.mxu0 %v4685
      %v4847 = vpop.f32.mrf.mxu0
      %v4848 = vadd.f32 %v4422, %v4847
      %v4849 = vpop.f32.mrf.mxu0
      %v4850 = vadd.f32 %v4422, %v4849
      %4851 = vmatmul.bf16.gmra.mxu0 %v4688
      %v4852 = vpop.f32.mrf.mxu0
      %v4853 = vadd.f32 %v4422, %v4852
      %v4854 = vpop.f32.mrf.mxu0
      %v4855 = vadd.f32 %v4422, %v4854
      %4856 = vmatmul.bf16.gmra.mxu0 %v4691
      %v4857 = vpop.f32.mrf.mxu0
      %v4858 = vadd.f32 %v4422, %v4857
      %v4859 = vpop.f32.mrf.mxu0
      %v4860 = vadd.f32 %v4422, %v4859
      %4861 = vdwg.mxu0
      %4863 = vset.pattern.permute.xlu0 0
      %4864 = vperm.xlu0 %4863, %v4288
      %v4865 = vpop.permute.xlu0 %4864
      %4868 = vset.pattern.permute.xlu0 0
      %4869 = vperm.xlu0 %4868, %v4289
      %v4870 = vpop.permute.xlu0 %4869
      %4873 = vset.pattern.permute.xlu0 0
      %4874 = vperm.xlu0 %4873, %v4290
      %v4875 = vpop.permute.xlu0 %4874
      %4878 = vset.pattern.permute.xlu0 0
      %4879 = vperm.xlu0 %4878, %v4291
      %v4880 = vpop.permute.xlu0 %4879
      %4883 = vset.pattern.permute.xlu0 0
      %4884 = vperm.xlu0 %4883, %v4292
      %v4885 = vpop.permute.xlu0 %4884
      %4888 = vset.pattern.permute.xlu0 0
      %4889 = vperm.xlu0 %4888, %v4293
      %v4890 = vpop.permute.xlu0 %4889
      %4893 = vset.pattern.permute.xlu0 0
      %4894 = vperm.xlu0 %4893, %v4294
      %v4895 = vpop.permute.xlu0 %4894
      %4898 = vset.pattern.permute.xlu0 0
      %4899 = vperm.xlu0 %4898, %v4295
      %v4900 = vpop.permute.xlu0 %4899
      %4903 = vset.pattern.permute.xlu0 0
      %4904 = vperm.xlu0 %4903, %v4296
      %v4905 = vpop.permute.xlu0 %4904
      %4908 = vset.pattern.permute.xlu0 0
      %4909 = vperm.xlu0 %4908, %v4297
      %v4910 = vpop.permute.xlu0 %4909
      %4913 = vset.pattern.permute.xlu0 0
      %4914 = vperm.xlu0 %4913, %v4298
      %v4915 = vpop.permute.xlu0 %4914
      %4918 = vset.pattern.permute.xlu0 0
      %4919 = vperm.xlu0 %4918, %v4299
      %v4920 = vpop.permute.xlu0 %4919
      %4923 = vset.pattern.permute.xlu0 0
      %4924 = vperm.xlu0 %4923, %v4300
      %v4925 = vpop.permute.xlu0 %4924
      %4928 = vset.pattern.permute.xlu0 0
      %4929 = vperm.xlu0 %4928, %v4301
      %v4930 = vpop.permute.xlu0 %4929
      %4933 = vset.pattern.permute.xlu0 0
      %4934 = vperm.xlu0 %4933, %v4302
      %v4935 = vpop.permute.xlu0 %4934
      %4938 = vset.pattern.permute.xlu0 0
      %4939 = vperm.xlu0 %4938, %v4303
      %v4940 = vpop.permute.xlu0 %4939
      %4943 = vset.pattern.permute.xlu0 0
      %4944 = vperm.xlu0 %4943, %v4304
      %v4945 = vpop.permute.xlu0 %4944
      %4948 = vset.pattern.permute.xlu0 0
      %4949 = vperm.xlu0 %4948, %v4305
      %v4950 = vpop.permute.xlu0 %4949
      %4953 = vset.pattern.permute.xlu0 0
      %4954 = vperm.xlu0 %4953, %v4306
      %v4955 = vpop.permute.xlu0 %4954
      %4958 = vset.pattern.permute.xlu0 0
      %4959 = vperm.xlu0 %4958, %v4307
      %v4960 = vpop.permute.xlu0 %4959
      %4963 = vset.pattern.permute.xlu0 0
      %4964 = vperm.xlu0 %4963, %v4308
      %v4965 = vpop.permute.xlu0 %4964
      %4968 = vset.pattern.permute.xlu0 0
      %4969 = vperm.xlu0 %4968, %v4309
      %v4970 = vpop.permute.xlu0 %4969
      %4973 = vset.pattern.permute.xlu0 0
      %4974 = vperm.xlu0 %4973, %v4310
      %v4975 = vpop.permute.xlu0 %4974
      %4978 = vset.pattern.permute.xlu0 0
      %4979 = vperm.xlu0 %4978, %v4311
      %v4980 = vpop.permute.xlu0 %4979
      %4983 = vset.pattern.permute.xlu0 0
      %4984 = vperm.xlu0 %4983, %v4312
      %v4985 = vpop.permute.xlu0 %4984
      %4988 = vset.pattern.permute.xlu0 0
      %4989 = vperm.xlu0 %4988, %v4313
      %v4990 = vpop.permute.xlu0 %4989
      %4993 = vset.pattern.permute.xlu0 0
      %4994 = vperm.xlu0 %4993, %v4314
      %v4995 = vpop.permute.xlu0 %4994
      %4998 = vset.pattern.permute.xlu0 0
      %4999 = vperm.xlu0 %4998, %v4315
      %v5000 = vpop.permute.xlu0 %4999
      %5003 = vset.pattern.permute.xlu0 0
      %5004 = vperm.xlu0 %5003, %v4316
      %v5005 = vpop.permute.xlu0 %5004
      %5008 = vset.pattern.permute.xlu0 0
      %5009 = vperm.xlu0 %5008, %v4317
      %v5010 = vpop.permute.xlu0 %5009
      %5013 = vset.pattern.permute.xlu0 0
      %5014 = vperm.xlu0 %5013, %v4318
      %v5015 = vpop.permute.xlu0 %5014
      %5018 = vset.pattern.permute.xlu0 0
      %5019 = vperm.xlu0 %5018, %v4319
      %v5020 = vpop.permute.xlu0 %5019
      %5023 = vset.pattern.permute.xlu0 0
      %5024 = vperm.xlu0 %5023, %v4320
      %v5025 = vpop.permute.xlu0 %5024
      %5028 = vset.pattern.permute.xlu0 0
      %5029 = vperm.xlu0 %5028, %v4321
      %v5030 = vpop.permute.xlu0 %5029
      %5033 = vset.pattern.permute.xlu0 0
      %5034 = vperm.xlu0 %5033, %v4322
      %v5035 = vpop.permute.xlu0 %5034
      %5038 = vset.pattern.permute.xlu0 0
      %5039 = vperm.xlu0 %5038, %v4323
      %v5040 = vpop.permute.xlu0 %5039
      %5043 = vset.pattern.permute.xlu0 0
      %5044 = vperm.xlu0 %5043, %v4324
      %v5045 = vpop.permute.xlu0 %5044
      %5048 = vset.pattern.permute.xlu0 0
      %5049 = vperm.xlu0 %5048, %v4325
      %v5050 = vpop.permute.xlu0 %5049
      %5053 = vset.pattern.permute.xlu0 0
      %5054 = vperm.xlu0 %5053, %v4326
      %v5055 = vpop.permute.xlu0 %5054
      %5058 = vset.pattern.permute.xlu0 0
      %5059 = vperm.xlu0 %5058, %v4327
      %v5060 = vpop.permute.xlu0 %5059
      %5063 = vset.pattern.permute.xlu0 0
      %5064 = vperm.xlu0 %5063, %v4328
      %v5065 = vpop.permute.xlu0 %5064
      %5068 = vset.pattern.permute.xlu0 0
      %5069 = vperm.xlu0 %5068, %v4329
      %v5070 = vpop.permute.xlu0 %5069
      %5073 = vset.pattern.permute.xlu0 0
      %5074 = vperm.xlu0 %5073, %v4330
      %v5075 = vpop.permute.xlu0 %5074
      %5078 = vset.pattern.permute.xlu0 0
      %5079 = vperm.xlu0 %5078, %v4331
      %v5080 = vpop.permute.xlu0 %5079
      %5083 = vset.pattern.permute.xlu0 0
      %5084 = vperm.xlu0 %5083, %v4332
      %v5085 = vpop.permute.xlu0 %5084
      %5088 = vset.pattern.permute.xlu0 0
      %5089 = vperm.xlu0 %5088, %v4333
      %v5090 = vpop.permute.xlu0 %5089
      %5093 = vset.pattern.permute.xlu0 0
      %5094 = vperm.xlu0 %5093, %v4334
      %v5095 = vpop.permute.xlu0 %5094
      %5098 = vset.pattern.permute.xlu0 0
      %5099 = vperm.xlu0 %5098, %v4335
      %v5100 = vpop.permute.xlu0 %5099
      %5103 = vset.pattern.permute.xlu0 0
      %5104 = vperm.xlu0 %5103, %v4336
      %v5105 = vpop.permute.xlu0 %5104
      %5108 = vset.pattern.permute.xlu0 0
      %5109 = vperm.xlu0 %5108, %v4337
      %v5110 = vpop.permute.xlu0 %5109
      %5113 = vset.pattern.permute.xlu0 0
      %5114 = vperm.xlu0 %5113, %v4338
      %v5115 = vpop.permute.xlu0 %5114
      %5118 = vset.pattern.permute.xlu0 0
      %5119 = vperm.xlu0 %5118, %v4339
      %v5120 = vpop.permute.xlu0 %5119
      %5123 = vset.pattern.permute.xlu0 0
      %5124 = vperm.xlu0 %5123, %v4340
      %v5125 = vpop.permute.xlu0 %5124
      %5128 = vset.pattern.permute.xlu0 0
      %5129 = vperm.xlu0 %5128, %v4341
      %v5130 = vpop.permute.xlu0 %5129
      %5133 = vset.pattern.permute.xlu0 0
      %5134 = vperm.xlu0 %5133, %v4342
      %v5135 = vpop.permute.xlu0 %5134
      %5138 = vset.pattern.permute.xlu0 0
      %5139 = vperm.xlu0 %5138, %v4343
      %v5140 = vpop.permute.xlu0 %5139
      %5143 = vset.pattern.permute.xlu0 0
      %5144 = vperm.xlu0 %5143, %v4344
      %v5145 = vpop.permute.xlu0 %5144
      %5148 = vset.pattern.permute.xlu0 0
      %5149 = vperm.xlu0 %5148, %v4345
      %v5150 = vpop.permute.xlu0 %5149
      %5153 = vset.pattern.permute.xlu0 0
      %5154 = vperm.xlu0 %5153, %v4346
      %v5155 = vpop.permute.xlu0 %5154
      %5158 = vset.pattern.permute.xlu0 0
      %5159 = vperm.xlu0 %5158, %v4347
      %v5160 = vpop.permute.xlu0 %5159
      %5163 = vset.pattern.permute.xlu0 0
      %5164 = vperm.xlu0 %5163, %v4348
      %v5165 = vpop.permute.xlu0 %5164
      %5168 = vset.pattern.permute.xlu0 0
      %5169 = vperm.xlu0 %5168, %v4349
      %v5170 = vpop.permute.xlu0 %5169
      %5173 = vset.pattern.permute.xlu0 0
      %5174 = vperm.xlu0 %5173, %v4350
      %v5175 = vpop.permute.xlu0 %5174
      %5178 = vset.pattern.permute.xlu0 0
      %5179 = vperm.xlu0 %5178, %v4351
      %v5180 = vpop.permute.xlu0 %5179
      %v5182 = vmul.f32 %v4703, %v4865
      %v5183 = vmul.f32 %v4705, %v4870
      %v5184 = vmul.f32 %v4708, %v4875
      %v5185 = vmul.f32 %v4710, %v4880
      %v5186 = vmul.f32 %v4713, %v4885
      %v5187 = vmul.f32 %v4715, %v4890
      %v5188 = vmul.f32 %v4718, %v4895
      %v5189 = vmul.f32 %v4720, %v4900
      %v5190 = vmul.f32 %v4723, %v4905
      %v5191 = vmul.f32 %v4725, %v4910
      %v5192 = vmul.f32 %v4728, %v4915
      %v5193 = vmul.f32 %v4730, %v4920
      %v5194 = vmul.f32 %v4733, %v4925
      %v5195 = vmul.f32 %v4735, %v4930
      %v5196 = vmul.f32 %v4738, %v4935
      %v5197 = vmul.f32 %v4740, %v4940
      %v5198 = vmul.f32 %v4743, %v4945
      %v5199 = vmul.f32 %v4745, %v4950
      %v5200 = vmul.f32 %v4748, %v4955
      %v5201 = vmul.f32 %v4750, %v4960
      %v5202 = vmul.f32 %v4753, %v4965
      %v5203 = vmul.f32 %v4755, %v4970
      %v5204 = vmul.f32 %v4758, %v4975
      %v5205 = vmul.f32 %v4760, %v4980
      %v5206 = vmul.f32 %v4763, %v4985
      %v5207 = vmul.f32 %v4765, %v4990
      %v5208 = vmul.f32 %v4768, %v4995
      %v5209 = vmul.f32 %v4770, %v5000
      %v5210 = vmul.f32 %v4773, %v5005
      %v5211 = vmul.f32 %v4775, %v5010
      %v5212 = vmul.f32 %v4778, %v5015
      %v5213 = vmul.f32 %v4780, %v5020
      %v5214 = vmul.f32 %v4783, %v5025
      %v5215 = vmul.f32 %v4785, %v5030
      %v5216 = vmul.f32 %v4788, %v5035
      %v5217 = vmul.f32 %v4790, %v5040
      %v5218 = vmul.f32 %v4793, %v5045
      %v5219 = vmul.f32 %v4795, %v5050
      %v5220 = vmul.f32 %v4798, %v5055
      %v5221 = vmul.f32 %v4800, %v5060
      %v5222 = vmul.f32 %v4803, %v5065
      %v5223 = vmul.f32 %v4805, %v5070
      %v5224 = vmul.f32 %v4808, %v5075
      %v5225 = vmul.f32 %v4810, %v5080
      %v5226 = vmul.f32 %v4813, %v5085
      %v5227 = vmul.f32 %v4815, %v5090
      %v5228 = vmul.f32 %v4818, %v5095
      %v5229 = vmul.f32 %v4820, %v5100
      %v5230 = vmul.f32 %v4823, %v5105
      %v5231 = vmul.f32 %v4825, %v5110
      %v5232 = vmul.f32 %v4828, %v5115
      %v5233 = vmul.f32 %v4830, %v5120
      %v5234 = vmul.f32 %v4833, %v5125
      %v5235 = vmul.f32 %v4835, %v5130
      %v5236 = vmul.f32 %v4838, %v5135
      %v5237 = vmul.f32 %v4840, %v5140
      %v5238 = vmul.f32 %v4843, %v5145
      %v5239 = vmul.f32 %v4845, %v5150
      %v5240 = vmul.f32 %v4848, %v5155
      %v5241 = vmul.f32 %v4850, %v5160
      %v5242 = vmul.f32 %v4853, %v5165
      %v5243 = vmul.f32 %v4855, %v5170
      %v5244 = vmul.f32 %v4858, %v5175
      %v5245 = vmul.f32 %v4860, %v5180
      %v5246 = vld [vmem:[%s8] sm:$0xf]
      %v5247 = vld [vmem:[%s8 + $0x4] sm:$0xf]
      %v5248 = vld [vmem:[%s8 + $0x8] sm:$0xf]
      %v5249 = vld [vmem:[%s8 + $0xc] sm:$0xf]
      %v5250 = vld [vmem:[%s9] sm:$0x1]
      %v5252 = vperm.slane %v5250, 0
      %v5258 = vunpack.c.l.b16 %v5246
      %v5259 = vunpack.c.l.b16 %v5247
      %v5260 = vunpack.c.l.b16 %v5248
      %v5261 = vunpack.c.l.b16 %v5249
      %v5262 = vpack.c.b16 %v5259, %v5258
      %v5263 = vpack.c.b16 %v5261, %v5260
      %5266 = vmatpush.bf16.msra.mxu0 0
      %5267 = vmatpush.bf16.msra.mxu0 0
      %5268 = vmatpush.bf16.msra.mxu0 0
      %5269 = vmatpush.bf16.msra.mxu0 0
      %5270 = vmatpush.bf16.msra.mxu0 0
      %5271 = vmatpush.bf16.msra.mxu0 0
      %5272 = vmatpush.bf16.msra.mxu0 %v5263
      %5273 = vmatpush.bf16.msra.mxu0 %v5262
      %5274 = vmatmul.bf16.gmra.mxu0 %v4598
      %v5275 = vpop.f32.mrf.mxu0
      %v5276 = vadd.f32 %v5252, %v5275
      %v5277 = vpop.f32.mrf.mxu0
      %v5278 = vadd.f32 %v5252, %v5277
      %5279 = vmatmul.bf16.gmra.mxu0 %v4601
      %v5280 = vpop.f32.mrf.mxu0
      %v5281 = vadd.f32 %v5252, %v5280
      %v5282 = vpop.f32.mrf.mxu0
      %v5283 = vadd.f32 %v5252, %v5282
      %5284 = vmatmul.bf16.gmra.mxu0 %v4604
      %v5285 = vpop.f32.mrf.mxu0
      %v5286 = vadd.f32 %v5252, %v5285
      %v5287 = vpop.f32.mrf.mxu0
      %v5288 = vadd.f32 %v5252, %v5287
      %5289 = vmatmul.bf16.gmra.mxu0 %v4607
      %v5290 = vpop.f32.mrf.mxu0
      %v5291 = vadd.f32 %v5252, %v5290
      %v5292 = vpop.f32.mrf.mxu0
      %v5293 = vadd.f32 %v5252, %v5292
      %5294 = vmatmul.bf16.gmra.mxu0 %v4610
      %v5295 = vpop.f32.mrf.mxu0
      %v5296 = vadd.f32 %v5252, %v5295
      %v5297 = vpop.f32.mrf.mxu0
      %v5298 = vadd.f32 %v5252, %v5297
      %5299 = vmatmul.bf16.gmra.mxu0 %v4613
      %v5300 = vpop.f32.mrf.mxu0
      %v5301 = vadd.f32 %v5252, %v5300
      %v5302 = vpop.f32.mrf.mxu0
      %v5303 = vadd.f32 %v5252, %v5302
      %5304 = vmatmul.bf16.gmra.mxu0 %v4616
      %v5305 = vpop.f32.mrf.mxu0
      %v5306 = vadd.f32 %v5252, %v5305
      %v5307 = vpop.f32.mrf.mxu0
      %v5308 = vadd.f32 %v5252, %v5307
      %5309 = vmatmul.bf16.gmra.mxu0 %v4619
      %v5310 = vpop.f32.mrf.mxu0
      %v5311 = vadd.f32 %v5252, %v5310
      %v5312 = vpop.f32.mrf.mxu0
      %v5313 = vadd.f32 %v5252, %v5312
      %5314 = vmatmul.bf16.gmra.mxu0 %v4622
      %v5315 = vpop.f32.mrf.mxu0
      %v5316 = vadd.f32 %v5252, %v5315
      %v5317 = vpop.f32.mrf.mxu0
      %v5318 = vadd.f32 %v5252, %v5317
      %5319 = vmatmul.bf16.gmra.mxu0 %v4625
      %v5320 = vpop.f32.mrf.mxu0
      %v5321 = vadd.f32 %v5252, %v5320
      %v5322 = vpop.f32.mrf.mxu0
      %v5323 = vadd.f32 %v5252, %v5322
      %5324 = vmatmul.bf16.gmra.mxu0 %v4628
      %v5325 = vpop.f32.mrf.mxu0
      %v5326 = vadd.f32 %v5252, %v5325
      %v5327 = vpop.f32.mrf.mxu0
      %v5328 = vadd.f32 %v5252, %v5327
      %5329 = vmatmul.bf16.gmra.mxu0 %v4631
      %v5330 = vpop.f32.mrf.mxu0
      %v5331 = vadd.f32 %v5252, %v5330
      %v5332 = vpop.f32.mrf.mxu0
      %v5333 = vadd.f32 %v5252, %v5332
      %5334 = vmatmul.bf16.gmra.mxu0 %v4634
      %v5335 = vpop.f32.mrf.mxu0
      %v5336 = vadd.f32 %v5252, %v5335
      %v5337 = vpop.f32.mrf.mxu0
      %v5338 = vadd.f32 %v5252, %v5337
      %5339 = vmatmul.bf16.gmra.mxu0 %v4637
      %v5340 = vpop.f32.mrf.mxu0
      %v5341 = vadd.f32 %v5252, %v5340
      %v5342 = vpop.f32.mrf.mxu0
      %v5343 = vadd.f32 %v5252, %v5342
      %5344 = vmatmul.bf16.gmra.mxu0 %v4640
      %v5345 = vpop.f32.mrf.mxu0
      %v5346 = vadd.f32 %v5252, %v5345
      %v5347 = vpop.f32.mrf.mxu0
      %v5348 = vadd.f32 %v5252, %v5347
      %5349 = vmatmul.bf16.gmra.mxu0 %v4643
      %v5350 = vpop.f32.mrf.mxu0
      %v5351 = vadd.f32 %v5252, %v5350
      %v5352 = vpop.f32.mrf.mxu0
      %v5353 = vadd.f32 %v5252, %v5352
      %5354 = vmatmul.bf16.gmra.mxu0 %v4646
      %v5355 = vpop.f32.mrf.mxu0
      %v5356 = vadd.f32 %v5252, %v5355
      %v5357 = vpop.f32.mrf.mxu0
      %v5358 = vadd.f32 %v5252, %v5357
      %5359 = vmatmul.bf16.gmra.mxu0 %v4649
      %v5360 = vpop.f32.mrf.mxu0
      %v5361 = vadd.f32 %v5252, %v5360
      %v5362 = vpop.f32.mrf.mxu0
      %v5363 = vadd.f32 %v5252, %v5362
      %5364 = vmatmul.bf16.gmra.mxu0 %v4652
      %v5365 = vpop.f32.mrf.mxu0
      %v5366 = vadd.f32 %v5252, %v5365
      %v5367 = vpop.f32.mrf.mxu0
      %v5368 = vadd.f32 %v5252, %v5367
      %5369 = vmatmul.bf16.gmra.mxu0 %v4655
      %v5370 = vpop.f32.mrf.mxu0
      %v5371 = vadd.f32 %v5252, %v5370
      %v5372 = vpop.f32.mrf.mxu0
      %v5373 = vadd.f32 %v5252, %v5372
      %5374 = vmatmul.bf16.gmra.mxu0 %v4658
      %v5375 = vpop.f32.mrf.mxu0
      %v5376 = vadd.f32 %v5252, %v5375
      %v5377 = vpop.f32.mrf.mxu0
      %v5378 = vadd.f32 %v5252, %v5377
      %5379 = vmatmul.bf16.gmra.mxu0 %v4661
      %v5380 = vpop.f32.mrf.mxu0
      %v5381 = vadd.f32 %v5252, %v5380
      %v5382 = vpop.f32.mrf.mxu0
      %v5383 = vadd.f32 %v5252, %v5382
      %5384 = vmatmul.bf16.gmra.mxu0 %v4664
      %v5385 = vpop.f32.mrf.mxu0
      %v5386 = vadd.f32 %v5252, %v5385
      %v5387 = vpop.f32.mrf.mxu0
      %v5388 = vadd.f32 %v5252, %v5387
      %5389 = vmatmul.bf16.gmra.mxu0 %v4667
      %v5390 = vpop.f32.mrf.mxu0
      %v5391 = vadd.f32 %v5252, %v5390
      %v5392 = vpop.f32.mrf.mxu0
      %v5393 = vadd.f32 %v5252, %v5392
      %5394 = vmatmul.bf16.gmra.mxu0 %v4670
      %v5395 = vpop.f32.mrf.mxu0
      %v5396 = vadd.f32 %v5252, %v5395
      %v5397 = vpop.f32.mrf.mxu0
      %v5398 = vadd.f32 %v5252, %v5397
      %5399 = vmatmul.bf16.gmra.mxu0 %v4673
      %v5400 = vpop.f32.mrf.mxu0
      %v5401 = vadd.f32 %v5252, %v5400
      %v5402 = vpop.f32.mrf.mxu0
      %v5403 = vadd.f32 %v5252, %v5402
      %5404 = vmatmul.bf16.gmra.mxu0 %v4676
      %v5405 = vpop.f32.mrf.mxu0
      %v5406 = vadd.f32 %v5252, %v5405
      %v5407 = vpop.f32.mrf.mxu0
      %v5408 = vadd.f32 %v5252, %v5407
      %5409 = vmatmul.bf16.gmra.mxu0 %v4679
      %v5410 = vpop.f32.mrf.mxu0
      %v5411 = vadd.f32 %v5252, %v5410
      %v5412 = vpop.f32.mrf.mxu0
      %v5413 = vadd.f32 %v5252, %v5412
      %5414 = vmatmul.bf16.gmra.mxu0 %v4682
      %v5415 = vpop.f32.mrf.mxu0
      %v5416 = vadd.f32 %v5252, %v5415
      %v5417 = vpop.f32.mrf.mxu0
      %v5418 = vadd.f32 %v5252, %v5417
      %5419 = vmatmul.bf16.gmra.mxu0 %v4685
      %v5420 = vpop.f32.mrf.mxu0
      %v5421 = vadd.f32 %v5252, %v5420
      %v5422 = vpop.f32.mrf.mxu0
      %v5423 = vadd.f32 %v5252, %v5422
      %5424 = vmatmul.bf16.gmra.mxu0 %v4688
      %v5425 = vpop.f32.mrf.mxu0
      %v5426 = vadd.f32 %v5252, %v5425
      %v5427 = vpop.f32.mrf.mxu0
      %v5428 = vadd.f32 %v5252, %v5427
      %5429 = vmatmul.bf16.gmra.mxu0 %v4691
      %v5430 = vpop.f32.mrf.mxu0
      %v5431 = vadd.f32 %v5252, %v5430
      %v5432 = vpop.f32.mrf.mxu0
      %v5433 = vadd.f32 %v5252, %v5432
      %5434 = vdwg.mxu0
      %v5435 = vmul.f32 %v5276, %v4865
      %v5436 = vmul.f32 %v5278, %v4870
      %v5437 = vmul.f32 %v5281, %v4875
      %v5438 = vmul.f32 %v5283, %v4880
      %v5439 = vmul.f32 %v5286, %v4885
      %v5440 = vmul.f32 %v5288, %v4890
      %v5441 = vmul.f32 %v5291, %v4895
      %v5442 = vmul.f32 %v5293, %v4900
      %v5443 = vmul.f32 %v5296, %v4905
      %v5444 = vmul.f32 %v5298, %v4910
      %v5445 = vmul.f32 %v5301, %v4915
      %v5446 = vmul.f32 %v5303, %v4920
      %v5447 = vmul.f32 %v5306, %v4925
      %v5448 = vmul.f32 %v5308, %v4930
      %v5449 = vmul.f32 %v5311, %v4935
      %v5450 = vmul.f32 %v5313, %v4940
      %v5451 = vmul.f32 %v5316, %v4945
      %v5452 = vmul.f32 %v5318, %v4950
      %v5453 = vmul.f32 %v5321, %v4955
      %v5454 = vmul.f32 %v5323, %v4960
      %v5455 = vmul.f32 %v5326, %v4965
      %v5456 = vmul.f32 %v5328, %v4970
      %v5457 = vmul.f32 %v5331, %v4975
      %v5458 = vmul.f32 %v5333, %v4980
      %v5459 = vmul.f32 %v5336, %v4985
      %v5460 = vmul.f32 %v5338, %v4990
      %v5461 = vmul.f32 %v5341, %v4995
      %v5462 = vmul.f32 %v5343, %v5000
      %v5463 = vmul.f32 %v5346, %v5005
      %v5464 = vmul.f32 %v5348, %v5010
      %v5465 = vmul.f32 %v5351, %v5015
      %v5466 = vmul.f32 %v5353, %v5020
      %v5467 = vmul.f32 %v5356, %v5025
      %v5468 = vmul.f32 %v5358, %v5030
      %v5469 = vmul.f32 %v5361, %v5035
      %v5470 = vmul.f32 %v5363, %v5040
      %v5471 = vmul.f32 %v5366, %v5045
      %v5472 = vmul.f32 %v5368, %v5050
      %v5473 = vmul.f32 %v5371, %v5055
      %v5474 = vmul.f32 %v5373, %v5060
      %v5475 = vmul.f32 %v5376, %v5065
      %v5476 = vmul.f32 %v5378, %v5070
      %v5477 = vmul.f32 %v5381, %v5075
      %v5478 = vmul.f32 %v5383, %v5080
      %v5479 = vmul.f32 %v5386, %v5085
      %v5480 = vmul.f32 %v5388, %v5090
      %v5481 = vmul.f32 %v5391, %v5095
      %v5482 = vmul.f32 %v5393, %v5100
      %v5483 = vmul.f32 %v5396, %v5105
      %v5484 = vmul.f32 %v5398, %v5110
      %v5485 = vmul.f32 %v5401, %v5115
      %v5486 = vmul.f32 %v5403, %v5120
      %v5487 = vmul.f32 %v5406, %v5125
      %v5488 = vmul.f32 %v5408, %v5130
      %v5489 = vmul.f32 %v5411, %v5135
      %v5490 = vmul.f32 %v5413, %v5140
      %v5491 = vmul.f32 %v5416, %v5145
      %v5492 = vmul.f32 %v5418, %v5150
      %v5493 = vmul.f32 %v5421, %v5155
      %v5494 = vmul.f32 %v5423, %v5160
      %v5495 = vmul.f32 %v5426, %v5165
      %v5496 = vmul.f32 %v5428, %v5170
      %v5497 = vmul.f32 %v5431, %v5175
      %v5498 = vmul.f32 %v5433, %v5180
      %v5499 = vsel %vm4596, %v5435, 1.0
      %v5500 = vsel %vm4596, %v5436, 1.0
      %v5501 = vsel %vm4596, %v5437, 1.0
      %v5502 = vsel %vm4596, %v5438, 1.0
      %v5503 = vsel %vm4596, %v5439, 1.0
      %v5504 = vsel %vm4596, %v5440, 1.0
      %v5505 = vsel %vm4596, %v5441, 1.0
      %v5506 = vsel %vm4596, %v5442, 1.0
      %v5507 = vsel %vm4596, %v5443, 1.0
      %v5508 = vsel %vm4596, %v5444, 1.0
      %v5509 = vsel %vm4596, %v5445, 1.0
      %v5510 = vsel %vm4596, %v5446, 1.0
      %v5511 = vsel %vm4596, %v5447, 1.0
      %v5512 = vsel %vm4596, %v5448, 1.0
      %v5513 = vsel %vm4596, %v5449, 1.0
      %v5514 = vsel %vm4596, %v5450, 1.0
      %v5515 = vsel %vm4596, %v5451, 1.0
      %v5516 = vsel %vm4596, %v5452, 1.0
      %v5517 = vsel %vm4596, %v5453, 1.0
      %v5518 = vsel %vm4596, %v5454, 1.0
      %v5519 = vsel %vm4596, %v5455, 1.0
      %v5520 = vsel %vm4596, %v5456, 1.0
      %v5521 = vsel %vm4596, %v5457, 1.0
      %v5522 = vsel %vm4596, %v5458, 1.0
      %v5523 = vsel %vm4596, %v5459, 1.0
      %v5524 = vsel %vm4596, %v5460, 1.0
      %v5525 = vsel %vm4596, %v5461, 1.0
      %v5526 = vsel %vm4596, %v5462, 1.0
      %v5527 = vsel %vm4596, %v5463, 1.0
      %v5528 = vsel %vm4596, %v5464, 1.0
      %v5529 = vsel %vm4596, %v5465, 1.0
      %v5530 = vsel %vm4596, %v5466, 1.0
      %v5531 = vsel %vm4596, %v5467, 1.0
      %v5532 = vsel %vm4596, %v5468, 1.0
      %v5533 = vsel %vm4596, %v5469, 1.0
      %v5534 = vsel %vm4596, %v5470, 1.0
      %v5535 = vsel %vm4596, %v5471, 1.0
      %v5536 = vsel %vm4596, %v5472, 1.0
      %v5537 = vsel %vm4596, %v5473, 1.0
      %v5538 = vsel %vm4596, %v5474, 1.0
      %v5539 = vsel %vm4596, %v5475, 1.0
      %v5540 = vsel %vm4596, %v5476, 1.0
      %v5541 = vsel %vm4596, %v5477, 1.0
      %v5542 = vsel %vm4596, %v5478, 1.0
      %v5543 = vsel %vm4596, %v5479, 1.0
      %v5544 = vsel %vm4596, %v5480, 1.0
      %v5545 = vsel %vm4596, %v5481, 1.0
      %v5546 = vsel %vm4596, %v5482, 1.0
      %v5547 = vsel %vm4596, %v5483, 1.0
      %v5548 = vsel %vm4596, %v5484, 1.0
      %v5549 = vsel %vm4596, %v5485, 1.0
      %v5550 = vsel %vm4596, %v5486, 1.0
      %v5551 = vsel %vm4596, %v5487, 1.0
      %v5552 = vsel %vm4596, %v5488, 1.0
      %v5553 = vsel %vm4596, %v5489, 1.0
      %v5554 = vsel %vm4596, %v5490, 1.0
      %v5555 = vsel %vm4596, %v5491, 1.0
      %v5556 = vsel %vm4596, %v5492, 1.0
      %v5557 = vsel %vm4596, %v5493, 1.0
      %v5558 = vsel %vm4596, %v5494, 1.0
      %v5559 = vsel %vm4596, %v5495, 1.0
      %v5560 = vsel %vm4596, %v5496, 1.0
      %v5561 = vsel %vm4596, %v5497, 1.0
      %v5562 = vsel %vm4596, %v5498, 1.0
      %v5563 = vld [vmem:[#allocation2] sm:$0xf]
      %v5564 = vld [vmem:[#allocation2 + $0x4] sm:$0xf]
      %v5565 = vld [vmem:[#allocation2 + $0x8] sm:$0xf]
      %v5566 = vld [vmem:[#allocation2 + $0xc] sm:$0xf]
      %v5567 = vld [vmem:[#allocation2 + $0x10] sm:$0xf]
      %v5568 = vld [vmem:[#allocation2 + $0x14] sm:$0xf]
      %v5569 = vld [vmem:[#allocation2 + $0x18] sm:$0xf]
      %v5570 = vld [vmem:[#allocation2 + $0x1c] sm:$0xf]
      %v5571 = vld [vmem:[#allocation2 + $0x20] sm:$0xf]
      %v5572 = vld [vmem:[#allocation2 + $0x24] sm:$0xf]
      %v5573 = vld [vmem:[#allocation2 + $0x28] sm:$0xf]
      %v5574 = vld [vmem:[#allocation2 + $0x2c] sm:$0xf]
      %v5575 = vld [vmem:[#allocation2 + $0x30] sm:$0xf]
      %v5576 = vld [vmem:[#allocation2 + $0x34] sm:$0xf]
      %v5577 = vld [vmem:[#allocation2 + $0x38] sm:$0xf]
      %v5578 = vld [vmem:[#allocation2 + $0x3c] sm:$0xf]
      %v5579 = vld [vmem:[#allocation2 + $0x40] sm:$0xf]
      %v5580 = vld [vmem:[#allocation2 + $0x44] sm:$0xf]
      %v5581 = vld [vmem:[#allocation2 + $0x48] sm:$0xf]
      %v5582 = vld [vmem:[#allocation2 + $0x4c] sm:$0xf]
      %v5583 = vld [vmem:[#allocation2 + $0x50] sm:$0xf]
      %v5584 = vld [vmem:[#allocation2 + $0x54] sm:$0xf]
      %v5585 = vld [vmem:[#allocation2 + $0x58] sm:$0xf]
      %v5586 = vld [vmem:[#allocation2 + $0x5c] sm:$0xf]
      %v5587 = vld [vmem:[#allocation2 + $0x60] sm:$0xf]
      %v5588 = vld [vmem:[#allocation2 + $0x64] sm:$0xf]
      %v5589 = vld [vmem:[#allocation2 + $0x68] sm:$0xf]
      %v5590 = vld [vmem:[#allocation2 + $0x6c] sm:$0xf]
      %v5591 = vld [vmem:[#allocation2 + $0x70] sm:$0xf]
      %v5592 = vld [vmem:[#allocation2 + $0x74] sm:$0xf]
      %v5593 = vld [vmem:[#allocation2 + $0x78] sm:$0xf]
      %v5594 = vld [vmem:[#allocation2 + $0x7c] sm:$0xf]
      %v5595 = vld [vmem:[#allocation2 + $0x80] sm:$0xf]
      %v5596 = vld [vmem:[#allocation2 + $0x84] sm:$0xf]
      %v5597 = vld [vmem:[#allocation2 + $0x88] sm:$0xf]
      %v5598 = vld [vmem:[#allocation2 + $0x8c] sm:$0xf]
      %v5599 = vld [vmem:[#allocation2 + $0x90] sm:$0xf]
      %v5600 = vld [vmem:[#allocation2 + $0x94] sm:$0xf]
      %v5601 = vld [vmem:[#allocation2 + $0x98] sm:$0xf]
      %v5602 = vld [vmem:[#allocation2 + $0x9c] sm:$0xf]
      %v5603 = vld [vmem:[#allocation2 + $0xa0] sm:$0xf]
      %v5604 = vld [vmem:[#allocation2 + $0xa4] sm:$0xf]
      %v5605 = vld [vmem:[#allocation2 + $0xa8] sm:$0xf]
      %v5606 = vld [vmem:[#allocation2 + $0xac] sm:$0xf]
      %v5607 = vld [vmem:[#allocation2 + $0xb0] sm:$0xf]
      %v5608 = vld [vmem:[#allocation2 + $0xb4] sm:$0xf]
      %v5609 = vld [vmem:[#allocation2 + $0xb8] sm:$0xf]
      %v5610 = vld [vmem:[#allocation2 + $0xbc] sm:$0xf]
      %v5611 = vld [vmem:[#allocation2 + $0xc0] sm:$0xf]
      %v5612 = vld [vmem:[#allocation2 + $0xc4] sm:$0xf]
      %v5613 = vld [vmem:[#allocation2 + $0xc8] sm:$0xf]
      %v5614 = vld [vmem:[#allocation2 + $0xcc] sm:$0xf]
      %v5615 = vld [vmem:[#allocation2 + $0xd0] sm:$0xf]
      %v5616 = vld [vmem:[#allocation2 + $0xd4] sm:$0xf]
      %v5617 = vld [vmem:[#allocation2 + $0xd8] sm:$0xf]
      %v5618 = vld [vmem:[#allocation2 + $0xdc] sm:$0xf]
      %v5619 = vld [vmem:[#allocation2 + $0xe0] sm:$0xf]
      %v5620 = vld [vmem:[#allocation2 + $0xe4] sm:$0xf]
      %v5621 = vld [vmem:[#allocation2 + $0xe8] sm:$0xf]
      %v5622 = vld [vmem:[#allocation2 + $0xec] sm:$0xf]
      %v5623 = vld [vmem:[#allocation2 + $0xf0] sm:$0xf]
      %v5624 = vld [vmem:[#allocation2 + $0xf4] sm:$0xf]
      %v5625 = vld [vmem:[#allocation2 + $0xf8] sm:$0xf]
      %v5626 = vld [vmem:[#allocation2 + $0xfc] sm:$0xf]
      %v5627 = vpack.c.bf16 %v5183, %v5182
      %v5628 = vpack.c.bf16 %v5185, %v5184
      %v5629 = vpack.c.bf16 %v5187, %v5186
      %v5630 = vpack.c.bf16 %v5189, %v5188
      %v5631 = vpack.c.bf16 %v5191, %v5190
      %v5632 = vpack.c.bf16 %v5193, %v5192
      %v5633 = vpack.c.bf16 %v5195, %v5194
      %v5634 = vpack.c.bf16 %v5197, %v5196
      %v5635 = vpack.c.bf16 %v5199, %v5198
      %v5636 = vpack.c.bf16 %v5201, %v5200
      %v5637 = vpack.c.bf16 %v5203, %v5202
      %v5638 = vpack.c.bf16 %v5205, %v5204
      %v5639 = vpack.c.bf16 %v5207, %v5206
      %v5640 = vpack.c.bf16 %v5209, %v5208
      %v5641 = vpack.c.bf16 %v5211, %v5210
      %v5642 = vpack.c.bf16 %v5213, %v5212
      %v5643 = vpack.c.bf16 %v5215, %v5214
      %v5644 = vpack.c.bf16 %v5217, %v5216
      %v5645 = vpack.c.bf16 %v5219, %v5218
      %v5646 = vpack.c.bf16 %v5221, %v5220
      %v5647 = vpack.c.bf16 %v5223, %v5222
      %v5648 = vpack.c.bf16 %v5225, %v5224
      %v5649 = vpack.c.bf16 %v5227, %v5226
      %v5650 = vpack.c.bf16 %v5229, %v5228
      %v5651 = vpack.c.bf16 %v5231, %v5230
      %v5652 = vpack.c.bf16 %v5233, %v5232
      %v5653 = vpack.c.bf16 %v5235, %v5234
      %v5654 = vpack.c.bf16 %v5237, %v5236
      %v5655 = vpack.c.bf16 %v5239, %v5238
      %v5656 = vpack.c.bf16 %v5241, %v5240
      %v5657 = vpack.c.bf16 %v5243, %v5242
      %v5658 = vpack.c.bf16 %v5245, %v5244
      %v5723 = vunpack.c.l.b16 %v5563
      %v5724 = vunpack.c.l.b16 %v5564
      %v5725 = vunpack.c.l.b16 %v5565
      %v5726 = vunpack.c.l.b16 %v5566
      %v5727 = vunpack.c.l.b16 %v5567
      %v5728 = vunpack.c.l.b16 %v5568
      %v5729 = vunpack.c.l.b16 %v5569
      %v5730 = vunpack.c.l.b16 %v5570
      %v5731 = vunpack.c.l.b16 %v5571
      %v5732 = vunpack.c.l.b16 %v5572
      %v5733 = vunpack.c.l.b16 %v5573
      %v5734 = vunpack.c.l.b16 %v5574
      %v5735 = vunpack.c.l.b16 %v5575
      %v5736 = vunpack.c.l.b16 %v5576
      %v5737 = vunpack.c.l.b16 %v5577
      %v5738 = vunpack.c.l.b16 %v5578
      %v5739 = vunpack.c.l.b16 %v5579
      %v5740 = vunpack.c.l.b16 %v5580
      %v5741 = vunpack.c.l.b16 %v5581
      %v5742 = vunpack.c.l.b16 %v5582
      %v5743 = vunpack.c.l.b16 %v5583
      %v5744 = vunpack.c.l.b16 %v5584
      %v5745 = vunpack.c.l.b16 %v5585
      %v5746 = vunpack.c.l.b16 %v5586
      %v5747 = vunpack.c.l.b16 %v5587
      %v5748 = vunpack.c.l.b16 %v5588
      %v5749 = vunpack.c.l.b16 %v5589
      %v5750 = vunpack.c.l.b16 %v5590
      %v5751 = vunpack.c.l.b16 %v5591
      %v5752 = vunpack.c.l.b16 %v5592
      %v5753 = vunpack.c.l.b16 %v5593
      %v5754 = vunpack.c.l.b16 %v5594
      %v5755 = vunpack.c.l.b16 %v5595
      %v5756 = vunpack.c.l.b16 %v5596
      %v5757 = vunpack.c.l.b16 %v5597
      %v5758 = vunpack.c.l.b16 %v5598
      %v5759 = vunpack.c.l.b16 %v5599
      %v5760 = vunpack.c.l.b16 %v5600
      %v5761 = vunpack.c.l.b16 %v5601
      %v5762 = vunpack.c.l.b16 %v5602
      %v5763 = vunpack.c.l.b16 %v5603
      %v5764 = vunpack.c.l.b16 %v5604
      %v5765 = vunpack.c.l.b16 %v5605
      %v5766 = vunpack.c.l.b16 %v5606
      %v5767 = vunpack.c.l.b16 %v5607
      %v5768 = vunpack.c.l.b16 %v5608
      %v5769 = vunpack.c.l.b16 %v5609
      %v5770 = vunpack.c.l.b16 %v5610
      %v5771 = vunpack.c.l.b16 %v5611
      %v5772 = vunpack.c.l.b16 %v5612
      %v5773 = vunpack.c.l.b16 %v5613
      %v5774 = vunpack.c.l.b16 %v5614
      %v5775 = vunpack.c.l.b16 %v5615
      %v5776 = vunpack.c.l.b16 %v5616
      %v5777 = vunpack.c.l.b16 %v5617
      %v5778 = vunpack.c.l.b16 %v5618
      %v5779 = vunpack.c.l.b16 %v5619
      %v5780 = vunpack.c.l.b16 %v5620
      %v5781 = vunpack.c.l.b16 %v5621
      %v5782 = vunpack.c.l.b16 %v5622
      %v5783 = vunpack.c.l.b16 %v5623
      %v5784 = vunpack.c.l.b16 %v5624
      %v5785 = vunpack.c.l.b16 %v5625
      %v5786 = vunpack.c.l.b16 %v5626
      %v5787 = vpack.c.b16 %v5724, %v5723
      %v5788 = vpack.c.b16 %v5726, %v5725
      %v5789 = vpack.c.b16 %v5728, %v5727
      %v5790 = vpack.c.b16 %v5730, %v5729
      %v5791 = vpack.c.b16 %v5732, %v5731
      %v5792 = vpack.c.b16 %v5734, %v5733
      %v5793 = vpack.c.b16 %v5736, %v5735
      %v5794 = vpack.c.b16 %v5738, %v5737
      %v5795 = vpack.c.b16 %v5740, %v5739
      %v5796 = vpack.c.b16 %v5742, %v5741
      %v5797 = vpack.c.b16 %v5744, %v5743
      %v5798 = vpack.c.b16 %v5746, %v5745
      %v5799 = vpack.c.b16 %v5748, %v5747
      %v5800 = vpack.c.b16 %v5750, %v5749
      %v5801 = vpack.c.b16 %v5752, %v5751
      %v5802 = vpack.c.b16 %v5754, %v5753
      %v5803 = vpack.c.b16 %v5756, %v5755
      %v5804 = vpack.c.b16 %v5758, %v5757
      %v5805 = vpack.c.b16 %v5760, %v5759
      %v5806 = vpack.c.b16 %v5762, %v5761
      %v5807 = vpack.c.b16 %v5764, %v5763
      %v5808 = vpack.c.b16 %v5766, %v5765
      %v5809 = vpack.c.b16 %v5768, %v5767
      %v5810 = vpack.c.b16 %v5770, %v5769
      %v5811 = vpack.c.b16 %v5772, %v5771
      %v5812 = vpack.c.b16 %v5774, %v5773
      %v5813 = vpack.c.b16 %v5776, %v5775
      %v5814 = vpack.c.b16 %v5778, %v5777
      %v5815 = vpack.c.b16 %v5780, %v5779
      %v5816 = vpack.c.b16 %v5782, %v5781
      %v5817 = vpack.c.b16 %v5784, %v5783
      %v5818 = vpack.c.b16 %v5786, %v5785
      %vm5819 = vcmask 31744
      %v5821 = vsel %vm5819, %v5787, 0
      %v5824 = vsel %vm5819, %v5788, 0
      %v5827 = vsel %vm5819, %v5789, 0
      %v5830 = vsel %vm5819, %v5790, 0
      %v5833 = vsel %vm5819, %v5791, 0
      %v5836 = vsel %vm5819, %v5792, 0
      %v5839 = vsel %vm5819, %v5793, 0
      %v5842 = vsel %vm5819, %v5794, 0
      %v5845 = vsel %vm5819, %v5795, 0
      %v5848 = vsel %vm5819, %v5796, 0
      %v5851 = vsel %vm5819, %v5797, 0
      %v5854 = vsel %vm5819, %v5798, 0
      %v5857 = vsel %vm5819, %v5799, 0
      %v5860 = vsel %vm5819, %v5800, 0
      %v5863 = vsel %vm5819, %v5801, 0
      %v5866 = vsel %vm5819, %v5802, 0
      %v5869 = vsel %vm5819, %v5803, 0
      %v5872 = vsel %vm5819, %v5804, 0
      %v5875 = vsel %vm5819, %v5805, 0
      %v5878 = vsel %vm5819, %v5806, 0
      %v5881 = vsel %vm5819, %v5807, 0
      %v5884 = vsel %vm5819, %v5808, 0
      %v5887 = vsel %vm5819, %v5809, 0
      %v5890 = vsel %vm5819, %v5810, 0
      %v5893 = vsel %vm5819, %v5811, 0
      %v5896 = vsel %vm5819, %v5812, 0
      %v5899 = vsel %vm5819, %v5813, 0
      %v5902 = vsel %vm5819, %v5814, 0
      %v5905 = vsel %vm5819, %v5815, 0
      %v5908 = vsel %vm5819, %v5816, 0
      %v5911 = vsel %vm5819, %v5817, 0
      %v5914 = vsel %vm5819, %v5818, 0
      %v5917 = vsel %vm5819, %v5627, 0
      %v5920 = vsel %vm5819, %v5628, 0
      %v5923 = vsel %vm5819, %v5629, 0
      %v5926 = vsel %vm5819, %v5630, 0
      %v5929 = vsel %vm5819, %v5631, 0
      %v5932 = vsel %vm5819, %v5632, 0
      %v5935 = vsel %vm5819, %v5633, 0
      %v5938 = vsel %vm5819, %v5634, 0
      %v5941 = vsel %vm5819, %v5635, 0
      %v5944 = vsel %vm5819, %v5636, 0
      %v5947 = vsel %vm5819, %v5637, 0
      %v5950 = vsel %vm5819, %v5638, 0
      %v5953 = vsel %vm5819, %v5639, 0
      %v5956 = vsel %vm5819, %v5640, 0
      %v5959 = vsel %vm5819, %v5641, 0
      %v5962 = vsel %vm5819, %v5642, 0
      %v5965 = vsel %vm5819, %v5643, 0
      %v5968 = vsel %vm5819, %v5644, 0
      %v5971 = vsel %vm5819, %v5645, 0
      %v5974 = vsel %vm5819, %v5646, 0
      %v5977 = vsel %vm5819, %v5647, 0
      %v5980 = vsel %vm5819, %v5648, 0
      %v5983 = vsel %vm5819, %v5649, 0
      %v5986 = vsel %vm5819, %v5650, 0
      %v5989 = vsel %vm5819, %v5651, 0
      %v5992 = vsel %vm5819, %v5652, 0
      %v5995 = vsel %vm5819, %v5653, 0
      %v5998 = vsel %vm5819, %v5654, 0
      %v6001 = vsel %vm5819, %v5655, 0
      %v6004 = vsel %vm5819, %v5656, 0
      %v6007 = vsel %vm5819, %v5657, 0
      %v6010 = vsel %vm5819, %v5658, 0
      %6012 = vmatpush.bf16.xpose.msra.mxu0 %v5938
      %6013 = vmatpush.bf16.xpose.msra.mxu0 %v5935
      %6014 = vmatpush.bf16.xpose.msra.mxu0 %v5932
      %6015 = vmatpush.bf16.xpose.msra.mxu0 %v5929
      %6016 = vmatpush.bf16.xpose.msra.mxu0 %v5926
      %6017 = vmatpush.bf16.xpose.msra.mxu0 %v5923
      %6018 = vmatpush.bf16.xpose.msra.mxu0 %v5920
      %6019 = vmatpush.bf16.xpose.msra.mxu0 %v5917
      %6020 = vmatmul.bf16.gmra.mxu0 %v5821
      %v6021 = vpop.f32.mrf.mxu0
      %v6022 = vadd.f32 0.0, %v6021
      %v6023 = vpop.f32.mrf.mxu0
      %v6024 = vadd.f32 0.0, %v6023
      %6025 = vmatmul.bf16.gmra.mxu0 %v5824
      %v6026 = vpop.f32.mrf.mxu0
      %v6027 = vadd.f32 0.0, %v6026
      %v6028 = vpop.f32.mrf.mxu0
      %v6029 = vadd.f32 0.0, %v6028
      %6030 = vmatmul.bf16.gmra.mxu0 %v5827
      %v6031 = vpop.f32.mrf.mxu0
      %v6032 = vadd.f32 0.0, %v6031
      %v6033 = vpop.f32.mrf.mxu0
      %v6034 = vadd.f32 0.0, %v6033
      %6035 = vmatmul.bf16.gmra.mxu0 %v5830
      %v6036 = vpop.f32.mrf.mxu0
      %v6037 = vadd.f32 0.0, %v6036
      %v6038 = vpop.f32.mrf.mxu0
      %v6039 = vadd.f32 0.0, %v6038
      %6040 = vmatmul.bf16.gmra.mxu0 %v5833
      %v6041 = vpop.f32.mrf.mxu0
      %v6042 = vadd.f32 0.0, %v6041
      %v6043 = vpop.f32.mrf.mxu0
      %v6044 = vadd.f32 0.0, %v6043
      %6045 = vmatmul.bf16.gmra.mxu0 %v5836
      %v6046 = vpop.f32.mrf.mxu0
      %v6047 = vadd.f32 0.0, %v6046
      %v6048 = vpop.f32.mrf.mxu0
      %v6049 = vadd.f32 0.0, %v6048
      %6050 = vmatmul.bf16.gmra.mxu0 %v5839
      %v6051 = vpop.f32.mrf.mxu0
      %v6052 = vadd.f32 0.0, %v6051
      %v6053 = vpop.f32.mrf.mxu0
      %v6054 = vadd.f32 0.0, %v6053
      %6055 = vmatmul.bf16.gmra.mxu0 %v5842
      %v6056 = vpop.f32.mrf.mxu0
      %v6057 = vadd.f32 0.0, %v6056
      %v6058 = vpop.f32.mrf.mxu0
      %v6059 = vadd.f32 0.0, %v6058
      %6060 = vmatmul.bf16.gmra.mxu0 %v5845
      %v6061 = vpop.f32.mrf.mxu0
      %v6062 = vadd.f32 0.0, %v6061
      %v6063 = vpop.f32.mrf.mxu0
      %v6064 = vadd.f32 0.0, %v6063
      %6065 = vmatmul.bf16.gmra.mxu0 %v5848
      %v6066 = vpop.f32.mrf.mxu0
      %v6067 = vadd.f32 0.0, %v6066
      %v6068 = vpop.f32.mrf.mxu0
      %v6069 = vadd.f32 0.0, %v6068
      %6070 = vmatmul.bf16.gmra.mxu0 %v5851
      %v6071 = vpop.f32.mrf.mxu0
      %v6072 = vadd.f32 0.0, %v6071
      %v6073 = vpop.f32.mrf.mxu0
      %v6074 = vadd.f32 0.0, %v6073
      %6075 = vmatmul.bf16.gmra.mxu0 %v5854
      %v6076 = vpop.f32.mrf.mxu0
      %v6077 = vadd.f32 0.0, %v6076
      %v6078 = vpop.f32.mrf.mxu0
      %v6079 = vadd.f32 0.0, %v6078
      %6080 = vmatmul.bf16.gmra.mxu0 %v5857
      %v6081 = vpop.f32.mrf.mxu0
      %v6082 = vadd.f32 0.0, %v6081
      %v6083 = vpop.f32.mrf.mxu0
      %v6084 = vadd.f32 0.0, %v6083
      %6085 = vmatmul.bf16.gmra.mxu0 %v5860
      %v6086 = vpop.f32.mrf.mxu0
      %v6087 = vadd.f32 0.0, %v6086
      %v6088 = vpop.f32.mrf.mxu0
      %v6089 = vadd.f32 0.0, %v6088
      %6090 = vmatmul.bf16.gmra.mxu0 %v5863
      %v6091 = vpop.f32.mrf.mxu0
      %v6092 = vadd.f32 0.0, %v6091
      %v6093 = vpop.f32.mrf.mxu0
      %v6094 = vadd.f32 0.0, %v6093
      %6095 = vmatmul.bf16.gmra.mxu0 %v5866
      %v6096 = vpop.f32.mrf.mxu0
      %v6097 = vadd.f32 0.0, %v6096
      %v6098 = vpop.f32.mrf.mxu0
      %v6099 = vadd.f32 0.0, %v6098
      %6100 = vmatmul.bf16.gmra.mxu0 %v5869
      %v6101 = vpop.f32.mrf.mxu0
      %v6102 = vadd.f32 0.0, %v6101
      %v6103 = vpop.f32.mrf.mxu0
      %v6104 = vadd.f32 0.0, %v6103
      %6105 = vmatmul.bf16.gmra.mxu0 %v5872
      %v6106 = vpop.f32.mrf.mxu0
      %v6107 = vadd.f32 0.0, %v6106
      %v6108 = vpop.f32.mrf.mxu0
      %v6109 = vadd.f32 0.0, %v6108
      %6110 = vmatmul.bf16.gmra.mxu0 %v5875
      %v6111 = vpop.f32.mrf.mxu0
      %v6112 = vadd.f32 0.0, %v6111
      %v6113 = vpop.f32.mrf.mxu0
      %v6114 = vadd.f32 0.0, %v6113
      %6115 = vmatmul.bf16.gmra.mxu0 %v5878
      %v6116 = vpop.f32.mrf.mxu0
      %v6117 = vadd.f32 0.0, %v6116
      %v6118 = vpop.f32.mrf.mxu0
      %v6119 = vadd.f32 0.0, %v6118
      %6120 = vmatmul.bf16.gmra.mxu0 %v5881
      %v6121 = vpop.f32.mrf.mxu0
      %v6122 = vadd.f32 0.0, %v6121
      %v6123 = vpop.f32.mrf.mxu0
      %v6124 = vadd.f32 0.0, %v6123
      %6125 = vmatmul.bf16.gmra.mxu0 %v5884
      %v6126 = vpop.f32.mrf.mxu0
      %v6127 = vadd.f32 0.0, %v6126
      %v6128 = vpop.f32.mrf.mxu0
      %v6129 = vadd.f32 0.0, %v6128
      %6130 = vmatmul.bf16.gmra.mxu0 %v5887
      %v6131 = vpop.f32.mrf.mxu0
      %v6132 = vadd.f32 0.0, %v6131
      %v6133 = vpop.f32.mrf.mxu0
      %v6134 = vadd.f32 0.0, %v6133
      %6135 = vmatmul.bf16.gmra.mxu0 %v5890
      %v6136 = vpop.f32.mrf.mxu0
      %v6137 = vadd.f32 0.0, %v6136
      %v6138 = vpop.f32.mrf.mxu0
      %v6139 = vadd.f32 0.0, %v6138
      %6140 = vmatmul.bf16.gmra.mxu0 %v5893
      %v6141 = vpop.f32.mrf.mxu0
      %v6142 = vadd.f32 0.0, %v6141
      %v6143 = vpop.f32.mrf.mxu0
      %v6144 = vadd.f32 0.0, %v6143
      %6145 = vmatmul.bf16.gmra.mxu0 %v5896
      %v6146 = vpop.f32.mrf.mxu0
      %v6147 = vadd.f32 0.0, %v6146
      %v6148 = vpop.f32.mrf.mxu0
      %v6149 = vadd.f32 0.0, %v6148
      %6150 = vmatmul.bf16.gmra.mxu0 %v5899
      %v6151 = vpop.f32.mrf.mxu0
      %v6152 = vadd.f32 0.0, %v6151
      %v6153 = vpop.f32.mrf.mxu0
      %v6154 = vadd.f32 0.0, %v6153
      %6155 = vmatmul.bf16.gmra.mxu0 %v5902
      %v6156 = vpop.f32.mrf.mxu0
      %v6157 = vadd.f32 0.0, %v6156
      %v6158 = vpop.f32.mrf.mxu0
      %v6159 = vadd.f32 0.0, %v6158
      %6160 = vmatmul.bf16.gmra.mxu0 %v5905
      %v6161 = vpop.f32.mrf.mxu0
      %v6162 = vadd.f32 0.0, %v6161
      %v6163 = vpop.f32.mrf.mxu0
      %v6164 = vadd.f32 0.0, %v6163
      %6165 = vmatmul.bf16.gmra.mxu0 %v5908
      %v6166 = vpop.f32.mrf.mxu0
      %v6167 = vadd.f32 0.0, %v6166
      %v6168 = vpop.f32.mrf.mxu0
      %v6169 = vadd.f32 0.0, %v6168
      %6170 = vmatmul.bf16.gmra.mxu0 %v5911
      %v6171 = vpop.f32.mrf.mxu0
      %v6172 = vadd.f32 0.0, %v6171
      %v6173 = vpop.f32.mrf.mxu0
      %v6174 = vadd.f32 0.0, %v6173
      %6175 = vmatmul.bf16.gmra.mxu0 %v5914
      %v6176 = vpop.f32.mrf.mxu0
      %v6177 = vadd.f32 0.0, %v6176
      %v6178 = vpop.f32.mrf.mxu0
      %v6179 = vadd.f32 0.0, %v6178
      %6180 = vdwg.mxu0
      %6181 = vmatpush.bf16.xpose.msra.mxu0 %v5962
      %6182 = vmatpush.bf16.xpose.msra.mxu0 %v5959
      %6183 = vmatpush.bf16.xpose.msra.mxu0 %v5956
      %6184 = vmatpush.bf16.xpose.msra.mxu0 %v5953
      %6185 = vmatpush.bf16.xpose.msra.mxu0 %v5950
      %6186 = vmatpush.bf16.xpose.msra.mxu0 %v5947
      %6187 = vmatpush.bf16.xpose.msra.mxu0 %v5944
      %6188 = vmatpush.bf16.xpose.msra.mxu0 %v5941
      %6189 = vmatmul.bf16.gmra.mxu0 %v5821
      %v6190 = vpop.f32.mrf.mxu0
      %v6191 = vadd.f32 0.0, %v6190
      %v6192 = vpop.f32.mrf.mxu0
      %v6193 = vadd.f32 0.0, %v6192
      %6194 = vmatmul.bf16.gmra.mxu0 %v5824
      %v6195 = vpop.f32.mrf.mxu0
      %v6196 = vadd.f32 0.0, %v6195
      %v6197 = vpop.f32.mrf.mxu0
      %v6198 = vadd.f32 0.0, %v6197
      %6199 = vmatmul.bf16.gmra.mxu0 %v5827
      %v6200 = vpop.f32.mrf.mxu0
      %v6201 = vadd.f32 0.0, %v6200
      %v6202 = vpop.f32.mrf.mxu0
      %v6203 = vadd.f32 0.0, %v6202
      %6204 = vmatmul.bf16.gmra.mxu0 %v5830
      %v6205 = vpop.f32.mrf.mxu0
      %v6206 = vadd.f32 0.0, %v6205
      %v6207 = vpop.f32.mrf.mxu0
      %v6208 = vadd.f32 0.0, %v6207
      %6209 = vmatmul.bf16.gmra.mxu0 %v5833
      %v6210 = vpop.f32.mrf.mxu0
      %v6211 = vadd.f32 0.0, %v6210
      %v6212 = vpop.f32.mrf.mxu0
      %v6213 = vadd.f32 0.0, %v6212
      %6214 = vmatmul.bf16.gmra.mxu0 %v5836
      %v6215 = vpop.f32.mrf.mxu0
      %v6216 = vadd.f32 0.0, %v6215
      %v6217 = vpop.f32.mrf.mxu0
      %v6218 = vadd.f32 0.0, %v6217
      %6219 = vmatmul.bf16.gmra.mxu0 %v5839
      %v6220 = vpop.f32.mrf.mxu0
      %v6221 = vadd.f32 0.0, %v6220
      %v6222 = vpop.f32.mrf.mxu0
      %v6223 = vadd.f32 0.0, %v6222
      %6224 = vmatmul.bf16.gmra.mxu0 %v5842
      %v6225 = vpop.f32.mrf.mxu0
      %v6226 = vadd.f32 0.0, %v6225
      %v6227 = vpop.f32.mrf.mxu0
      %v6228 = vadd.f32 0.0, %v6227
      %6229 = vmatmul.bf16.gmra.mxu0 %v5845
      %v6230 = vpop.f32.mrf.mxu0
      %v6231 = vadd.f32 0.0, %v6230
      %v6232 = vpop.f32.mrf.mxu0
      %v6233 = vadd.f32 0.0, %v6232
      %6234 = vmatmul.bf16.gmra.mxu0 %v5848
      %v6235 = vpop.f32.mrf.mxu0
      %v6236 = vadd.f32 0.0, %v6235
      %v6237 = vpop.f32.mrf.mxu0
      %v6238 = vadd.f32 0.0, %v6237
      %6239 = vmatmul.bf16.gmra.mxu0 %v5851
      %v6240 = vpop.f32.mrf.mxu0
      %v6241 = vadd.f32 0.0, %v6240
      %v6242 = vpop.f32.mrf.mxu0
      %v6243 = vadd.f32 0.0, %v6242
      %6244 = vmatmul.bf16.gmra.mxu0 %v5854
      %v6245 = vpop.f32.mrf.mxu0
      %v6246 = vadd.f32 0.0, %v6245
      %v6247 = vpop.f32.mrf.mxu0
      %v6248 = vadd.f32 0.0, %v6247
      %6249 = vmatmul.bf16.gmra.mxu0 %v5857
      %v6250 = vpop.f32.mrf.mxu0
      %v6251 = vadd.f32 0.0, %v6250
      %v6252 = vpop.f32.mrf.mxu0
      %v6253 = vadd.f32 0.0, %v6252
      %6254 = vmatmul.bf16.gmra.mxu0 %v5860
      %v6255 = vpop.f32.mrf.mxu0
      %v6256 = vadd.f32 0.0, %v6255
      %v6257 = vpop.f32.mrf.mxu0
      %v6258 = vadd.f32 0.0, %v6257
      %6259 = vmatmul.bf16.gmra.mxu0 %v5863
      %v6260 = vpop.f32.mrf.mxu0
      %v6261 = vadd.f32 0.0, %v6260
      %v6262 = vpop.f32.mrf.mxu0
      %v6263 = vadd.f32 0.0, %v6262
      %6264 = vmatmul.bf16.gmra.mxu0 %v5866
      %v6265 = vpop.f32.mrf.mxu0
      %v6266 = vadd.f32 0.0, %v6265
      %v6267 = vpop.f32.mrf.mxu0
      %v6268 = vadd.f32 0.0, %v6267
      %6269 = vmatmul.bf16.gmra.mxu0 %v5869
      %v6270 = vpop.f32.mrf.mxu0
      %v6271 = vadd.f32 0.0, %v6270
      %v6272 = vpop.f32.mrf.mxu0
      %v6273 = vadd.f32 0.0, %v6272
      %6274 = vmatmul.bf16.gmra.mxu0 %v5872
      %v6275 = vpop.f32.mrf.mxu0
      %v6276 = vadd.f32 0.0, %v6275
      %v6277 = vpop.f32.mrf.mxu0
      %v6278 = vadd.f32 0.0, %v6277
      %6279 = vmatmul.bf16.gmra.mxu0 %v5875
      %v6280 = vpop.f32.mrf.mxu0
      %v6281 = vadd.f32 0.0, %v6280
      %v6282 = vpop.f32.mrf.mxu0
      %v6283 = vadd.f32 0.0, %v6282
      %6284 = vmatmul.bf16.gmra.mxu0 %v5878
      %v6285 = vpop.f32.mrf.mxu0
      %v6286 = vadd.f32 0.0, %v6285
      %v6287 = vpop.f32.mrf.mxu0
      %v6288 = vadd.f32 0.0, %v6287
      %6289 = vmatmul.bf16.gmra.mxu0 %v5881
      %v6290 = vpop.f32.mrf.mxu0
      %v6291 = vadd.f32 0.0, %v6290
      %v6292 = vpop.f32.mrf.mxu0
      %v6293 = vadd.f32 0.0, %v6292
      %6294 = vmatmul.bf16.gmra.mxu0 %v5884
      %v6295 = vpop.f32.mrf.mxu0
      %v6296 = vadd.f32 0.0, %v6295
      %v6297 = vpop.f32.mrf.mxu0
      %v6298 = vadd.f32 0.0, %v6297
      %6299 = vmatmul.bf16.gmra.mxu0 %v5887
      %v6300 = vpop.f32.mrf.mxu0
      %v6301 = vadd.f32 0.0, %v6300
      %v6302 = vpop.f32.mrf.mxu0
      %v6303 = vadd.f32 0.0, %v6302
      %6304 = vmatmul.bf16.gmra.mxu0 %v5890
      %v6305 = vpop.f32.mrf.mxu0
      %v6306 = vadd.f32 0.0, %v6305
      %v6307 = vpop.f32.mrf.mxu0
      %v6308 = vadd.f32 0.0, %v6307
      %6309 = vmatmul.bf16.gmra.mxu0 %v5893
      %v6310 = vpop.f32.mrf.mxu0
      %v6311 = vadd.f32 0.0, %v6310
      %v6312 = vpop.f32.mrf.mxu0
      %v6313 = vadd.f32 0.0, %v6312
      %6314 = vmatmul.bf16.gmra.mxu0 %v5896
      %v6315 = vpop.f32.mrf.mxu0
      %v6316 = vadd.f32 0.0, %v6315
      %v6317 = vpop.f32.mrf.mxu0
      %v6318 = vadd.f32 0.0, %v6317
      %6319 = vmatmul.bf16.gmra.mxu0 %v5899
      %v6320 = vpop.f32.mrf.mxu0
      %v6321 = vadd.f32 0.0, %v6320
      %v6322 = vpop.f32.mrf.mxu0
      %v6323 = vadd.f32 0.0, %v6322
      %6324 = vmatmul.bf16.gmra.mxu0 %v5902
      %v6325 = vpop.f32.mrf.mxu0
      %v6326 = vadd.f32 0.0, %v6325
      %v6327 = vpop.f32.mrf.mxu0
      %v6328 = vadd.f32 0.0, %v6327
      %6329 = vmatmul.bf16.gmra.mxu0 %v5905
      %v6330 = vpop.f32.mrf.mxu0
      %v6331 = vadd.f32 0.0, %v6330
      %v6332 = vpop.f32.mrf.mxu0
      %v6333 = vadd.f32 0.0, %v6332
      %6334 = vmatmul.bf16.gmra.mxu0 %v5908
      %v6335 = vpop.f32.mrf.mxu0
      %v6336 = vadd.f32 0.0, %v6335
      %v6337 = vpop.f32.mrf.mxu0
      %v6338 = vadd.f32 0.0, %v6337
      %6339 = vmatmul.bf16.gmra.mxu0 %v5911
      %v6340 = vpop.f32.mrf.mxu0
      %v6341 = vadd.f32 0.0, %v6340
      %v6342 = vpop.f32.mrf.mxu0
      %v6343 = vadd.f32 0.0, %v6342
      %6344 = vmatmul.bf16.gmra.mxu0 %v5914
      %v6345 = vpop.f32.mrf.mxu0
      %v6346 = vadd.f32 0.0, %v6345
      %v6347 = vpop.f32.mrf.mxu0
      %v6348 = vadd.f32 0.0, %v6347
      %6349 = vdwg.mxu0
      %6350 = vmatpush.bf16.xpose.msra.mxu0 %v5986
      %6351 = vmatpush.bf16.xpose.msra.mxu0 %v5983
      %6352 = vmatpush.bf16.xpose.msra.mxu0 %v5980
      %6353 = vmatpush.bf16.xpose.msra.mxu0 %v5977
      %6354 = vmatpush.bf16.xpose.msra.mxu0 %v5974
      %6355 = vmatpush.bf16.xpose.msra.mxu0 %v5971
      %6356 = vmatpush.bf16.xpose.msra.mxu0 %v5968
      %6357 = vmatpush.bf16.xpose.msra.mxu0 %v5965
      %6358 = vmatmul.bf16.gmra.mxu0 %v5821
      %v6359 = vpop.f32.mrf.mxu0
      %v6360 = vadd.f32 0.0, %v6359
      %v6361 = vpop.f32.mrf.mxu0
      %v6362 = vadd.f32 0.0, %v6361
      %6363 = vmatmul.bf16.gmra.mxu0 %v5824
      %v6364 = vpop.f32.mrf.mxu0
      %v6365 = vadd.f32 0.0, %v6364
      %v6366 = vpop.f32.mrf.mxu0
      %v6367 = vadd.f32 0.0, %v6366
      %6368 = vmatmul.bf16.gmra.mxu0 %v5827
      %v6369 = vpop.f32.mrf.mxu0
      %v6370 = vadd.f32 0.0, %v6369
      %v6371 = vpop.f32.mrf.mxu0
      %v6372 = vadd.f32 0.0, %v6371
      %6373 = vmatmul.bf16.gmra.mxu0 %v5830
      %v6374 = vpop.f32.mrf.mxu0
      %v6375 = vadd.f32 0.0, %v6374
      %v6376 = vpop.f32.mrf.mxu0
      %v6377 = vadd.f32 0.0, %v6376
      %6378 = vmatmul.bf16.gmra.mxu0 %v5833
      %v6379 = vpop.f32.mrf.mxu0
      %v6380 = vadd.f32 0.0, %v6379
      %v6381 = vpop.f32.mrf.mxu0
      %v6382 = vadd.f32 0.0, %v6381
      %6383 = vmatmul.bf16.gmra.mxu0 %v5836
      %v6384 = vpop.f32.mrf.mxu0
      %v6385 = vadd.f32 0.0, %v6384
      %v6386 = vpop.f32.mrf.mxu0
      %v6387 = vadd.f32 0.0, %v6386
      %6388 = vmatmul.bf16.gmra.mxu0 %v5839
      %v6389 = vpop.f32.mrf.mxu0
      %v6390 = vadd.f32 0.0, %v6389
      %v6391 = vpop.f32.mrf.mxu0
      %v6392 = vadd.f32 0.0, %v6391
      %6393 = vmatmul.bf16.gmra.mxu0 %v5842
      %v6394 = vpop.f32.mrf.mxu0
      %v6395 = vadd.f32 0.0, %v6394
      %v6396 = vpop.f32.mrf.mxu0
      %v6397 = vadd.f32 0.0, %v6396
      %6398 = vmatmul.bf16.gmra.mxu0 %v5845
      %v6399 = vpop.f32.mrf.mxu0
      %v6400 = vadd.f32 0.0, %v6399
      %v6401 = vpop.f32.mrf.mxu0
      %v6402 = vadd.f32 0.0, %v6401
      %6403 = vmatmul.bf16.gmra.mxu0 %v5848
      %v6404 = vpop.f32.mrf.mxu0
      %v6405 = vadd.f32 0.0, %v6404
      %v6406 = vpop.f32.mrf.mxu0
      %v6407 = vadd.f32 0.0, %v6406
      %6408 = vmatmul.bf16.gmra.mxu0 %v5851
      %v6409 = vpop.f32.mrf.mxu0
      %v6410 = vadd.f32 0.0, %v6409
      %v6411 = vpop.f32.mrf.mxu0
      %v6412 = vadd.f32 0.0, %v6411
      %6413 = vmatmul.bf16.gmra.mxu0 %v5854
      %v6414 = vpop.f32.mrf.mxu0
      %v6415 = vadd.f32 0.0, %v6414
      %v6416 = vpop.f32.mrf.mxu0
      %v6417 = vadd.f32 0.0, %v6416
      %6418 = vmatmul.bf16.gmra.mxu0 %v5857
      %v6419 = vpop.f32.mrf.mxu0
      %v6420 = vadd.f32 0.0, %v6419
      %v6421 = vpop.f32.mrf.mxu0
      %v6422 = vadd.f32 0.0, %v6421
      %6423 = vmatmul.bf16.gmra.mxu0 %v5860
      %v6424 = vpop.f32.mrf.mxu0
      %v6425 = vadd.f32 0.0, %v6424
      %v6426 = vpop.f32.mrf.mxu0
      %v6427 = vadd.f32 0.0, %v6426
      %6428 = vmatmul.bf16.gmra.mxu0 %v5863
      %v6429 = vpop.f32.mrf.mxu0
      %v6430 = vadd.f32 0.0, %v6429
      %v6431 = vpop.f32.mrf.mxu0
      %v6432 = vadd.f32 0.0, %v6431
      %6433 = vmatmul.bf16.gmra.mxu0 %v5866
      %v6434 = vpop.f32.mrf.mxu0
      %v6435 = vadd.f32 0.0, %v6434
      %v6436 = vpop.f32.mrf.mxu0
      %v6437 = vadd.f32 0.0, %v6436
      %6438 = vmatmul.bf16.gmra.mxu0 %v5869
      %v6439 = vpop.f32.mrf.mxu0
      %v6440 = vadd.f32 0.0, %v6439
      %v6441 = vpop.f32.mrf.mxu0
      %v6442 = vadd.f32 0.0, %v6441
      %6443 = vmatmul.bf16.gmra.mxu0 %v5872
      %v6444 = vpop.f32.mrf.mxu0
      %v6445 = vadd.f32 0.0, %v6444
      %v6446 = vpop.f32.mrf.mxu0
      %v6447 = vadd.f32 0.0, %v6446
      %6448 = vmatmul.bf16.gmra.mxu0 %v5875
      %v6449 = vpop.f32.mrf.mxu0
      %v6450 = vadd.f32 0.0, %v6449
      %v6451 = vpop.f32.mrf.mxu0
      %v6452 = vadd.f32 0.0, %v6451
      %6453 = vmatmul.bf16.gmra.mxu0 %v5878
      %v6454 = vpop.f32.mrf.mxu0
      %v6455 = vadd.f32 0.0, %v6454
      %v6456 = vpop.f32.mrf.mxu0
      %v6457 = vadd.f32 0.0, %v6456
      %6458 = vmatmul.bf16.gmra.mxu0 %v5881
      %v6459 = vpop.f32.mrf.mxu0
      %v6460 = vadd.f32 0.0, %v6459
      %v6461 = vpop.f32.mrf.mxu0
      %v6462 = vadd.f32 0.0, %v6461
      %6463 = vmatmul.bf16.gmra.mxu0 %v5884
      %v6464 = vpop.f32.mrf.mxu0
      %v6465 = vadd.f32 0.0, %v6464
      %v6466 = vpop.f32.mrf.mxu0
      %v6467 = vadd.f32 0.0, %v6466
      %6468 = vmatmul.bf16.gmra.mxu0 %v5887
      %v6469 = vpop.f32.mrf.mxu0
      %v6470 = vadd.f32 0.0, %v6469
      %v6471 = vpop.f32.mrf.mxu0
      %v6472 = vadd.f32 0.0, %v6471
      %6473 = vmatmul.bf16.gmra.mxu0 %v5890
      %v6474 = vpop.f32.mrf.mxu0
      %v6475 = vadd.f32 0.0, %v6474
      %v6476 = vpop.f32.mrf.mxu0
      %v6477 = vadd.f32 0.0, %v6476
      %6478 = vmatmul.bf16.gmra.mxu0 %v5893
      %v6479 = vpop.f32.mrf.mxu0
      %v6480 = vadd.f32 0.0, %v6479
      %v6481 = vpop.f32.mrf.mxu0
      %v6482 = vadd.f32 0.0, %v6481
      %6483 = vmatmul.bf16.gmra.mxu0 %v5896
      %v6484 = vpop.f32.mrf.mxu0
      %v6485 = vadd.f32 0.0, %v6484
      %v6486 = vpop.f32.mrf.mxu0
      %v6487 = vadd.f32 0.0, %v6486
      %6488 = vmatmul.bf16.gmra.mxu0 %v5899
      %v6489 = vpop.f32.mrf.mxu0
      %v6490 = vadd.f32 0.0, %v6489
      %v6491 = vpop.f32.mrf.mxu0
      %v6492 = vadd.f32 0.0, %v6491
      %6493 = vmatmul.bf16.gmra.mxu0 %v5902
      %v6494 = vpop.f32.mrf.mxu0
      %v6495 = vadd.f32 0.0, %v6494
      %v6496 = vpop.f32.mrf.mxu0
      %v6497 = vadd.f32 0.0, %v6496
      %6498 = vmatmul.bf16.gmra.mxu0 %v5905
      %v6499 = vpop.f32.mrf.mxu0
      %v6500 = vadd.f32 0.0, %v6499
      %v6501 = vpop.f32.mrf.mxu0
      %v6502 = vadd.f32 0.0, %v6501
      %6503 = vmatmul.bf16.gmra.mxu0 %v5908
      %v6504 = vpop.f32.mrf.mxu0
      %v6505 = vadd.f32 0.0, %v6504
      %v6506 = vpop.f32.mrf.mxu0
      %v6507 = vadd.f32 0.0, %v6506
      %6508 = vmatmul.bf16.gmra.mxu0 %v5911
      %v6509 = vpop.f32.mrf.mxu0
      %v6510 = vadd.f32 0.0, %v6509
      %v6511 = vpop.f32.mrf.mxu0
      %v6512 = vadd.f32 0.0, %v6511
      %6513 = vmatmul.bf16.gmra.mxu0 %v5914
      %v6514 = vpop.f32.mrf.mxu0
      %v6515 = vadd.f32 0.0, %v6514
      %v6516 = vpop.f32.mrf.mxu0
      %v6517 = vadd.f32 0.0, %v6516
      %6518 = vdwg.mxu0
      %6519 = vmatpush.bf16.xpose.msra.mxu0 %v6010
      %6520 = vmatpush.bf16.xpose.msra.mxu0 %v6007
      %6521 = vmatpush.bf16.xpose.msra.mxu0 %v6004
      %6522 = vmatpush.bf16.xpose.msra.mxu0 %v6001
      %6523 = vmatpush.bf16.xpose.msra.mxu0 %v5998
      %6524 = vmatpush.bf16.xpose.msra.mxu0 %v5995
      %6525 = vmatpush.bf16.xpose.msra.mxu0 %v5992
      %6526 = vmatpush.bf16.xpose.msra.mxu0 %v5989
      %6527 = vmatmul.bf16.gmra.mxu0 %v5821
      %v6528 = vpop.f32.mrf.mxu0
      %v6529 = vadd.f32 0.0, %v6528
      %v6530 = vpop.f32.mrf.mxu0
      %v6531 = vadd.f32 0.0, %v6530
      %6532 = vmatmul.bf16.gmra.mxu0 %v5824
      %v6533 = vpop.f32.mrf.mxu0
      %v6534 = vadd.f32 0.0, %v6533
      %v6535 = vpop.f32.mrf.mxu0
      %v6536 = vadd.f32 0.0, %v6535
      %6537 = vmatmul.bf16.gmra.mxu0 %v5827
      %v6538 = vpop.f32.mrf.mxu0
      %v6539 = vadd.f32 0.0, %v6538
      %v6540 = vpop.f32.mrf.mxu0
      %v6541 = vadd.f32 0.0, %v6540
      %6542 = vmatmul.bf16.gmra.mxu0 %v5830
      %v6543 = vpop.f32.mrf.mxu0
      %v6544 = vadd.f32 0.0, %v6543
      %v6545 = vpop.f32.mrf.mxu0
      %v6546 = vadd.f32 0.0, %v6545
      %6547 = vmatmul.bf16.gmra.mxu0 %v5833
      %v6548 = vpop.f32.mrf.mxu0
      %v6549 = vadd.f32 0.0, %v6548
      %v6550 = vpop.f32.mrf.mxu0
      %v6551 = vadd.f32 0.0, %v6550
      %6552 = vmatmul.bf16.gmra.mxu0 %v5836
      %v6553 = vpop.f32.mrf.mxu0
      %v6554 = vadd.f32 0.0, %v6553
      %v6555 = vpop.f32.mrf.mxu0
      %v6556 = vadd.f32 0.0, %v6555
      %6557 = vmatmul.bf16.gmra.mxu0 %v5839
      %v6558 = vpop.f32.mrf.mxu0
      %v6559 = vadd.f32 0.0, %v6558
      %v6560 = vpop.f32.mrf.mxu0
      %v6561 = vadd.f32 0.0, %v6560
      %6562 = vmatmul.bf16.gmra.mxu0 %v5842
      %v6563 = vpop.f32.mrf.mxu0
      %v6564 = vadd.f32 0.0, %v6563
      %v6565 = vpop.f32.mrf.mxu0
      %v6566 = vadd.f32 0.0, %v6565
      %6567 = vmatmul.bf16.gmra.mxu0 %v5845
      %v6568 = vpop.f32.mrf.mxu0
      %v6569 = vadd.f32 0.0, %v6568
      %v6570 = vpop.f32.mrf.mxu0
      %v6571 = vadd.f32 0.0, %v6570
      %6572 = vmatmul.bf16.gmra.mxu0 %v5848
      %v6573 = vpop.f32.mrf.mxu0
      %v6574 = vadd.f32 0.0, %v6573
      %v6575 = vpop.f32.mrf.mxu0
      %v6576 = vadd.f32 0.0, %v6575
      %6577 = vmatmul.bf16.gmra.mxu0 %v5851
      %v6578 = vpop.f32.mrf.mxu0
      %v6579 = vadd.f32 0.0, %v6578
      %v6580 = vpop.f32.mrf.mxu0
      %v6581 = vadd.f32 0.0, %v6580
      %6582 = vmatmul.bf16.gmra.mxu0 %v5854
      %v6583 = vpop.f32.mrf.mxu0
      %v6584 = vadd.f32 0.0, %v6583
      %v6585 = vpop.f32.mrf.mxu0
      %v6586 = vadd.f32 0.0, %v6585
      %6587 = vmatmul.bf16.gmra.mxu0 %v5857
      %v6588 = vpop.f32.mrf.mxu0
      %v6589 = vadd.f32 0.0, %v6588
      %v6590 = vpop.f32.mrf.mxu0
      %v6591 = vadd.f32 0.0, %v6590
      %6592 = vmatmul.bf16.gmra.mxu0 %v5860
      %v6593 = vpop.f32.mrf.mxu0
      %v6594 = vadd.f32 0.0, %v6593
      %v6595 = vpop.f32.mrf.mxu0
      %v6596 = vadd.f32 0.0, %v6595
      %6597 = vmatmul.bf16.gmra.mxu0 %v5863
      %v6598 = vpop.f32.mrf.mxu0
      %v6599 = vadd.f32 0.0, %v6598
      %v6600 = vpop.f32.mrf.mxu0
      %v6601 = vadd.f32 0.0, %v6600
      %6602 = vmatmul.bf16.gmra.mxu0 %v5866
      %v6603 = vpop.f32.mrf.mxu0
      %v6604 = vadd.f32 0.0, %v6603
      %v6605 = vpop.f32.mrf.mxu0
      %v6606 = vadd.f32 0.0, %v6605
      %6607 = vmatmul.bf16.gmra.mxu0 %v5869
      %v6608 = vpop.f32.mrf.mxu0
      %v6609 = vadd.f32 0.0, %v6608
      %v6610 = vpop.f32.mrf.mxu0
      %v6611 = vadd.f32 0.0, %v6610
      %6612 = vmatmul.bf16.gmra.mxu0 %v5872
      %v6613 = vpop.f32.mrf.mxu0
      %v6614 = vadd.f32 0.0, %v6613
      %v6615 = vpop.f32.mrf.mxu0
      %v6616 = vadd.f32 0.0, %v6615
      %6617 = vmatmul.bf16.gmra.mxu0 %v5875
      %v6618 = vpop.f32.mrf.mxu0
      %v6619 = vadd.f32 0.0, %v6618
      %v6620 = vpop.f32.mrf.mxu0
      %v6621 = vadd.f32 0.0, %v6620
      %6622 = vmatmul.bf16.gmra.mxu0 %v5878
      %v6623 = vpop.f32.mrf.mxu0
      %v6624 = vadd.f32 0.0, %v6623
      %v6625 = vpop.f32.mrf.mxu0
      %v6626 = vadd.f32 0.0, %v6625
      %6627 = vmatmul.bf16.gmra.mxu0 %v5881
      %v6628 = vpop.f32.mrf.mxu0
      %v6629 = vadd.f32 0.0, %v6628
      %v6630 = vpop.f32.mrf.mxu0
      %v6631 = vadd.f32 0.0, %v6630
      %6632 = vmatmul.bf16.gmra.mxu0 %v5884
      %v6633 = vpop.f32.mrf.mxu0
      %v6634 = vadd.f32 0.0, %v6633
      %v6635 = vpop.f32.mrf.mxu0
      %v6636 = vadd.f32 0.0, %v6635
      %6637 = vmatmul.bf16.gmra.mxu0 %v5887
      %v6638 = vpop.f32.mrf.mxu0
      %v6639 = vadd.f32 0.0, %v6638
      %v6640 = vpop.f32.mrf.mxu0
      %v6641 = vadd.f32 0.0, %v6640
      %6642 = vmatmul.bf16.gmra.mxu0 %v5890
      %v6643 = vpop.f32.mrf.mxu0
      %v6644 = vadd.f32 0.0, %v6643
      %v6645 = vpop.f32.mrf.mxu0
      %v6646 = vadd.f32 0.0, %v6645
      %6647 = vmatmul.bf16.gmra.mxu0 %v5893
      %v6648 = vpop.f32.mrf.mxu0
      %v6649 = vadd.f32 0.0, %v6648
      %v6650 = vpop.f32.mrf.mxu0
      %v6651 = vadd.f32 0.0, %v6650
      %6652 = vmatmul.bf16.gmra.mxu0 %v5896
      %v6653 = vpop.f32.mrf.mxu0
      %v6654 = vadd.f32 0.0, %v6653
      %v6655 = vpop.f32.mrf.mxu0
      %v6656 = vadd.f32 0.0, %v6655
      %6657 = vmatmul.bf16.gmra.mxu0 %v5899
      %v6658 = vpop.f32.mrf.mxu0
      %v6659 = vadd.f32 0.0, %v6658
      %v6660 = vpop.f32.mrf.mxu0
      %v6661 = vadd.f32 0.0, %v6660
      %6662 = vmatmul.bf16.gmra.mxu0 %v5902
      %v6663 = vpop.f32.mrf.mxu0
      %v6664 = vadd.f32 0.0, %v6663
      %v6665 = vpop.f32.mrf.mxu0
      %v6666 = vadd.f32 0.0, %v6665
      %6667 = vmatmul.bf16.gmra.mxu0 %v5905
      %v6668 = vpop.f32.mrf.mxu0
      %v6669 = vadd.f32 0.0, %v6668
      %v6670 = vpop.f32.mrf.mxu0
      %v6671 = vadd.f32 0.0, %v6670
      %6672 = vmatmul.bf16.gmra.mxu0 %v5908
      %v6673 = vpop.f32.mrf.mxu0
      %v6674 = vadd.f32 0.0, %v6673
      %v6675 = vpop.f32.mrf.mxu0
      %v6676 = vadd.f32 0.0, %v6675
      %6677 = vmatmul.bf16.gmra.mxu0 %v5911
      %v6678 = vpop.f32.mrf.mxu0
      %v6679 = vadd.f32 0.0, %v6678
      %v6680 = vpop.f32.mrf.mxu0
      %v6681 = vadd.f32 0.0, %v6680
      %6682 = vmatmul.bf16.gmra.mxu0 %v5914
      %v6683 = vpop.f32.mrf.mxu0
      %v6684 = vadd.f32 0.0, %v6683
      %v6685 = vpop.f32.mrf.mxu0
      %v6686 = vadd.f32 0.0, %v6685
      %6687 = vdwg.mxu0
      %v6688 = vld [vmem:[#allocation3] sm:$0xff]
      %v6689 = vld [vmem:[#allocation3 + $0x8] sm:$0xff]
      %v6690 = vld [vmem:[#allocation3 + $0x10] sm:$0xff]
      %v6691 = vld [vmem:[#allocation3 + $0x18] sm:$0xff]
      %v6692 = vld [vmem:[#allocation3 + $0x20] sm:$0xff]
      %v6693 = vld [vmem:[#allocation3 + $0x28] sm:$0xff]
      %v6694 = vld [vmem:[#allocation3 + $0x30] sm:$0xff]
      %v6695 = vld [vmem:[#allocation3 + $0x38] sm:$0xff]
      %v6696 = vld [vmem:[#allocation3 + $0x40] sm:$0xff]
      %v6697 = vld [vmem:[#allocation3 + $0x48] sm:$0xff]
      %v6698 = vld [vmem:[#allocation3 + $0x50] sm:$0xff]
      %v6699 = vld [vmem:[#allocation3 + $0x58] sm:$0xff]
      %v6700 = vld [vmem:[#allocation3 + $0x60] sm:$0xff]
      %v6701 = vld [vmem:[#allocation3 + $0x68] sm:$0xff]
      %v6702 = vld [vmem:[#allocation3 + $0x70] sm:$0xff]
      %v6703 = vld [vmem:[#allocation3 + $0x78] sm:$0xff]
      %v6704 = vld [vmem:[#allocation3 + $0x80] sm:$0xff]
      %v6705 = vld [vmem:[#allocation3 + $0x88] sm:$0xff]
      %v6706 = vld [vmem:[#allocation3 + $0x90] sm:$0xff]
      %v6707 = vld [vmem:[#allocation3 + $0x98] sm:$0xff]
      %v6708 = vld [vmem:[#allocation3 + $0xa0] sm:$0xff]
      %v6709 = vld [vmem:[#allocation3 + $0xa8] sm:$0xff]
      %v6710 = vld [vmem:[#allocation3 + $0xb0] sm:$0xff]
      %v6711 = vld [vmem:[#allocation3 + $0xb8] sm:$0xff]
      %v6712 = vld [vmem:[#allocation3 + $0xc0] sm:$0xff]
      %v6713 = vld [vmem:[#allocation3 + $0xc8] sm:$0xff]
      %v6714 = vld [vmem:[#allocation3 + $0xd0] sm:$0xff]
      %v6715 = vld [vmem:[#allocation3 + $0xd8] sm:$0xff]
      %v6716 = vld [vmem:[#allocation3 + $0xe0] sm:$0xff]
      %v6717 = vld [vmem:[#allocation3 + $0xe8] sm:$0xff]
      %v6718 = vld [vmem:[#allocation3 + $0xf0] sm:$0xff]
      %v6719 = vld [vmem:[#allocation3 + $0xf8] sm:$0xff]
      %v6720 = vld [vmem:[#allocation3 + $0x100] sm:$0xff]
      %v6721 = vld [vmem:[#allocation3 + $0x108] sm:$0xff]
      %v6722 = vld [vmem:[#allocation3 + $0x110] sm:$0xff]
      %v6723 = vld [vmem:[#allocation3 + $0x118] sm:$0xff]
      %v6724 = vld [vmem:[#allocation3 + $0x120] sm:$0xff]
      %v6725 = vld [vmem:[#allocation3 + $0x128] sm:$0xff]
      %v6726 = vld [vmem:[#allocation3 + $0x130] sm:$0xff]
      %v6727 = vld [vmem:[#allocation3 + $0x138] sm:$0xff]
      %v6728 = vld [vmem:[#allocation3 + $0x140] sm:$0xff]
      %v6729 = vld [vmem:[#allocation3 + $0x148] sm:$0xff]
      %v6730 = vld [vmem:[#allocation3 + $0x150] sm:$0xff]
      %v6731 = vld [vmem:[#allocation3 + $0x158] sm:$0xff]
      %v6732 = vld [vmem:[#allocation3 + $0x160] sm:$0xff]
      %v6733 = vld [vmem:[#allocation3 + $0x168] sm:$0xff]
      %v6734 = vld [vmem:[#allocation3 + $0x170] sm:$0xff]
      %v6735 = vld [vmem:[#allocation3 + $0x178] sm:$0xff]
      %v6736 = vld [vmem:[#allocation3 + $0x180] sm:$0xff]
      %v6737 = vld [vmem:[#allocation3 + $0x188] sm:$0xff]
      %v6738 = vld [vmem:[#allocation3 + $0x190] sm:$0xff]
      %v6739 = vld [vmem:[#allocation3 + $0x198] sm:$0xff]
      %v6740 = vld [vmem:[#allocation3 + $0x1a0] sm:$0xff]
      %v6741 = vld [vmem:[#allocation3 + $0x1a8] sm:$0xff]
      %v6742 = vld [vmem:[#allocation3 + $0x1b0] sm:$0xff]
      %v6743 = vld [vmem:[#allocation3 + $0x1b8] sm:$0xff]
      %v6744 = vld [vmem:[#allocation3 + $0x1c0] sm:$0xff]
      %v6745 = vld [vmem:[#allocation3 + $0x1c8] sm:$0xff]
      %v6746 = vld [vmem:[#allocation3 + $0x1d0] sm:$0xff]
      %v6747 = vld [vmem:[#allocation3 + $0x1d8] sm:$0xff]
      %v6748 = vld [vmem:[#allocation3 + $0x1e0] sm:$0xff]
      %v6749 = vld [vmem:[#allocation3 + $0x1e8] sm:$0xff]
      %v6750 = vld [vmem:[#allocation3 + $0x1f0] sm:$0xff]
      %v6751 = vld [vmem:[#allocation3 + $0x1f8] sm:$0xff]
      %v6752 = vmax.f32 %v6022, %v6191
      %v6753 = vmax.f32 %v6752, %v6360
      %v6754 = vmax.f32 %v6753, %v6529
      %6755 = vmax.xlane.f32.xlu0 %v6754
      %v6756 = vpop.xlane.xlu0 %6755
      %v6757 = vmax.f32 %v6024, %v6193
      %v6758 = vmax.f32 %v6757, %v6362
      %v6759 = vmax.f32 %v6758, %v6531
      %6760 = vmax.xlane.f32.xlu0 %v6759
      %v6761 = vpop.xlane.xlu0 %6760
      %v6762 = vmax.f32 %v6027, %v6196
      %v6763 = vmax.f32 %v6762, %v6365
      %v6764 = vmax.f32 %v6763, %v6534
      %6765 = vmax.xlane.f32.xlu0 %v6764
      %v6766 = vpop.xlane.xlu0 %6765
      %v6767 = vmax.f32 %v6029, %v6198
      %v6768 = vmax.f32 %v6767, %v6367
      %v6769 = vmax.f32 %v6768, %v6536
      %6770 = vmax.xlane.f32.xlu0 %v6769
      %v6771 = vpop.xlane.xlu0 %6770
      %v6772 = vmax.f32 %v6032, %v6201
      %v6773 = vmax.f32 %v6772, %v6370
      %v6774 = vmax.f32 %v6773, %v6539
      %6775 = vmax.xlane.f32.xlu0 %v6774
      %v6776 = vpop.xlane.xlu0 %6775
      %v6777 = vmax.f32 %v6034, %v6203
      %v6778 = vmax.f32 %v6777, %v6372
      %v6779 = vmax.f32 %v6778, %v6541
      %6780 = vmax.xlane.f32.xlu0 %v6779
      %v6781 = vpop.xlane.xlu0 %6780
      %v6782 = vmax.f32 %v6037, %v6206
      %v6783 = vmax.f32 %v6782, %v6375
      %v6784 = vmax.f32 %v6783, %v6544
      %6785 = vmax.xlane.f32.xlu0 %v6784
      %v6786 = vpop.xlane.xlu0 %6785
      %v6787 = vmax.f32 %v6039, %v6208
      %v6788 = vmax.f32 %v6787, %v6377
      %v6789 = vmax.f32 %v6788, %v6546
      %6790 = vmax.xlane.f32.xlu0 %v6789
      %v6791 = vpop.xlane.xlu0 %6790
      %v6792 = vmax.f32 %v6042, %v6211
      %v6793 = vmax.f32 %v6792, %v6380
      %v6794 = vmax.f32 %v6793, %v6549
      %6795 = vmax.xlane.f32.xlu0 %v6794
      %v6796 = vpop.xlane.xlu0 %6795
      %v6797 = vmax.f32 %v6044, %v6213
      %v6798 = vmax.f32 %v6797, %v6382
      %v6799 = vmax.f32 %v6798, %v6551
      %6800 = vmax.xlane.f32.xlu0 %v6799
      %v6801 = vpop.xlane.xlu0 %6800
      %v6802 = vmax.f32 %v6047, %v6216
      %v6803 = vmax.f32 %v6802, %v6385
      %v6804 = vmax.f32 %v6803, %v6554
      %6805 = vmax.xlane.f32.xlu0 %v6804
      %v6806 = vpop.xlane.xlu0 %6805
      %v6807 = vmax.f32 %v6049, %v6218
      %v6808 = vmax.f32 %v6807, %v6387
      %v6809 = vmax.f32 %v6808, %v6556
      %6810 = vmax.xlane.f32.xlu0 %v6809
      %v6811 = vpop.xlane.xlu0 %6810
      %v6812 = vmax.f32 %v6052, %v6221
      %v6813 = vmax.f32 %v6812, %v6390
      %v6814 = vmax.f32 %v6813, %v6559
      %6815 = vmax.xlane.f32.xlu0 %v6814
      %v6816 = vpop.xlane.xlu0 %6815
      %v6817 = vmax.f32 %v6054, %v6223
      %v6818 = vmax.f32 %v6817, %v6392
      %v6819 = vmax.f32 %v6818, %v6561
      %6820 = vmax.xlane.f32.xlu0 %v6819
      %v6821 = vpop.xlane.xlu0 %6820
      %v6822 = vmax.f32 %v6057, %v6226
      %v6823 = vmax.f32 %v6822, %v6395
      %v6824 = vmax.f32 %v6823, %v6564
      %6825 = vmax.xlane.f32.xlu0 %v6824
      %v6826 = vpop.xlane.xlu0 %6825
      %v6827 = vmax.f32 %v6059, %v6228
      %v6828 = vmax.f32 %v6827, %v6397
      %v6829 = vmax.f32 %v6828, %v6566
      %6830 = vmax.xlane.f32.xlu0 %v6829
      %v6831 = vpop.xlane.xlu0 %6830
      %v6832 = vmax.f32 %v6062, %v6231
      %v6833 = vmax.f32 %v6832, %v6400
      %v6834 = vmax.f32 %v6833, %v6569
      %6835 = vmax.xlane.f32.xlu0 %v6834
      %v6836 = vpop.xlane.xlu0 %6835
      %v6837 = vmax.f32 %v6064, %v6233
      %v6838 = vmax.f32 %v6837, %v6402
      %v6839 = vmax.f32 %v6838, %v6571
      %6840 = vmax.xlane.f32.xlu0 %v6839
      %v6841 = vpop.xlane.xlu0 %6840
      %v6842 = vmax.f32 %v6067, %v6236
      %v6843 = vmax.f32 %v6842, %v6405
      %v6844 = vmax.f32 %v6843, %v6574
      %6845 = vmax.xlane.f32.xlu0 %v6844
      %v6846 = vpop.xlane.xlu0 %6845
      %v6847 = vmax.f32 %v6069, %v6238
      %v6848 = vmax.f32 %v6847, %v6407
      %v6849 = vmax.f32 %v6848, %v6576
      %6850 = vmax.xlane.f32.xlu0 %v6849
      %v6851 = vpop.xlane.xlu0 %6850
      %v6852 = vmax.f32 %v6072, %v6241
      %v6853 = vmax.f32 %v6852, %v6410
      %v6854 = vmax.f32 %v6853, %v6579
      %6855 = vmax.xlane.f32.xlu0 %v6854
      %v6856 = vpop.xlane.xlu0 %6855
      %v6857 = vmax.f32 %v6074, %v6243
      %v6858 = vmax.f32 %v6857, %v6412
      %v6859 = vmax.f32 %v6858, %v6581
      %6860 = vmax.xlane.f32.xlu0 %v6859
      %v6861 = vpop.xlane.xlu0 %6860
      %v6862 = vmax.f32 %v6077, %v6246
      %v6863 = vmax.f32 %v6862, %v6415
      %v6864 = vmax.f32 %v6863, %v6584
      %6865 = vmax.xlane.f32.xlu0 %v6864
      %v6866 = vpop.xlane.xlu0 %6865
      %v6867 = vmax.f32 %v6079, %v6248
      %v6868 = vmax.f32 %v6867, %v6417
      %v6869 = vmax.f32 %v6868, %v6586
      %6870 = vmax.xlane.f32.xlu0 %v6869
      %v6871 = vpop.xlane.xlu0 %6870
      %v6872 = vmax.f32 %v6082, %v6251
      %v6873 = vmax.f32 %v6872, %v6420
      %v6874 = vmax.f32 %v6873, %v6589
      %6875 = vmax.xlane.f32.xlu0 %v6874
      %v6876 = vpop.xlane.xlu0 %6875
      %v6877 = vmax.f32 %v6084, %v6253
      %v6878 = vmax.f32 %v6877, %v6422
      %v6879 = vmax.f32 %v6878, %v6591
      %6880 = vmax.xlane.f32.xlu0 %v6879
      %v6881 = vpop.xlane.xlu0 %6880
      %v6882 = vmax.f32 %v6087, %v6256
      %v6883 = vmax.f32 %v6882, %v6425
      %v6884 = vmax.f32 %v6883, %v6594
      %6885 = vmax.xlane.f32.xlu0 %v6884
      %v6886 = vpop.xlane.xlu0 %6885
      %v6887 = vmax.f32 %v6089, %v6258
      %v6888 = vmax.f32 %v6887, %v6427
      %v6889 = vmax.f32 %v6888, %v6596
      %6890 = vmax.xlane.f32.xlu0 %v6889
      %v6891 = vpop.xlane.xlu0 %6890
      %v6892 = vmax.f32 %v6092, %v6261
      %v6893 = vmax.f32 %v6892, %v6430
      %v6894 = vmax.f32 %v6893, %v6599
      %6895 = vmax.xlane.f32.xlu0 %v6894
      %v6896 = vpop.xlane.xlu0 %6895
      %v6897 = vmax.f32 %v6094, %v6263
      %v6898 = vmax.f32 %v6897, %v6432
      %v6899 = vmax.f32 %v6898, %v6601
      %6900 = vmax.xlane.f32.xlu0 %v6899
      %v6901 = vpop.xlane.xlu0 %6900
      %v6902 = vmax.f32 %v6097, %v6266
      %v6903 = vmax.f32 %v6902, %v6435
      %v6904 = vmax.f32 %v6903, %v6604
      %6905 = vmax.xlane.f32.xlu0 %v6904
      %v6906 = vpop.xlane.xlu0 %6905
      %v6907 = vmax.f32 %v6099, %v6268
      %v6908 = vmax.f32 %v6907, %v6437
      %v6909 = vmax.f32 %v6908, %v6606
      %6910 = vmax.xlane.f32.xlu0 %v6909
      %v6911 = vpop.xlane.xlu0 %6910
      %v6912 = vmax.f32 %v6102, %v6271
      %v6913 = vmax.f32 %v6912, %v6440
      %v6914 = vmax.f32 %v6913, %v6609
      %6915 = vmax.xlane.f32.xlu0 %v6914
      %v6916 = vpop.xlane.xlu0 %6915
      %v6917 = vmax.f32 %v6104, %v6273
      %v6918 = vmax.f32 %v6917, %v6442
      %v6919 = vmax.f32 %v6918, %v6611
      %6920 = vmax.xlane.f32.xlu0 %v6919
      %v6921 = vpop.xlane.xlu0 %6920
      %v6922 = vmax.f32 %v6107, %v6276
      %v6923 = vmax.f32 %v6922, %v6445
      %v6924 = vmax.f32 %v6923, %v6614
      %6925 = vmax.xlane.f32.xlu0 %v6924
      %v6926 = vpop.xlane.xlu0 %6925
      %v6927 = vmax.f32 %v6109, %v6278
      %v6928 = vmax.f32 %v6927, %v6447
      %v6929 = vmax.f32 %v6928, %v6616
      %6930 = vmax.xlane.f32.xlu0 %v6929
      %v6931 = vpop.xlane.xlu0 %6930
      %v6932 = vmax.f32 %v6112, %v6281
      %v6933 = vmax.f32 %v6932, %v6450
      %v6934 = vmax.f32 %v6933, %v6619
      %6935 = vmax.xlane.f32.xlu0 %v6934
      %v6936 = vpop.xlane.xlu0 %6935
      %v6937 = vmax.f32 %v6114, %v6283
      %v6938 = vmax.f32 %v6937, %v6452
      %v6939 = vmax.f32 %v6938, %v6621
      %6940 = vmax.xlane.f32.xlu0 %v6939
      %v6941 = vpop.xlane.xlu0 %6940
      %v6942 = vmax.f32 %v6117, %v6286
      %v6943 = vmax.f32 %v6942, %v6455
      %v6944 = vmax.f32 %v6943, %v6624
      %6945 = vmax.xlane.f32.xlu0 %v6944
      %v6946 = vpop.xlane.xlu0 %6945
      %v6947 = vmax.f32 %v6119, %v6288
      %v6948 = vmax.f32 %v6947, %v6457
      %v6949 = vmax.f32 %v6948, %v6626
      %6950 = vmax.xlane.f32.xlu0 %v6949
      %v6951 = vpop.xlane.xlu0 %6950
      %v6952 = vmax.f32 %v6122, %v6291
      %v6953 = vmax.f32 %v6952, %v6460
      %v6954 = vmax.f32 %v6953, %v6629
      %6955 = vmax.xlane.f32.xlu0 %v6954
      %v6956 = vpop.xlane.xlu0 %6955
      %v6957 = vmax.f32 %v6124, %v6293
      %v6958 = vmax.f32 %v6957, %v6462
      %v6959 = vmax.f32 %v6958, %v6631
      %6960 = vmax.xlane.f32.xlu0 %v6959
      %v6961 = vpop.xlane.xlu0 %6960
      %v6962 = vmax.f32 %v6127, %v6296
      %v6963 = vmax.f32 %v6962, %v6465
      %v6964 = vmax.f32 %v6963, %v6634
      %6965 = vmax.xlane.f32.xlu0 %v6964
      %v6966 = vpop.xlane.xlu0 %6965
      %v6967 = vmax.f32 %v6129, %v6298
      %v6968 = vmax.f32 %v6967, %v6467
      %v6969 = vmax.f32 %v6968, %v6636
      %6970 = vmax.xlane.f32.xlu0 %v6969
      %v6971 = vpop.xlane.xlu0 %6970
      %v6972 = vmax.f32 %v6132, %v6301
      %v6973 = vmax.f32 %v6972, %v6470
      %v6974 = vmax.f32 %v6973, %v6639
      %6975 = vmax.xlane.f32.xlu0 %v6974
      %v6976 = vpop.xlane.xlu0 %6975
      %v6977 = vmax.f32 %v6134, %v6303
      %v6978 = vmax.f32 %v6977, %v6472
      %v6979 = vmax.f32 %v6978, %v6641
      %6980 = vmax.xlane.f32.xlu0 %v6979
      %v6981 = vpop.xlane.xlu0 %6980
      %v6982 = vmax.f32 %v6137, %v6306
      %v6983 = vmax.f32 %v6982, %v6475
      %v6984 = vmax.f32 %v6983, %v6644
      %6985 = vmax.xlane.f32.xlu0 %v6984
      %v6986 = vpop.xlane.xlu0 %6985
      %v6987 = vmax.f32 %v6139, %v6308
      %v6988 = vmax.f32 %v6987, %v6477
      %v6989 = vmax.f32 %v6988, %v6646
      %6990 = vmax.xlane.f32.xlu0 %v6989
      %v6991 = vpop.xlane.xlu0 %6990
      %v6992 = vmax.f32 %v6142, %v6311
      %v6993 = vmax.f32 %v6992, %v6480
      %v6994 = vmax.f32 %v6993, %v6649
      %6995 = vmax.xlane.f32.xlu0 %v6994
      %v6996 = vpop.xlane.xlu0 %6995
      %v6997 = vmax.f32 %v6144, %v6313
      %v6998 = vmax.f32 %v6997, %v6482
      %v6999 = vmax.f32 %v6998, %v6651
      %7000 = vmax.xlane.f32.xlu0 %v6999
      %v7001 = vpop.xlane.xlu0 %7000
      %v7002 = vmax.f32 %v6147, %v6316
      %v7003 = vmax.f32 %v7002, %v6485
      %v7004 = vmax.f32 %v7003, %v6654
      %7005 = vmax.xlane.f32.xlu0 %v7004
      %v7006 = vpop.xlane.xlu0 %7005
      %v7007 = vmax.f32 %v6149, %v6318
      %v7008 = vmax.f32 %v7007, %v6487
      %v7009 = vmax.f32 %v7008, %v6656
      %7010 = vmax.xlane.f32.xlu0 %v7009
      %v7011 = vpop.xlane.xlu0 %7010
      %v7012 = vmax.f32 %v6152, %v6321
      %v7013 = vmax.f32 %v7012, %v6490
      %v7014 = vmax.f32 %v7013, %v6659
      %7015 = vmax.xlane.f32.xlu0 %v7014
      %v7016 = vpop.xlane.xlu0 %7015
      %v7017 = vmax.f32 %v6154, %v6323
      %v7018 = vmax.f32 %v7017, %v6492
      %v7019 = vmax.f32 %v7018, %v6661
      %7020 = vmax.xlane.f32.xlu0 %v7019
      %v7021 = vpop.xlane.xlu0 %7020
      %v7022 = vmax.f32 %v6157, %v6326
      %v7023 = vmax.f32 %v7022, %v6495
      %v7024 = vmax.f32 %v7023, %v6664
      %7025 = vmax.xlane.f32.xlu0 %v7024
      %v7026 = vpop.xlane.xlu0 %7025
      %v7027 = vmax.f32 %v6159, %v6328
      %v7028 = vmax.f32 %v7027, %v6497
      %v7029 = vmax.f32 %v7028, %v6666
      %7030 = vmax.xlane.f32.xlu0 %v7029
      %v7031 = vpop.xlane.xlu0 %7030
      %v7032 = vmax.f32 %v6162, %v6331
      %v7033 = vmax.f32 %v7032, %v6500
      %v7034 = vmax.f32 %v7033, %v6669
      %7035 = vmax.xlane.f32.xlu0 %v7034
      %v7036 = vpop.xlane.xlu0 %7035
      %v7037 = vmax.f32 %v6164, %v6333
      %v7038 = vmax.f32 %v7037, %v6502
      %v7039 = vmax.f32 %v7038, %v6671
      %7040 = vmax.xlane.f32.xlu0 %v7039
      %v7041 = vpop.xlane.xlu0 %7040
      %v7042 = vmax.f32 %v6167, %v6336
      %v7043 = vmax.f32 %v7042, %v6505
      %v7044 = vmax.f32 %v7043, %v6674
      %7045 = vmax.xlane.f32.xlu0 %v7044
      %v7046 = vpop.xlane.xlu0 %7045
      %v7047 = vmax.f32 %v6169, %v6338
      %v7048 = vmax.f32 %v7047, %v6507
      %v7049 = vmax.f32 %v7048, %v6676
      %7050 = vmax.xlane.f32.xlu0 %v7049
      %v7051 = vpop.xlane.xlu0 %7050
      %v7052 = vmax.f32 %v6172, %v6341
      %v7053 = vmax.f32 %v7052, %v6510
      %v7054 = vmax.f32 %v7053, %v6679
      %7055 = vmax.xlane.f32.xlu0 %v7054
      %v7056 = vpop.xlane.xlu0 %7055
      %v7057 = vmax.f32 %v6174, %v6343
      %v7058 = vmax.f32 %v7057, %v6512
      %v7059 = vmax.f32 %v7058, %v6681
      %7060 = vmax.xlane.f32.xlu0 %v7059
      %v7061 = vpop.xlane.xlu0 %7060
      %v7062 = vmax.f32 %v6177, %v6346
      %v7063 = vmax.f32 %v7062, %v6515
      %v7064 = vmax.f32 %v7063, %v6684
      %7065 = vmax.xlane.f32.xlu0 %v7064
      %v7066 = vpop.xlane.xlu0 %7065
      %v7067 = vmax.f32 %v6179, %v6348
      %v7068 = vmax.f32 %v7067, %v6517
      %v7069 = vmax.f32 %v7068, %v6686
      %7070 = vmax.xlane.f32.xlu0 %v7069
      %v7071 = vpop.xlane.xlu0 %7070
      %v7072 = vmax.f32 %v6688, %v6756
      %v7073 = vmax.f32 %v6689, %v6761
      %v7074 = vmax.f32 %v6690, %v6766
      %v7075 = vmax.f32 %v6691, %v6771
      %v7076 = vmax.f32 %v6692, %v6776
      %v7077 = vmax.f32 %v6693, %v6781
      %v7078 = vmax.f32 %v6694, %v6786
      %v7079 = vmax.f32 %v6695, %v6791
      %v7080 = vmax.f32 %v6696, %v6796
      %v7081 = vmax.f32 %v6697, %v6801
      %v7082 = vmax.f32 %v6698, %v6806
      %v7083 = vmax.f32 %v6699, %v6811
      %v7084 = vmax.f32 %v6700, %v6816
      %v7085 = vmax.f32 %v6701, %v6821
      %v7086 = vmax.f32 %v6702, %v6826
      %v7087 = vmax.f32 %v6703, %v6831
      %v7088 = vmax.f32 %v6704, %v6836
      %v7089 = vmax.f32 %v6705, %v6841
      %v7090 = vmax.f32 %v6706, %v6846
      %v7091 = vmax.f32 %v6707, %v6851
      %v7092 = vmax.f32 %v6708, %v6856
      %v7093 = vmax.f32 %v6709, %v6861
      %v7094 = vmax.f32 %v6710, %v6866
      %v7095 = vmax.f32 %v6711, %v6871
      %v7096 = vmax.f32 %v6712, %v6876
      %v7097 = vmax.f32 %v6713, %v6881
      %v7098 = vmax.f32 %v6714, %v6886
      %v7099 = vmax.f32 %v6715, %v6891
      %v7100 = vmax.f32 %v6716, %v6896
      %v7101 = vmax.f32 %v6717, %v6901
      %v7102 = vmax.f32 %v6718, %v6906
      %v7103 = vmax.f32 %v6719, %v6911
      %v7104 = vmax.f32 %v6720, %v6916
      %v7105 = vmax.f32 %v6721, %v6921
      %v7106 = vmax.f32 %v6722, %v6926
      %v7107 = vmax.f32 %v6723, %v6931
      %v7108 = vmax.f32 %v6724, %v6936
      %v7109 = vmax.f32 %v6725, %v6941
      %v7110 = vmax.f32 %v6726, %v6946
      %v7111 = vmax.f32 %v6727, %v6951
      %v7112 = vmax.f32 %v6728, %v6956
      %v7113 = vmax.f32 %v6729, %v6961
      %v7114 = vmax.f32 %v6730, %v6966
      %v7115 = vmax.f32 %v6731, %v6971
      %v7116 = vmax.f32 %v6732, %v6976
      %v7117 = vmax.f32 %v6733, %v6981
      %v7118 = vmax.f32 %v6734, %v6986
      %v7119 = vmax.f32 %v6735, %v6991
      %v7120 = vmax.f32 %v6736, %v6996
      %v7121 = vmax.f32 %v6737, %v7001
      %v7122 = vmax.f32 %v6738, %v7006
      %v7123 = vmax.f32 %v6739, %v7011
      %v7124 = vmax.f32 %v6740, %v7016
      %v7125 = vmax.f32 %v6741, %v7021
      %v7126 = vmax.f32 %v6742, %v7026
      %v7127 = vmax.f32 %v6743, %v7031
      %v7128 = vmax.f32 %v6744, %v7036
      %v7129 = vmax.f32 %v6745, %v7041
      %v7130 = vmax.f32 %v6746, %v7046
      %v7131 = vmax.f32 %v6747, %v7051
      %v7132 = vmax.f32 %v6748, %v7056
      %v7133 = vmax.f32 %v6749, %v7061
      %v7134 = vmax.f32 %v6750, %v7066
      %v7135 = vmax.f32 %v6751, %v7071
      %v7136 = vsub.f32 %v6688, %v7072
      %v7137 = vsub.f32 %v6689, %v7073
      %v7138 = vsub.f32 %v6690, %v7074
      %v7139 = vsub.f32 %v6691, %v7075
      %v7140 = vsub.f32 %v6692, %v7076
      %v7141 = vsub.f32 %v6693, %v7077
      %v7142 = vsub.f32 %v6694, %v7078
      %v7143 = vsub.f32 %v6695, %v7079
      %v7144 = vsub.f32 %v6696, %v7080
      %v7145 = vsub.f32 %v6697, %v7081
      %v7146 = vsub.f32 %v6698, %v7082
      %v7147 = vsub.f32 %v6699, %v7083
      %v7148 = vsub.f32 %v6700, %v7084
      %v7149 = vsub.f32 %v6701, %v7085
      %v7150 = vsub.f32 %v6702, %v7086
      %v7151 = vsub.f32 %v6703, %v7087
      %v7152 = vsub.f32 %v6704, %v7088
      %v7153 = vsub.f32 %v6705, %v7089
      %v7154 = vsub.f32 %v6706, %v7090
      %v7155 = vsub.f32 %v6707, %v7091
      %v7156 = vsub.f32 %v6708, %v7092
      %v7157 = vsub.f32 %v6709, %v7093
      %v7158 = vsub.f32 %v6710, %v7094
      %v7159 = vsub.f32 %v6711, %v7095
      %v7160 = vsub.f32 %v6712, %v7096
      %v7161 = vsub.f32 %v6713, %v7097
      %v7162 = vsub.f32 %v6714, %v7098
      %v7163 = vsub.f32 %v6715, %v7099
      %v7164 = vsub.f32 %v6716, %v7100
      %v7165 = vsub.f32 %v6717, %v7101
      %v7166 = vsub.f32 %v6718, %v7102
      %v7167 = vsub.f32 %v6719, %v7103
      %v7168 = vsub.f32 %v6720, %v7104
      %v7169 = vsub.f32 %v6721, %v7105
      %v7170 = vsub.f32 %v6722, %v7106
      %v7171 = vsub.f32 %v6723, %v7107
      %v7172 = vsub.f32 %v6724, %v7108
      %v7173 = vsub.f32 %v6725, %v7109
      %v7174 = vsub.f32 %v6726, %v7110
      %v7175 = vsub.f32 %v6727, %v7111
      %v7176 = vsub.f32 %v6728, %v7112
      %v7177 = vsub.f32 %v6729, %v7113
      %v7178 = vsub.f32 %v6730, %v7114
      %v7179 = vsub.f32 %v6731, %v7115
      %v7180 = vsub.f32 %v6732, %v7116
      %v7181 = vsub.f32 %v6733, %v7117
      %v7182 = vsub.f32 %v6734, %v7118
      %v7183 = vsub.f32 %v6735, %v7119
      %v7184 = vsub.f32 %v6736, %v7120
      %v7185 = vsub.f32 %v6737, %v7121
      %v7186 = vsub.f32 %v6738, %v7122
      %v7187 = vsub.f32 %v6739, %v7123
      %v7188 = vsub.f32 %v6740, %v7124
      %v7189 = vsub.f32 %v6741, %v7125
      %v7190 = vsub.f32 %v6742, %v7126
      %v7191 = vsub.f32 %v6743, %v7127
      %v7192 = vsub.f32 %v6744, %v7128
      %v7193 = vsub.f32 %v6745, %v7129
      %v7194 = vsub.f32 %v6746, %v7130
      %v7195 = vsub.f32 %v6747, %v7131
      %v7196 = vsub.f32 %v6748, %v7132
      %v7197 = vsub.f32 %v6749, %v7133
      %v7198 = vsub.f32 %v6750, %v7134
      %v7199 = vsub.f32 %v6751, %v7135
      %v7200 = vmul.f32 %v7136, 1.442695
      %v7201 = vpow.pop %v7200
      %v7202 = vmul.f32 %v7137, 1.442695
      %v7203 = vpow.pop %v7202
      %v7204 = vmul.f32 %v7138, 1.442695
      %v7205 = vpow.pop %v7204
      %v7206 = vmul.f32 %v7139, 1.442695
      %v7207 = vpow.pop %v7206
      %v7208 = vmul.f32 %v7140, 1.442695
      %v7209 = vpow.pop %v7208
      %v7210 = vmul.f32 %v7141, 1.442695
      %v7211 = vpow.pop %v7210
      %v7212 = vmul.f32 %v7142, 1.442695
      %v7213 = vpow.pop %v7212
      %v7214 = vmul.f32 %v7143, 1.442695
      %v7215 = vpow.pop %v7214
      %v7216 = vmul.f32 %v7144, 1.442695
      %v7217 = vpow.pop %v7216
      %v7218 = vmul.f32 %v7145, 1.442695
      %v7219 = vpow.pop %v7218
      %v7220 = vmul.f32 %v7146, 1.442695
      %v7221 = vpow.pop %v7220
      %v7222 = vmul.f32 %v7147, 1.442695
      %v7223 = vpow.pop %v7222
      %v7224 = vmul.f32 %v7148, 1.442695
      %v7225 = vpow.pop %v7224
      %v7226 = vmul.f32 %v7149, 1.442695
      %v7227 = vpow.pop %v7226
      %v7228 = vmul.f32 %v7150, 1.442695
      %v7229 = vpow.pop %v7228
      %v7230 = vmul.f32 %v7151, 1.442695
      %v7231 = vpow.pop %v7230
      %v7232 = vmul.f32 %v7152, 1.442695
      %v7233 = vpow.pop %v7232
      %v7234 = vmul.f32 %v7153, 1.442695
      %v7235 = vpow.pop %v7234
      %v7236 = vmul.f32 %v7154, 1.442695
      %v7237 = vpow.pop %v7236
      %v7238 = vmul.f32 %v7155, 1.442695
      %v7239 = vpow.pop %v7238
      %v7240 = vmul.f32 %v7156, 1.442695
      %v7241 = vpow.pop %v7240
      %v7242 = vmul.f32 %v7157, 1.442695
      %v7243 = vpow.pop %v7242
      %v7244 = vmul.f32 %v7158, 1.442695
      %v7245 = vpow.pop %v7244
      %v7246 = vmul.f32 %v7159, 1.442695
      %v7247 = vpow.pop %v7246
      %v7248 = vmul.f32 %v7160, 1.442695
      %v7249 = vpow.pop %v7248
      %v7250 = vmul.f32 %v7161, 1.442695
      %v7251 = vpow.pop %v7250
      %v7252 = vmul.f32 %v7162, 1.442695
      %v7253 = vpow.pop %v7252
      %v7254 = vmul.f32 %v7163, 1.442695
      %v7255 = vpow.pop %v7254
      %v7256 = vmul.f32 %v7164, 1.442695
      %v7257 = vpow.pop %v7256
      %v7258 = vmul.f32 %v7165, 1.442695
      %v7259 = vpow.pop %v7258
      %v7260 = vmul.f32 %v7166, 1.442695
      %v7261 = vpow.pop %v7260
      %v7262 = vmul.f32 %v7167, 1.442695
      %v7263 = vpow.pop %v7262
      %v7264 = vmul.f32 %v7168, 1.442695
      %v7265 = vpow.pop %v7264
      %v7266 = vmul.f32 %v7169, 1.442695
      %v7267 = vpow.pop %v7266
      %v7268 = vmul.f32 %v7170, 1.442695
      %v7269 = vpow.pop %v7268
      %v7270 = vmul.f32 %v7171, 1.442695
      %v7271 = vpow.pop %v7270
      %v7272 = vmul.f32 %v7172, 1.442695
      %v7273 = vpow.pop %v7272
      %v7274 = vmul.f32 %v7173, 1.442695
      %v7275 = vpow.pop %v7274
      %v7276 = vmul.f32 %v7174, 1.442695
      %v7277 = vpow.pop %v7276
      %v7278 = vmul.f32 %v7175, 1.442695
      %v7279 = vpow.pop %v7278
      %v7280 = vmul.f32 %v7176, 1.442695
      %v7281 = vpow.pop %v7280
      %v7282 = vmul.f32 %v7177, 1.442695
      %v7283 = vpow.pop %v7282
      %v7284 = vmul.f32 %v7178, 1.442695
      %v7285 = vpow.pop %v7284
      %v7286 = vmul.f32 %v7179, 1.442695
      %v7287 = vpow.pop %v7286
      %v7288 = vmul.f32 %v7180, 1.442695
      %v7289 = vpow.pop %v7288
      %v7290 = vmul.f32 %v7181, 1.442695
      %v7291 = vpow.pop %v7290
      %v7292 = vmul.f32 %v7182, 1.442695
      %v7293 = vpow.pop %v7292
      %v7294 = vmul.f32 %v7183, 1.442695
      %v7295 = vpow.pop %v7294
      %v7296 = vmul.f32 %v7184, 1.442695
      %v7297 = vpow.pop %v7296
      %v7298 = vmul.f32 %v7185, 1.442695
      %v7299 = vpow.pop %v7298
      %v7300 = vmul.f32 %v7186, 1.442695
      %v7301 = vpow.pop %v7300
      %v7302 = vmul.f32 %v7187, 1.442695
      %v7303 = vpow.pop %v7302
      %v7304 = vmul.f32 %v7188, 1.442695
      %v7305 = vpow.pop %v7304
      %v7306 = vmul.f32 %v7189, 1.442695
      %v7307 = vpow.pop %v7306
      %v7308 = vmul.f32 %v7190, 1.442695
      %v7309 = vpow.pop %v7308
      %v7310 = vmul.f32 %v7191, 1.442695
      %v7311 = vpow.pop %v7310
      %v7312 = vmul.f32 %v7192, 1.442695
      %v7313 = vpow.pop %v7312
      %v7314 = vmul.f32 %v7193, 1.442695
      %v7315 = vpow.pop %v7314
      %v7316 = vmul.f32 %v7194, 1.442695
      %v7317 = vpow.pop %v7316
      %v7318 = vmul.f32 %v7195, 1.442695
      %v7319 = vpow.pop %v7318
      %v7320 = vmul.f32 %v7196, 1.442695
      %v7321 = vpow.pop %v7320
      %v7322 = vmul.f32 %v7197, 1.442695
      %v7323 = vpow.pop %v7322
      %v7324 = vmul.f32 %v7198, 1.442695
      %v7325 = vpow.pop %v7324
      %v7326 = vmul.f32 %v7199, 1.442695
      %v7327 = vpow.pop %v7326
      %7329 = vset.pattern.permute.xlu0 0
      %7330 = vperm.xlu0 %7329, %v7072
      %v7331 = vpop.permute.xlu0 %7330
      %7334 = vset.pattern.permute.xlu0 0
      %7335 = vperm.xlu0 %7334, %v7073
      %v7336 = vpop.permute.xlu0 %7335
      %7339 = vset.pattern.permute.xlu0 0
      %7340 = vperm.xlu0 %7339, %v7074
      %v7341 = vpop.permute.xlu0 %7340
      %7344 = vset.pattern.permute.xlu0 0
      %7345 = vperm.xlu0 %7344, %v7075
      %v7346 = vpop.permute.xlu0 %7345
      %7349 = vset.pattern.permute.xlu0 0
      %7350 = vperm.xlu0 %7349, %v7076
      %v7351 = vpop.permute.xlu0 %7350
      %7354 = vset.pattern.permute.xlu0 0
      %7355 = vperm.xlu0 %7354, %v7077
      %v7356 = vpop.permute.xlu0 %7355
      %7359 = vset.pattern.permute.xlu0 0
      %7360 = vperm.xlu0 %7359, %v7078
      %v7361 = vpop.permute.xlu0 %7360
      %7364 = vset.pattern.permute.xlu0 0
      %7365 = vperm.xlu0 %7364, %v7079
      %v7366 = vpop.permute.xlu0 %7365
      %7369 = vset.pattern.permute.xlu0 0
      %7370 = vperm.xlu0 %7369, %v7080
      %v7371 = vpop.permute.xlu0 %7370
      %7374 = vset.pattern.permute.xlu0 0
      %7375 = vperm.xlu0 %7374, %v7081
      %v7376 = vpop.permute.xlu0 %7375
      %7379 = vset.pattern.permute.xlu0 0
      %7380 = vperm.xlu0 %7379, %v7082
      %v7381 = vpop.permute.xlu0 %7380
      %7384 = vset.pattern.permute.xlu0 0
      %7385 = vperm.xlu0 %7384, %v7083
      %v7386 = vpop.permute.xlu0 %7385
      %7389 = vset.pattern.permute.xlu0 0
      %7390 = vperm.xlu0 %7389, %v7084
      %v7391 = vpop.permute.xlu0 %7390
      %7394 = vset.pattern.permute.xlu0 0
      %7395 = vperm.xlu0 %7394, %v7085
      %v7396 = vpop.permute.xlu0 %7395
      %7399 = vset.pattern.permute.xlu0 0
      %7400 = vperm.xlu0 %7399, %v7086
      %v7401 = vpop.permute.xlu0 %7400
      %7404 = vset.pattern.permute.xlu0 0
      %7405 = vperm.xlu0 %7404, %v7087
      %v7406 = vpop.permute.xlu0 %7405
      %7409 = vset.pattern.permute.xlu0 0
      %7410 = vperm.xlu0 %7409, %v7088
      %v7411 = vpop.permute.xlu0 %7410
      %7414 = vset.pattern.permute.xlu0 0
      %7415 = vperm.xlu0 %7414, %v7089
      %v7416 = vpop.permute.xlu0 %7415
      %7419 = vset.pattern.permute.xlu0 0
      %7420 = vperm.xlu0 %7419, %v7090
      %v7421 = vpop.permute.xlu0 %7420
      %7424 = vset.pattern.permute.xlu0 0
      %7425 = vperm.xlu0 %7424, %v7091
      %v7426 = vpop.permute.xlu0 %7425
      %7429 = vset.pattern.permute.xlu0 0
      %7430 = vperm.xlu0 %7429, %v7092
      %v7431 = vpop.permute.xlu0 %7430
      %7434 = vset.pattern.permute.xlu0 0
      %7435 = vperm.xlu0 %7434, %v7093
      %v7436 = vpop.permute.xlu0 %7435
      %7439 = vset.pattern.permute.xlu0 0
      %7440 = vperm.xlu0 %7439, %v7094
      %v7441 = vpop.permute.xlu0 %7440
      %7444 = vset.pattern.permute.xlu0 0
      %7445 = vperm.xlu0 %7444, %v7095
      %v7446 = vpop.permute.xlu0 %7445
      %7449 = vset.pattern.permute.xlu0 0
      %7450 = vperm.xlu0 %7449, %v7096
      %v7451 = vpop.permute.xlu0 %7450
      %7454 = vset.pattern.permute.xlu0 0
      %7455 = vperm.xlu0 %7454, %v7097
      %v7456 = vpop.permute.xlu0 %7455
      %7459 = vset.pattern.permute.xlu0 0
      %7460 = vperm.xlu0 %7459, %v7098
      %v7461 = vpop.permute.xlu0 %7460
      %7464 = vset.pattern.permute.xlu0 0
      %7465 = vperm.xlu0 %7464, %v7099
      %v7466 = vpop.permute.xlu0 %7465
      %7469 = vset.pattern.permute.xlu0 0
      %7470 = vperm.xlu0 %7469, %v7100
      %v7471 = vpop.permute.xlu0 %7470
      %7474 = vset.pattern.permute.xlu0 0
      %7475 = vperm.xlu0 %7474, %v7101
      %v7476 = vpop.permute.xlu0 %7475
      %7479 = vset.pattern.permute.xlu0 0
      %7480 = vperm.xlu0 %7479, %v7102
      %v7481 = vpop.permute.xlu0 %7480
      %7484 = vset.pattern.permute.xlu0 0
      %7485 = vperm.xlu0 %7484, %v7103
      %v7486 = vpop.permute.xlu0 %7485
      %7489 = vset.pattern.permute.xlu0 0
      %7490 = vperm.xlu0 %7489, %v7104
      %v7491 = vpop.permute.xlu0 %7490
      %7494 = vset.pattern.permute.xlu0 0
      %7495 = vperm.xlu0 %7494, %v7105
      %v7496 = vpop.permute.xlu0 %7495
      %7499 = vset.pattern.permute.xlu0 0
      %7500 = vperm.xlu0 %7499, %v7106
      %v7501 = vpop.permute.xlu0 %7500
      %7504 = vset.pattern.permute.xlu0 0
      %7505 = vperm.xlu0 %7504, %v7107
      %v7506 = vpop.permute.xlu0 %7505
      %7509 = vset.pattern.permute.xlu0 0
      %7510 = vperm.xlu0 %7509, %v7108
      %v7511 = vpop.permute.xlu0 %7510
      %7514 = vset.pattern.permute.xlu0 0
      %7515 = vperm.xlu0 %7514, %v7109
      %v7516 = vpop.permute.xlu0 %7515
      %7519 = vset.pattern.permute.xlu0 0
      %7520 = vperm.xlu0 %7519, %v7110
      %v7521 = vpop.permute.xlu0 %7520
      %7524 = vset.pattern.permute.xlu0 0
      %7525 = vperm.xlu0 %7524, %v7111
      %v7526 = vpop.permute.xlu0 %7525
      %7529 = vset.pattern.permute.xlu0 0
      %7530 = vperm.xlu0 %7529, %v7112
      %v7531 = vpop.permute.xlu0 %7530
      %7534 = vset.pattern.permute.xlu0 0
      %7535 = vperm.xlu0 %7534, %v7113
      %v7536 = vpop.permute.xlu0 %7535
      %7539 = vset.pattern.permute.xlu0 0
      %7540 = vperm.xlu0 %7539, %v7114
      %v7541 = vpop.permute.xlu0 %7540
      %7544 = vset.pattern.permute.xlu0 0
      %7545 = vperm.xlu0 %7544, %v7115
      %v7546 = vpop.permute.xlu0 %7545
      %7549 = vset.pattern.permute.xlu0 0
      %7550 = vperm.xlu0 %7549, %v7116
      %v7551 = vpop.permute.xlu0 %7550
      %7554 = vset.pattern.permute.xlu0 0
      %7555 = vperm.xlu0 %7554, %v7117
      %v7556 = vpop.permute.xlu0 %7555
      %7559 = vset.pattern.permute.xlu0 0
      %7560 = vperm.xlu0 %7559, %v7118
      %v7561 = vpop.permute.xlu0 %7560
      %7564 = vset.pattern.permute.xlu0 0
      %7565 = vperm.xlu0 %7564, %v7119
      %v7566 = vpop.permute.xlu0 %7565
      %7569 = vset.pattern.permute.xlu0 0
      %7570 = vperm.xlu0 %7569, %v7120
      %v7571 = vpop.permute.xlu0 %7570
      %7574 = vset.pattern.permute.xlu0 0
      %7575 = vperm.xlu0 %7574, %v7121
      %v7576 = vpop.permute.xlu0 %7575
      %7579 = vset.pattern.permute.xlu0 0
      %7580 = vperm.xlu0 %7579, %v7122
      %v7581 = vpop.permute.xlu0 %7580
      %7584 = vset.pattern.permute.xlu0 0
      %7585 = vperm.xlu0 %7584, %v7123
      %v7586 = vpop.permute.xlu0 %7585
      %7589 = vset.pattern.permute.xlu0 0
      %7590 = vperm.xlu0 %7589, %v7124
      %v7591 = vpop.permute.xlu0 %7590
      %7594 = vset.pattern.permute.xlu0 0
      %7595 = vperm.xlu0 %7594, %v7125
      %v7596 = vpop.permute.xlu0 %7595
      %7599 = vset.pattern.permute.xlu0 0
      %7600 = vperm.xlu0 %7599, %v7126
      %v7601 = vpop.permute.xlu0 %7600
      %7604 = vset.pattern.permute.xlu0 0
      %7605 = vperm.xlu0 %7604, %v7127
      %v7606 = vpop.permute.xlu0 %7605
      %7609 = vset.pattern.permute.xlu0 0
      %7610 = vperm.xlu0 %7609, %v7128
      %v7611 = vpop.permute.xlu0 %7610
      %7614 = vset.pattern.permute.xlu0 0
      %7615 = vperm.xlu0 %7614, %v7129
      %v7616 = vpop.permute.xlu0 %7615
      %7619 = vset.pattern.permute.xlu0 0
      %7620 = vperm.xlu0 %7619, %v7130
      %v7621 = vpop.permute.xlu0 %7620
      %7624 = vset.pattern.permute.xlu0 0
      %7625 = vperm.xlu0 %7624, %v7131
      %v7626 = vpop.permute.xlu0 %7625
      %7629 = vset.pattern.permute.xlu0 0
      %7630 = vperm.xlu0 %7629, %v7132
      %v7631 = vpop.permute.xlu0 %7630
      %7634 = vset.pattern.permute.xlu0 0
      %7635 = vperm.xlu0 %7634, %v7133
      %v7636 = vpop.permute.xlu0 %7635
      %7639 = vset.pattern.permute.xlu0 0
      %7640 = vperm.xlu0 %7639, %v7134
      %v7641 = vpop.permute.xlu0 %7640
      %7644 = vset.pattern.permute.xlu0 0
      %7645 = vperm.xlu0 %7644, %v7135
      %v7646 = vpop.permute.xlu0 %7645
      %v7648 = vsub.f32 %v6022, %v7331
      %v7649 = vsub.f32 %v6191, %v7331
      %v7650 = vsub.f32 %v6360, %v7331
      %v7651 = vsub.f32 %v6529, %v7331
      %v7652 = vsub.f32 %v6024, %v7336
      %v7653 = vsub.f32 %v6193, %v7336
      %v7654 = vsub.f32 %v6362, %v7336
      %v7655 = vsub.f32 %v6531, %v7336
      %v7656 = vsub.f32 %v6027, %v7341
      %v7657 = vsub.f32 %v6196, %v7341
      %v7658 = vsub.f32 %v6365, %v7341
      %v7659 = vsub.f32 %v6534, %v7341
      %v7660 = vsub.f32 %v6029, %v7346
      %v7661 = vsub.f32 %v6198, %v7346
      %v7662 = vsub.f32 %v6367, %v7346
      %v7663 = vsub.f32 %v6536, %v7346
      %v7664 = vsub.f32 %v6032, %v7351
      %v7665 = vsub.f32 %v6201, %v7351
      %v7666 = vsub.f32 %v6370, %v7351
      %v7667 = vsub.f32 %v6539, %v7351
      %v7668 = vsub.f32 %v6034, %v7356
      %v7669 = vsub.f32 %v6203, %v7356
      %v7670 = vsub.f32 %v6372, %v7356
      %v7671 = vsub.f32 %v6541, %v7356
      %v7672 = vsub.f32 %v6037, %v7361
      %v7673 = vsub.f32 %v6206, %v7361
      %v7674 = vsub.f32 %v6375, %v7361
      %v7675 = vsub.f32 %v6544, %v7361
      %v7676 = vsub.f32 %v6039, %v7366
      %v7677 = vsub.f32 %v6208, %v7366
      %v7678 = vsub.f32 %v6377, %v7366
      %v7679 = vsub.f32 %v6546, %v7366
      %v7680 = vsub.f32 %v6042, %v7371
      %v7681 = vsub.f32 %v6211, %v7371
      %v7682 = vsub.f32 %v6380, %v7371
      %v7683 = vsub.f32 %v6549, %v7371
      %v7684 = vsub.f32 %v6044, %v7376
      %v7685 = vsub.f32 %v6213, %v7376
      %v7686 = vsub.f32 %v6382, %v7376
      %v7687 = vsub.f32 %v6551, %v7376
      %v7688 = vsub.f32 %v6047, %v7381
      %v7689 = vsub.f32 %v6216, %v7381
      %v7690 = vsub.f32 %v6385, %v7381
      %v7691 = vsub.f32 %v6554, %v7381
      %v7692 = vsub.f32 %v6049, %v7386
      %v7693 = vsub.f32 %v6218, %v7386
      %v7694 = vsub.f32 %v6387, %v7386
      %v7695 = vsub.f32 %v6556, %v7386
      %v7696 = vsub.f32 %v6052, %v7391
      %v7697 = vsub.f32 %v6221, %v7391
      %v7698 = vsub.f32 %v6390, %v7391
      %v7699 = vsub.f32 %v6559, %v7391
      %v7700 = vsub.f32 %v6054, %v7396
      %v7701 = vsub.f32 %v6223, %v7396
      %v7702 = vsub.f32 %v6392, %v7396
      %v7703 = vsub.f32 %v6561, %v7396
      %v7704 = vsub.f32 %v6057, %v7401
      %v7705 = vsub.f32 %v6226, %v7401
      %v7706 = vsub.f32 %v6395, %v7401
      %v7707 = vsub.f32 %v6564, %v7401
      %v7708 = vsub.f32 %v6059, %v7406
      %v7709 = vsub.f32 %v6228, %v7406
      %v7710 = vsub.f32 %v6397, %v7406
      %v7711 = vsub.f32 %v6566, %v7406
      %v7712 = vsub.f32 %v6062, %v7411
      %v7713 = vsub.f32 %v6231, %v7411
      %v7714 = vsub.f32 %v6400, %v7411
      %v7715 = vsub.f32 %v6569, %v7411
      %v7716 = vsub.f32 %v6064, %v7416
      %v7717 = vsub.f32 %v6233, %v7416
      %v7718 = vsub.f32 %v6402, %v7416
      %v7719 = vsub.f32 %v6571, %v7416
      %v7720 = vsub.f32 %v6067, %v7421
      %v7721 = vsub.f32 %v6236, %v7421
      %v7722 = vsub.f32 %v6405, %v7421
      %v7723 = vsub.f32 %v6574, %v7421
      %v7724 = vsub.f32 %v6069, %v7426
      %v7725 = vsub.f32 %v6238, %v7426
      %v7726 = vsub.f32 %v6407, %v7426
      %v7727 = vsub.f32 %v6576, %v7426
      %v7728 = vsub.f32 %v6072, %v7431
      %v7729 = vsub.f32 %v6241, %v7431
      %v7730 = vsub.f32 %v6410, %v7431
      %v7731 = vsub.f32 %v6579, %v7431
      %v7732 = vsub.f32 %v6074, %v7436
      %v7733 = vsub.f32 %v6243, %v7436
      %v7734 = vsub.f32 %v6412, %v7436
      %v7735 = vsub.f32 %v6581, %v7436
      %v7736 = vsub.f32 %v6077, %v7441
      %v7737 = vsub.f32 %v6246, %v7441
      %v7738 = vsub.f32 %v6415, %v7441
      %v7739 = vsub.f32 %v6584, %v7441
      %v7740 = vsub.f32 %v6079, %v7446
      %v7741 = vsub.f32 %v6248, %v7446
      %v7742 = vsub.f32 %v6417, %v7446
      %v7743 = vsub.f32 %v6586, %v7446
      %v7744 = vsub.f32 %v6082, %v7451
      %v7745 = vsub.f32 %v6251, %v7451
      %v7746 = vsub.f32 %v6420, %v7451
      %v7747 = vsub.f32 %v6589, %v7451
      %v7748 = vsub.f32 %v6084, %v7456
      %v7749 = vsub.f32 %v6253, %v7456
      %v7750 = vsub.f32 %v6422, %v7456
      %v7751 = vsub.f32 %v6591, %v7456
      %v7752 = vsub.f32 %v6087, %v7461
      %v7753 = vsub.f32 %v6256, %v7461
      %v7754 = vsub.f32 %v6425, %v7461
      %v7755 = vsub.f32 %v6594, %v7461
      %v7756 = vsub.f32 %v6089, %v7466
      %v7757 = vsub.f32 %v6258, %v7466
      %v7758 = vsub.f32 %v6427, %v7466
      %v7759 = vsub.f32 %v6596, %v7466
      %v7760 = vsub.f32 %v6092, %v7471
      %v7761 = vsub.f32 %v6261, %v7471
      %v7762 = vsub.f32 %v6430, %v7471
      %v7763 = vsub.f32 %v6599, %v7471
      %v7764 = vsub.f32 %v6094, %v7476
      %v7765 = vsub.f32 %v6263, %v7476
      %v7766 = vsub.f32 %v6432, %v7476
      %v7767 = vsub.f32 %v6601, %v7476
      %v7768 = vsub.f32 %v6097, %v7481
      %v7769 = vsub.f32 %v6266, %v7481
      %v7770 = vsub.f32 %v6435, %v7481
      %v7771 = vsub.f32 %v6604, %v7481
      %v7772 = vsub.f32 %v6099, %v7486
      %v7773 = vsub.f32 %v6268, %v7486
      %v7774 = vsub.f32 %v6437, %v7486
      %v7775 = vsub.f32 %v6606, %v7486
      %v7776 = vsub.f32 %v6102, %v7491
      %v7777 = vsub.f32 %v6271, %v7491
      %v7778 = vsub.f32 %v6440, %v7491
      %v7779 = vsub.f32 %v6609, %v7491
      %v7780 = vsub.f32 %v6104, %v7496
      %v7781 = vsub.f32 %v6273, %v7496
      %v7782 = vsub.f32 %v6442, %v7496
      %v7783 = vsub.f32 %v6611, %v7496
      %v7784 = vsub.f32 %v6107, %v7501
      %v7785 = vsub.f32 %v6276, %v7501
      %v7786 = vsub.f32 %v6445, %v7501
      %v7787 = vsub.f32 %v6614, %v7501
      %v7788 = vsub.f32 %v6109, %v7506
      %v7789 = vsub.f32 %v6278, %v7506
      %v7790 = vsub.f32 %v6447, %v7506
      %v7791 = vsub.f32 %v6616, %v7506
      %v7792 = vsub.f32 %v6112, %v7511
      %v7793 = vsub.f32 %v6281, %v7511
      %v7794 = vsub.f32 %v6450, %v7511
      %v7795 = vsub.f32 %v6619, %v7511
      %v7796 = vsub.f32 %v6114, %v7516
      %v7797 = vsub.f32 %v6283, %v7516
      %v7798 = vsub.f32 %v6452, %v7516
      %v7799 = vsub.f32 %v6621, %v7516
      %v7800 = vsub.f32 %v6117, %v7521
      %v7801 = vsub.f32 %v6286, %v7521
      %v7802 = vsub.f32 %v6455, %v7521
      %v7803 = vsub.f32 %v6624, %v7521
      %v7804 = vsub.f32 %v6119, %v7526
      %v7805 = vsub.f32 %v6288, %v7526
      %v7806 = vsub.f32 %v6457, %v7526
      %v7807 = vsub.f32 %v6626, %v7526
      %v7808 = vsub.f32 %v6122, %v7531
      %v7809 = vsub.f32 %v6291, %v7531
      %v7810 = vsub.f32 %v6460, %v7531
      %v7811 = vsub.f32 %v6629, %v7531
      %v7812 = vsub.f32 %v6124, %v7536
      %v7813 = vsub.f32 %v6293, %v7536
      %v7814 = vsub.f32 %v6462, %v7536
      %v7815 = vsub.f32 %v6631, %v7536
      %v7816 = vsub.f32 %v6127, %v7541
      %v7817 = vsub.f32 %v6296, %v7541
      %v7818 = vsub.f32 %v6465, %v7541
      %v7819 = vsub.f32 %v6634, %v7541
      %v7820 = vsub.f32 %v6129, %v7546
      %v7821 = vsub.f32 %v6298, %v7546
      %v7822 = vsub.f32 %v6467, %v7546
      %v7823 = vsub.f32 %v6636, %v7546
      %v7824 = vsub.f32 %v6132, %v7551
      %v7825 = vsub.f32 %v6301, %v7551
      %v7826 = vsub.f32 %v6470, %v7551
      %v7827 = vsub.f32 %v6639, %v7551
      %v7828 = vsub.f32 %v6134, %v7556
      %v7829 = vsub.f32 %v6303, %v7556
      %v7830 = vsub.f32 %v6472, %v7556
      %v7831 = vsub.f32 %v6641, %v7556
      %v7832 = vsub.f32 %v6137, %v7561
      %v7833 = vsub.f32 %v6306, %v7561
      %v7834 = vsub.f32 %v6475, %v7561
      %v7835 = vsub.f32 %v6644, %v7561
      %v7836 = vsub.f32 %v6139, %v7566
      %v7837 = vsub.f32 %v6308, %v7566
      %v7838 = vsub.f32 %v6477, %v7566
      %v7839 = vsub.f32 %v6646, %v7566
      %v7840 = vsub.f32 %v6142, %v7571
      %v7841 = vsub.f32 %v6311, %v7571
      %v7842 = vsub.f32 %v6480, %v7571
      %v7843 = vsub.f32 %v6649, %v7571
      %v7844 = vsub.f32 %v6144, %v7576
      %v7845 = vsub.f32 %v6313, %v7576
      %v7846 = vsub.f32 %v6482, %v7576
      %v7847 = vsub.f32 %v6651, %v7576
      %v7848 = vsub.f32 %v6147, %v7581
      %v7849 = vsub.f32 %v6316, %v7581
      %v7850 = vsub.f32 %v6485, %v7581
      %v7851 = vsub.f32 %v6654, %v7581
      %v7852 = vsub.f32 %v6149, %v7586
      %v7853 = vsub.f32 %v6318, %v7586
      %v7854 = vsub.f32 %v6487, %v7586
      %v7855 = vsub.f32 %v6656, %v7586
      %v7856 = vsub.f32 %v6152, %v7591
      %v7857 = vsub.f32 %v6321, %v7591
      %v7858 = vsub.f32 %v6490, %v7591
      %v7859 = vsub.f32 %v6659, %v7591
      %v7860 = vsub.f32 %v6154, %v7596
      %v7861 = vsub.f32 %v6323, %v7596
      %v7862 = vsub.f32 %v6492, %v7596
      %v7863 = vsub.f32 %v6661, %v7596
      %v7864 = vsub.f32 %v6157, %v7601
      %v7865 = vsub.f32 %v6326, %v7601
      %v7866 = vsub.f32 %v6495, %v7601
      %v7867 = vsub.f32 %v6664, %v7601
      %v7868 = vsub.f32 %v6159, %v7606
      %v7869 = vsub.f32 %v6328, %v7606
      %v7870 = vsub.f32 %v6497, %v7606
      %v7871 = vsub.f32 %v6666, %v7606
      %v7872 = vsub.f32 %v6162, %v7611
      %v7873 = vsub.f32 %v6331, %v7611
      %v7874 = vsub.f32 %v6500, %v7611
      %v7875 = vsub.f32 %v6669, %v7611
      %v7876 = vsub.f32 %v6164, %v7616
      %v7877 = vsub.f32 %v6333, %v7616
      %v7878 = vsub.f32 %v6502, %v7616
      %v7879 = vsub.f32 %v6671, %v7616
      %v7880 = vsub.f32 %v6167, %v7621
      %v7881 = vsub.f32 %v6336, %v7621
      %v7882 = vsub.f32 %v6505, %v7621
      %v7883 = vsub.f32 %v6674, %v7621
      %v7884 = vsub.f32 %v6169, %v7626
      %v7885 = vsub.f32 %v6338, %v7626
      %v7886 = vsub.f32 %v6507, %v7626
      %v7887 = vsub.f32 %v6676, %v7626
      %v7888 = vsub.f32 %v6172, %v7631
      %v7889 = vsub.f32 %v6341, %v7631
      %v7890 = vsub.f32 %v6510, %v7631
      %v7891 = vsub.f32 %v6679, %v7631
      %v7892 = vsub.f32 %v6174, %v7636
      %v7893 = vsub.f32 %v6343, %v7636
      %v7894 = vsub.f32 %v6512, %v7636
      %v7895 = vsub.f32 %v6681, %v7636
      %v7896 = vsub.f32 %v6177, %v7641
      %v7897 = vsub.f32 %v6346, %v7641
      %v7898 = vsub.f32 %v6515, %v7641
      %v7899 = vsub.f32 %v6684, %v7641
      %v7900 = vsub.f32 %v6179, %v7646
      %v7901 = vsub.f32 %v6348, %v7646
      %v7902 = vsub.f32 %v6517, %v7646
      %v7903 = vsub.f32 %v6686, %v7646
      %v7904 = vmul.f32 %v7648, 1.442695
      %v7905 = vpow.pop %v7904
      %v7906 = vmul.f32 %v7649, 1.442695
      %v7907 = vpow.pop %v7906
      %v7908 = vmul.f32 %v7650, 1.442695
      %v7909 = vpow.pop %v7908
      %v7910 = vmul.f32 %v7651, 1.442695
      %v7911 = vpow.pop %v7910
      %v7912 = vmul.f32 %v7652, 1.442695
      %v7913 = vpow.pop %v7912
      %v7914 = vmul.f32 %v7653, 1.442695
      %v7915 = vpow.pop %v7914
      %v7916 = vmul.f32 %v7654, 1.442695
      %v7917 = vpow.pop %v7916
      %v7918 = vmul.f32 %v7655, 1.442695
      %v7919 = vpow.pop %v7918
      %v7920 = vmul.f32 %v7656, 1.442695
      %v7921 = vpow.pop %v7920
      %v7922 = vmul.f32 %v7657, 1.442695
      %v7923 = vpow.pop %v7922
      %v7924 = vmul.f32 %v7658, 1.442695
      %v7925 = vpow.pop %v7924
      %v7926 = vmul.f32 %v7659, 1.442695
      %v7927 = vpow.pop %v7926
      %v7928 = vmul.f32 %v7660, 1.442695
      %v7929 = vpow.pop %v7928
      %v7930 = vmul.f32 %v7661, 1.442695
      %v7931 = vpow.pop %v7930
      %v7932 = vmul.f32 %v7662, 1.442695
      %v7933 = vpow.pop %v7932
      %v7934 = vmul.f32 %v7663, 1.442695
      %v7935 = vpow.pop %v7934
      %v7936 = vmul.f32 %v7664, 1.442695
      %v7937 = vpow.pop %v7936
      %v7938 = vmul.f32 %v7665, 1.442695
      %v7939 = vpow.pop %v7938
      %v7940 = vmul.f32 %v7666, 1.442695
      %v7941 = vpow.pop %v7940
      %v7942 = vmul.f32 %v7667, 1.442695
      %v7943 = vpow.pop %v7942
      %v7944 = vmul.f32 %v7668, 1.442695
      %v7945 = vpow.pop %v7944
      %v7946 = vmul.f32 %v7669, 1.442695
      %v7947 = vpow.pop %v7946
      %v7948 = vmul.f32 %v7670, 1.442695
      %v7949 = vpow.pop %v7948
      %v7950 = vmul.f32 %v7671, 1.442695
      %v7951 = vpow.pop %v7950
      %v7952 = vmul.f32 %v7672, 1.442695
      %v7953 = vpow.pop %v7952
      %v7954 = vmul.f32 %v7673, 1.442695
      %v7955 = vpow.pop %v7954
      %v7956 = vmul.f32 %v7674, 1.442695
      %v7957 = vpow.pop %v7956
      %v7958 = vmul.f32 %v7675, 1.442695
      %v7959 = vpow.pop %v7958
      %v7960 = vmul.f32 %v7676, 1.442695
      %v7961 = vpow.pop %v7960
      %v7962 = vmul.f32 %v7677, 1.442695
      %v7963 = vpow.pop %v7962
      %v7964 = vmul.f32 %v7678, 1.442695
      %v7965 = vpow.pop %v7964
      %v7966 = vmul.f32 %v7679, 1.442695
      %v7967 = vpow.pop %v7966
      %v7968 = vmul.f32 %v7680, 1.442695
      %v7969 = vpow.pop %v7968
      %v7970 = vmul.f32 %v7681, 1.442695
      %v7971 = vpow.pop %v7970
      %v7972 = vmul.f32 %v7682, 1.442695
      %v7973 = vpow.pop %v7972
      %v7974 = vmul.f32 %v7683, 1.442695
      %v7975 = vpow.pop %v7974
      %v7976 = vmul.f32 %v7684, 1.442695
      %v7977 = vpow.pop %v7976
      %v7978 = vmul.f32 %v7685, 1.442695
      %v7979 = vpow.pop %v7978
      %v7980 = vmul.f32 %v7686, 1.442695
      %v7981 = vpow.pop %v7980
      %v7982 = vmul.f32 %v7687, 1.442695
      %v7983 = vpow.pop %v7982
      %v7984 = vmul.f32 %v7688, 1.442695
      %v7985 = vpow.pop %v7984
      %v7986 = vmul.f32 %v7689, 1.442695
      %v7987 = vpow.pop %v7986
      %v7988 = vmul.f32 %v7690, 1.442695
      %v7989 = vpow.pop %v7988
      %v7990 = vmul.f32 %v7691, 1.442695
      %v7991 = vpow.pop %v7990
      %v7992 = vmul.f32 %v7692, 1.442695
      %v7993 = vpow.pop %v7992
      %v7994 = vmul.f32 %v7693, 1.442695
      %v7995 = vpow.pop %v7994
      %v7996 = vmul.f32 %v7694, 1.442695
      %v7997 = vpow.pop %v7996
      %v7998 = vmul.f32 %v7695, 1.442695
      %v7999 = vpow.pop %v7998
      %v8000 = vmul.f32 %v7696, 1.442695
      %v8001 = vpow.pop %v8000
      %v8002 = vmul.f32 %v7697, 1.442695
      %v8003 = vpow.pop %v8002
      %v8004 = vmul.f32 %v7698, 1.442695
      %v8005 = vpow.pop %v8004
      %v8006 = vmul.f32 %v7699, 1.442695
      %v8007 = vpow.pop %v8006
      %v8008 = vmul.f32 %v7700, 1.442695
      %v8009 = vpow.pop %v8008
      %v8010 = vmul.f32 %v7701, 1.442695
      %v8011 = vpow.pop %v8010
      %v8012 = vmul.f32 %v7702, 1.442695
      %v8013 = vpow.pop %v8012
      %v8014 = vmul.f32 %v7703, 1.442695
      %v8015 = vpow.pop %v8014
      %v8016 = vmul.f32 %v7704, 1.442695
      %v8017 = vpow.pop %v8016
      %v8018 = vmul.f32 %v7705, 1.442695
      %v8019 = vpow.pop %v8018
      %v8020 = vmul.f32 %v7706, 1.442695
      %v8021 = vpow.pop %v8020
      %v8022 = vmul.f32 %v7707, 1.442695
      %v8023 = vpow.pop %v8022
      %v8024 = vmul.f32 %v7708, 1.442695
      %v8025 = vpow.pop %v8024
      %v8026 = vmul.f32 %v7709, 1.442695
      %v8027 = vpow.pop %v8026
      %v8028 = vmul.f32 %v7710, 1.442695
      %v8029 = vpow.pop %v8028
      %v8030 = vmul.f32 %v7711, 1.442695
      %v8031 = vpow.pop %v8030
      %v8032 = vmul.f32 %v7712, 1.442695
      %v8033 = vpow.pop %v8032
      %v8034 = vmul.f32 %v7713, 1.442695
      %v8035 = vpow.pop %v8034
      %v8036 = vmul.f32 %v7714, 1.442695
      %v8037 = vpow.pop %v8036
      %v8038 = vmul.f32 %v7715, 1.442695
      %v8039 = vpow.pop %v8038
      %v8040 = vmul.f32 %v7716, 1.442695
      %v8041 = vpow.pop %v8040
      %v8042 = vmul.f32 %v7717, 1.442695
      %v8043 = vpow.pop %v8042
      %v8044 = vmul.f32 %v7718, 1.442695
      %v8045 = vpow.pop %v8044
      %v8046 = vmul.f32 %v7719, 1.442695
      %v8047 = vpow.pop %v8046
      %v8048 = vmul.f32 %v7720, 1.442695
      %v8049 = vpow.pop %v8048
      %v8050 = vmul.f32 %v7721, 1.442695
      %v8051 = vpow.pop %v8050
      %v8052 = vmul.f32 %v7722, 1.442695
      %v8053 = vpow.pop %v8052
      %v8054 = vmul.f32 %v7723, 1.442695
      %v8055 = vpow.pop %v8054
      %v8056 = vmul.f32 %v7724, 1.442695
      %v8057 = vpow.pop %v8056
      %v8058 = vmul.f32 %v7725, 1.442695
      %v8059 = vpow.pop %v8058
      %v8060 = vmul.f32 %v7726, 1.442695
      %v8061 = vpow.pop %v8060
      %v8062 = vmul.f32 %v7727, 1.442695
      %v8063 = vpow.pop %v8062
      %v8064 = vmul.f32 %v7728, 1.442695
      %v8065 = vpow.pop %v8064
      %v8066 = vmul.f32 %v7729, 1.442695
      %v8067 = vpow.pop %v8066
      %v8068 = vmul.f32 %v7730, 1.442695
      %v8069 = vpow.pop %v8068
      %v8070 = vmul.f32 %v7731, 1.442695
      %v8071 = vpow.pop %v8070
      %v8072 = vmul.f32 %v7732, 1.442695
      %v8073 = vpow.pop %v8072
      %v8074 = vmul.f32 %v7733, 1.442695
      %v8075 = vpow.pop %v8074
      %v8076 = vmul.f32 %v7734, 1.442695
      %v8077 = vpow.pop %v8076
      %v8078 = vmul.f32 %v7735, 1.442695
      %v8079 = vpow.pop %v8078
      %v8080 = vmul.f32 %v7736, 1.442695
      %v8081 = vpow.pop %v8080
      %v8082 = vmul.f32 %v7737, 1.442695
      %v8083 = vpow.pop %v8082
      %v8084 = vmul.f32 %v7738, 1.442695
      %v8085 = vpow.pop %v8084
      %v8086 = vmul.f32 %v7739, 1.442695
      %v8087 = vpow.pop %v8086
      %v8088 = vmul.f32 %v7740, 1.442695
      %v8089 = vpow.pop %v8088
      %v8090 = vmul.f32 %v7741, 1.442695
      %v8091 = vpow.pop %v8090
      %v8092 = vmul.f32 %v7742, 1.442695
      %v8093 = vpow.pop %v8092
      %v8094 = vmul.f32 %v7743, 1.442695
      %v8095 = vpow.pop %v8094
      %v8096 = vmul.f32 %v7744, 1.442695
      %v8097 = vpow.pop %v8096
      %v8098 = vmul.f32 %v7745, 1.442695
      %v8099 = vpow.pop %v8098
      %v8100 = vmul.f32 %v7746, 1.442695
      %v8101 = vpow.pop %v8100
      %v8102 = vmul.f32 %v7747, 1.442695
      %v8103 = vpow.pop %v8102
      %v8104 = vmul.f32 %v7748, 1.442695
      %v8105 = vpow.pop %v8104
      %v8106 = vmul.f32 %v7749, 1.442695
      %v8107 = vpow.pop %v8106
      %v8108 = vmul.f32 %v7750, 1.442695
      %v8109 = vpow.pop %v8108
      %v8110 = vmul.f32 %v7751, 1.442695
      %v8111 = vpow.pop %v8110
      %v8112 = vmul.f32 %v7752, 1.442695
      %v8113 = vpow.pop %v8112
      %v8114 = vmul.f32 %v7753, 1.442695
      %v8115 = vpow.pop %v8114
      %v8116 = vmul.f32 %v7754, 1.442695
      %v8117 = vpow.pop %v8116
      %v8118 = vmul.f32 %v7755, 1.442695
      %v8119 = vpow.pop %v8118
      %v8120 = vmul.f32 %v7756, 1.442695
      %v8121 = vpow.pop %v8120
      %v8122 = vmul.f32 %v7757, 1.442695
      %v8123 = vpow.pop %v8122
      %v8124 = vmul.f32 %v7758, 1.442695
      %v8125 = vpow.pop %v8124
      %v8126 = vmul.f32 %v7759, 1.442695
      %v8127 = vpow.pop %v8126
      %v8128 = vmul.f32 %v7760, 1.442695
      %v8129 = vpow.pop %v8128
      %v8130 = vmul.f32 %v7761, 1.442695
      %v8131 = vpow.pop %v8130
      %v8132 = vmul.f32 %v7762, 1.442695
      %v8133 = vpow.pop %v8132
      %v8134 = vmul.f32 %v7763, 1.442695
      %v8135 = vpow.pop %v8134
      %v8136 = vmul.f32 %v7764, 1.442695
      %v8137 = vpow.pop %v8136
      %v8138 = vmul.f32 %v7765, 1.442695
      %v8139 = vpow.pop %v8138
      %v8140 = vmul.f32 %v7766, 1.442695
      %v8141 = vpow.pop %v8140
      %v8142 = vmul.f32 %v7767, 1.442695
      %v8143 = vpow.pop %v8142
      %v8144 = vmul.f32 %v7768, 1.442695
      %v8145 = vpow.pop %v8144
      %v8146 = vmul.f32 %v7769, 1.442695
      %v8147 = vpow.pop %v8146
      %v8148 = vmul.f32 %v7770, 1.442695
      %v8149 = vpow.pop %v8148
      %v8150 = vmul.f32 %v7771, 1.442695
      %v8151 = vpow.pop %v8150
      %v8152 = vmul.f32 %v7772, 1.442695
      %v8153 = vpow.pop %v8152
      %v8154 = vmul.f32 %v7773, 1.442695
      %v8155 = vpow.pop %v8154
      %v8156 = vmul.f32 %v7774, 1.442695
      %v8157 = vpow.pop %v8156
      %v8158 = vmul.f32 %v7775, 1.442695
      %v8159 = vpow.pop %v8158
      %v8160 = vmul.f32 %v7776, 1.442695
      %v8161 = vpow.pop %v8160
      %v8162 = vmul.f32 %v7777, 1.442695
      %v8163 = vpow.pop %v8162
      %v8164 = vmul.f32 %v7778, 1.442695
      %v8165 = vpow.pop %v8164
      %v8166 = vmul.f32 %v7779, 1.442695
      %v8167 = vpow.pop %v8166
      %v8168 = vmul.f32 %v7780, 1.442695
      %v8169 = vpow.pop %v8168
      %v8170 = vmul.f32 %v7781, 1.442695
      %v8171 = vpow.pop %v8170
      %v8172 = vmul.f32 %v7782, 1.442695
      %v8173 = vpow.pop %v8172
      %v8174 = vmul.f32 %v7783, 1.442695
      %v8175 = vpow.pop %v8174
      %v8176 = vmul.f32 %v7784, 1.442695
      %v8177 = vpow.pop %v8176
      %v8178 = vmul.f32 %v7785, 1.442695
      %v8179 = vpow.pop %v8178
      %v8180 = vmul.f32 %v7786, 1.442695
      %v8181 = vpow.pop %v8180
      %v8182 = vmul.f32 %v7787, 1.442695
      %v8183 = vpow.pop %v8182
      %v8184 = vmul.f32 %v7788, 1.442695
      %v8185 = vpow.pop %v8184
      %v8186 = vmul.f32 %v7789, 1.442695
      %v8187 = vpow.pop %v8186
      %v8188 = vmul.f32 %v7790, 1.442695
      %v8189 = vpow.pop %v8188
      %v8190 = vmul.f32 %v7791, 1.442695
      %v8191 = vpow.pop %v8190
      %v8192 = vmul.f32 %v7792, 1.442695
      %v8193 = vpow.pop %v8192
      %v8194 = vmul.f32 %v7793, 1.442695
      %v8195 = vpow.pop %v8194
      %v8196 = vmul.f32 %v7794, 1.442695
      %v8197 = vpow.pop %v8196
      %v8198 = vmul.f32 %v7795, 1.442695
      %v8199 = vpow.pop %v8198
      %v8200 = vmul.f32 %v7796, 1.442695
      %v8201 = vpow.pop %v8200
      %v8202 = vmul.f32 %v7797, 1.442695
      %v8203 = vpow.pop %v8202
      %v8204 = vmul.f32 %v7798, 1.442695
      %v8205 = vpow.pop %v8204
      %v8206 = vmul.f32 %v7799, 1.442695
      %v8207 = vpow.pop %v8206
      %v8208 = vmul.f32 %v7800, 1.442695
      %v8209 = vpow.pop %v8208
      %v8210 = vmul.f32 %v7801, 1.442695
      %v8211 = vpow.pop %v8210
      %v8212 = vmul.f32 %v7802, 1.442695
      %v8213 = vpow.pop %v8212
      %v8214 = vmul.f32 %v7803, 1.442695
      %v8215 = vpow.pop %v8214
      %v8216 = vmul.f32 %v7804, 1.442695
      %v8217 = vpow.pop %v8216
      %v8218 = vmul.f32 %v7805, 1.442695
      %v8219 = vpow.pop %v8218
      %v8220 = vmul.f32 %v7806, 1.442695
      %v8221 = vpow.pop %v8220
      %v8222 = vmul.f32 %v7807, 1.442695
      %v8223 = vpow.pop %v8222
      %v8224 = vmul.f32 %v7808, 1.442695
      %v8225 = vpow.pop %v8224
      %v8226 = vmul.f32 %v7809, 1.442695
      %v8227 = vpow.pop %v8226
      %v8228 = vmul.f32 %v7810, 1.442695
      %v8229 = vpow.pop %v8228
      %v8230 = vmul.f32 %v7811, 1.442695
      %v8231 = vpow.pop %v8230
      %v8232 = vmul.f32 %v7812, 1.442695
      %v8233 = vpow.pop %v8232
      %v8234 = vmul.f32 %v7813, 1.442695
      %v8235 = vpow.pop %v8234
      %v8236 = vmul.f32 %v7814, 1.442695
      %v8237 = vpow.pop %v8236
      %v8238 = vmul.f32 %v7815, 1.442695
      %v8239 = vpow.pop %v8238
      %v8240 = vmul.f32 %v7816, 1.442695
      %v8241 = vpow.pop %v8240
      %v8242 = vmul.f32 %v7817, 1.442695
      %v8243 = vpow.pop %v8242
      %v8244 = vmul.f32 %v7818, 1.442695
      %v8245 = vpow.pop %v8244
      %v8246 = vmul.f32 %v7819, 1.442695
      %v8247 = vpow.pop %v8246
      %v8248 = vmul.f32 %v7820, 1.442695
      %v8249 = vpow.pop %v8248
      %v8250 = vmul.f32 %v7821, 1.442695
      %v8251 = vpow.pop %v8250
      %v8252 = vmul.f32 %v7822, 1.442695
      %v8253 = vpow.pop %v8252
      %v8254 = vmul.f32 %v7823, 1.442695
      %v8255 = vpow.pop %v8254
      %v8256 = vmul.f32 %v7824, 1.442695
      %v8257 = vpow.pop %v8256
      %v8258 = vmul.f32 %v7825, 1.442695
      %v8259 = vpow.pop %v8258
      %v8260 = vmul.f32 %v7826, 1.442695
      %v8261 = vpow.pop %v8260
      %v8262 = vmul.f32 %v7827, 1.442695
      %v8263 = vpow.pop %v8262
      %v8264 = vmul.f32 %v7828, 1.442695
      %v8265 = vpow.pop %v8264
      %v8266 = vmul.f32 %v7829, 1.442695
      %v8267 = vpow.pop %v8266
      %v8268 = vmul.f32 %v7830, 1.442695
      %v8269 = vpow.pop %v8268
      %v8270 = vmul.f32 %v7831, 1.442695
      %v8271 = vpow.pop %v8270
      %v8272 = vmul.f32 %v7832, 1.442695
      %v8273 = vpow.pop %v8272
      %v8274 = vmul.f32 %v7833, 1.442695
      %v8275 = vpow.pop %v8274
      %v8276 = vmul.f32 %v7834, 1.442695
      %v8277 = vpow.pop %v8276
      %v8278 = vmul.f32 %v7835, 1.442695
      %v8279 = vpow.pop %v8278
      %v8280 = vmul.f32 %v7836, 1.442695
      %v8281 = vpow.pop %v8280
      %v8282 = vmul.f32 %v7837, 1.442695
      %v8283 = vpow.pop %v8282
      %v8284 = vmul.f32 %v7838, 1.442695
      %v8285 = vpow.pop %v8284
      %v8286 = vmul.f32 %v7839, 1.442695
      %v8287 = vpow.pop %v8286
      %v8288 = vmul.f32 %v7840, 1.442695
      %v8289 = vpow.pop %v8288
      %v8290 = vmul.f32 %v7841, 1.442695
      %v8291 = vpow.pop %v8290
      %v8292 = vmul.f32 %v7842, 1.442695
      %v8293 = vpow.pop %v8292
      %v8294 = vmul.f32 %v7843, 1.442695
      %v8295 = vpow.pop %v8294
      %v8296 = vmul.f32 %v7844, 1.442695
      %v8297 = vpow.pop %v8296
      %v8298 = vmul.f32 %v7845, 1.442695
      %v8299 = vpow.pop %v8298
      %v8300 = vmul.f32 %v7846, 1.442695
      %v8301 = vpow.pop %v8300
      %v8302 = vmul.f32 %v7847, 1.442695
      %v8303 = vpow.pop %v8302
      %v8304 = vmul.f32 %v7848, 1.442695
      %v8305 = vpow.pop %v8304
      %v8306 = vmul.f32 %v7849, 1.442695
      %v8307 = vpow.pop %v8306
      %v8308 = vmul.f32 %v7850, 1.442695
      %v8309 = vpow.pop %v8308
      %v8310 = vmul.f32 %v7851, 1.442695
      %v8311 = vpow.pop %v8310
      %v8312 = vmul.f32 %v7852, 1.442695
      %v8313 = vpow.pop %v8312
      %v8314 = vmul.f32 %v7853, 1.442695
      %v8315 = vpow.pop %v8314
      %v8316 = vmul.f32 %v7854, 1.442695
      %v8317 = vpow.pop %v8316
      %v8318 = vmul.f32 %v7855, 1.442695
      %v8319 = vpow.pop %v8318
      %v8320 = vmul.f32 %v7856, 1.442695
      %v8321 = vpow.pop %v8320
      %v8322 = vmul.f32 %v7857, 1.442695
      %v8323 = vpow.pop %v8322
      %v8324 = vmul.f32 %v7858, 1.442695
      %v8325 = vpow.pop %v8324
      %v8326 = vmul.f32 %v7859, 1.442695
      %v8327 = vpow.pop %v8326
      %v8328 = vmul.f32 %v7860, 1.442695
      %v8329 = vpow.pop %v8328
      %v8330 = vmul.f32 %v7861, 1.442695
      %v8331 = vpow.pop %v8330
      %v8332 = vmul.f32 %v7862, 1.442695
      %v8333 = vpow.pop %v8332
      %v8334 = vmul.f32 %v7863, 1.442695
      %v8335 = vpow.pop %v8334
      %v8336 = vmul.f32 %v7864, 1.442695
      %v8337 = vpow.pop %v8336
      %v8338 = vmul.f32 %v7865, 1.442695
      %v8339 = vpow.pop %v8338
      %v8340 = vmul.f32 %v7866, 1.442695
      %v8341 = vpow.pop %v8340
      %v8342 = vmul.f32 %v7867, 1.442695
      %v8343 = vpow.pop %v8342
      %v8344 = vmul.f32 %v7868, 1.442695
      %v8345 = vpow.pop %v8344
      %v8346 = vmul.f32 %v7869, 1.442695
      %v8347 = vpow.pop %v8346
      %v8348 = vmul.f32 %v7870, 1.442695
      %v8349 = vpow.pop %v8348
      %v8350 = vmul.f32 %v7871, 1.442695
      %v8351 = vpow.pop %v8350
      %v8352 = vmul.f32 %v7872, 1.442695
      %v8353 = vpow.pop %v8352
      %v8354 = vmul.f32 %v7873, 1.442695
      %v8355 = vpow.pop %v8354
      %v8356 = vmul.f32 %v7874, 1.442695
      %v8357 = vpow.pop %v8356
      %v8358 = vmul.f32 %v7875, 1.442695
      %v8359 = vpow.pop %v8358
      %v8360 = vmul.f32 %v7876, 1.442695
      %v8361 = vpow.pop %v8360
      %v8362 = vmul.f32 %v7877, 1.442695
      %v8363 = vpow.pop %v8362
      %v8364 = vmul.f32 %v7878, 1.442695
      %v8365 = vpow.pop %v8364
      %v8366 = vmul.f32 %v7879, 1.442695
      %v8367 = vpow.pop %v8366
      %v8368 = vmul.f32 %v7880, 1.442695
      %v8369 = vpow.pop %v8368
      %v8370 = vmul.f32 %v7881, 1.442695
      %v8371 = vpow.pop %v8370
      %v8372 = vmul.f32 %v7882, 1.442695
      %v8373 = vpow.pop %v8372
      %v8374 = vmul.f32 %v7883, 1.442695
      %v8375 = vpow.pop %v8374
      %v8376 = vmul.f32 %v7884, 1.442695
      %v8377 = vpow.pop %v8376
      %v8378 = vmul.f32 %v7885, 1.442695
      %v8379 = vpow.pop %v8378
      %v8380 = vmul.f32 %v7886, 1.442695
      %v8381 = vpow.pop %v8380
      %v8382 = vmul.f32 %v7887, 1.442695
      %v8383 = vpow.pop %v8382
      %v8384 = vmul.f32 %v7888, 1.442695
      %v8385 = vpow.pop %v8384
      %v8386 = vmul.f32 %v7889, 1.442695
      %v8387 = vpow.pop %v8386
      %v8388 = vmul.f32 %v7890, 1.442695
      %v8389 = vpow.pop %v8388
      %v8390 = vmul.f32 %v7891, 1.442695
      %v8391 = vpow.pop %v8390
      %v8392 = vmul.f32 %v7892, 1.442695
      %v8393 = vpow.pop %v8392
      %v8394 = vmul.f32 %v7893, 1.442695
      %v8395 = vpow.pop %v8394
      %v8396 = vmul.f32 %v7894, 1.442695
      %v8397 = vpow.pop %v8396
      %v8398 = vmul.f32 %v7895, 1.442695
      %v8399 = vpow.pop %v8398
      %v8400 = vmul.f32 %v7896, 1.442695
      %v8401 = vpow.pop %v8400
      %v8402 = vmul.f32 %v7897, 1.442695
      %v8403 = vpow.pop %v8402
      %v8404 = vmul.f32 %v7898, 1.442695
      %v8405 = vpow.pop %v8404
      %v8406 = vmul.f32 %v7899, 1.442695
      %v8407 = vpow.pop %v8406
      %v8408 = vmul.f32 %v7900, 1.442695
      %v8409 = vpow.pop %v8408
      %v8410 = vmul.f32 %v7901, 1.442695
      %v8411 = vpow.pop %v8410
      %v8412 = vmul.f32 %v7902, 1.442695
      %v8413 = vpow.pop %v8412
      %v8414 = vmul.f32 %v7903, 1.442695
      %v8415 = vpow.pop %v8414
      %v8416 = vld [vmem:[#allocation4] sm:$0xff]
      %v8417 = vld [vmem:[#allocation4 + $0x8] sm:$0xff]
      %v8418 = vld [vmem:[#allocation4 + $0x10] sm:$0xff]
      %v8419 = vld [vmem:[#allocation4 + $0x18] sm:$0xff]
      %v8420 = vld [vmem:[#allocation4 + $0x20] sm:$0xff]
      %v8421 = vld [vmem:[#allocation4 + $0x28] sm:$0xff]
      %v8422 = vld [vmem:[#allocation4 + $0x30] sm:$0xff]
      %v8423 = vld [vmem:[#allocation4 + $0x38] sm:$0xff]
      %v8424 = vld [vmem:[#allocation4 + $0x40] sm:$0xff]
      %v8425 = vld [vmem:[#allocation4 + $0x48] sm:$0xff]
      %v8426 = vld [vmem:[#allocation4 + $0x50] sm:$0xff]
      %v8427 = vld [vmem:[#allocation4 + $0x58] sm:$0xff]
      %v8428 = vld [vmem:[#allocation4 + $0x60] sm:$0xff]
      %v8429 = vld [vmem:[#allocation4 + $0x68] sm:$0xff]
      %v8430 = vld [vmem:[#allocation4 + $0x70] sm:$0xff]
      %v8431 = vld [vmem:[#allocation4 + $0x78] sm:$0xff]
      %v8432 = vld [vmem:[#allocation4 + $0x80] sm:$0xff]
      %v8433 = vld [vmem:[#allocation4 + $0x88] sm:$0xff]
      %v8434 = vld [vmem:[#allocation4 + $0x90] sm:$0xff]
      %v8435 = vld [vmem:[#allocation4 + $0x98] sm:$0xff]
      %v8436 = vld [vmem:[#allocation4 + $0xa0] sm:$0xff]
      %v8437 = vld [vmem:[#allocation4 + $0xa8] sm:$0xff]
      %v8438 = vld [vmem:[#allocation4 + $0xb0] sm:$0xff]
      %v8439 = vld [vmem:[#allocation4 + $0xb8] sm:$0xff]
      %v8440 = vld [vmem:[#allocation4 + $0xc0] sm:$0xff]
      %v8441 = vld [vmem:[#allocation4 + $0xc8] sm:$0xff]
      %v8442 = vld [vmem:[#allocation4 + $0xd0] sm:$0xff]
      %v8443 = vld [vmem:[#allocation4 + $0xd8] sm:$0xff]
      %v8444 = vld [vmem:[#allocation4 + $0xe0] sm:$0xff]
      %v8445 = vld [vmem:[#allocation4 + $0xe8] sm:$0xff]
      %v8446 = vld [vmem:[#allocation4 + $0xf0] sm:$0xff]
      %v8447 = vld [vmem:[#allocation4 + $0xf8] sm:$0xff]
      %v8448 = vld [vmem:[#allocation4 + $0x100] sm:$0xff]
      %v8449 = vld [vmem:[#allocation4 + $0x108] sm:$0xff]
      %v8450 = vld [vmem:[#allocation4 + $0x110] sm:$0xff]
      %v8451 = vld [vmem:[#allocation4 + $0x118] sm:$0xff]
      %v8452 = vld [vmem:[#allocation4 + $0x120] sm:$0xff]
      %v8453 = vld [vmem:[#allocation4 + $0x128] sm:$0xff]
      %v8454 = vld [vmem:[#allocation4 + $0x130] sm:$0xff]
      %v8455 = vld [vmem:[#allocation4 + $0x138] sm:$0xff]
      %v8456 = vld [vmem:[#allocation4 + $0x140] sm:$0xff]
      %v8457 = vld [vmem:[#allocation4 + $0x148] sm:$0xff]
      %v8458 = vld [vmem:[#allocation4 + $0x150] sm:$0xff]
      %v8459 = vld [vmem:[#allocation4 + $0x158] sm:$0xff]
      %v8460 = vld [vmem:[#allocation4 + $0x160] sm:$0xff]
      %v8461 = vld [vmem:[#allocation4 + $0x168] sm:$0xff]
      %v8462 = vld [vmem:[#allocation4 + $0x170] sm:$0xff]
      %v8463 = vld [vmem:[#allocation4 + $0x178] sm:$0xff]
      %v8464 = vld [vmem:[#allocation4 + $0x180] sm:$0xff]
      %v8465 = vld [vmem:[#allocation4 + $0x188] sm:$0xff]
      %v8466 = vld [vmem:[#allocation4 + $0x190] sm:$0xff]
      %v8467 = vld [vmem:[#allocation4 + $0x198] sm:$0xff]
      %v8468 = vld [vmem:[#allocation4 + $0x1a0] sm:$0xff]
      %v8469 = vld [vmem:[#allocation4 + $0x1a8] sm:$0xff]
      %v8470 = vld [vmem:[#allocation4 + $0x1b0] sm:$0xff]
      %v8471 = vld [vmem:[#allocation4 + $0x1b8] sm:$0xff]
      %v8472 = vld [vmem:[#allocation4 + $0x1c0] sm:$0xff]
      %v8473 = vld [vmem:[#allocation4 + $0x1c8] sm:$0xff]
      %v8474 = vld [vmem:[#allocation4 + $0x1d0] sm:$0xff]
      %v8475 = vld [vmem:[#allocation4 + $0x1d8] sm:$0xff]
      %v8476 = vld [vmem:[#allocation4 + $0x1e0] sm:$0xff]
      %v8477 = vld [vmem:[#allocation4 + $0x1e8] sm:$0xff]
      %v8478 = vld [vmem:[#allocation4 + $0x1f0] sm:$0xff]
      %v8479 = vld [vmem:[#allocation4 + $0x1f8] sm:$0xff]
      %8481 = vset.pattern.permute.xlu0 0
      %8482 = vperm.xlu0 %8481, %v7201
      %v8483 = vpop.permute.xlu0 %8482
      %8486 = vset.pattern.permute.xlu0 0
      %8487 = vperm.xlu0 %8486, %v7203
      %v8488 = vpop.permute.xlu0 %8487
      %8491 = vset.pattern.permute.xlu0 0
      %8492 = vperm.xlu0 %8491, %v7205
      %v8493 = vpop.permute.xlu0 %8492
      %8496 = vset.pattern.permute.xlu0 0
      %8497 = vperm.xlu0 %8496, %v7207
      %v8498 = vpop.permute.xlu0 %8497
      %8501 = vset.pattern.permute.xlu0 0
      %8502 = vperm.xlu0 %8501, %v7209
      %v8503 = vpop.permute.xlu0 %8502
      %8506 = vset.pattern.permute.xlu0 0
      %8507 = vperm.xlu0 %8506, %v7211
      %v8508 = vpop.permute.xlu0 %8507
      %8511 = vset.pattern.permute.xlu0 0
      %8512 = vperm.xlu0 %8511, %v7213
      %v8513 = vpop.permute.xlu0 %8512
      %8516 = vset.pattern.permute.xlu0 0
      %8517 = vperm.xlu0 %8516, %v7215
      %v8518 = vpop.permute.xlu0 %8517
      %8521 = vset.pattern.permute.xlu0 0
      %8522 = vperm.xlu0 %8521, %v7217
      %v8523 = vpop.permute.xlu0 %8522
      %8526 = vset.pattern.permute.xlu0 0
      %8527 = vperm.xlu0 %8526, %v7219
      %v8528 = vpop.permute.xlu0 %8527
      %8531 = vset.pattern.permute.xlu0 0
      %8532 = vperm.xlu0 %8531, %v7221
      %v8533 = vpop.permute.xlu0 %8532
      %8536 = vset.pattern.permute.xlu0 0
      %8537 = vperm.xlu0 %8536, %v7223
      %v8538 = vpop.permute.xlu0 %8537
      %8541 = vset.pattern.permute.xlu0 0
      %8542 = vperm.xlu0 %8541, %v7225
      %v8543 = vpop.permute.xlu0 %8542
      %8546 = vset.pattern.permute.xlu0 0
      %8547 = vperm.xlu0 %8546, %v7227
      %v8548 = vpop.permute.xlu0 %8547
      %8551 = vset.pattern.permute.xlu0 0
      %8552 = vperm.xlu0 %8551, %v7229
      %v8553 = vpop.permute.xlu0 %8552
      %8556 = vset.pattern.permute.xlu0 0
      %8557 = vperm.xlu0 %8556, %v7231
      %v8558 = vpop.permute.xlu0 %8557
      %8561 = vset.pattern.permute.xlu0 0
      %8562 = vperm.xlu0 %8561, %v7233
      %v8563 = vpop.permute.xlu0 %8562
      %8566 = vset.pattern.permute.xlu0 0
      %8567 = vperm.xlu0 %8566, %v7235
      %v8568 = vpop.permute.xlu0 %8567
      %8571 = vset.pattern.permute.xlu0 0
      %8572 = vperm.xlu0 %8571, %v7237
      %v8573 = vpop.permute.xlu0 %8572
      %8576 = vset.pattern.permute.xlu0 0
      %8577 = vperm.xlu0 %8576, %v7239
      %v8578 = vpop.permute.xlu0 %8577
      %8581 = vset.pattern.permute.xlu0 0
      %8582 = vperm.xlu0 %8581, %v7241
      %v8583 = vpop.permute.xlu0 %8582
      %8586 = vset.pattern.permute.xlu0 0
      %8587 = vperm.xlu0 %8586, %v7243
      %v8588 = vpop.permute.xlu0 %8587
      %8591 = vset.pattern.permute.xlu0 0
      %8592 = vperm.xlu0 %8591, %v7245
      %v8593 = vpop.permute.xlu0 %8592
      %8596 = vset.pattern.permute.xlu0 0
      %8597 = vperm.xlu0 %8596, %v7247
      %v8598 = vpop.permute.xlu0 %8597
      %8601 = vset.pattern.permute.xlu0 0
      %8602 = vperm.xlu0 %8601, %v7249
      %v8603 = vpop.permute.xlu0 %8602
      %8606 = vset.pattern.permute.xlu0 0
      %8607 = vperm.xlu0 %8606, %v7251
      %v8608 = vpop.permute.xlu0 %8607
      %8611 = vset.pattern.permute.xlu0 0
      %8612 = vperm.xlu0 %8611, %v7253
      %v8613 = vpop.permute.xlu0 %8612
      %8616 = vset.pattern.permute.xlu0 0
      %8617 = vperm.xlu0 %8616, %v7255
      %v8618 = vpop.permute.xlu0 %8617
      %8621 = vset.pattern.permute.xlu0 0
      %8622 = vperm.xlu0 %8621, %v7257
      %v8623 = vpop.permute.xlu0 %8622
      %8626 = vset.pattern.permute.xlu0 0
      %8627 = vperm.xlu0 %8626, %v7259
      %v8628 = vpop.permute.xlu0 %8627
      %8631 = vset.pattern.permute.xlu0 0
      %8632 = vperm.xlu0 %8631, %v7261
      %v8633 = vpop.permute.xlu0 %8632
      %8636 = vset.pattern.permute.xlu0 0
      %8637 = vperm.xlu0 %8636, %v7263
      %v8638 = vpop.permute.xlu0 %8637
      %8641 = vset.pattern.permute.xlu0 0
      %8642 = vperm.xlu0 %8641, %v7265
      %v8643 = vpop.permute.xlu0 %8642
      %8646 = vset.pattern.permute.xlu0 0
      %8647 = vperm.xlu0 %8646, %v7267
      %v8648 = vpop.permute.xlu0 %8647
      %8651 = vset.pattern.permute.xlu0 0
      %8652 = vperm.xlu0 %8651, %v7269
      %v8653 = vpop.permute.xlu0 %8652
      %8656 = vset.pattern.permute.xlu0 0
      %8657 = vperm.xlu0 %8656, %v7271
      %v8658 = vpop.permute.xlu0 %8657
      %8661 = vset.pattern.permute.xlu0 0
      %8662 = vperm.xlu0 %8661, %v7273
      %v8663 = vpop.permute.xlu0 %8662
      %8666 = vset.pattern.permute.xlu0 0
      %8667 = vperm.xlu0 %8666, %v7275
      %v8668 = vpop.permute.xlu0 %8667
      %8671 = vset.pattern.permute.xlu0 0
      %8672 = vperm.xlu0 %8671, %v7277
      %v8673 = vpop.permute.xlu0 %8672
      %8676 = vset.pattern.permute.xlu0 0
      %8677 = vperm.xlu0 %8676, %v7279
      %v8678 = vpop.permute.xlu0 %8677
      %8681 = vset.pattern.permute.xlu0 0
      %8682 = vperm.xlu0 %8681, %v7281
      %v8683 = vpop.permute.xlu0 %8682
      %8686 = vset.pattern.permute.xlu0 0
      %8687 = vperm.xlu0 %8686, %v7283
      %v8688 = vpop.permute.xlu0 %8687
      %8691 = vset.pattern.permute.xlu0 0
      %8692 = vperm.xlu0 %8691, %v7285
      %v8693 = vpop.permute.xlu0 %8692
      %8696 = vset.pattern.permute.xlu0 0
      %8697 = vperm.xlu0 %8696, %v7287
      %v8698 = vpop.permute.xlu0 %8697
      %8701 = vset.pattern.permute.xlu0 0
      %8702 = vperm.xlu0 %8701, %v7289
      %v8703 = vpop.permute.xlu0 %8702
      %8706 = vset.pattern.permute.xlu0 0
      %8707 = vperm.xlu0 %8706, %v7291
      %v8708 = vpop.permute.xlu0 %8707
      %8711 = vset.pattern.permute.xlu0 0
      %8712 = vperm.xlu0 %8711, %v7293
      %v8713 = vpop.permute.xlu0 %8712
      %8716 = vset.pattern.permute.xlu0 0
      %8717 = vperm.xlu0 %8716, %v7295
      %v8718 = vpop.permute.xlu0 %8717
      %8721 = vset.pattern.permute.xlu0 0
      %8722 = vperm.xlu0 %8721, %v7297
      %v8723 = vpop.permute.xlu0 %8722
      %8726 = vset.pattern.permute.xlu0 0
      %8727 = vperm.xlu0 %8726, %v7299
      %v8728 = vpop.permute.xlu0 %8727
      %8731 = vset.pattern.permute.xlu0 0
      %8732 = vperm.xlu0 %8731, %v7301
      %v8733 = vpop.permute.xlu0 %8732
      %8736 = vset.pattern.permute.xlu0 0
      %8737 = vperm.xlu0 %8736, %v7303
      %v8738 = vpop.permute.xlu0 %8737
      %8741 = vset.pattern.permute.xlu0 0
      %8742 = vperm.xlu0 %8741, %v7305
      %v8743 = vpop.permute.xlu0 %8742
      %8746 = vset.pattern.permute.xlu0 0
      %8747 = vperm.xlu0 %8746, %v7307
      %v8748 = vpop.permute.xlu0 %8747
      %8751 = vset.pattern.permute.xlu0 0
      %8752 = vperm.xlu0 %8751, %v7309
      %v8753 = vpop.permute.xlu0 %8752
      %8756 = vset.pattern.permute.xlu0 0
      %8757 = vperm.xlu0 %8756, %v7311
      %v8758 = vpop.permute.xlu0 %8757
      %8761 = vset.pattern.permute.xlu0 0
      %8762 = vperm.xlu0 %8761, %v7313
      %v8763 = vpop.permute.xlu0 %8762
      %8766 = vset.pattern.permute.xlu0 0
      %8767 = vperm.xlu0 %8766, %v7315
      %v8768 = vpop.permute.xlu0 %8767
      %8771 = vset.pattern.permute.xlu0 0
      %8772 = vperm.xlu0 %8771, %v7317
      %v8773 = vpop.permute.xlu0 %8772
      %8776 = vset.pattern.permute.xlu0 0
      %8777 = vperm.xlu0 %8776, %v7319
      %v8778 = vpop.permute.xlu0 %8777
      %8781 = vset.pattern.permute.xlu0 0
      %8782 = vperm.xlu0 %8781, %v7321
      %v8783 = vpop.permute.xlu0 %8782
      %8786 = vset.pattern.permute.xlu0 0
      %8787 = vperm.xlu0 %8786, %v7323
      %v8788 = vpop.permute.xlu0 %8787
      %8791 = vset.pattern.permute.xlu0 0
      %8792 = vperm.xlu0 %8791, %v7325
      %v8793 = vpop.permute.xlu0 %8792
      %8796 = vset.pattern.permute.xlu0 0
      %8797 = vperm.xlu0 %8796, %v7327
      %v8798 = vpop.permute.xlu0 %8797
      %v8800 = vmul.f32 %v8483, %v8416
      %v8801 = vmul.f32 %v8488, %v8417
      %v8802 = vmul.f32 %v8493, %v8418
      %v8803 = vmul.f32 %v8498, %v8419
      %v8804 = vmul.f32 %v8503, %v8420
      %v8805 = vmul.f32 %v8508, %v8421
      %v8806 = vmul.f32 %v8513, %v8422
      %v8807 = vmul.f32 %v8518, %v8423
      %v8808 = vmul.f32 %v8523, %v8424
      %v8809 = vmul.f32 %v8528, %v8425
      %v8810 = vmul.f32 %v8533, %v8426
      %v8811 = vmul.f32 %v8538, %v8427
      %v8812 = vmul.f32 %v8543, %v8428
      %v8813 = vmul.f32 %v8548, %v8429
      %v8814 = vmul.f32 %v8553, %v8430
      %v8815 = vmul.f32 %v8558, %v8431
      %v8816 = vmul.f32 %v8563, %v8432
      %v8817 = vmul.f32 %v8568, %v8433
      %v8818 = vmul.f32 %v8573, %v8434
      %v8819 = vmul.f32 %v8578, %v8435
      %v8820 = vmul.f32 %v8583, %v8436
      %v8821 = vmul.f32 %v8588, %v8437
      %v8822 = vmul.f32 %v8593, %v8438
      %v8823 = vmul.f32 %v8598, %v8439
      %v8824 = vmul.f32 %v8603, %v8440
      %v8825 = vmul.f32 %v8608, %v8441
      %v8826 = vmul.f32 %v8613, %v8442
      %v8827 = vmul.f32 %v8618, %v8443
      %v8828 = vmul.f32 %v8623, %v8444
      %v8829 = vmul.f32 %v8628, %v8445
      %v8830 = vmul.f32 %v8633, %v8446
      %v8831 = vmul.f32 %v8638, %v8447
      %v8832 = vmul.f32 %v8643, %v8448
      %v8833 = vmul.f32 %v8648, %v8449
      %v8834 = vmul.f32 %v8653, %v8450
      %v8835 = vmul.f32 %v8658, %v8451
      %v8836 = vmul.f32 %v8663, %v8452
      %v8837 = vmul.f32 %v8668, %v8453
      %v8838 = vmul.f32 %v8673, %v8454
      %v8839 = vmul.f32 %v8678, %v8455
      %v8840 = vmul.f32 %v8683, %v8456
      %v8841 = vmul.f32 %v8688, %v8457
      %v8842 = vmul.f32 %v8693, %v8458
      %v8843 = vmul.f32 %v8698, %v8459
      %v8844 = vmul.f32 %v8703, %v8460
      %v8845 = vmul.f32 %v8708, %v8461
      %v8846 = vmul.f32 %v8713, %v8462
      %v8847 = vmul.f32 %v8718, %v8463
      %v8848 = vmul.f32 %v8723, %v8464
      %v8849 = vmul.f32 %v8728, %v8465
      %v8850 = vmul.f32 %v8733, %v8466
      %v8851 = vmul.f32 %v8738, %v8467
      %v8852 = vmul.f32 %v8743, %v8468
      %v8853 = vmul.f32 %v8748, %v8469
      %v8854 = vmul.f32 %v8753, %v8470
      %v8855 = vmul.f32 %v8758, %v8471
      %v8856 = vmul.f32 %v8763, %v8472
      %v8857 = vmul.f32 %v8768, %v8473
      %v8858 = vmul.f32 %v8773, %v8474
      %v8859 = vmul.f32 %v8778, %v8475
      %v8860 = vmul.f32 %v8783, %v8476
      %v8861 = vmul.f32 %v8788, %v8477
      %v8862 = vmul.f32 %v8793, %v8478
      %v8863 = vmul.f32 %v8798, %v8479
      %v8864 = vpack.c.bf16 %v7913, %v7905
      %v8865 = vpack.c.bf16 %v7915, %v7907
      %v8866 = vpack.c.bf16 %v7917, %v7909
      %v8867 = vpack.c.bf16 %v7919, %v7911
      %v8868 = vpack.c.bf16 %v7929, %v7921
      %v8869 = vpack.c.bf16 %v7931, %v7923
      %v8870 = vpack.c.bf16 %v7933, %v7925
      %v8871 = vpack.c.bf16 %v7935, %v7927
      %v8872 = vpack.c.bf16 %v7945, %v7937
      %v8873 = vpack.c.bf16 %v7947, %v7939
      %v8874 = vpack.c.bf16 %v7949, %v7941
      %v8875 = vpack.c.bf16 %v7951, %v7943
      %v8876 = vpack.c.bf16 %v7961, %v7953
      %v8877 = vpack.c.bf16 %v7963, %v7955
      %v8878 = vpack.c.bf16 %v7965, %v7957
      %v8879 = vpack.c.bf16 %v7967, %v7959
      %v8880 = vpack.c.bf16 %v7977, %v7969
      %v8881 = vpack.c.bf16 %v7979, %v7971
      %v8882 = vpack.c.bf16 %v7981, %v7973
      %v8883 = vpack.c.bf16 %v7983, %v7975
      %v8884 = vpack.c.bf16 %v7993, %v7985
      %v8885 = vpack.c.bf16 %v7995, %v7987
      %v8886 = vpack.c.bf16 %v7997, %v7989
      %v8887 = vpack.c.bf16 %v7999, %v7991
      %v8888 = vpack.c.bf16 %v8009, %v8001
      %v8889 = vpack.c.bf16 %v8011, %v8003
      %v8890 = vpack.c.bf16 %v8013, %v8005
      %v8891 = vpack.c.bf16 %v8015, %v8007
      %v8892 = vpack.c.bf16 %v8025, %v8017
      %v8893 = vpack.c.bf16 %v8027, %v8019
      %v8894 = vpack.c.bf16 %v8029, %v8021
      %v8895 = vpack.c.bf16 %v8031, %v8023
      %v8896 = vpack.c.bf16 %v8041, %v8033
      %v8897 = vpack.c.bf16 %v8043, %v8035
      %v8898 = vpack.c.bf16 %v8045, %v8037
      %v8899 = vpack.c.bf16 %v8047, %v8039
      %v8900 = vpack.c.bf16 %v8057, %v8049
      %v8901 = vpack.c.bf16 %v8059, %v8051
      %v8902 = vpack.c.bf16 %v8061, %v8053
      %v8903 = vpack.c.bf16 %v8063, %v8055
      %v8904 = vpack.c.bf16 %v8073, %v8065
      %v8905 = vpack.c.bf16 %v8075, %v8067
      %v8906 = vpack.c.bf16 %v8077, %v8069
      %v8907 = vpack.c.bf16 %v8079, %v8071
      %v8908 = vpack.c.bf16 %v8089, %v8081
      %v8909 = vpack.c.bf16 %v8091, %v8083
      %v8910 = vpack.c.bf16 %v8093, %v8085
      %v8911 = vpack.c.bf16 %v8095, %v8087
      %v8912 = vpack.c.bf16 %v8105, %v8097
      %v8913 = vpack.c.bf16 %v8107, %v8099
      %v8914 = vpack.c.bf16 %v8109, %v8101
      %v8915 = vpack.c.bf16 %v8111, %v8103
      %v8916 = vpack.c.bf16 %v8121, %v8113
      %v8917 = vpack.c.bf16 %v8123, %v8115
      %v8918 = vpack.c.bf16 %v8125, %v8117
      %v8919 = vpack.c.bf16 %v8127, %v8119
      %v8920 = vpack.c.bf16 %v8137, %v8129
      %v8921 = vpack.c.bf16 %v8139, %v8131
      %v8922 = vpack.c.bf16 %v8141, %v8133
      %v8923 = vpack.c.bf16 %v8143, %v8135
      %v8924 = vpack.c.bf16 %v8153, %v8145
      %v8925 = vpack.c.bf16 %v8155, %v8147
      %v8926 = vpack.c.bf16 %v8157, %v8149
      %v8927 = vpack.c.bf16 %v8159, %v8151
      %v8928 = vpack.c.bf16 %v8169, %v8161
      %v8929 = vpack.c.bf16 %v8171, %v8163
      %v8930 = vpack.c.bf16 %v8173, %v8165
      %v8931 = vpack.c.bf16 %v8175, %v8167
      %v8932 = vpack.c.bf16 %v8185, %v8177
      %v8933 = vpack.c.bf16 %v8187, %v8179
      %v8934 = vpack.c.bf16 %v8189, %v8181
      %v8935 = vpack.c.bf16 %v8191, %v8183
      %v8936 = vpack.c.bf16 %v8201, %v8193
      %v8937 = vpack.c.bf16 %v8203, %v8195
      %v8938 = vpack.c.bf16 %v8205, %v8197
      %v8939 = vpack.c.bf16 %v8207, %v8199
      %v8940 = vpack.c.bf16 %v8217, %v8209
      %v8941 = vpack.c.bf16 %v8219, %v8211
      %v8942 = vpack.c.bf16 %v8221, %v8213
      %v8943 = vpack.c.bf16 %v8223, %v8215
      %v8944 = vpack.c.bf16 %v8233, %v8225
      %v8945 = vpack.c.bf16 %v8235, %v8227
      %v8946 = vpack.c.bf16 %v8237, %v8229
      %v8947 = vpack.c.bf16 %v8239, %v8231
      %v8948 = vpack.c.bf16 %v8249, %v8241
      %v8949 = vpack.c.bf16 %v8251, %v8243
      %v8950 = vpack.c.bf16 %v8253, %v8245
      %v8951 = vpack.c.bf16 %v8255, %v8247
      %v8952 = vpack.c.bf16 %v8265, %v8257
      %v8953 = vpack.c.bf16 %v8267, %v8259
      %v8954 = vpack.c.bf16 %v8269, %v8261
      %v8955 = vpack.c.bf16 %v8271, %v8263
      %v8956 = vpack.c.bf16 %v8281, %v8273
      %v8957 = vpack.c.bf16 %v8283, %v8275
      %v8958 = vpack.c.bf16 %v8285, %v8277
      %v8959 = vpack.c.bf16 %v8287, %v8279
      %v8960 = vpack.c.bf16 %v8297, %v8289
      %v8961 = vpack.c.bf16 %v8299, %v8291
      %v8962 = vpack.c.bf16 %v8301, %v8293
      %v8963 = vpack.c.bf16 %v8303, %v8295
      %v8964 = vpack.c.bf16 %v8313, %v8305
      %v8965 = vpack.c.bf16 %v8315, %v8307
      %v8966 = vpack.c.bf16 %v8317, %v8309
      %v8967 = vpack.c.bf16 %v8319, %v8311
      %v8968 = vpack.c.bf16 %v8329, %v8321
      %v8969 = vpack.c.bf16 %v8331, %v8323
      %v8970 = vpack.c.bf16 %v8333, %v8325
      %v8971 = vpack.c.bf16 %v8335, %v8327
      %v8972 = vpack.c.bf16 %v8345, %v8337
      %v8973 = vpack.c.bf16 %v8347, %v8339
      %v8974 = vpack.c.bf16 %v8349, %v8341
      %v8975 = vpack.c.bf16 %v8351, %v8343
      %v8976 = vpack.c.bf16 %v8361, %v8353
      %v8977 = vpack.c.bf16 %v8363, %v8355
      %v8978 = vpack.c.bf16 %v8365, %v8357
      %v8979 = vpack.c.bf16 %v8367, %v8359
      %v8980 = vpack.c.bf16 %v8377, %v8369
      %v8981 = vpack.c.bf16 %v8379, %v8371
      %v8982 = vpack.c.bf16 %v8381, %v8373
      %v8983 = vpack.c.bf16 %v8383, %v8375
      %v8984 = vpack.c.bf16 %v8393, %v8385
      %v8985 = vpack.c.bf16 %v8395, %v8387
      %v8986 = vpack.c.bf16 %v8397, %v8389
      %v8987 = vpack.c.bf16 %v8399, %v8391
      %v8988 = vpack.c.bf16 %v8409, %v8401
      %v8989 = vpack.c.bf16 %v8411, %v8403
      %v8990 = vpack.c.bf16 %v8413, %v8405
      %v8991 = vpack.c.bf16 %v8415, %v8407
      %v8992 = vpack.c.bf16 %v5500, %v5499
      %v8993 = vpack.c.bf16 %v5502, %v5501
      %v8994 = vpack.c.bf16 %v5504, %v5503
      %v8995 = vpack.c.bf16 %v5506, %v5505
      %v8996 = vpack.c.bf16 %v5508, %v5507
      %v8997 = vpack.c.bf16 %v5510, %v5509
      %v8998 = vpack.c.bf16 %v5512, %v5511
      %v8999 = vpack.c.bf16 %v5514, %v5513
      %v9000 = vpack.c.bf16 %v5516, %v5515
      %v9001 = vpack.c.bf16 %v5518, %v5517
      %v9002 = vpack.c.bf16 %v5520, %v5519
      %v9003 = vpack.c.bf16 %v5522, %v5521
      %v9004 = vpack.c.bf16 %v5524, %v5523
      %v9005 = vpack.c.bf16 %v5526, %v5525
      %v9006 = vpack.c.bf16 %v5528, %v5527
      %v9007 = vpack.c.bf16 %v5530, %v5529
      %v9008 = vpack.c.bf16 %v5532, %v5531
      %v9009 = vpack.c.bf16 %v5534, %v5533
      %v9010 = vpack.c.bf16 %v5536, %v5535
      %v9011 = vpack.c.bf16 %v5538, %v5537
      %v9012 = vpack.c.bf16 %v5540, %v5539
      %v9013 = vpack.c.bf16 %v5542, %v5541
      %v9014 = vpack.c.bf16 %v5544, %v5543
      %v9015 = vpack.c.bf16 %v5546, %v5545
      %v9016 = vpack.c.bf16 %v5548, %v5547
      %v9017 = vpack.c.bf16 %v5550, %v5549
      %v9018 = vpack.c.bf16 %v5552, %v5551
      %v9019 = vpack.c.bf16 %v5554, %v5553
      %v9020 = vpack.c.bf16 %v5556, %v5555
      %v9021 = vpack.c.bf16 %v5558, %v5557
      %v9022 = vpack.c.bf16 %v5560, %v5559
      %v9023 = vpack.c.bf16 %v5562, %v5561
      %9024 = vmatpush.bf16.msra.mxu0 %v8999
      %9025 = vmatpush.bf16.msra.mxu0 %v8998
      %9026 = vmatpush.bf16.msra.mxu0 %v8997
      %9027 = vmatpush.bf16.msra.mxu0 %v8996
      %9028 = vmatpush.bf16.msra.mxu0 %v8995
      %9029 = vmatpush.bf16.msra.mxu0 %v8994
      %9030 = vmatpush.bf16.msra.mxu0 %v8993
      %9031 = vmatpush.bf16.msra.mxu0 %v8992
      %9032 = vmatmul.bf16.gmra.mxu0 %v8864
      %v9033 = vpop.f32.mrf.mxu0
      %v9034 = vadd.f32 0.0, %v9033
      %v9035 = vpop.f32.mrf.mxu0
      %v9036 = vadd.f32 0.0, %v9035
      %9037 = vmatmul.bf16.gmra.mxu0 %v8868
      %v9038 = vpop.f32.mrf.mxu0
      %v9039 = vadd.f32 0.0, %v9038
      %v9040 = vpop.f32.mrf.mxu0
      %v9041 = vadd.f32 0.0, %v9040
      %9042 = vmatmul.bf16.gmra.mxu0 %v8872
      %v9043 = vpop.f32.mrf.mxu0
      %v9044 = vadd.f32 0.0, %v9043
      %v9045 = vpop.f32.mrf.mxu0
      %v9046 = vadd.f32 0.0, %v9045
      %9047 = vmatmul.bf16.gmra.mxu0 %v8876
      %v9048 = vpop.f32.mrf.mxu0
      %v9049 = vadd.f32 0.0, %v9048
      %v9050 = vpop.f32.mrf.mxu0
      %v9051 = vadd.f32 0.0, %v9050
      %9052 = vmatmul.bf16.gmra.mxu0 %v8880
      %v9053 = vpop.f32.mrf.mxu0
      %v9054 = vadd.f32 0.0, %v9053
      %v9055 = vpop.f32.mrf.mxu0
      %v9056 = vadd.f32 0.0, %v9055
      %9057 = vmatmul.bf16.gmra.mxu0 %v8884
      %v9058 = vpop.f32.mrf.mxu0
      %v9059 = vadd.f32 0.0, %v9058
      %v9060 = vpop.f32.mrf.mxu0
      %v9061 = vadd.f32 0.0, %v9060
      %9062 = vmatmul.bf16.gmra.mxu0 %v8888
      %v9063 = vpop.f32.mrf.mxu0
      %v9064 = vadd.f32 0.0, %v9063
      %v9065 = vpop.f32.mrf.mxu0
      %v9066 = vadd.f32 0.0, %v9065
      %9067 = vmatmul.bf16.gmra.mxu0 %v8892
      %v9068 = vpop.f32.mrf.mxu0
      %v9069 = vadd.f32 0.0, %v9068
      %v9070 = vpop.f32.mrf.mxu0
      %v9071 = vadd.f32 0.0, %v9070
      %9072 = vmatmul.bf16.gmra.mxu0 %v8896
      %v9073 = vpop.f32.mrf.mxu0
      %v9074 = vadd.f32 0.0, %v9073
      %v9075 = vpop.f32.mrf.mxu0
      %v9076 = vadd.f32 0.0, %v9075
      %9077 = vmatmul.bf16.gmra.mxu0 %v8900
      %v9078 = vpop.f32.mrf.mxu0
      %v9079 = vadd.f32 0.0, %v9078
      %v9080 = vpop.f32.mrf.mxu0
      %v9081 = vadd.f32 0.0, %v9080
      %9082 = vmatmul.bf16.gmra.mxu0 %v8904
      %v9083 = vpop.f32.mrf.mxu0
      %v9084 = vadd.f32 0.0, %v9083
      %v9085 = vpop.f32.mrf.mxu0
      %v9086 = vadd.f32 0.0, %v9085
      %9087 = vmatmul.bf16.gmra.mxu0 %v8908
      %v9088 = vpop.f32.mrf.mxu0
      %v9089 = vadd.f32 0.0, %v9088
      %v9090 = vpop.f32.mrf.mxu0
      %v9091 = vadd.f32 0.0, %v9090
      %9092 = vmatmul.bf16.gmra.mxu0 %v8912
      %v9093 = vpop.f32.mrf.mxu0
      %v9094 = vadd.f32 0.0, %v9093
      %v9095 = vpop.f32.mrf.mxu0
      %v9096 = vadd.f32 0.0, %v9095
      %9097 = vmatmul.bf16.gmra.mxu0 %v8916
      %v9098 = vpop.f32.mrf.mxu0
      %v9099 = vadd.f32 0.0, %v9098
      %v9100 = vpop.f32.mrf.mxu0
      %v9101 = vadd.f32 0.0, %v9100
      %9102 = vmatmul.bf16.gmra.mxu0 %v8920
      %v9103 = vpop.f32.mrf.mxu0
      %v9104 = vadd.f32 0.0, %v9103
      %v9105 = vpop.f32.mrf.mxu0
      %v9106 = vadd.f32 0.0, %v9105
      %9107 = vmatmul.bf16.gmra.mxu0 %v8924
      %v9108 = vpop.f32.mrf.mxu0
      %v9109 = vadd.f32 0.0, %v9108
      %v9110 = vpop.f32.mrf.mxu0
      %v9111 = vadd.f32 0.0, %v9110
      %9112 = vmatmul.bf16.gmra.mxu0 %v8928
      %v9113 = vpop.f32.mrf.mxu0
      %v9114 = vadd.f32 0.0, %v9113
      %v9115 = vpop.f32.mrf.mxu0
      %v9116 = vadd.f32 0.0, %v9115
      %9117 = vmatmul.bf16.gmra.mxu0 %v8932
      %v9118 = vpop.f32.mrf.mxu0
      %v9119 = vadd.f32 0.0, %v9118
      %v9120 = vpop.f32.mrf.mxu0
      %v9121 = vadd.f32 0.0, %v9120
      %9122 = vmatmul.bf16.gmra.mxu0 %v8936
      %v9123 = vpop.f32.mrf.mxu0
      %v9124 = vadd.f32 0.0, %v9123
      %v9125 = vpop.f32.mrf.mxu0
      %v9126 = vadd.f32 0.0, %v9125
      %9127 = vmatmul.bf16.gmra.mxu0 %v8940
      %v9128 = vpop.f32.mrf.mxu0
      %v9129 = vadd.f32 0.0, %v9128
      %v9130 = vpop.f32.mrf.mxu0
      %v9131 = vadd.f32 0.0, %v9130
      %9132 = vmatmul.bf16.gmra.mxu0 %v8944
      %v9133 = vpop.f32.mrf.mxu0
      %v9134 = vadd.f32 0.0, %v9133
      %v9135 = vpop.f32.mrf.mxu0
      %v9136 = vadd.f32 0.0, %v9135
      %9137 = vmatmul.bf16.gmra.mxu0 %v8948
      %v9138 = vpop.f32.mrf.mxu0
      %v9139 = vadd.f32 0.0, %v9138
      %v9140 = vpop.f32.mrf.mxu0
      %v9141 = vadd.f32 0.0, %v9140
      %9142 = vmatmul.bf16.gmra.mxu0 %v8952
      %v9143 = vpop.f32.mrf.mxu0
      %v9144 = vadd.f32 0.0, %v9143
      %v9145 = vpop.f32.mrf.mxu0
      %v9146 = vadd.f32 0.0, %v9145
      %9147 = vmatmul.bf16.gmra.mxu0 %v8956
      %v9148 = vpop.f32.mrf.mxu0
      %v9149 = vadd.f32 0.0, %v9148
      %v9150 = vpop.f32.mrf.mxu0
      %v9151 = vadd.f32 0.0, %v9150
      %9152 = vmatmul.bf16.gmra.mxu0 %v8960
      %v9153 = vpop.f32.mrf.mxu0
      %v9154 = vadd.f32 0.0, %v9153
      %v9155 = vpop.f32.mrf.mxu0
      %v9156 = vadd.f32 0.0, %v9155
      %9157 = vmatmul.bf16.gmra.mxu0 %v8964
      %v9158 = vpop.f32.mrf.mxu0
      %v9159 = vadd.f32 0.0, %v9158
      %v9160 = vpop.f32.mrf.mxu0
      %v9161 = vadd.f32 0.0, %v9160
      %9162 = vmatmul.bf16.gmra.mxu0 %v8968
      %v9163 = vpop.f32.mrf.mxu0
      %v9164 = vadd.f32 0.0, %v9163
      %v9165 = vpop.f32.mrf.mxu0
      %v9166 = vadd.f32 0.0, %v9165
      %9167 = vmatmul.bf16.gmra.mxu0 %v8972
      %v9168 = vpop.f32.mrf.mxu0
      %v9169 = vadd.f32 0.0, %v9168
      %v9170 = vpop.f32.mrf.mxu0
      %v9171 = vadd.f32 0.0, %v9170
      %9172 = vmatmul.bf16.gmra.mxu0 %v8976
      %v9173 = vpop.f32.mrf.mxu0
      %v9174 = vadd.f32 0.0, %v9173
      %v9175 = vpop.f32.mrf.mxu0
      %v9176 = vadd.f32 0.0, %v9175
      %9177 = vmatmul.bf16.gmra.mxu0 %v8980
      %v9178 = vpop.f32.mrf.mxu0
      %v9179 = vadd.f32 0.0, %v9178
      %v9180 = vpop.f32.mrf.mxu0
      %v9181 = vadd.f32 0.0, %v9180
      %9182 = vmatmul.bf16.gmra.mxu0 %v8984
      %v9183 = vpop.f32.mrf.mxu0
      %v9184 = vadd.f32 0.0, %v9183
      %v9185 = vpop.f32.mrf.mxu0
      %v9186 = vadd.f32 0.0, %v9185
      %9187 = vmatmul.bf16.gmra.mxu0 %v8988
      %v9188 = vpop.f32.mrf.mxu0
      %v9189 = vadd.f32 0.0, %v9188
      %v9190 = vpop.f32.mrf.mxu0
      %v9191 = vadd.f32 0.0, %v9190
      %9192 = vdwg.mxu0
      %9193 = vmatpush.bf16.msra.mxu0 %v9007
      %9194 = vmatpush.bf16.msra.mxu0 %v9006
      %9195 = vmatpush.bf16.msra.mxu0 %v9005
      %9196 = vmatpush.bf16.msra.mxu0 %v9004
      %9197 = vmatpush.bf16.msra.mxu0 %v9003
      %9198 = vmatpush.bf16.msra.mxu0 %v9002
      %9199 = vmatpush.bf16.msra.mxu0 %v9001
      %9200 = vmatpush.bf16.msra.mxu0 %v9000
      %9201 = vmatmul.bf16.gmra.mxu0 %v8865
      %v9202 = vpop.f32.mrf.mxu0
      %v9203 = vadd.f32 %v9034, %v9202
      %v9204 = vpop.f32.mrf.mxu0
      %v9205 = vadd.f32 %v9036, %v9204
      %9206 = vmatmul.bf16.gmra.mxu0 %v8869
      %v9207 = vpop.f32.mrf.mxu0
      %v9208 = vadd.f32 %v9039, %v9207
      %v9209 = vpop.f32.mrf.mxu0
      %v9210 = vadd.f32 %v9041, %v9209
      %9211 = vmatmul.bf16.gmra.mxu0 %v8873
      %v9212 = vpop.f32.mrf.mxu0
      %v9213 = vadd.f32 %v9044, %v9212
      %v9214 = vpop.f32.mrf.mxu0
      %v9215 = vadd.f32 %v9046, %v9214
      %9216 = vmatmul.bf16.gmra.mxu0 %v8877
      %v9217 = vpop.f32.mrf.mxu0
      %v9218 = vadd.f32 %v9049, %v9217
      %v9219 = vpop.f32.mrf.mxu0
      %v9220 = vadd.f32 %v9051, %v9219
      %9221 = vmatmul.bf16.gmra.mxu0 %v8881
      %v9222 = vpop.f32.mrf.mxu0
      %v9223 = vadd.f32 %v9054, %v9222
      %v9224 = vpop.f32.mrf.mxu0
      %v9225 = vadd.f32 %v9056, %v9224
      %9226 = vmatmul.bf16.gmra.mxu0 %v8885
      %v9227 = vpop.f32.mrf.mxu0
      %v9228 = vadd.f32 %v9059, %v9227
      %v9229 = vpop.f32.mrf.mxu0
      %v9230 = vadd.f32 %v9061, %v9229
      %9231 = vmatmul.bf16.gmra.mxu0 %v8889
      %v9232 = vpop.f32.mrf.mxu0
      %v9233 = vadd.f32 %v9064, %v9232
      %v9234 = vpop.f32.mrf.mxu0
      %v9235 = vadd.f32 %v9066, %v9234
      %9236 = vmatmul.bf16.gmra.mxu0 %v8893
      %v9237 = vpop.f32.mrf.mxu0
      %v9238 = vadd.f32 %v9069, %v9237
      %v9239 = vpop.f32.mrf.mxu0
      %v9240 = vadd.f32 %v9071, %v9239
      %9241 = vmatmul.bf16.gmra.mxu0 %v8897
      %v9242 = vpop.f32.mrf.mxu0
      %v9243 = vadd.f32 %v9074, %v9242
      %v9244 = vpop.f32.mrf.mxu0
      %v9245 = vadd.f32 %v9076, %v9244
      %9246 = vmatmul.bf16.gmra.mxu0 %v8901
      %v9247 = vpop.f32.mrf.mxu0
      %v9248 = vadd.f32 %v9079, %v9247
      %v9249 = vpop.f32.mrf.mxu0
      %v9250 = vadd.f32 %v9081, %v9249
      %9251 = vmatmul.bf16.gmra.mxu0 %v8905
      %v9252 = vpop.f32.mrf.mxu0
      %v9253 = vadd.f32 %v9084, %v9252
      %v9254 = vpop.f32.mrf.mxu0
      %v9255 = vadd.f32 %v9086, %v9254
      %9256 = vmatmul.bf16.gmra.mxu0 %v8909
      %v9257 = vpop.f32.mrf.mxu0
      %v9258 = vadd.f32 %v9089, %v9257
      %v9259 = vpop.f32.mrf.mxu0
      %v9260 = vadd.f32 %v9091, %v9259
      %9261 = vmatmul.bf16.gmra.mxu0 %v8913
      %v9262 = vpop.f32.mrf.mxu0
      %v9263 = vadd.f32 %v9094, %v9262
      %v9264 = vpop.f32.mrf.mxu0
      %v9265 = vadd.f32 %v9096, %v9264
      %9266 = vmatmul.bf16.gmra.mxu0 %v8917
      %v9267 = vpop.f32.mrf.mxu0
      %v9268 = vadd.f32 %v9099, %v9267
      %v9269 = vpop.f32.mrf.mxu0
      %v9270 = vadd.f32 %v9101, %v9269
      %9271 = vmatmul.bf16.gmra.mxu0 %v8921
      %v9272 = vpop.f32.mrf.mxu0
      %v9273 = vadd.f32 %v9104, %v9272
      %v9274 = vpop.f32.mrf.mxu0
      %v9275 = vadd.f32 %v9106, %v9274
      %9276 = vmatmul.bf16.gmra.mxu0 %v8925
      %v9277 = vpop.f32.mrf.mxu0
      %v9278 = vadd.f32 %v9109, %v9277
      %v9279 = vpop.f32.mrf.mxu0
      %v9280 = vadd.f32 %v9111, %v9279
      %9281 = vmatmul.bf16.gmra.mxu0 %v8929
      %v9282 = vpop.f32.mrf.mxu0
      %v9283 = vadd.f32 %v9114, %v9282
      %v9284 = vpop.f32.mrf.mxu0
      %v9285 = vadd.f32 %v9116, %v9284
      %9286 = vmatmul.bf16.gmra.mxu0 %v8933
      %v9287 = vpop.f32.mrf.mxu0
      %v9288 = vadd.f32 %v9119, %v9287
      %v9289 = vpop.f32.mrf.mxu0
      %v9290 = vadd.f32 %v9121, %v9289
      %9291 = vmatmul.bf16.gmra.mxu0 %v8937
      %v9292 = vpop.f32.mrf.mxu0
      %v9293 = vadd.f32 %v9124, %v9292
      %v9294 = vpop.f32.mrf.mxu0
      %v9295 = vadd.f32 %v9126, %v9294
      %9296 = vmatmul.bf16.gmra.mxu0 %v8941
      %v9297 = vpop.f32.mrf.mxu0
      %v9298 = vadd.f32 %v9129, %v9297
      %v9299 = vpop.f32.mrf.mxu0
      %v9300 = vadd.f32 %v9131, %v9299
      %9301 = vmatmul.bf16.gmra.mxu0 %v8945
      %v9302 = vpop.f32.mrf.mxu0
      %v9303 = vadd.f32 %v9134, %v9302
      %v9304 = vpop.f32.mrf.mxu0
      %v9305 = vadd.f32 %v9136, %v9304
      %9306 = vmatmul.bf16.gmra.mxu0 %v8949
      %v9307 = vpop.f32.mrf.mxu0
      %v9308 = vadd.f32 %v9139, %v9307
      %v9309 = vpop.f32.mrf.mxu0
      %v9310 = vadd.f32 %v9141, %v9309
      %9311 = vmatmul.bf16.gmra.mxu0 %v8953
      %v9312 = vpop.f32.mrf.mxu0
      %v9313 = vadd.f32 %v9144, %v9312
      %v9314 = vpop.f32.mrf.mxu0
      %v9315 = vadd.f32 %v9146, %v9314
      %9316 = vmatmul.bf16.gmra.mxu0 %v8957
      %v9317 = vpop.f32.mrf.mxu0
      %v9318 = vadd.f32 %v9149, %v9317
      %v9319 = vpop.f32.mrf.mxu0
      %v9320 = vadd.f32 %v9151, %v9319
      %9321 = vmatmul.bf16.gmra.mxu0 %v8961
      %v9322 = vpop.f32.mrf.mxu0
      %v9323 = vadd.f32 %v9154, %v9322
      %v9324 = vpop.f32.mrf.mxu0
      %v9325 = vadd.f32 %v9156, %v9324
      %9326 = vmatmul.bf16.gmra.mxu0 %v8965
      %v9327 = vpop.f32.mrf.mxu0
      %v9328 = vadd.f32 %v9159, %v9327
      %v9329 = vpop.f32.mrf.mxu0
      %v9330 = vadd.f32 %v9161, %v9329
      %9331 = vmatmul.bf16.gmra.mxu0 %v8969
      %v9332 = vpop.f32.mrf.mxu0
      %v9333 = vadd.f32 %v9164, %v9332
      %v9334 = vpop.f32.mrf.mxu0
      %v9335 = vadd.f32 %v9166, %v9334
      %9336 = vmatmul.bf16.gmra.mxu0 %v8973
      %v9337 = vpop.f32.mrf.mxu0
      %v9338 = vadd.f32 %v9169, %v9337
      %v9339 = vpop.f32.mrf.mxu0
      %v9340 = vadd.f32 %v9171, %v9339
      %9341 = vmatmul.bf16.gmra.mxu0 %v8977
      %v9342 = vpop.f32.mrf.mxu0
      %v9343 = vadd.f32 %v9174, %v9342
      %v9344 = vpop.f32.mrf.mxu0
      %v9345 = vadd.f32 %v9176, %v9344
      %9346 = vmatmul.bf16.gmra.mxu0 %v8981
      %v9347 = vpop.f32.mrf.mxu0
      %v9348 = vadd.f32 %v9179, %v9347
      %v9349 = vpop.f32.mrf.mxu0
      %v9350 = vadd.f32 %v9181, %v9349
      %9351 = vmatmul.bf16.gmra.mxu0 %v8985
      %v9352 = vpop.f32.mrf.mxu0
      %v9353 = vadd.f32 %v9184, %v9352
      %v9354 = vpop.f32.mrf.mxu0
      %v9355 = vadd.f32 %v9186, %v9354
      %9356 = vmatmul.bf16.gmra.mxu0 %v8989
      %v9357 = vpop.f32.mrf.mxu0
      %v9358 = vadd.f32 %v9189, %v9357
      %v9359 = vpop.f32.mrf.mxu0
      %v9360 = vadd.f32 %v9191, %v9359
      %9361 = vdwg.mxu0
      %9362 = vmatpush.bf16.msra.mxu0 %v9015
      %9363 = vmatpush.bf16.msra.mxu0 %v9014
      %9364 = vmatpush.bf16.msra.mxu0 %v9013
      %9365 = vmatpush.bf16.msra.mxu0 %v9012
      %9366 = vmatpush.bf16.msra.mxu0 %v9011
      %9367 = vmatpush.bf16.msra.mxu0 %v9010
      %9368 = vmatpush.bf16.msra.mxu0 %v9009
      %9369 = vmatpush.bf16.msra.mxu0 %v9008
      %9370 = vmatmul.bf16.gmra.mxu0 %v8866
      %v9371 = vpop.f32.mrf.mxu0
      %v9372 = vadd.f32 %v9203, %v9371
      %v9373 = vpop.f32.mrf.mxu0
      %v9374 = vadd.f32 %v9205, %v9373
      %9375 = vmatmul.bf16.gmra.mxu0 %v8870
      %v9376 = vpop.f32.mrf.mxu0
      %v9377 = vadd.f32 %v9208, %v9376
      %v9378 = vpop.f32.mrf.mxu0
      %v9379 = vadd.f32 %v9210, %v9378
      %9380 = vmatmul.bf16.gmra.mxu0 %v8874
      %v9381 = vpop.f32.mrf.mxu0
      %v9382 = vadd.f32 %v9213, %v9381
      %v9383 = vpop.f32.mrf.mxu0
      %v9384 = vadd.f32 %v9215, %v9383
      %9385 = vmatmul.bf16.gmra.mxu0 %v8878
      %v9386 = vpop.f32.mrf.mxu0
      %v9387 = vadd.f32 %v9218, %v9386
      %v9388 = vpop.f32.mrf.mxu0
      %v9389 = vadd.f32 %v9220, %v9388
      %9390 = vmatmul.bf16.gmra.mxu0 %v8882
      %v9391 = vpop.f32.mrf.mxu0
      %v9392 = vadd.f32 %v9223, %v9391
      %v9393 = vpop.f32.mrf.mxu0
      %v9394 = vadd.f32 %v9225, %v9393
      %9395 = vmatmul.bf16.gmra.mxu0 %v8886
      %v9396 = vpop.f32.mrf.mxu0
      %v9397 = vadd.f32 %v9228, %v9396
      %v9398 = vpop.f32.mrf.mxu0
      %v9399 = vadd.f32 %v9230, %v9398
      %9400 = vmatmul.bf16.gmra.mxu0 %v8890
      %v9401 = vpop.f32.mrf.mxu0
      %v9402 = vadd.f32 %v9233, %v9401
      %v9403 = vpop.f32.mrf.mxu0
      %v9404 = vadd.f32 %v9235, %v9403
      %9405 = vmatmul.bf16.gmra.mxu0 %v8894
      %v9406 = vpop.f32.mrf.mxu0
      %v9407 = vadd.f32 %v9238, %v9406
      %v9408 = vpop.f32.mrf.mxu0
      %v9409 = vadd.f32 %v9240, %v9408
      %9410 = vmatmul.bf16.gmra.mxu0 %v8898
      %v9411 = vpop.f32.mrf.mxu0
      %v9412 = vadd.f32 %v9243, %v9411
      %v9413 = vpop.f32.mrf.mxu0
      %v9414 = vadd.f32 %v9245, %v9413
      %9415 = vmatmul.bf16.gmra.mxu0 %v8902
      %v9416 = vpop.f32.mrf.mxu0
      %v9417 = vadd.f32 %v9248, %v9416
      %v9418 = vpop.f32.mrf.mxu0
      %v9419 = vadd.f32 %v9250, %v9418
      %9420 = vmatmul.bf16.gmra.mxu0 %v8906
      %v9421 = vpop.f32.mrf.mxu0
      %v9422 = vadd.f32 %v9253, %v9421
      %v9423 = vpop.f32.mrf.mxu0
      %v9424 = vadd.f32 %v9255, %v9423
      %9425 = vmatmul.bf16.gmra.mxu0 %v8910
      %v9426 = vpop.f32.mrf.mxu0
      %v9427 = vadd.f32 %v9258, %v9426
      %v9428 = vpop.f32.mrf.mxu0
      %v9429 = vadd.f32 %v9260, %v9428
      %9430 = vmatmul.bf16.gmra.mxu0 %v8914
      %v9431 = vpop.f32.mrf.mxu0
      %v9432 = vadd.f32 %v9263, %v9431
      %v9433 = vpop.f32.mrf.mxu0
      %v9434 = vadd.f32 %v9265, %v9433
      %9435 = vmatmul.bf16.gmra.mxu0 %v8918
      %v9436 = vpop.f32.mrf.mxu0
      %v9437 = vadd.f32 %v9268, %v9436
      %v9438 = vpop.f32.mrf.mxu0
      %v9439 = vadd.f32 %v9270, %v9438
      %9440 = vmatmul.bf16.gmra.mxu0 %v8922
      %v9441 = vpop.f32.mrf.mxu0
      %v9442 = vadd.f32 %v9273, %v9441
      %v9443 = vpop.f32.mrf.mxu0
      %v9444 = vadd.f32 %v9275, %v9443
      %9445 = vmatmul.bf16.gmra.mxu0 %v8926
      %v9446 = vpop.f32.mrf.mxu0
      %v9447 = vadd.f32 %v9278, %v9446
      %v9448 = vpop.f32.mrf.mxu0
      %v9449 = vadd.f32 %v9280, %v9448
      %9450 = vmatmul.bf16.gmra.mxu0 %v8930
      %v9451 = vpop.f32.mrf.mxu0
      %v9452 = vadd.f32 %v9283, %v9451
      %v9453 = vpop.f32.mrf.mxu0
      %v9454 = vadd.f32 %v9285, %v9453
      %9455 = vmatmul.bf16.gmra.mxu0 %v8934
      %v9456 = vpop.f32.mrf.mxu0
      %v9457 = vadd.f32 %v9288, %v9456
      %v9458 = vpop.f32.mrf.mxu0
      %v9459 = vadd.f32 %v9290, %v9458
      %9460 = vmatmul.bf16.gmra.mxu0 %v8938
      %v9461 = vpop.f32.mrf.mxu0
      %v9462 = vadd.f32 %v9293, %v9461
      %v9463 = vpop.f32.mrf.mxu0
      %v9464 = vadd.f32 %v9295, %v9463
      %9465 = vmatmul.bf16.gmra.mxu0 %v8942
      %v9466 = vpop.f32.mrf.mxu0
      %v9467 = vadd.f32 %v9298, %v9466
      %v9468 = vpop.f32.mrf.mxu0
      %v9469 = vadd.f32 %v9300, %v9468
      %9470 = vmatmul.bf16.gmra.mxu0 %v8946
      %v9471 = vpop.f32.mrf.mxu0
      %v9472 = vadd.f32 %v9303, %v9471
      %v9473 = vpop.f32.mrf.mxu0
      %v9474 = vadd.f32 %v9305, %v9473
      %9475 = vmatmul.bf16.gmra.mxu0 %v8950
      %v9476 = vpop.f32.mrf.mxu0
      %v9477 = vadd.f32 %v9308, %v9476
      %v9478 = vpop.f32.mrf.mxu0
      %v9479 = vadd.f32 %v9310, %v9478
      %9480 = vmatmul.bf16.gmra.mxu0 %v8954
      %v9481 = vpop.f32.mrf.mxu0
      %v9482 = vadd.f32 %v9313, %v9481
      %v9483 = vpop.f32.mrf.mxu0
      %v9484 = vadd.f32 %v9315, %v9483
      %9485 = vmatmul.bf16.gmra.mxu0 %v8958
      %v9486 = vpop.f32.mrf.mxu0
      %v9487 = vadd.f32 %v9318, %v9486
      %v9488 = vpop.f32.mrf.mxu0
      %v9489 = vadd.f32 %v9320, %v9488
      %9490 = vmatmul.bf16.gmra.mxu0 %v8962
      %v9491 = vpop.f32.mrf.mxu0
      %v9492 = vadd.f32 %v9323, %v9491
      %v9493 = vpop.f32.mrf.mxu0
      %v9494 = vadd.f32 %v9325, %v9493
      %9495 = vmatmul.bf16.gmra.mxu0 %v8966
      %v9496 = vpop.f32.mrf.mxu0
      %v9497 = vadd.f32 %v9328, %v9496
      %v9498 = vpop.f32.mrf.mxu0
      %v9499 = vadd.f32 %v9330, %v9498
      %9500 = vmatmul.bf16.gmra.mxu0 %v8970
      %v9501 = vpop.f32.mrf.mxu0
      %v9502 = vadd.f32 %v9333, %v9501
      %v9503 = vpop.f32.mrf.mxu0
      %v9504 = vadd.f32 %v9335, %v9503
      %9505 = vmatmul.bf16.gmra.mxu0 %v8974
      %v9506 = vpop.f32.mrf.mxu0
      %v9507 = vadd.f32 %v9338, %v9506
      %v9508 = vpop.f32.mrf.mxu0
      %v9509 = vadd.f32 %v9340, %v9508
      %9510 = vmatmul.bf16.gmra.mxu0 %v8978
      %v9511 = vpop.f32.mrf.mxu0
      %v9512 = vadd.f32 %v9343, %v9511
      %v9513 = vpop.f32.mrf.mxu0
      %v9514 = vadd.f32 %v9345, %v9513
      %9515 = vmatmul.bf16.gmra.mxu0 %v8982
      %v9516 = vpop.f32.mrf.mxu0
      %v9517 = vadd.f32 %v9348, %v9516
      %v9518 = vpop.f32.mrf.mxu0
      %v9519 = vadd.f32 %v9350, %v9518
      %9520 = vmatmul.bf16.gmra.mxu0 %v8986
      %v9521 = vpop.f32.mrf.mxu0
      %v9522 = vadd.f32 %v9353, %v9521
      %v9523 = vpop.f32.mrf.mxu0
      %v9524 = vadd.f32 %v9355, %v9523
      %9525 = vmatmul.bf16.gmra.mxu0 %v8990
      %v9526 = vpop.f32.mrf.mxu0
      %v9527 = vadd.f32 %v9358, %v9526
      %v9528 = vpop.f32.mrf.mxu0
      %v9529 = vadd.f32 %v9360, %v9528
      %9530 = vdwg.mxu0
      %9531 = vmatpush.bf16.msra.mxu0 %v9023
      %9532 = vmatpush.bf16.msra.mxu0 %v9022
      %9533 = vmatpush.bf16.msra.mxu0 %v9021
      %9534 = vmatpush.bf16.msra.mxu0 %v9020
      %9535 = vmatpush.bf16.msra.mxu0 %v9019
      %9536 = vmatpush.bf16.msra.mxu0 %v9018
      %9537 = vmatpush.bf16.msra.mxu0 %v9017
      %9538 = vmatpush.bf16.msra.mxu0 %v9016
      %9539 = vmatmul.bf16.gmra.mxu0 %v8867
      %v9540 = vpop.f32.mrf.mxu0
      %v9541 = vadd.f32 %v9372, %v9540
      %v9542 = vpop.f32.mrf.mxu0
      %v9543 = vadd.f32 %v9374, %v9542
      %9544 = vmatmul.bf16.gmra.mxu0 %v8871
      %v9545 = vpop.f32.mrf.mxu0
      %v9546 = vadd.f32 %v9377, %v9545
      %v9547 = vpop.f32.mrf.mxu0
      %v9548 = vadd.f32 %v9379, %v9547
      %9549 = vmatmul.bf16.gmra.mxu0 %v8875
      %v9550 = vpop.f32.mrf.mxu0
      %v9551 = vadd.f32 %v9382, %v9550
      %v9552 = vpop.f32.mrf.mxu0
      %v9553 = vadd.f32 %v9384, %v9552
      %9554 = vmatmul.bf16.gmra.mxu0 %v8879
      %v9555 = vpop.f32.mrf.mxu0
      %v9556 = vadd.f32 %v9387, %v9555
      %v9557 = vpop.f32.mrf.mxu0
      %v9558 = vadd.f32 %v9389, %v9557
      %9559 = vmatmul.bf16.gmra.mxu0 %v8883
      %v9560 = vpop.f32.mrf.mxu0
      %v9561 = vadd.f32 %v9392, %v9560
      %v9562 = vpop.f32.mrf.mxu0
      %v9563 = vadd.f32 %v9394, %v9562
      %9564 = vmatmul.bf16.gmra.mxu0 %v8887
      %v9565 = vpop.f32.mrf.mxu0
      %v9566 = vadd.f32 %v9397, %v9565
      %v9567 = vpop.f32.mrf.mxu0
      %v9568 = vadd.f32 %v9399, %v9567
      %9569 = vmatmul.bf16.gmra.mxu0 %v8891
      %v9570 = vpop.f32.mrf.mxu0
      %v9571 = vadd.f32 %v9402, %v9570
      %v9572 = vpop.f32.mrf.mxu0
      %v9573 = vadd.f32 %v9404, %v9572
      %9574 = vmatmul.bf16.gmra.mxu0 %v8895
      %v9575 = vpop.f32.mrf.mxu0
      %v9576 = vadd.f32 %v9407, %v9575
      %v9577 = vpop.f32.mrf.mxu0
      %v9578 = vadd.f32 %v9409, %v9577
      %9579 = vmatmul.bf16.gmra.mxu0 %v8899
      %v9580 = vpop.f32.mrf.mxu0
      %v9581 = vadd.f32 %v9412, %v9580
      %v9582 = vpop.f32.mrf.mxu0
      %v9583 = vadd.f32 %v9414, %v9582
      %9584 = vmatmul.bf16.gmra.mxu0 %v8903
      %v9585 = vpop.f32.mrf.mxu0
      %v9586 = vadd.f32 %v9417, %v9585
      %v9587 = vpop.f32.mrf.mxu0
      %v9588 = vadd.f32 %v9419, %v9587
      %9589 = vmatmul.bf16.gmra.mxu0 %v8907
      %v9590 = vpop.f32.mrf.mxu0
      %v9591 = vadd.f32 %v9422, %v9590
      %v9592 = vpop.f32.mrf.mxu0
      %v9593 = vadd.f32 %v9424, %v9592
      %9594 = vmatmul.bf16.gmra.mxu0 %v8911
      %v9595 = vpop.f32.mrf.mxu0
      %v9596 = vadd.f32 %v9427, %v9595
      %v9597 = vpop.f32.mrf.mxu0
      %v9598 = vadd.f32 %v9429, %v9597
      %9599 = vmatmul.bf16.gmra.mxu0 %v8915
      %v9600 = vpop.f32.mrf.mxu0
      %v9601 = vadd.f32 %v9432, %v9600
      %v9602 = vpop.f32.mrf.mxu0
      %v9603 = vadd.f32 %v9434, %v9602
      %9604 = vmatmul.bf16.gmra.mxu0 %v8919
      %v9605 = vpop.f32.mrf.mxu0
      %v9606 = vadd.f32 %v9437, %v9605
      %v9607 = vpop.f32.mrf.mxu0
      %v9608 = vadd.f32 %v9439, %v9607
      %9609 = vmatmul.bf16.gmra.mxu0 %v8923
      %v9610 = vpop.f32.mrf.mxu0
      %v9611 = vadd.f32 %v9442, %v9610
      %v9612 = vpop.f32.mrf.mxu0
      %v9613 = vadd.f32 %v9444, %v9612
      %9614 = vmatmul.bf16.gmra.mxu0 %v8927
      %v9615 = vpop.f32.mrf.mxu0
      %v9616 = vadd.f32 %v9447, %v9615
      %v9617 = vpop.f32.mrf.mxu0
      %v9618 = vadd.f32 %v9449, %v9617
      %9619 = vmatmul.bf16.gmra.mxu0 %v8931
      %v9620 = vpop.f32.mrf.mxu0
      %v9621 = vadd.f32 %v9452, %v9620
      %v9622 = vpop.f32.mrf.mxu0
      %v9623 = vadd.f32 %v9454, %v9622
      %9624 = vmatmul.bf16.gmra.mxu0 %v8935
      %v9625 = vpop.f32.mrf.mxu0
      %v9626 = vadd.f32 %v9457, %v9625
      %v9627 = vpop.f32.mrf.mxu0
      %v9628 = vadd.f32 %v9459, %v9627
      %9629 = vmatmul.bf16.gmra.mxu0 %v8939
      %v9630 = vpop.f32.mrf.mxu0
      %v9631 = vadd.f32 %v9462, %v9630
      %v9632 = vpop.f32.mrf.mxu0
      %v9633 = vadd.f32 %v9464, %v9632
      %9634 = vmatmul.bf16.gmra.mxu0 %v8943
      %v9635 = vpop.f32.mrf.mxu0
      %v9636 = vadd.f32 %v9467, %v9635
      %v9637 = vpop.f32.mrf.mxu0
      %v9638 = vadd.f32 %v9469, %v9637
      %9639 = vmatmul.bf16.gmra.mxu0 %v8947
      %v9640 = vpop.f32.mrf.mxu0
      %v9641 = vadd.f32 %v9472, %v9640
      %v9642 = vpop.f32.mrf.mxu0
      %v9643 = vadd.f32 %v9474, %v9642
      %9644 = vmatmul.bf16.gmra.mxu0 %v8951
      %v9645 = vpop.f32.mrf.mxu0
      %v9646 = vadd.f32 %v9477, %v9645
      %v9647 = vpop.f32.mrf.mxu0
      %v9648 = vadd.f32 %v9479, %v9647
      %9649 = vmatmul.bf16.gmra.mxu0 %v8955
      %v9650 = vpop.f32.mrf.mxu0
      %v9651 = vadd.f32 %v9482, %v9650
      %v9652 = vpop.f32.mrf.mxu0
      %v9653 = vadd.f32 %v9484, %v9652
      %9654 = vmatmul.bf16.gmra.mxu0 %v8959
      %v9655 = vpop.f32.mrf.mxu0
      %v9656 = vadd.f32 %v9487, %v9655
      %v9657 = vpop.f32.mrf.mxu0
      %v9658 = vadd.f32 %v9489, %v9657
      %9659 = vmatmul.bf16.gmra.mxu0 %v8963
      %v9660 = vpop.f32.mrf.mxu0
      %v9661 = vadd.f32 %v9492, %v9660
      %v9662 = vpop.f32.mrf.mxu0
      %v9663 = vadd.f32 %v9494, %v9662
      %9664 = vmatmul.bf16.gmra.mxu0 %v8967
      %v9665 = vpop.f32.mrf.mxu0
      %v9666 = vadd.f32 %v9497, %v9665
      %v9667 = vpop.f32.mrf.mxu0
      %v9668 = vadd.f32 %v9499, %v9667
      %9669 = vmatmul.bf16.gmra.mxu0 %v8971
      %v9670 = vpop.f32.mrf.mxu0
      %v9671 = vadd.f32 %v9502, %v9670
      %v9672 = vpop.f32.mrf.mxu0
      %v9673 = vadd.f32 %v9504, %v9672
      %9674 = vmatmul.bf16.gmra.mxu0 %v8975
      %v9675 = vpop.f32.mrf.mxu0
      %v9676 = vadd.f32 %v9507, %v9675
      %v9677 = vpop.f32.mrf.mxu0
      %v9678 = vadd.f32 %v9509, %v9677
      %9679 = vmatmul.bf16.gmra.mxu0 %v8979
      %v9680 = vpop.f32.mrf.mxu0
      %v9681 = vadd.f32 %v9512, %v9680
      %v9682 = vpop.f32.mrf.mxu0
      %v9683 = vadd.f32 %v9514, %v9682
      %9684 = vmatmul.bf16.gmra.mxu0 %v8983
      %v9685 = vpop.f32.mrf.mxu0
      %v9686 = vadd.f32 %v9517, %v9685
      %v9687 = vpop.f32.mrf.mxu0
      %v9688 = vadd.f32 %v9519, %v9687
      %9689 = vmatmul.bf16.gmra.mxu0 %v8987
      %v9690 = vpop.f32.mrf.mxu0
      %v9691 = vadd.f32 %v9522, %v9690
      %v9692 = vpop.f32.mrf.mxu0
      %v9693 = vadd.f32 %v9524, %v9692
      %9694 = vmatmul.bf16.gmra.mxu0 %v8991
      %v9695 = vpop.f32.mrf.mxu0
      %v9696 = vadd.f32 %v9527, %v9695
      %v9697 = vpop.f32.mrf.mxu0
      %v9698 = vadd.f32 %v9529, %v9697
      %9699 = vdwg.mxu0
      %v9700 = vadd.f32 %v8800, %v9541
      %v9701 = vadd.f32 %v8801, %v9543
      %v9702 = vadd.f32 %v8802, %v9546
      %v9703 = vadd.f32 %v8803, %v9548
      %v9704 = vadd.f32 %v8804, %v9551
      %v9705 = vadd.f32 %v8805, %v9553
      %v9706 = vadd.f32 %v8806, %v9556
      %v9707 = vadd.f32 %v8807, %v9558
      %v9708 = vadd.f32 %v8808, %v9561
      %v9709 = vadd.f32 %v8809, %v9563
      %v9710 = vadd.f32 %v8810, %v9566
      %v9711 = vadd.f32 %v8811, %v9568
      %v9712 = vadd.f32 %v8812, %v9571
      %v9713 = vadd.f32 %v8813, %v9573
      %v9714 = vadd.f32 %v8814, %v9576
      %v9715 = vadd.f32 %v8815, %v9578
      %v9716 = vadd.f32 %v8816, %v9581
      %v9717 = vadd.f32 %v8817, %v9583
      %v9718 = vadd.f32 %v8818, %v9586
      %v9719 = vadd.f32 %v8819, %v9588
      %v9720 = vadd.f32 %v8820, %v9591
      %v9721 = vadd.f32 %v8821, %v9593
      %v9722 = vadd.f32 %v8822, %v9596
      %v9723 = vadd.f32 %v8823, %v9598
      %v9724 = vadd.f32 %v8824, %v9601
      %v9725 = vadd.f32 %v8825, %v9603
      %v9726 = vadd.f32 %v8826, %v9606
      %v9727 = vadd.f32 %v8827, %v9608
      %v9728 = vadd.f32 %v8828, %v9611
      %v9729 = vadd.f32 %v8829, %v9613
      %v9730 = vadd.f32 %v8830, %v9616
      %v9731 = vadd.f32 %v8831, %v9618
      %v9732 = vadd.f32 %v8832, %v9621
      %v9733 = vadd.f32 %v8833, %v9623
      %v9734 = vadd.f32 %v8834, %v9626
      %v9735 = vadd.f32 %v8835, %v9628
      %v9736 = vadd.f32 %v8836, %v9631
      %v9737 = vadd.f32 %v8837, %v9633
      %v9738 = vadd.f32 %v8838, %v9636
      %v9739 = vadd.f32 %v8839, %v9638
      %v9740 = vadd.f32 %v8840, %v9641
      %v9741 = vadd.f32 %v8841, %v9643
      %v9742 = vadd.f32 %v8842, %v9646
      %v9743 = vadd.f32 %v8843, %v9648
      %v9744 = vadd.f32 %v8844, %v9651
      %v9745 = vadd.f32 %v8845, %v9653
      %v9746 = vadd.f32 %v8846, %v9656
      %v9747 = vadd.f32 %v8847, %v9658
      %v9748 = vadd.f32 %v8848, %v9661
      %v9749 = vadd.f32 %v8849, %v9663
      %v9750 = vadd.f32 %v8850, %v9666
      %v9751 = vadd.f32 %v8851, %v9668
      %v9752 = vadd.f32 %v8852, %v9671
      %v9753 = vadd.f32 %v8853, %v9673
      %v9754 = vadd.f32 %v8854, %v9676
      %v9755 = vadd.f32 %v8855, %v9678
      %v9756 = vadd.f32 %v8856, %v9681
      %v9757 = vadd.f32 %v8857, %v9683
      %v9758 = vadd.f32 %v8858, %v9686
      %v9759 = vadd.f32 %v8859, %v9688
      %v9760 = vadd.f32 %v8860, %v9691
      %v9761 = vadd.f32 %v8861, %v9693
      %v9762 = vadd.f32 %v8862, %v9696
      %v9763 = vadd.f32 %v8863, %v9698
      %vm9764 = vcmask 269312
      %9765 = vst.msk [vmem:[#allocation4] sm:$0xff] %vm9764, %v9700
      %9766 = vst.msk [vmem:[#allocation4 + $0x8] sm:$0xff] %vm9764, %v9701
      %9767 = vst.msk [vmem:[#allocation4 + $0x10] sm:$0xff] %vm9764, %v9702
      %9768 = vst.msk [vmem:[#allocation4 + $0x18] sm:$0xff] %vm9764, %v9703
      %9769 = vst.msk [vmem:[#allocation4 + $0x20] sm:$0xff] %vm9764, %v9704
      %9770 = vst.msk [vmem:[#allocation4 + $0x28] sm:$0xff] %vm9764, %v9705
      %9771 = vst.msk [vmem:[#allocation4 + $0x30] sm:$0xff] %vm9764, %v9706
      %9772 = vst.msk [vmem:[#allocation4 + $0x38] sm:$0xff] %vm9764, %v9707
      %9773 = vst.msk [vmem:[#allocation4 + $0x40] sm:$0xff] %vm9764, %v9708
      %9774 = vst.msk [vmem:[#allocation4 + $0x48] sm:$0xff] %vm9764, %v9709
      %9775 = vst.msk [vmem:[#allocation4 + $0x50] sm:$0xff] %vm9764, %v9710
      %9776 = vst.msk [vmem:[#allocation4 + $0x58] sm:$0xff] %vm9764, %v9711
      %9777 = vst.msk [vmem:[#allocation4 + $0x60] sm:$0xff] %vm9764, %v9712
      %9778 = vst.msk [vmem:[#allocation4 + $0x68] sm:$0xff] %vm9764, %v9713
      %9779 = vst.msk [vmem:[#allocation4 + $0x70] sm:$0xff] %vm9764, %v9714
      %9780 = vst.msk [vmem:[#allocation4 + $0x78] sm:$0xff] %vm9764, %v9715
      %9781 = vst.msk [vmem:[#allocation4 + $0x80] sm:$0xff] %vm9764, %v9716
      %9782 = vst.msk [vmem:[#allocation4 + $0x88] sm:$0xff] %vm9764, %v9717
      %9783 = vst.msk [vmem:[#allocation4 + $0x90] sm:$0xff] %vm9764, %v9718
      %9784 = vst.msk [vmem:[#allocation4 + $0x98] sm:$0xff] %vm9764, %v9719
      %9785 = vst.msk [vmem:[#allocation4 + $0xa0] sm:$0xff] %vm9764, %v9720
      %9786 = vst.msk [vmem:[#allocation4 + $0xa8] sm:$0xff] %vm9764, %v9721
      %9787 = vst.msk [vmem:[#allocation4 + $0xb0] sm:$0xff] %vm9764, %v9722
      %9788 = vst.msk [vmem:[#allocation4 + $0xb8] sm:$0xff] %vm9764, %v9723
      %9789 = vst.msk [vmem:[#allocation4 + $0xc0] sm:$0xff] %vm9764, %v9724
      %9790 = vst.msk [vmem:[#allocation4 + $0xc8] sm:$0xff] %vm9764, %v9725
      %9791 = vst.msk [vmem:[#allocation4 + $0xd0] sm:$0xff] %vm9764, %v9726
      %9792 = vst.msk [vmem:[#allocation4 + $0xd8] sm:$0xff] %vm9764, %v9727
      %9793 = vst.msk [vmem:[#allocation4 + $0xe0] sm:$0xff] %vm9764, %v9728
      %9794 = vst.msk [vmem:[#allocation4 + $0xe8] sm:$0xff] %vm9764, %v9729
      %9795 = vst.msk [vmem:[#allocation4 + $0xf0] sm:$0xff] %vm9764, %v9730
      %9796 = vst.msk [vmem:[#allocation4 + $0xf8] sm:$0xff] %vm9764, %v9731
      %9797 = vst.msk [vmem:[#allocation4 + $0x100] sm:$0xff] %vm9764, %v9732
      %9798 = vst.msk [vmem:[#allocation4 + $0x108] sm:$0xff] %vm9764, %v9733
      %9799 = vst.msk [vmem:[#allocation4 + $0x110] sm:$0xff] %vm9764, %v9734
      %9800 = vst.msk [vmem:[#allocation4 + $0x118] sm:$0xff] %vm9764, %v9735
      %9801 = vst.msk [vmem:[#allocation4 + $0x120] sm:$0xff] %vm9764, %v9736
      %9802 = vst.msk [vmem:[#allocation4 + $0x128] sm:$0xff] %vm9764, %v9737
      %9803 = vst.msk [vmem:[#allocation4 + $0x130] sm:$0xff] %vm9764, %v9738
      %9804 = vst.msk [vmem:[#allocation4 + $0x138] sm:$0xff] %vm9764, %v9739
      %9805 = vst.msk [vmem:[#allocation4 + $0x140] sm:$0xff] %vm9764, %v9740
      %9806 = vst.msk [vmem:[#allocation4 + $0x148] sm:$0xff] %vm9764, %v9741
      %9807 = vst.msk [vmem:[#allocation4 + $0x150] sm:$0xff] %vm9764, %v9742
      %9808 = vst.msk [vmem:[#allocation4 + $0x158] sm:$0xff] %vm9764, %v9743
      %9809 = vst.msk [vmem:[#allocation4 + $0x160] sm:$0xff] %vm9764, %v9744
      %9810 = vst.msk [vmem:[#allocation4 + $0x168] sm:$0xff] %vm9764, %v9745
      %9811 = vst.msk [vmem:[#allocation4 + $0x170] sm:$0xff] %vm9764, %v9746
      %9812 = vst.msk [vmem:[#allocation4 + $0x178] sm:$0xff] %vm9764, %v9747
      %9813 = vst.msk [vmem:[#allocation4 + $0x180] sm:$0xff] %vm9764, %v9748
      %9814 = vst.msk [vmem:[#allocation4 + $0x188] sm:$0xff] %vm9764, %v9749
      %9815 = vst.msk [vmem:[#allocation4 + $0x190] sm:$0xff] %vm9764, %v9750
      %9816 = vst.msk [vmem:[#allocation4 + $0x198] sm:$0xff] %vm9764, %v9751
      %9817 = vst.msk [vmem:[#allocation4 + $0x1a0] sm:$0xff] %vm9764, %v9752
      %9818 = vst.msk [vmem:[#allocation4 + $0x1a8] sm:$0xff] %vm9764, %v9753
      %9819 = vst.msk [vmem:[#allocation4 + $0x1b0] sm:$0xff] %vm9764, %v9754
      %9820 = vst.msk [vmem:[#allocation4 + $0x1b8] sm:$0xff] %vm9764, %v9755
      %9821 = vst.msk [vmem:[#allocation4 + $0x1c0] sm:$0xff] %vm9764, %v9756
      %9822 = vst.msk [vmem:[#allocation4 + $0x1c8] sm:$0xff] %vm9764, %v9757
      %9823 = vst.msk [vmem:[#allocation4 + $0x1d0] sm:$0xff] %vm9764, %v9758
      %9824 = vst.msk [vmem:[#allocation4 + $0x1d8] sm:$0xff] %vm9764, %v9759
      %9825 = vst.msk [vmem:[#allocation4 + $0x1e0] sm:$0xff] %vm9764, %v9760
      %9826 = vst.msk [vmem:[#allocation4 + $0x1e8] sm:$0xff] %vm9764, %v9761
      %9827 = vst.msk [vmem:[#allocation4 + $0x1f0] sm:$0xff] %vm9764, %v9762
      %9828 = vst.msk [vmem:[#allocation4 + $0x1f8] sm:$0xff] %vm9764, %v9763
      %vm9829 = vcmask 7168
      %9830 = vst.msk [vmem:[#allocation3] sm:$0xff] %vm9829, %v7072
      %9831 = vst.msk [vmem:[#allocation3 + $0x8] sm:$0xff] %vm9829, %v7073
      %9832 = vst.msk [vmem:[#allocation3 + $0x10] sm:$0xff] %vm9829, %v7074
      %9833 = vst.msk [vmem:[#allocation3 + $0x18] sm:$0xff] %vm9829, %v7075
      %9834 = vst.msk [vmem:[#allocation3 + $0x20] sm:$0xff] %vm9829, %v7076
      %9835 = vst.msk [vmem:[#allocation3 + $0x28] sm:$0xff] %vm9829, %v7077
      %9836 = vst.msk [vmem:[#allocation3 + $0x30] sm:$0xff] %vm9829, %v7078
      %9837 = vst.msk [vmem:[#allocation3 + $0x38] sm:$0xff] %vm9829, %v7079
      %9838 = vst.msk [vmem:[#allocation3 + $0x40] sm:$0xff] %vm9829, %v7080
      %9839 = vst.msk [vmem:[#allocation3 + $0x48] sm:$0xff] %vm9829, %v7081
      %9840 = vst.msk [vmem:[#allocation3 + $0x50] sm:$0xff] %vm9829, %v7082
      %9841 = vst.msk [vmem:[#allocation3 + $0x58] sm:$0xff] %vm9829, %v7083
      %9842 = vst.msk [vmem:[#allocation3 + $0x60] sm:$0xff] %vm9829, %v7084
      %9843 = vst.msk [vmem:[#allocation3 + $0x68] sm:$0xff] %vm9829, %v7085
      %9844 = vst.msk [vmem:[#allocation3 + $0x70] sm:$0xff] %vm9829, %v7086
      %9845 = vst.msk [vmem:[#allocation3 + $0x78] sm:$0xff] %vm9829, %v7087
      %9846 = vst.msk [vmem:[#allocation3 + $0x80] sm:$0xff] %vm9829, %v7088
      %9847 = vst.msk [vmem:[#allocation3 + $0x88] sm:$0xff] %vm9829, %v7089
      %9848 = vst.msk [vmem:[#allocation3 + $0x90] sm:$0xff] %vm9829, %v7090
      %9849 = vst.msk [vmem:[#allocation3 + $0x98] sm:$0xff] %vm9829, %v7091
      %9850 = vst.msk [vmem:[#allocation3 + $0xa0] sm:$0xff] %vm9829, %v7092
      %9851 = vst.msk [vmem:[#allocation3 + $0xa8] sm:$0xff] %vm9829, %v7093
      %9852 = vst.msk [vmem:[#allocation3 + $0xb0] sm:$0xff] %vm9829, %v7094
      %9853 = vst.msk [vmem:[#allocation3 + $0xb8] sm:$0xff] %vm9829, %v7095
      %9854 = vst.msk [vmem:[#allocation3 + $0xc0] sm:$0xff] %vm9829, %v7096
      %9855 = vst.msk [vmem:[#allocation3 + $0xc8] sm:$0xff] %vm9829, %v7097
      %9856 = vst.msk [vmem:[#allocation3 + $0xd0] sm:$0xff] %vm9829, %v7098
      %9857 = vst.msk [vmem:[#allocation3 + $0xd8] sm:$0xff] %vm9829, %v7099
      %9858 = vst.msk [vmem:[#allocation3 + $0xe0] sm:$0xff] %vm9829, %v7100
      %9859 = vst.msk [vmem:[#allocation3 + $0xe8] sm:$0xff] %vm9829, %v7101
      %9860 = vst.msk [vmem:[#allocation3 + $0xf0] sm:$0xff] %vm9829, %v7102
      %9861 = vst.msk [vmem:[#allocation3 + $0xf8] sm:$0xff] %vm9829, %v7103
      %9862 = vst.msk [vmem:[#allocation3 + $0x100] sm:$0xff] %vm9829, %v7104
      %9863 = vst.msk [vmem:[#allocation3 + $0x108] sm:$0xff] %vm9829, %v7105
      %9864 = vst.msk [vmem:[#allocation3 + $0x110] sm:$0xff] %vm9829, %v7106
      %9865 = vst.msk [vmem:[#allocation3 + $0x118] sm:$0xff] %vm9829, %v7107
      %9866 = vst.msk [vmem:[#allocation3 + $0x120] sm:$0xff] %vm9829, %v7108
      %9867 = vst.msk [vmem:[#allocation3 + $0x128] sm:$0xff] %vm9829, %v7109
      %9868 = vst.msk [vmem:[#allocation3 + $0x130] sm:$0xff] %vm9829, %v7110
      %9869 = vst.msk [vmem:[#allocation3 + $0x138] sm:$0xff] %vm9829, %v7111
      %9870 = vst.msk [vmem:[#allocation3 + $0x140] sm:$0xff] %vm9829, %v7112
      %9871 = vst.msk [vmem:[#allocation3 + $0x148] sm:$0xff] %vm9829, %v7113
      %9872 = vst.msk [vmem:[#allocation3 + $0x150] sm:$0xff] %vm9829, %v7114
      %9873 = vst.msk [vmem:[#allocation3 + $0x158] sm:$0xff] %vm9829, %v7115
      %9874 = vst.msk [vmem:[#allocation3 + $0x160] sm:$0xff] %vm9829, %v7116
      %9875 = vst.msk [vmem:[#allocation3 + $0x168] sm:$0xff] %vm9829, %v7117
      %9876 = vst.msk [vmem:[#allocation3 + $0x170] sm:$0xff] %vm9829, %v7118
      %9877 = vst.msk [vmem:[#allocation3 + $0x178] sm:$0xff] %vm9829, %v7119
      %9878 = vst.msk [vmem:[#allocation3 + $0x180] sm:$0xff] %vm9829, %v7120
      %9879 = vst.msk [vmem:[#allocation3 + $0x188] sm:$0xff] %vm9829, %v7121
      %9880 = vst.msk [vmem:[#allocation3 + $0x190] sm:$0xff] %vm9829, %v7122
      %9881 = vst.msk [vmem:[#allocation3 + $0x198] sm:$0xff] %vm9829, %v7123
      %9882 = vst.msk [vmem:[#allocation3 + $0x1a0] sm:$0xff] %vm9829, %v7124
      %9883 = vst.msk [vmem:[#allocation3 + $0x1a8] sm:$0xff] %vm9829, %v7125
      %9884 = vst.msk [vmem:[#allocation3 + $0x1b0] sm:$0xff] %vm9829, %v7126
      %9885 = vst.msk [vmem:[#allocation3 + $0x1b8] sm:$0xff] %vm9829, %v7127
      %9886 = vst.msk [vmem:[#allocation3 + $0x1c0] sm:$0xff] %vm9829, %v7128
      %9887 = vst.msk [vmem:[#allocation3 + $0x1c8] sm:$0xff] %vm9829, %v7129
      %9888 = vst.msk [vmem:[#allocation3 + $0x1d0] sm:$0xff] %vm9829, %v7130
      %9889 = vst.msk [vmem:[#allocation3 + $0x1d8] sm:$0xff] %vm9829, %v7131
      %9890 = vst.msk [vmem:[#allocation3 + $0x1e0] sm:$0xff] %vm9829, %v7132
      %9891 = vst.msk [vmem:[#allocation3 + $0x1e8] sm:$0xff] %vm9829, %v7133
      %9892 = vst.msk [vmem:[#allocation3 + $0x1f0] sm:$0xff] %vm9829, %v7134
      %9893 = vst.msk [vmem:[#allocation3 + $0x1f8] sm:$0xff] %vm9829, %v7135
      // Predicated region
      $region69: #{ssfm_forward.1} parent=63 // pred_check
        %p9894 = pneg %p543
      $region70: #{ssfm_forward.1} parent=63 // pred_check_branch
        %9896 = sbr.rel (%p9894) target = $region72
      $region71: #{ssfm_forward.1} parent=63 // pred_region
        %s9897 = sld [smem:[#allocation5]]
        %v9898 = vld [vmem:[#allocation4] sm:$0xff]
        %v9899 = vld [vmem:[#allocation4 + $0x8] sm:$0xff]
        %v9900 = vld [vmem:[#allocation4 + $0x10] sm:$0xff]
        %v9901 = vld [vmem:[#allocation4 + $0x18] sm:$0xff]
        %v9902 = vld [vmem:[#allocation4 + $0x20] sm:$0xff]
        %v9903 = vld [vmem:[#allocation4 + $0x28] sm:$0xff]
        %v9904 = vld [vmem:[#allocation4 + $0x30] sm:$0xff]
        %v9905 = vld [vmem:[#allocation4 + $0x38] sm:$0xff]
        %v9906 = vld [vmem:[#allocation4 + $0x40] sm:$0xff]
        %v9907 = vld [vmem:[#allocation4 + $0x48] sm:$0xff]
        %v9908 = vld [vmem:[#allocation4 + $0x50] sm:$0xff]
        %v9909 = vld [vmem:[#allocation4 + $0x58] sm:$0xff]
        %v9910 = vld [vmem:[#allocation4 + $0x60] sm:$0xff]
        %v9911 = vld [vmem:[#allocation4 + $0x68] sm:$0xff]
        %v9912 = vld [vmem:[#allocation4 + $0x70] sm:$0xff]
        %v9913 = vld [vmem:[#allocation4 + $0x78] sm:$0xff]
        %v9914 = vld [vmem:[#allocation4 + $0x80] sm:$0xff]
        %v9915 = vld [vmem:[#allocation4 + $0x88] sm:$0xff]
        %v9916 = vld [vmem:[#allocation4 + $0x90] sm:$0xff]
        %v9917 = vld [vmem:[#allocation4 + $0x98] sm:$0xff]
        %v9918 = vld [vmem:[#allocation4 + $0xa0] sm:$0xff]
        %v9919 = vld [vmem:[#allocation4 + $0xa8] sm:$0xff]
        %v9920 = vld [vmem:[#allocation4 + $0xb0] sm:$0xff]
        %v9921 = vld [vmem:[#allocation4 + $0xb8] sm:$0xff]
        %v9922 = vld [vmem:[#allocation4 + $0xc0] sm:$0xff]
        %v9923 = vld [vmem:[#allocation4 + $0xc8] sm:$0xff]
        %v9924 = vld [vmem:[#allocation4 + $0xd0] sm:$0xff]
        %v9925 = vld [vmem:[#allocation4 + $0xd8] sm:$0xff]
        %v9926 = vld [vmem:[#allocation4 + $0xe0] sm:$0xff]
        %v9927 = vld [vmem:[#allocation4 + $0xe8] sm:$0xff]
        %v9928 = vld [vmem:[#allocation4 + $0xf0] sm:$0xff]
        %v9929 = vld [vmem:[#allocation4 + $0xf8] sm:$0xff]
        %v9930 = vld [vmem:[#allocation4 + $0x100] sm:$0xff]
        %v9931 = vld [vmem:[#allocation4 + $0x108] sm:$0xff]
        %v9932 = vld [vmem:[#allocation4 + $0x110] sm:$0xff]
        %v9933 = vld [vmem:[#allocation4 + $0x118] sm:$0xff]
        %v9934 = vld [vmem:[#allocation4 + $0x120] sm:$0xff]
        %v9935 = vld [vmem:[#allocation4 + $0x128] sm:$0xff]
        %v9936 = vld [vmem:[#allocation4 + $0x130] sm:$0xff]
        %v9937 = vld [vmem:[#allocation4 + $0x138] sm:$0xff]
        %v9938 = vld [vmem:[#allocation4 + $0x140] sm:$0xff]
        %v9939 = vld [vmem:[#allocation4 + $0x148] sm:$0xff]
        %v9940 = vld [vmem:[#allocation4 + $0x150] sm:$0xff]
        %v9941 = vld [vmem:[#allocation4 + $0x158] sm:$0xff]
        %v9942 = vld [vmem:[#allocation4 + $0x160] sm:$0xff]
        %v9943 = vld [vmem:[#allocation4 + $0x168] sm:$0xff]
        %v9944 = vld [vmem:[#allocation4 + $0x170] sm:$0xff]
        %v9945 = vld [vmem:[#allocation4 + $0x178] sm:$0xff]
        %v9946 = vld [vmem:[#allocation4 + $0x180] sm:$0xff]
        %v9947 = vld [vmem:[#allocation4 + $0x188] sm:$0xff]
        %v9948 = vld [vmem:[#allocation4 + $0x190] sm:$0xff]
        %v9949 = vld [vmem:[#allocation4 + $0x198] sm:$0xff]
        %v9950 = vld [vmem:[#allocation4 + $0x1a0] sm:$0xff]
        %v9951 = vld [vmem:[#allocation4 + $0x1a8] sm:$0xff]
        %v9952 = vld [vmem:[#allocation4 + $0x1b0] sm:$0xff]
        %v9953 = vld [vmem:[#allocation4 + $0x1b8] sm:$0xff]
        %v9954 = vld [vmem:[#allocation4 + $0x1c0] sm:$0xff]
        %v9955 = vld [vmem:[#allocation4 + $0x1c8] sm:$0xff]
        %v9956 = vld [vmem:[#allocation4 + $0x1d0] sm:$0xff]
        %v9957 = vld [vmem:[#allocation4 + $0x1d8] sm:$0xff]
        %v9958 = vld [vmem:[#allocation4 + $0x1e0] sm:$0xff]
        %v9959 = vld [vmem:[#allocation4 + $0x1e8] sm:$0xff]
        %v9960 = vld [vmem:[#allocation4 + $0x1f0] sm:$0xff]
        %v9961 = vld [vmem:[#allocation4 + $0x1f8] sm:$0xff]
        %v9962 = vrcp.pop %v9898
        %v9963 = vrcp.pop %v9899
        %v9964 = vrcp.pop %v9900
        %v9965 = vrcp.pop %v9901
        %v9966 = vrcp.pop %v9902
        %v9967 = vrcp.pop %v9903
        %v9968 = vrcp.pop %v9904
        %v9969 = vrcp.pop %v9905
        %v9970 = vrcp.pop %v9906
        %v9971 = vrcp.pop %v9907
        %v9972 = vrcp.pop %v9908
        %v9973 = vrcp.pop %v9909
        %v9974 = vrcp.pop %v9910
        %v9975 = vrcp.pop %v9911
        %v9976 = vrcp.pop %v9912
        %v9977 = vrcp.pop %v9913
        %v9978 = vrcp.pop %v9914
        %v9979 = vrcp.pop %v9915
        %v9980 = vrcp.pop %v9916
        %v9981 = vrcp.pop %v9917
        %v9982 = vrcp.pop %v9918
        %v9983 = vrcp.pop %v9919
        %v9984 = vrcp.pop %v9920
        %v9985 = vrcp.pop %v9921
        %v9986 = vrcp.pop %v9922
        %v9987 = vrcp.pop %v9923
        %v9988 = vrcp.pop %v9924
        %v9989 = vrcp.pop %v9925
        %v9990 = vrcp.pop %v9926
        %v9991 = vrcp.pop %v9927
        %v9992 = vrcp.pop %v9928
        %v9993 = vrcp.pop %v9929
        %v9994 = vrcp.pop %v9930
        %v9995 = vrcp.pop %v9931
        %v9996 = vrcp.pop %v9932
        %v9997 = vrcp.pop %v9933
        %v9998 = vrcp.pop %v9934
        %v9999 = vrcp.pop %v9935
        %v10000 = vrcp.pop %v9936
        %v10001 = vrcp.pop %v9937
        %v10002 = vrcp.pop %v9938
        %v10003 = vrcp.pop %v9939
        %v10004 = vrcp.pop %v9940
        %v10005 = vrcp.pop %v9941
        %v10006 = vrcp.pop %v9942
        %v10007 = vrcp.pop %v9943
        %v10008 = vrcp.pop %v9944
        %v10009 = vrcp.pop %v9945
        %v10010 = vrcp.pop %v9946
        %v10011 = vrcp.pop %v9947
        %v10012 = vrcp.pop %v9948
        %v10013 = vrcp.pop %v9949
        %v10014 = vrcp.pop %v9950
        %v10015 = vrcp.pop %v9951
        %v10016 = vrcp.pop %v9952
        %v10017 = vrcp.pop %v9953
        %v10018 = vrcp.pop %v9954
        %v10019 = vrcp.pop %v9955
        %v10020 = vrcp.pop %v9956
        %v10021 = vrcp.pop %v9957
        %v10022 = vrcp.pop %v9958
        %v10023 = vrcp.pop %v9959
        %v10024 = vrcp.pop %v9960
        %v10025 = vrcp.pop %v9961
        %10027 = vset.pattern.permute.xlu0 32
        %10028 = vperm.xlu0 %10027, %v9962
        %v10029 = vpop.permute.xlu0 %10028
        %10032 = vset.pattern.permute.xlu0 32
        %10033 = vperm.xlu0 %10032, %v9963
        %v10034 = vpop.permute.xlu0 %10033
        %10037 = vset.pattern.permute.xlu0 32
        %10038 = vperm.xlu0 %10037, %v9964
        %v10039 = vpop.permute.xlu0 %10038
        %10042 = vset.pattern.permute.xlu0 32
        %10043 = vperm.xlu0 %10042, %v9965
        %v10044 = vpop.permute.xlu0 %10043
        %10047 = vset.pattern.permute.xlu0 32
        %10048 = vperm.xlu0 %10047, %v9966
        %v10049 = vpop.permute.xlu0 %10048
        %10052 = vset.pattern.permute.xlu0 32
        %10053 = vperm.xlu0 %10052, %v9967
        %v10054 = vpop.permute.xlu0 %10053
        %10057 = vset.pattern.permute.xlu0 32
        %10058 = vperm.xlu0 %10057, %v9968
        %v10059 = vpop.permute.xlu0 %10058
        %10062 = vset.pattern.permute.xlu0 32
        %10063 = vperm.xlu0 %10062, %v9969
        %v10064 = vpop.permute.xlu0 %10063
        %10067 = vset.pattern.permute.xlu0 32
        %10068 = vperm.xlu0 %10067, %v9970
        %v10069 = vpop.permute.xlu0 %10068
        %10072 = vset.pattern.permute.xlu0 32
        %10073 = vperm.xlu0 %10072, %v9971
        %v10074 = vpop.permute.xlu0 %10073
        %10077 = vset.pattern.permute.xlu0 32
        %10078 = vperm.xlu0 %10077, %v9972
        %v10079 = vpop.permute.xlu0 %10078
        %10082 = vset.pattern.permute.xlu0 32
        %10083 = vperm.xlu0 %10082, %v9973
        %v10084 = vpop.permute.xlu0 %10083
        %10087 = vset.pattern.permute.xlu0 32
        %10088 = vperm.xlu0 %10087, %v9974
        %v10089 = vpop.permute.xlu0 %10088
        %10092 = vset.pattern.permute.xlu0 32
        %10093 = vperm.xlu0 %10092, %v9975
        %v10094 = vpop.permute.xlu0 %10093
        %10097 = vset.pattern.permute.xlu0 32
        %10098 = vperm.xlu0 %10097, %v9976
        %v10099 = vpop.permute.xlu0 %10098
        %10102 = vset.pattern.permute.xlu0 32
        %10103 = vperm.xlu0 %10102, %v9977
        %v10104 = vpop.permute.xlu0 %10103
        %10107 = vset.pattern.permute.xlu0 32
        %10108 = vperm.xlu0 %10107, %v9978
        %v10109 = vpop.permute.xlu0 %10108
        %10112 = vset.pattern.permute.xlu0 32
        %10113 = vperm.xlu0 %10112, %v9979
        %v10114 = vpop.permute.xlu0 %10113
        %10117 = vset.pattern.permute.xlu0 32
        %10118 = vperm.xlu0 %10117, %v9980
        %v10119 = vpop.permute.xlu0 %10118
        %10122 = vset.pattern.permute.xlu0 32
        %10123 = vperm.xlu0 %10122, %v9981
        %v10124 = vpop.permute.xlu0 %10123
        %10127 = vset.pattern.permute.xlu0 32
        %10128 = vperm.xlu0 %10127, %v9982
        %v10129 = vpop.permute.xlu0 %10128
        %10132 = vset.pattern.permute.xlu0 32
        %10133 = vperm.xlu0 %10132, %v9983
        %v10134 = vpop.permute.xlu0 %10133
        %10137 = vset.pattern.permute.xlu0 32
        %10138 = vperm.xlu0 %10137, %v9984
        %v10139 = vpop.permute.xlu0 %10138
        %10142 = vset.pattern.permute.xlu0 32
        %10143 = vperm.xlu0 %10142, %v9985
        %v10144 = vpop.permute.xlu0 %10143
        %10147 = vset.pattern.permute.xlu0 32
        %10148 = vperm.xlu0 %10147, %v9986
        %v10149 = vpop.permute.xlu0 %10148
        %10152 = vset.pattern.permute.xlu0 32
        %10153 = vperm.xlu0 %10152, %v9987
        %v10154 = vpop.permute.xlu0 %10153
        %10157 = vset.pattern.permute.xlu0 32
        %10158 = vperm.xlu0 %10157, %v9988
        %v10159 = vpop.permute.xlu0 %10158
        %10162 = vset.pattern.permute.xlu0 32
        %10163 = vperm.xlu0 %10162, %v9989
        %v10164 = vpop.permute.xlu0 %10163
        %10167 = vset.pattern.permute.xlu0 32
        %10168 = vperm.xlu0 %10167, %v9990
        %v10169 = vpop.permute.xlu0 %10168
        %10172 = vset.pattern.permute.xlu0 32
        %10173 = vperm.xlu0 %10172, %v9991
        %v10174 = vpop.permute.xlu0 %10173
        %10177 = vset.pattern.permute.xlu0 32
        %10178 = vperm.xlu0 %10177, %v9992
        %v10179 = vpop.permute.xlu0 %10178
        %10182 = vset.pattern.permute.xlu0 32
        %10183 = vperm.xlu0 %10182, %v9993
        %v10184 = vpop.permute.xlu0 %10183
        %10187 = vset.pattern.permute.xlu0 32
        %10188 = vperm.xlu0 %10187, %v9994
        %v10189 = vpop.permute.xlu0 %10188
        %10192 = vset.pattern.permute.xlu0 32
        %10193 = vperm.xlu0 %10192, %v9995
        %v10194 = vpop.permute.xlu0 %10193
        %10197 = vset.pattern.permute.xlu0 32
        %10198 = vperm.xlu0 %10197, %v9996
        %v10199 = vpop.permute.xlu0 %10198
        %10202 = vset.pattern.permute.xlu0 32
        %10203 = vperm.xlu0 %10202, %v9997
        %v10204 = vpop.permute.xlu0 %10203
        %10207 = vset.pattern.permute.xlu0 32
        %10208 = vperm.xlu0 %10207, %v9998
        %v10209 = vpop.permute.xlu0 %10208
        %10212 = vset.pattern.permute.xlu0 32
        %10213 = vperm.xlu0 %10212, %v9999
        %v10214 = vpop.permute.xlu0 %10213
        %10217 = vset.pattern.permute.xlu0 32
        %10218 = vperm.xlu0 %10217, %v10000
        %v10219 = vpop.permute.xlu0 %10218
        %10222 = vset.pattern.permute.xlu0 32
        %10223 = vperm.xlu0 %10222, %v10001
        %v10224 = vpop.permute.xlu0 %10223
        %10227 = vset.pattern.permute.xlu0 32
        %10228 = vperm.xlu0 %10227, %v10002
        %v10229 = vpop.permute.xlu0 %10228
        %10232 = vset.pattern.permute.xlu0 32
        %10233 = vperm.xlu0 %10232, %v10003
        %v10234 = vpop.permute.xlu0 %10233
        %10237 = vset.pattern.permute.xlu0 32
        %10238 = vperm.xlu0 %10237, %v10004
        %v10239 = vpop.permute.xlu0 %10238
        %10242 = vset.pattern.permute.xlu0 32
        %10243 = vperm.xlu0 %10242, %v10005
        %v10244 = vpop.permute.xlu0 %10243
        %10247 = vset.pattern.permute.xlu0 32
        %10248 = vperm.xlu0 %10247, %v10006
        %v10249 = vpop.permute.xlu0 %10248
        %10252 = vset.pattern.permute.xlu0 32
        %10253 = vperm.xlu0 %10252, %v10007
        %v10254 = vpop.permute.xlu0 %10253
        %10257 = vset.pattern.permute.xlu0 32
        %10258 = vperm.xlu0 %10257, %v10008
        %v10259 = vpop.permute.xlu0 %10258
        %10262 = vset.pattern.permute.xlu0 32
        %10263 = vperm.xlu0 %10262, %v10009
        %v10264 = vpop.permute.xlu0 %10263
        %10267 = vset.pattern.permute.xlu0 32
        %10268 = vperm.xlu0 %10267, %v10010
        %v10269 = vpop.permute.xlu0 %10268
        %10272 = vset.pattern.permute.xlu0 32
        %10273 = vperm.xlu0 %10272, %v10011
        %v10274 = vpop.permute.xlu0 %10273
        %10277 = vset.pattern.permute.xlu0 32
        %10278 = vperm.xlu0 %10277, %v10012
        %v10279 = vpop.permute.xlu0 %10278
        %10282 = vset.pattern.permute.xlu0 32
        %10283 = vperm.xlu0 %10282, %v10013
        %v10284 = vpop.permute.xlu0 %10283
        %10287 = vset.pattern.permute.xlu0 32
        %10288 = vperm.xlu0 %10287, %v10014
        %v10289 = vpop.permute.xlu0 %10288
        %10292 = vset.pattern.permute.xlu0 32
        %10293 = vperm.xlu0 %10292, %v10015
        %v10294 = vpop.permute.xlu0 %10293
        %10297 = vset.pattern.permute.xlu0 32
        %10298 = vperm.xlu0 %10297, %v10016
        %v10299 = vpop.permute.xlu0 %10298
        %10302 = vset.pattern.permute.xlu0 32
        %10303 = vperm.xlu0 %10302, %v10017
        %v10304 = vpop.permute.xlu0 %10303
        %10307 = vset.pattern.permute.xlu0 32
        %10308 = vperm.xlu0 %10307, %v10018
        %v10309 = vpop.permute.xlu0 %10308
        %10312 = vset.pattern.permute.xlu0 32
        %10313 = vperm.xlu0 %10312, %v10019
        %v10314 = vpop.permute.xlu0 %10313
        %10317 = vset.pattern.permute.xlu0 32
        %10318 = vperm.xlu0 %10317, %v10020
        %v10319 = vpop.permute.xlu0 %10318
        %10322 = vset.pattern.permute.xlu0 32
        %10323 = vperm.xlu0 %10322, %v10021
        %v10324 = vpop.permute.xlu0 %10323
        %10327 = vset.pattern.permute.xlu0 32
        %10328 = vperm.xlu0 %10327, %v10022
        %v10329 = vpop.permute.xlu0 %10328
        %10332 = vset.pattern.permute.xlu0 32
        %10333 = vperm.xlu0 %10332, %v10023
        %v10334 = vpop.permute.xlu0 %10333
        %10337 = vset.pattern.permute.xlu0 32
        %10338 = vperm.xlu0 %10337, %v10024
        %v10339 = vpop.permute.xlu0 %10338
        %10342 = vset.pattern.permute.xlu0 32
        %10343 = vperm.xlu0 %10342, %v10025
        %v10344 = vpop.permute.xlu0 %10343
        %v10346 = vmul.f32 %v9898, %v10029
        %v10347 = vmul.f32 %v9899, %v10034
        %v10348 = vmul.f32 %v9900, %v10039
        %v10349 = vmul.f32 %v9901, %v10044
        %v10350 = vmul.f32 %v9902, %v10049
        %v10351 = vmul.f32 %v9903, %v10054
        %v10352 = vmul.f32 %v9904, %v10059
        %v10353 = vmul.f32 %v9905, %v10064
        %v10354 = vmul.f32 %v9906, %v10069
        %v10355 = vmul.f32 %v9907, %v10074
        %v10356 = vmul.f32 %v9908, %v10079
        %v10357 = vmul.f32 %v9909, %v10084
        %v10358 = vmul.f32 %v9910, %v10089
        %v10359 = vmul.f32 %v9911, %v10094
        %v10360 = vmul.f32 %v9912, %v10099
        %v10361 = vmul.f32 %v9913, %v10104
        %v10362 = vmul.f32 %v9914, %v10109
        %v10363 = vmul.f32 %v9915, %v10114
        %v10364 = vmul.f32 %v9916, %v10119
        %v10365 = vmul.f32 %v9917, %v10124
        %v10366 = vmul.f32 %v9918, %v10129
        %v10367 = vmul.f32 %v9919, %v10134
        %v10368 = vmul.f32 %v9920, %v10139
        %v10369 = vmul.f32 %v9921, %v10144
        %v10370 = vmul.f32 %v9922, %v10149
        %v10371 = vmul.f32 %v9923, %v10154
        %v10372 = vmul.f32 %v9924, %v10159
        %v10373 = vmul.f32 %v9925, %v10164
        %v10374 = vmul.f32 %v9926, %v10169
        %v10375 = vmul.f32 %v9927, %v10174
        %v10376 = vmul.f32 %v9928, %v10179
        %v10377 = vmul.f32 %v9929, %v10184
        %v10378 = vmul.f32 %v9930, %v10189
        %v10379 = vmul.f32 %v9931, %v10194
        %v10380 = vmul.f32 %v9932, %v10199
        %v10381 = vmul.f32 %v9933, %v10204
        %v10382 = vmul.f32 %v9934, %v10209
        %v10383 = vmul.f32 %v9935, %v10214
        %v10384 = vmul.f32 %v9936, %v10219
        %v10385 = vmul.f32 %v9937, %v10224
        %v10386 = vmul.f32 %v9938, %v10229
        %v10387 = vmul.f32 %v9939, %v10234
        %v10388 = vmul.f32 %v9940, %v10239
        %v10389 = vmul.f32 %v9941, %v10244
        %v10390 = vmul.f32 %v9942, %v10249
        %v10391 = vmul.f32 %v9943, %v10254
        %v10392 = vmul.f32 %v9944, %v10259
        %v10393 = vmul.f32 %v9945, %v10264
        %v10394 = vmul.f32 %v9946, %v10269
        %v10395 = vmul.f32 %v9947, %v10274
        %v10396 = vmul.f32 %v9948, %v10279
        %v10397 = vmul.f32 %v9949, %v10284
        %v10398 = vmul.f32 %v9950, %v10289
        %v10399 = vmul.f32 %v9951, %v10294
        %v10400 = vmul.f32 %v9952, %v10299
        %v10401 = vmul.f32 %v9953, %v10304
        %v10402 = vmul.f32 %v9954, %v10309
        %v10403 = vmul.f32 %v9955, %v10314
        %v10404 = vmul.f32 %v9956, %v10319
        %v10405 = vmul.f32 %v9957, %v10324
        %v10406 = vmul.f32 %v9958, %v10329
        %v10407 = vmul.f32 %v9959, %v10334
        %v10408 = vmul.f32 %v9960, %v10339
        %v10409 = vmul.f32 %v9961, %v10344
        %v10410 = vstv %s9897
        %v10411 = vmul.f32 %v10410, %v10346
        %v10412 = vmul.f32 %v10410, %v10347
        %v10413 = vmul.f32 %v10410, %v10348
        %v10414 = vmul.f32 %v10410, %v10349
        %v10415 = vmul.f32 %v10410, %v10350
        %v10416 = vmul.f32 %v10410, %v10351
        %v10417 = vmul.f32 %v10410, %v10352
        %v10418 = vmul.f32 %v10410, %v10353
        %v10419 = vmul.f32 %v10410, %v10354
        %v10420 = vmul.f32 %v10410, %v10355
        %v10421 = vmul.f32 %v10410, %v10356
        %v10422 = vmul.f32 %v10410, %v10357
        %v10423 = vmul.f32 %v10410, %v10358
        %v10424 = vmul.f32 %v10410, %v10359
        %v10425 = vmul.f32 %v10410, %v10360
        %v10426 = vmul.f32 %v10410, %v10361
        %v10427 = vmul.f32 %v10410, %v10362
        %v10428 = vmul.f32 %v10410, %v10363
        %v10429 = vmul.f32 %v10410, %v10364
        %v10430 = vmul.f32 %v10410, %v10365
        %v10431 = vmul.f32 %v10410, %v10366
        %v10432 = vmul.f32 %v10410, %v10367
        %v10433 = vmul.f32 %v10410, %v10368
        %v10434 = vmul.f32 %v10410, %v10369
        %v10435 = vmul.f32 %v10410, %v10370
        %v10436 = vmul.f32 %v10410, %v10371
        %v10437 = vmul.f32 %v10410, %v10372
        %v10438 = vmul.f32 %v10410, %v10373
        %v10439 = vmul.f32 %v10410, %v10374
        %v10440 = vmul.f32 %v10410, %v10375
        %v10441 = vmul.f32 %v10410, %v10376
        %v10442 = vmul.f32 %v10410, %v10377
        %v10443 = vmul.f32 %v10410, %v10378
        %v10444 = vmul.f32 %v10410, %v10379
        %v10445 = vmul.f32 %v10410, %v10380
        %v10446 = vmul.f32 %v10410, %v10381
        %v10447 = vmul.f32 %v10410, %v10382
        %v10448 = vmul.f32 %v10410, %v10383
        %v10449 = vmul.f32 %v10410, %v10384
        %v10450 = vmul.f32 %v10410, %v10385
        %v10451 = vmul.f32 %v10410, %v10386
        %v10452 = vmul.f32 %v10410, %v10387
        %v10453 = vmul.f32 %v10410, %v10388
        %v10454 = vmul.f32 %v10410, %v10389
        %v10455 = vmul.f32 %v10410, %v10390
        %v10456 = vmul.f32 %v10410, %v10391
        %v10457 = vmul.f32 %v10410, %v10392
        %v10458 = vmul.f32 %v10410, %v10393
        %v10459 = vmul.f32 %v10410, %v10394
        %v10460 = vmul.f32 %v10410, %v10395
        %v10461 = vmul.f32 %v10410, %v10396
        %v10462 = vmul.f32 %v10410, %v10397
        %v10463 = vmul.f32 %v10410, %v10398
        %v10464 = vmul.f32 %v10410, %v10399
        %v10465 = vmul.f32 %v10410, %v10400
        %v10466 = vmul.f32 %v10410, %v10401
        %v10467 = vmul.f32 %v10410, %v10402
        %v10468 = vmul.f32 %v10410, %v10403
        %v10469 = vmul.f32 %v10410, %v10404
        %v10470 = vmul.f32 %v10410, %v10405
        %v10471 = vmul.f32 %v10410, %v10406
        %v10472 = vmul.f32 %v10410, %v10407
        %v10473 = vmul.f32 %v10410, %v10408
        %v10474 = vmul.f32 %v10410, %v10409
        %v10475 = vld [vmem:[%s500] sm:$0xff]
        %v10476 = vld [vmem:[%s500 + $0x8] sm:$0xff]
        %v10477 = vld [vmem:[%s500 + $0x10] sm:$0xff]
        %v10478 = vld [vmem:[%s500 + $0x18] sm:$0xff]
        %v10479 = vld [vmem:[%s500 + $0x20] sm:$0xff]
        %v10480 = vld [vmem:[%s500 + $0x28] sm:$0xff]
        %v10481 = vld [vmem:[%s500 + $0x30] sm:$0xff]
        %v10482 = vld [vmem:[%s500 + $0x38] sm:$0xff]
        %v10483 = vld [vmem:[%s500 + $0x40] sm:$0xff]
        %v10484 = vld [vmem:[%s500 + $0x48] sm:$0xff]
        %v10485 = vld [vmem:[%s500 + $0x50] sm:$0xff]
        %v10486 = vld [vmem:[%s500 + $0x58] sm:$0xff]
        %v10487 = vld [vmem:[%s500 + $0x60] sm:$0xff]
        %v10488 = vld [vmem:[%s500 + $0x68] sm:$0xff]
        %v10489 = vld [vmem:[%s500 + $0x70] sm:$0xff]
        %v10490 = vld [vmem:[%s500 + $0x78] sm:$0xff]
        %v10491 = vld [vmem:[%s500 + $0x80] sm:$0xff]
        %v10492 = vld [vmem:[%s500 + $0x88] sm:$0xff]
        %v10493 = vld [vmem:[%s500 + $0x90] sm:$0xff]
        %v10494 = vld [vmem:[%s500 + $0x98] sm:$0xff]
        %v10495 = vld [vmem:[%s500 + $0xa0] sm:$0xff]
        %v10496 = vld [vmem:[%s500 + $0xa8] sm:$0xff]
        %v10497 = vld [vmem:[%s500 + $0xb0] sm:$0xff]
        %v10498 = vld [vmem:[%s500 + $0xb8] sm:$0xff]
        %v10499 = vld [vmem:[%s500 + $0xc0] sm:$0xff]
        %v10500 = vld [vmem:[%s500 + $0xc8] sm:$0xff]
        %v10501 = vld [vmem:[%s500 + $0xd0] sm:$0xff]
        %v10502 = vld [vmem:[%s500 + $0xd8] sm:$0xff]
        %v10503 = vld [vmem:[%s500 + $0xe0] sm:$0xff]
        %v10504 = vld [vmem:[%s500 + $0xe8] sm:$0xff]
        %v10505 = vld [vmem:[%s500 + $0xf0] sm:$0xff]
        %v10506 = vld [vmem:[%s500 + $0xf8] sm:$0xff]
        %v10507 = vld [vmem:[%s500 + $0x100] sm:$0xff]
        %v10508 = vld [vmem:[%s500 + $0x108] sm:$0xff]
        %v10509 = vld [vmem:[%s500 + $0x110] sm:$0xff]
        %v10510 = vld [vmem:[%s500 + $0x118] sm:$0xff]
        %v10511 = vld [vmem:[%s500 + $0x120] sm:$0xff]
        %v10512 = vld [vmem:[%s500 + $0x128] sm:$0xff]
        %v10513 = vld [vmem:[%s500 + $0x130] sm:$0xff]
        %v10514 = vld [vmem:[%s500 + $0x138] sm:$0xff]
        %v10515 = vld [vmem:[%s500 + $0x140] sm:$0xff]
        %v10516 = vld [vmem:[%s500 + $0x148] sm:$0xff]
        %v10517 = vld [vmem:[%s500 + $0x150] sm:$0xff]
        %v10518 = vld [vmem:[%s500 + $0x158] sm:$0xff]
        %v10519 = vld [vmem:[%s500 + $0x160] sm:$0xff]
        %v10520 = vld [vmem:[%s500 + $0x168] sm:$0xff]
        %v10521 = vld [vmem:[%s500 + $0x170] sm:$0xff]
        %v10522 = vld [vmem:[%s500 + $0x178] sm:$0xff]
        %v10523 = vld [vmem:[%s500 + $0x180] sm:$0xff]
        %v10524 = vld [vmem:[%s500 + $0x188] sm:$0xff]
        %v10525 = vld [vmem:[%s500 + $0x190] sm:$0xff]
        %v10526 = vld [vmem:[%s500 + $0x198] sm:$0xff]
        %v10527 = vld [vmem:[%s500 + $0x1a0] sm:$0xff]
        %v10528 = vld [vmem:[%s500 + $0x1a8] sm:$0xff]
        %v10529 = vld [vmem:[%s500 + $0x1b0] sm:$0xff]
        %v10530 = vld [vmem:[%s500 + $0x1b8] sm:$0xff]
        %v10531 = vld [vmem:[%s500 + $0x1c0] sm:$0xff]
        %v10532 = vld [vmem:[%s500 + $0x1c8] sm:$0xff]
        %v10533 = vld [vmem:[%s500 + $0x1d0] sm:$0xff]
        %v10534 = vld [vmem:[%s500 + $0x1d8] sm:$0xff]
        %v10535 = vld [vmem:[%s500 + $0x1e0] sm:$0xff]
        %v10536 = vld [vmem:[%s500 + $0x1e8] sm:$0xff]
        %v10537 = vld [vmem:[%s500 + $0x1f0] sm:$0xff]
        %v10538 = vld [vmem:[%s500 + $0x1f8] sm:$0xff]
        %v10539 = vadd.f32 %v10411, %v10475
        %v10540 = vadd.f32 %v10412, %v10476
        %v10541 = vadd.f32 %v10413, %v10477
        %v10542 = vadd.f32 %v10414, %v10478
        %v10543 = vadd.f32 %v10415, %v10479
        %v10544 = vadd.f32 %v10416, %v10480
        %v10545 = vadd.f32 %v10417, %v10481
        %v10546 = vadd.f32 %v10418, %v10482
        %v10547 = vadd.f32 %v10419, %v10483
        %v10548 = vadd.f32 %v10420, %v10484
        %v10549 = vadd.f32 %v10421, %v10485
        %v10550 = vadd.f32 %v10422, %v10486
        %v10551 = vadd.f32 %v10423, %v10487
        %v10552 = vadd.f32 %v10424, %v10488
        %v10553 = vadd.f32 %v10425, %v10489
        %v10554 = vadd.f32 %v10426, %v10490
        %v10555 = vadd.f32 %v10427, %v10491
        %v10556 = vadd.f32 %v10428, %v10492
        %v10557 = vadd.f32 %v10429, %v10493
        %v10558 = vadd.f32 %v10430, %v10494
        %v10559 = vadd.f32 %v10431, %v10495
        %v10560 = vadd.f32 %v10432, %v10496
        %v10561 = vadd.f32 %v10433, %v10497
        %v10562 = vadd.f32 %v10434, %v10498
        %v10563 = vadd.f32 %v10435, %v10499
        %v10564 = vadd.f32 %v10436, %v10500
        %v10565 = vadd.f32 %v10437, %v10501
        %v10566 = vadd.f32 %v10438, %v10502
        %v10567 = vadd.f32 %v10439, %v10503
        %v10568 = vadd.f32 %v10440, %v10504
        %v10569 = vadd.f32 %v10441, %v10505
        %v10570 = vadd.f32 %v10442, %v10506
        %v10571 = vadd.f32 %v10443, %v10507
        %v10572 = vadd.f32 %v10444, %v10508
        %v10573 = vadd.f32 %v10445, %v10509
        %v10574 = vadd.f32 %v10446, %v10510
        %v10575 = vadd.f32 %v10447, %v10511
        %v10576 = vadd.f32 %v10448, %v10512
        %v10577 = vadd.f32 %v10449, %v10513
        %v10578 = vadd.f32 %v10450, %v10514
        %v10579 = vadd.f32 %v10451, %v10515
        %v10580 = vadd.f32 %v10452, %v10516
        %v10581 = vadd.f32 %v10453, %v10517
        %v10582 = vadd.f32 %v10454, %v10518
        %v10583 = vadd.f32 %v10455, %v10519
        %v10584 = vadd.f32 %v10456, %v10520
        %v10585 = vadd.f32 %v10457, %v10521
        %v10586 = vadd.f32 %v10458, %v10522
        %v10587 = vadd.f32 %v10459, %v10523
        %v10588 = vadd.f32 %v10460, %v10524
        %v10589 = vadd.f32 %v10461, %v10525
        %v10590 = vadd.f32 %v10462, %v10526
        %v10591 = vadd.f32 %v10463, %v10527
        %v10592 = vadd.f32 %v10464, %v10528
        %v10593 = vadd.f32 %v10465, %v10529
        %v10594 = vadd.f32 %v10466, %v10530
        %v10595 = vadd.f32 %v10467, %v10531
        %v10596 = vadd.f32 %v10468, %v10532
        %v10597 = vadd.f32 %v10469, %v10533
        %v10598 = vadd.f32 %v10470, %v10534
        %v10599 = vadd.f32 %v10471, %v10535
        %v10600 = vadd.f32 %v10472, %v10536
        %v10601 = vadd.f32 %v10473, %v10537
        %v10602 = vadd.f32 %v10474, %v10538
        %10603 = vst.msk [vmem:[%s540] sm:$0xff] %vm4596, %v10539
        %10604 = vst.msk [vmem:[%s540 + $0x8] sm:$0xff] %vm4596, %v10540
        %10605 = vst.msk [vmem:[%s540 + $0x10] sm:$0xff] %vm4596, %v10541
        %10606 = vst.msk [vmem:[%s540 + $0x18] sm:$0xff] %vm4596, %v10542
        %10607 = vst.msk [vmem:[%s540 + $0x20] sm:$0xff] %vm4596, %v10543
        %10608 = vst.msk [vmem:[%s540 + $0x28] sm:$0xff] %vm4596, %v10544
        %10609 = vst.msk [vmem:[%s540 + $0x30] sm:$0xff] %vm4596, %v10545
        %10610 = vst.msk [vmem:[%s540 + $0x38] sm:$0xff] %vm4596, %v10546
        %10611 = vst.msk [vmem:[%s540 + $0x40] sm:$0xff] %vm4596, %v10547
        %10612 = vst.msk [vmem:[%s540 + $0x48] sm:$0xff] %vm4596, %v10548
        %10613 = vst.msk [vmem:[%s540 + $0x50] sm:$0xff] %vm4596, %v10549
        %10614 = vst.msk [vmem:[%s540 + $0x58] sm:$0xff] %vm4596, %v10550
        %10615 = vst.msk [vmem:[%s540 + $0x60] sm:$0xff] %vm4596, %v10551
        %10616 = vst.msk [vmem:[%s540 + $0x68] sm:$0xff] %vm4596, %v10552
        %10617 = vst.msk [vmem:[%s540 + $0x70] sm:$0xff] %vm4596, %v10553
        %10618 = vst.msk [vmem:[%s540 + $0x78] sm:$0xff] %vm4596, %v10554
        %10619 = vst.msk [vmem:[%s540 + $0x80] sm:$0xff] %vm4596, %v10555
        %10620 = vst.msk [vmem:[%s540 + $0x88] sm:$0xff] %vm4596, %v10556
        %10621 = vst.msk [vmem:[%s540 + $0x90] sm:$0xff] %vm4596, %v10557
        %10622 = vst.msk [vmem:[%s540 + $0x98] sm:$0xff] %vm4596, %v10558
        %10623 = vst.msk [vmem:[%s540 + $0xa0] sm:$0xff] %vm4596, %v10559
        %10624 = vst.msk [vmem:[%s540 + $0xa8] sm:$0xff] %vm4596, %v10560
        %10625 = vst.msk [vmem:[%s540 + $0xb0] sm:$0xff] %vm4596, %v10561
        %10626 = vst.msk [vmem:[%s540 + $0xb8] sm:$0xff] %vm4596, %v10562
        %10627 = vst.msk [vmem:[%s540 + $0xc0] sm:$0xff] %vm4596, %v10563
        %10628 = vst.msk [vmem:[%s540 + $0xc8] sm:$0xff] %vm4596, %v10564
        %10629 = vst.msk [vmem:[%s540 + $0xd0] sm:$0xff] %vm4596, %v10565
        %10630 = vst.msk [vmem:[%s540 + $0xd8] sm:$0xff] %vm4596, %v10566
        %10631 = vst.msk [vmem:[%s540 + $0xe0] sm:$0xff] %vm4596, %v10567
        %10632 = vst.msk [vmem:[%s540 + $0xe8] sm:$0xff] %vm4596, %v10568
        %10633 = vst.msk [vmem:[%s540 + $0xf0] sm:$0xff] %vm4596, %v10569
        %10634 = vst.msk [vmem:[%s540 + $0xf8] sm:$0xff] %vm4596, %v10570
        %10635 = vst.msk [vmem:[%s540 + $0x100] sm:$0xff] %vm4596, %v10571
        %10636 = vst.msk [vmem:[%s540 + $0x108] sm:$0xff] %vm4596, %v10572
        %10637 = vst.msk [vmem:[%s540 + $0x110] sm:$0xff] %vm4596, %v10573
        %10638 = vst.msk [vmem:[%s540 + $0x118] sm:$0xff] %vm4596, %v10574
        %10639 = vst.msk [vmem:[%s540 + $0x120] sm:$0xff] %vm4596, %v10575
        %10640 = vst.msk [vmem:[%s540 + $0x128] sm:$0xff] %vm4596, %v10576
        %10641 = vst.msk [vmem:[%s540 + $0x130] sm:$0xff] %vm4596, %v10577
        %10642 = vst.msk [vmem:[%s540 + $0x138] sm:$0xff] %vm4596, %v10578
        %10643 = vst.msk [vmem:[%s540 + $0x140] sm:$0xff] %vm4596, %v10579
        %10644 = vst.msk [vmem:[%s540 + $0x148] sm:$0xff] %vm4596, %v10580
        %10645 = vst.msk [vmem:[%s540 + $0x150] sm:$0xff] %vm4596, %v10581
        %10646 = vst.msk [vmem:[%s540 + $0x158] sm:$0xff] %vm4596, %v10582
        %10647 = vst.msk [vmem:[%s540 + $0x160] sm:$0xff] %vm4596, %v10583
        %10648 = vst.msk [vmem:[%s540 + $0x168] sm:$0xff] %vm4596, %v10584
        %10649 = vst.msk [vmem:[%s540 + $0x170] sm:$0xff] %vm4596, %v10585
        %10650 = vst.msk [vmem:[%s540 + $0x178] sm:$0xff] %vm4596, %v10586
        %10651 = vst.msk [vmem:[%s540 + $0x180] sm:$0xff] %vm4596, %v10587
        %10652 = vst.msk [vmem:[%s540 + $0x188] sm:$0xff] %vm4596, %v10588
        %10653 = vst.msk [vmem:[%s540 + $0x190] sm:$0xff] %vm4596, %v10589
        %10654 = vst.msk [vmem:[%s540 + $0x198] sm:$0xff] %vm4596, %v10590
        %10655 = vst.msk [vmem:[%s540 + $0x1a0] sm:$0xff] %vm4596, %v10591
        %10656 = vst.msk [vmem:[%s540 + $0x1a8] sm:$0xff] %vm4596, %v10592
        %10657 = vst.msk [vmem:[%s540 + $0x1b0] sm:$0xff] %vm4596, %v10593
        %10658 = vst.msk [vmem:[%s540 + $0x1b8] sm:$0xff] %vm4596, %v10594
        %10659 = vst.msk [vmem:[%s540 + $0x1c0] sm:$0xff] %vm4596, %v10595
        %10660 = vst.msk [vmem:[%s540 + $0x1c8] sm:$0xff] %vm4596, %v10596
        %10661 = vst.msk [vmem:[%s540 + $0x1d0] sm:$0xff] %vm4596, %v10597
        %10662 = vst.msk [vmem:[%s540 + $0x1d8] sm:$0xff] %vm4596, %v10598
        %10663 = vst.msk [vmem:[%s540 + $0x1e0] sm:$0xff] %vm4596, %v10599
        %10664 = vst.msk [vmem:[%s540 + $0x1e8] sm:$0xff] %vm4596, %v10600
        %10665 = vst.msk [vmem:[%s540 + $0x1f0] sm:$0xff] %vm4596, %v10601
        %10666 = vst.msk [vmem:[%s540 + $0x1f8] sm:$0xff] %vm4596, %v10602
      $region72: #{ssfm_forward.1} parent=63 // pred_fallthru
        _
      %s10667 = smul.u32 64, %s29
      %p10668 = scmp.lt.s32.totalorder %s28, 1
      %s10669 = scalar_select %p10668, %s28, 1
      %p10670 = scmp.lt.s32.totalorder %s10667, 63
      %s10671 = scalar_select %p10670, %s10667, 63
      %s10672 = smul.addr %s10669, 64
      %s10673 = sadd.s32 %s10671, %s10672
      %s10674 = smul.addr %s10673, 8
      %s10675 = scalar_lea.vmem %s11, %s10674
      // Predicated region
      $region73: #{ssfm_forward.1} parent=63 // pred_check
        %p10676 = pneg %p321
      $region74: #{ssfm_forward.1} parent=63 // pred_check_branch
        %10678 = sbr.rel (%p10676) target = $region76
      $region75: #{ssfm_forward.1} parent=63 // pred_region
        %s10679 = smul.u32 64, %s29
      $region76: #{ssfm_forward.1} parent=63 // pred_fallthru
        _
    $region64: #{ssfm_forward.1} parent=5 // pred_fallthru
      _
    %p10680 = scmp.le.s32.totalorder 2, %s18
    // Predicated region
    $region77: #{ssfm_forward.1} parent=5 // pred_check
      %p10681 = pneg %p10680
    $region78: #{ssfm_forward.1} parent=5 // pred_check_branch
      %10683 = sbr.rel (%p10681) target = $region80
    $region79: #{ssfm_forward.1} parent=5 // pred_region
      %s10684 = ssub.s32 %s18, 2
      // Predicated region
      $region81: #{ssfm_forward.1} parent=79 // pred_check
        %p10685 = pneg %p327
      $region82: #{ssfm_forward.1} parent=79 // pred_check_branch
        %10687 = sbr.rel (%p10685) target = $region84
      $region83: #{ssfm_forward.1} parent=79 // pred_region
        %s10688 = smul.u32 64, %s32
        %p10689 = scmp.lt.s32.totalorder %s31, 1
        %s10690 = scalar_select %p10689, %s31, 1
        %p10691 = scmp.lt.s32.totalorder %s10688, 63
        %s10692 = scalar_select %p10691, %s10688, 63
        %s10693 = smul.addr %s10690, 64
        %s10694 = sadd.s32 %s10692, %s10693
        %s10695 = smul.addr %s10694, 8
        %s10696 = scalar_lea.vmem %s11, %s10695
      $region84: #{ssfm_forward.1} parent=79 // pred_fallthru
        _
    $region80: #{ssfm_forward.1} parent=5 // pred_fallthru
      _
  $region6: #{ssfm_forward.1} parent=0 // loop_footer
    %s22 = sadd.s32 1, %s18
  $region7: #{ssfm_forward.1} parent=0 // loop_footer_branch
    %17 = sbr.rel target = $region3
  $region8: #{ssfm_forward.1} parent=0 // loop_exit
    _

</llo_original>
